<compile_context>
chip_gen: v5e
topology: v5e:2x2
jax: 0.10.0
libtpu: 0.0.40
codegen_flags: <defaults>
</compile_context>

<pallas_src>
import numpy as np
import jax
import jax.numpy as jnp
from jax.experimental import pallas as pl
from jax.experimental.pallas import tpu as pltpu


# ----------------------------------------------------------------------------
# Static (numpy) gather indices for the conv1 patch tensor.
# ----------------------------------------------------------------------------
def _conv1_patch_indices():
    t = np.arange(4)
    di, dj = t // 2, t % 2
    ab = np.arange(16)
    a, b = ab // 4, ab % 4
    s = np.minimum(np.arange(40), 35)        # pad rows replicate s=35, sliced off later
    hh, ww = s // 6, s % 6
    f = np.arange(25)
    ki, kj = f // 5, f % 5
    row = (di[:, None, None, None] + (2 * a)[None, :, None, None]
           + (4 * hh)[None, None, :, None] + ki[None, None, None, :])
    col = (dj[:, None, None, None] + (2 * b)[None, :, None, None]
           + (4 * ww)[None, None, :, None] + kj[None, None, None, :])
    return (row.reshape(2560, 25).astype(np.int32),
            col.reshape(2560, 25).astype(np.int32))


_P1_ROWS, _P1_COLS = _conv1_patch_indices()


# ----------------------------------------------------------------------------
# Pallas kernels
# ----------------------------------------------------------------------------
def _conv_stack_kernel(p1_ref, w1_ref, b1_ref, w2_ref, b2_ref, o_ref):
    """Fused conv1+ReLU+AvgPool2 + conv2+ReLU+MaxPool2 for one batch element.

    p1_ref: (1, 2560, 25) bf16  pre-gathered conv1 patches (layout above)
    w1_ref: (25, 8)    bf16     conv1 weight, rows ordered (ki, kj)
    b1_ref: (1, 8)     f32
    w2_ref: (9, 8, 64) bf16     conv2 weight per tap (i, j): (in_ch, out_ch)
    b2_ref: (1, 64)    f32
    o_ref : (1, 36, 64) f32     pooled2, rows = 6*h + w, channels minor
    """
    # conv1 + ReLU for every needed output position: one MXU matmul, f32 acc.
    c1 = jnp.dot(p1_ref[0], w1_ref[...], preferred_element_type=jnp.float32)
    c1 = jnp.maximum(c1 + b1_ref[...], 0.0)                       # (2560, 8) f32

    # AvgPool 2x2 stride 2: mean over the 4 taps (major 640-row blocks).
    pooled1 = 0.25 * (c1[0:640] + c1[640:1280] + c1[1280:1920] + c1[1920:2560])
    pooled1 = pooled1.astype(jnp.bfloat16)                        # (640, 8)

    # 16 aligned (40, 8) views, one per (a, b) spatial offset of pooled1.
    blocks = [pooled1[ab * 40:(ab + 1) * 40] for ab in range(16)]

    # conv2 decomposed into its 9 taps; MaxPool 2x2 folded in as 4 phases.
    b2 = b2_ref[...]
    out = None
    for ei in range(2):
        for ej in range(2):
            acc = jnp.zeros((40, 64), jnp.float32)
            for i in range(3):
                for j in range(3):
                    acc = acc + jnp.dot(blocks[(ei + i) * 4 + (ej + j)],
                                        w2_ref[3 * i + j],
                                        preferred_element_type=jnp.float32)
            phase = jnp.maximum(acc + b2, 0.0)                    # ReLU then max
            out = phase if out is None else jnp.maximum(out, phase)

    o_ref[0] = out[0:36, :]                                       # drop pad rows


def _mlp_kernel(x_ref, w1_ref, b1_ref, w2_ref, b2_ref, o_ref):
    """out = relu(x @ w1 + b1) @ w2 + b2 ; bf16 MXU operands, f32 epilogues."""
    x = x_ref[...].astype(jnp.bfloat16)
    h = jnp.dot(x, w1_ref[...], preferred_element_type=jnp.float32) + b1_ref[...]
    h = jnp.maximum(h, 0.0).astype(jnp.bfloat16)
    y = jnp.dot(h, w2_ref[...], preferred_element_type=jnp.float32) + b2_ref[...]
    o_ref[...] = y


# ----------------------------------------------------------------------------
# Pallas wrappers
# ----------------------------------------------------------------------------
def conv_stack(p1, w1, b1, w2, b2):
    N = p1.shape[0]
    return pl.pallas_call(
        _conv_stack_kernel,
        out_shape=jax.ShapeDtypeStruct((N, 36, 64), jnp.float32),
        grid=(N,),
        in_specs=[
            pl.BlockSpec((1, 2560, 25), lambda n: (n, 0, 0)),
            pl.BlockSpec((25, 8), lambda n: (0, 0)),
            pl.BlockSpec((1, 8), lambda n: (0, 0)),
            pl.BlockSpec((9, 8, 64), lambda n: (0, 0, 0)),
            pl.BlockSpec((1, 64), lambda n: (0, 0)),
        ],
        out_specs=pl.BlockSpec((1, 36, 64), lambda n: (n, 0, 0)),
        compiler_params=pltpu.CompilerParams(
            dimension_semantics=("parallel",),     # batch axis -> both TCs on v7x
        ),
    )(p1, w1, b1, w2, b2)


def mlp_head(feat, w1, b1, w2, b2):
    M, K = feat.shape
    H = w1.shape[1]
    O = w2.shape[1]
    return pl.pallas_call(
        _mlp_kernel,
        out_shape=jax.ShapeDtypeStruct((M, O), jnp.float32),
        grid=(1,),
        in_specs=[
            pl.BlockSpec((M, K), lambda i: (0, 0)),
            pl.BlockSpec((K, H), lambda i: (0, 0)),     # single K block (no tiling)
            pl.BlockSpec((1, H), lambda i: (0, 0)),
            pl.BlockSpec((H, O), lambda i: (0, 0)),
            pl.BlockSpec((1, O), lambda i: (0, 0)),
        ],
        out_specs=pl.BlockSpec((M, O), lambda i: (0, 0)),
        compiler_params=pltpu.CompilerParams(
            dimension_semantics=("arbitrary",),
            vmem_limit_bytes=32 * 1024 * 1024,          # headroom on v7x (64 MiB phys)
        ),
    )(feat, w1, b1, w2, b2)


# ----------------------------------------------------------------------------
# Model parameters (deterministic, PyTorch tensor conventions)
# ----------------------------------------------------------------------------
def init_params(key):
    ks = jax.random.split(key, 8)

    def t(k, shape, scale):
        return scale * jax.random.normal(k, shape, jnp.float32)

    w_c1 = t(ks[0], (8, 1, 5, 5), 0.2)         # Conv2d(1, 8, 5)
    b_c1 = t(ks[1], (8,), 0.1)
    w_c2 = t(ks[2], (64, 8, 3, 3), 0.1)        # Conv2d(8, 64, 3)
    b_c2 = t(ks[3], (64,), 0.1)
    w_f1 = t(ks[4], (1000, 6 * 6 * 64), 0.02)  # Linear(2304, 1000)
    b_f1 = t(ks[5], (1000,), 0.02)
    w_f2 = t(ks[6], (10, 1000), 0.03)          # Linear(1000, 10)
    b_f2 = t(ks[7], (10,), 0.03)
    return (w_c1, b_c1, w_c2, b_c2, w_f1, b_f1, w_f2, b_f2)


# ----------------------------------------------------------------------------
# Forward pass (Pallas) and pure-JAX reference
# ----------------------------------------------------------------------------
@jax.jit
def model_forward(x_nchw, params):
    w_c1, b_c1, w_c2, b_c2, w_f1, b_f1, w_f2, b_f2 = params
    N = x_nchw.shape[0]

    # Weight prep (XLA, tiny): MXU operands in bf16, biases stay f32.
    w1_mat = jnp.transpose(w_c1, (2, 3, 1, 0)).reshape(25, 8).astype(jnp.bfloat16)
    w2_taps = jnp.transpose(w_c2, (2, 3, 1, 0)).reshape(9, 8, 64).astype(jnp.bfloat16)
    # fc1: PyTorch flattens (C,H,W); our features are (H,W,C) -> permute rows.
    wf1_mat = jnp.transpose(w_f1.reshape(1000, 64, 6, 6),
                            (2, 3, 1, 0)).reshape(2304, 1000).astype(jnp.bfloat16)
    wf2_mat = w_f2.T.astype(jnp.bfloat16)                 # (1000, 10)

    # conv1 patch gather (one XLA gather); all compute happens in-kernel.
    x2d = x_nchw[:, 0]                                    # (N, 32, 32)
    p1 = x2d[:, _P1_ROWS, _P1_COLS].astype(jnp.bfloat16)  # (N, 2560, 25)

    # Fused conv1+avgpool+conv2+maxpool.
    pooled2 = conv_stack(p1, w1_mat, b_c1.reshape(1, 8),
                         w2_taps, b_c2.reshape(1, 64))    # (N, 36, 64)

    # Flatten in (h, w, c) order; wf1_mat rows are permuted to match.
    feat = pooled2.reshape(N, 2304)

    # Fused fc1+ReLU+fc2.
    out = mlp_head(feat, wf1_mat, b_f1.reshape(1, 1000),
                   wf2_mat, b_f2.reshape(1, 10))          # (N, 10)
    return out


def reference_forward(x, params):
    """Pure-JAX (XLA) reference identical to the PyTorch module semantics."""
    w_c1, b_c1, w_c2, b_c2, w_f1, b_f1, w_f2, b_f2 = params
    prec = jax.lax.Precision.HIGHEST
    dn = ("NCHW", "OIHW", "NCHW")

    y = jax.lax.conv_general_dilated(x, w_c1, (1, 1), "VALID",
                                     dimension_numbers=dn, precision=prec)
    y = jax.nn.relu(y + b_c1[None, :, None, None])
    y = jax.lax.reduce_window(y, 0.0, jax.lax.add,
                              (1, 1, 2, 2), (1, 1, 2, 2), "VALID") / 4.0
    y = jax.lax.conv_general_dilated(y, w_c2, (1, 1), "VALID",
                                     dimension_numbers=dn, precision=prec)
    y = jax.nn.relu(y + b_c2[None, :, None, None])
    y = jax.lax.reduce_window(y, -jnp.inf, jax.lax.max,
                              (1, 1, 2, 2), (1, 1, 2, 2), "VALID")
    y = y.reshape(y.shape[0], -1)
    y = jax.nn.relu(jnp.matmul(y, w_f1.T, precision=prec) + b_f1)
    y = jnp.matmul(y, w_f2.T, precision=prec) + b_f2
    return y


if __name__ == "__main__":
    key = jax.random.PRNGKey(0)
    kx, kp = jax.random.split(key)
    x = jax.random.normal(kx, (2, 1, 32, 32), jnp.float32)
    params = init_params(kp)

    out = model_forward(x, params)
    out = jax.block_until_ready(out)
    assert out.shape == (2, 10), out.shape

    ref = jax.block_until_ready(reference_forward(x, params))
    np.testing.assert_allclose(np.asarray(out), np.asarray(ref), rtol=2e-2, atol=2e-2)

    print("KERNEL_OK")
</pallas_src>

<mosaic_0001>
module attributes {stable_mosaic.version = 11 : i64} {
  func.func @_conv_stack_kernel(%arg0: i32, %arg1: memref<1x2560x25xbf16, #tpu.memory_space<vmem>>, %arg2: memref<25x8xbf16, #tpu.memory_space<vmem>>, %arg3: memref<1x8xf32, #tpu.memory_space<vmem>>, %arg4: memref<9x8x64xbf16, #tpu.memory_space<vmem>>, %arg5: memref<1x64xf32, #tpu.memory_space<vmem>>, %arg6: memref<1x36x64xf32, #tpu.memory_space<vmem>>) attributes {dimension_semantics = [#tpu.dimension_semantics<parallel>], iteration_bounds = array<i64: 2>, scalar_prefetch = 0 : i64, scratch_operands = 0 : i64, tpu.core_type = #tpu.core_type<tc>, window_params = [{transform_indices = @transform_0, window_bounds = array<i64: 1, 2560, 25>}, {pipeline_mode = #tpu.pipeline_mode<synchronous>, transform_indices = @transform_1, window_bounds = array<i64: 25, 8>}, {pipeline_mode = #tpu.pipeline_mode<synchronous>, transform_indices = @transform_2, window_bounds = array<i64: 1, 8>}, {pipeline_mode = #tpu.pipeline_mode<synchronous>, transform_indices = @transform_3, window_bounds = array<i64: 9, 8, 64>}, {pipeline_mode = #tpu.pipeline_mode<synchronous>, transform_indices = @transform_4, window_bounds = array<i64: 1, 64>}, {transform_indices = @transform_5, window_bounds = array<i64: 1, 36, 64>}]} {
    %c0 = arith.constant 0 : index
    %c0_0 = arith.constant 0 : index
    %c0_1 = arith.constant 0 : index
    %0 = vector.load %arg1[%c0, %c0_0, %c0_1] : memref<1x2560x25xbf16, #tpu.memory_space<vmem>>, vector<1x2560x25xbf16>
    %1 = vector.shape_cast %0 : vector<1x2560x25xbf16> to vector<2560x25xbf16>
    %c0_2 = arith.constant 0 : index
    %c0_3 = arith.constant 0 : index
    %2 = vector.load %arg2[%c0_2, %c0_3] : memref<25x8xbf16, #tpu.memory_space<vmem>>, vector<25x8xbf16>
    %cst = arith.constant dense<0.000000e+00> : vector<2560x8xf32>
    %3 = tpu.matmul %1, %2, %cst {dimension_numbers = #tpu.dot_dimension_numbers<[1], [0], [0], [1], [0, 0, 1, 1], [], []>} : vector<2560x25xbf16>, vector<25x8xbf16>, vector<2560x8xf32> -> vector<2560x8xf32>
    %c0_4 = arith.constant 0 : index
    %c0_5 = arith.constant 0 : index
    %4 = vector.load %arg3[%c0_4, %c0_5] : memref<1x8xf32, #tpu.memory_space<vmem>>, vector<1x8xf32>
    %5 = vector.broadcast %4 : vector<1x8xf32> to vector<2560x8xf32>
    %6 = arith.addf %3, %5 : vector<2560x8xf32>
    %cst_6 = arith.constant 0.000000e+00 : f32
    %7 = vector.broadcast %cst_6 : f32 to vector<2560x8xf32>
    %8 = arith.maximumf %6, %7 : vector<2560x8xf32>
    %9 = vector.extract_strided_slice %8 {offsets = [0, 0], sizes = [640, 8], strides = [1, 1]} : vector<2560x8xf32> to vector<640x8xf32>
    %10 = vector.extract_strided_slice %8 {offsets = [640, 0], sizes = [640, 8], strides = [1, 1]} : vector<2560x8xf32> to vector<640x8xf32>
    %11 = arith.addf %9, %10 : vector<640x8xf32>
    %12 = vector.extract_strided_slice %8 {offsets = [1280, 0], sizes = [640, 8], strides = [1, 1]} : vector<2560x8xf32> to vector<640x8xf32>
    %13 = arith.addf %11, %12 : vector<640x8xf32>
    %14 = vector.extract_strided_slice %8 {offsets = [1920, 0], sizes = [640, 8], strides = [1, 1]} : vector<2560x8xf32> to vector<640x8xf32>
    %15 = arith.addf %13, %14 : vector<640x8xf32>
    %cst_7 = arith.constant 2.500000e-01 : f32
    %16 = vector.broadcast %cst_7 : f32 to vector<640x8xf32>
    %17 = arith.mulf %16, %15 : vector<640x8xf32>
    %18 = arith.truncf %17 : vector<640x8xf32> to vector<640x8xbf16>
    %19 = vector.extract_strided_slice %18 {offsets = [0, 0], sizes = [40, 8], strides = [1, 1]} : vector<640x8xbf16> to vector<40x8xbf16>
    %20 = vector.extract_strided_slice %18 {offsets = [40, 0], sizes = [40, 8], strides = [1, 1]} : vector<640x8xbf16> to vector<40x8xbf16>
    %21 = vector.extract_strided_slice %18 {offsets = [80, 0], sizes = [40, 8], strides = [1, 1]} : vector<640x8xbf16> to vector<40x8xbf16>
    %22 = vector.extract_strided_slice %18 {offsets = [120, 0], sizes = [40, 8], strides = [1, 1]} : vector<640x8xbf16> to vector<40x8xbf16>
    %23 = vector.extract_strided_slice %18 {offsets = [160, 0], sizes = [40, 8], strides = [1, 1]} : vector<640x8xbf16> to vector<40x8xbf16>
    %24 = vector.extract_strided_slice %18 {offsets = [200, 0], sizes = [40, 8], strides = [1, 1]} : vector<640x8xbf16> to vector<40x8xbf16>
    %25 = vector.extract_strided_slice %18 {offsets = [240, 0], sizes = [40, 8], strides = [1, 1]} : vector<640x8xbf16> to vector<40x8xbf16>
    %26 = vector.extract_strided_slice %18 {offsets = [280, 0], sizes = [40, 8], strides = [1, 1]} : vector<640x8xbf16> to vector<40x8xbf16>
    %27 = vector.extract_strided_slice %18 {offsets = [320, 0], sizes = [40, 8], strides = [1, 1]} : vector<640x8xbf16> to vector<40x8xbf16>
    %28 = vector.extract_strided_slice %18 {offsets = [360, 0], sizes = [40, 8], strides = [1, 1]} : vector<640x8xbf16> to vector<40x8xbf16>
    %29 = vector.extract_strided_slice %18 {offsets = [400, 0], sizes = [40, 8], strides = [1, 1]} : vector<640x8xbf16> to vector<40x8xbf16>
    %30 = vector.extract_strided_slice %18 {offsets = [440, 0], sizes = [40, 8], strides = [1, 1]} : vector<640x8xbf16> to vector<40x8xbf16>
    %31 = vector.extract_strided_slice %18 {offsets = [480, 0], sizes = [40, 8], strides = [1, 1]} : vector<640x8xbf16> to vector<40x8xbf16>
    %32 = vector.extract_strided_slice %18 {offsets = [520, 0], sizes = [40, 8], strides = [1, 1]} : vector<640x8xbf16> to vector<40x8xbf16>
    %33 = vector.extract_strided_slice %18 {offsets = [560, 0], sizes = [40, 8], strides = [1, 1]} : vector<640x8xbf16> to vector<40x8xbf16>
    %34 = vector.extract_strided_slice %18 {offsets = [600, 0], sizes = [40, 8], strides = [1, 1]} : vector<640x8xbf16> to vector<40x8xbf16>
    %c0_8 = arith.constant 0 : index
    %c0_9 = arith.constant 0 : index
    %35 = vector.load %arg5[%c0_8, %c0_9] : memref<1x64xf32, #tpu.memory_space<vmem>>, vector<1x64xf32>
    %cst_10 = arith.constant 0.000000e+00 : f32
    %36 = vector.broadcast %cst_10 : f32 to vector<40x64xf32>
    %c0_11 = arith.constant 0 : index
    %c0_12 = arith.constant 0 : index
    %c0_13 = arith.constant 0 : index
    %37 = vector.load %arg4[%c0_11, %c0_12, %c0_13] : memref<9x8x64xbf16, #tpu.memory_space<vmem>>, vector<1x8x64xbf16>
    %38 = vector.shape_cast %37 : vector<1x8x64xbf16> to vector<8x64xbf16>
    %cst_14 = arith.constant dense<0.000000e+00> : vector<40x64xf32>
    %39 = tpu.matmul %19, %38, %cst_14 {dimension_numbers = #tpu.dot_dimension_numbers<[1], [0], [0], [1], [0, 0, 1, 1], [], []>} : vector<40x8xbf16>, vector<8x64xbf16>, vector<40x64xf32> -> vector<40x64xf32>
    %40 = arith.addf %36, %39 : vector<40x64xf32>
    %c1 = arith.constant 1 : index
    %c0_15 = arith.constant 0 : index
    %c0_16 = arith.constant 0 : index
    %41 = vector.load %arg4[%c1, %c0_15, %c0_16] : memref<9x8x64xbf16, #tpu.memory_space<vmem>>, vector<1x8x64xbf16>
    %42 = vector.shape_cast %41 : vector<1x8x64xbf16> to vector<8x64xbf16>
    %cst_17 = arith.constant dense<0.000000e+00> : vector<40x64xf32>
    %43 = tpu.matmul %20, %42, %cst_17 {dimension_numbers = #tpu.dot_dimension_numbers<[1], [0], [0], [1], [0, 0, 1, 1], [], []>} : vector<40x8xbf16>, vector<8x64xbf16>, vector<40x64xf32> -> vector<40x64xf32>
    %44 = arith.addf %40, %43 : vector<40x64xf32>
    %c2 = arith.constant 2 : index
    %c0_18 = arith.constant 0 : index
    %c0_19 = arith.constant 0 : index
    %45 = vector.load %arg4[%c2, %c0_18, %c0_19] : memref<9x8x64xbf16, #tpu.memory_space<vmem>>, vector<1x8x64xbf16>
    %46 = vector.shape_cast %45 : vector<1x8x64xbf16> to vector<8x64xbf16>
    %cst_20 = arith.constant dense<0.000000e+00> : vector<40x64xf32>
    %47 = tpu.matmul %21, %46, %cst_20 {dimension_numbers = #tpu.dot_dimension_numbers<[1], [0], [0], [1], [0, 0, 1, 1], [], []>} : vector<40x8xbf16>, vector<8x64xbf16>, vector<40x64xf32> -> vector<40x64xf32>
    %48 = arith.addf %44, %47 : vector<40x64xf32>
    %c3 = arith.constant 3 : index
    %c0_21 = arith.constant 0 : index
    %c0_22 = arith.constant 0 : index
    %49 = vector.load %arg4[%c3, %c0_21, %c0_22] : memref<9x8x64xbf16, #tpu.memory_space<vmem>>, vector<1x8x64xbf16>
    %50 = vector.shape_cast %49 : vector<1x8x64xbf16> to vector<8x64xbf16>
    %cst_23 = arith.constant dense<0.000000e+00> : vector<40x64xf32>
    %51 = tpu.matmul %23, %50, %cst_23 {dimension_numbers = #tpu.dot_dimension_numbers<[1], [0], [0], [1], [0, 0, 1, 1], [], []>} : vector<40x8xbf16>, vector<8x64xbf16>, vector<40x64xf32> -> vector<40x64xf32>
    %52 = arith.addf %48, %51 : vector<40x64xf32>
    %c4 = arith.constant 4 : index
    %c0_24 = arith.constant 0 : index
    %c0_25 = arith.constant 0 : index
    %53 = vector.load %arg4[%c4, %c0_24, %c0_25] : memref<9x8x64xbf16, #tpu.memory_space<vmem>>, vector<1x8x64xbf16>
    %54 = vector.shape_cast %53 : vector<1x8x64xbf16> to vector<8x64xbf16>
    %cst_26 = arith.constant dense<0.000000e+00> : vector<40x64xf32>
    %55 = tpu.matmul %24, %54, %cst_26 {dimension_numbers = #tpu.dot_dimension_numbers<[1], [0], [0], [1], [0, 0, 1, 1], [], []>} : vector<40x8xbf16>, vector<8x64xbf16>, vector<40x64xf32> -> vector<40x64xf32>
    %56 = arith.addf %52, %55 : vector<40x64xf32>
    %c5 = arith.constant 5 : index
    %c0_27 = arith.constant 0 : index
    %c0_28 = arith.constant 0 : index
    %57 = vector.load %arg4[%c5, %c0_27, %c0_28] : memref<9x8x64xbf16, #tpu.memory_space<vmem>>, vector<1x8x64xbf16>
    %58 = vector.shape_cast %57 : vector<1x8x64xbf16> to vector<8x64xbf16>
    %cst_29 = arith.constant dense<0.000000e+00> : vector<40x64xf32>
    %59 = tpu.matmul %25, %58, %cst_29 {dimension_numbers = #tpu.dot_dimension_numbers<[1], [0], [0], [1], [0, 0, 1, 1], [], []>} : vector<40x8xbf16>, vector<8x64xbf16>, vector<40x64xf32> -> vector<40x64xf32>
    %60 = arith.addf %56, %59 : vector<40x64xf32>
    %c6 = arith.constant 6 : index
    %c0_30 = arith.constant 0 : index
    %c0_31 = arith.constant 0 : index
    %61 = vector.load %arg4[%c6, %c0_30, %c0_31] : memref<9x8x64xbf16, #tpu.memory_space<vmem>>, vector<1x8x64xbf16>
    %62 = vector.shape_cast %61 : vector<1x8x64xbf16> to vector<8x64xbf16>
    %cst_32 = arith.constant dense<0.000000e+00> : vector<40x64xf32>
    %63 = tpu.matmul %27, %62, %cst_32 {dimension_numbers = #tpu.dot_dimension_numbers<[1], [0], [0], [1], [0, 0, 1, 1], [], []>} : vector<40x8xbf16>, vector<8x64xbf16>, vector<40x64xf32> -> vector<40x64xf32>
    %64 = arith.addf %60, %63 : vector<40x64xf32>
    %c7 = arith.constant 7 : index
    %c0_33 = arith.constant 0 : index
    %c0_34 = arith.constant 0 : index
    %65 = vector.load %arg4[%c7, %c0_33, %c0_34] : memref<9x8x64xbf16, #tpu.memory_space<vmem>>, vector<1x8x64xbf16>
    %66 = vector.shape_cast %65 : vector<1x8x64xbf16> to vector<8x64xbf16>
    %cst_35 = arith.constant dense<0.000000e+00> : vector<40x64xf32>
    %67 = tpu.matmul %28, %66, %cst_35 {dimension_numbers = #tpu.dot_dimension_numbers<[1], [0], [0], [1], [0, 0, 1, 1], [], []>} : vector<40x8xbf16>, vector<8x64xbf16>, vector<40x64xf32> -> vector<40x64xf32>
    %68 = arith.addf %64, %67 : vector<40x64xf32>
    %c8 = arith.constant 8 : index
    %c0_36 = arith.constant 0 : index
    %c0_37 = arith.constant 0 : index
    %69 = vector.load %arg4[%c8, %c0_36, %c0_37] : memref<9x8x64xbf16, #tpu.memory_space<vmem>>, vector<1x8x64xbf16>
    %70 = vector.shape_cast %69 : vector<1x8x64xbf16> to vector<8x64xbf16>
    %cst_38 = arith.constant dense<0.000000e+00> : vector<40x64xf32>
    %71 = tpu.matmul %29, %70, %cst_38 {dimension_numbers = #tpu.dot_dimension_numbers<[1], [0], [0], [1], [0, 0, 1, 1], [], []>} : vector<40x8xbf16>, vector<8x64xbf16>, vector<40x64xf32> -> vector<40x64xf32>
    %72 = arith.addf %68, %71 : vector<40x64xf32>
    %73 = vector.broadcast %35 : vector<1x64xf32> to vector<40x64xf32>
    %74 = arith.addf %72, %73 : vector<40x64xf32>
    %cst_39 = arith.constant 0.000000e+00 : f32
    %75 = vector.broadcast %cst_39 : f32 to vector<40x64xf32>
    %76 = arith.maximumf %74, %75 : vector<40x64xf32>
    %cst_40 = arith.constant 0.000000e+00 : f32
    %77 = vector.broadcast %cst_40 : f32 to vector<40x64xf32>
    %c0_41 = arith.constant 0 : index
    %c0_42 = arith.constant 0 : index
    %c0_43 = arith.constant 0 : index
    %78 = vector.load %arg4[%c0_41, %c0_42, %c0_43] : memref<9x8x64xbf16, #tpu.memory_space<vmem>>, vector<1x8x64xbf16>
    %79 = vector.shape_cast %78 : vector<1x8x64xbf16> to vector<8x64xbf16>
    %cst_44 = arith.constant dense<0.000000e+00> : vector<40x64xf32>
    %80 = tpu.matmul %20, %79, %cst_44 {dimension_numbers = #tpu.dot_dimension_numbers<[1], [0], [0], [1], [0, 0, 1, 1], [], []>} : vector<40x8xbf16>, vector<8x64xbf16>, vector<40x64xf32> -> vector<40x64xf32>
    %81 = arith.addf %77, %80 : vector<40x64xf32>
    %c1_45 = arith.constant 1 : index
    %c0_46 = arith.constant 0 : index
    %c0_47 = arith.constant 0 : index
    %82 = vector.load %arg4[%c1_45, %c0_46, %c0_47] : memref<9x8x64xbf16, #tpu.memory_space<vmem>>, vector<1x8x64xbf16>
    %83 = vector.shape_cast %82 : vector<1x8x64xbf16> to vector<8x64xbf16>
    %cst_48 = arith.constant dense<0.000000e+00> : vector<40x64xf32>
    %84 = tpu.matmul %21, %83, %cst_48 {dimension_numbers = #tpu.dot_dimension_numbers<[1], [0], [0], [1], [0, 0, 1, 1], [], []>} : vector<40x8xbf16>, vector<8x64xbf16>, vector<40x64xf32> -> vector<40x64xf32>
    %85 = arith.addf %81, %84 : vector<40x64xf32>
    %c2_49 = arith.constant 2 : index
    %c0_50 = arith.constant 0 : index
    %c0_51 = arith.constant 0 : index
    %86 = vector.load %arg4[%c2_49, %c0_50, %c0_51] : memref<9x8x64xbf16, #tpu.memory_space<vmem>>, vector<1x8x64xbf16>
    %87 = vector.shape_cast %86 : vector<1x8x64xbf16> to vector<8x64xbf16>
    %cst_52 = arith.constant dense<0.000000e+00> : vector<40x64xf32>
    %88 = tpu.matmul %22, %87, %cst_52 {dimension_numbers = #tpu.dot_dimension_numbers<[1], [0], [0], [1], [0, 0, 1, 1], [], []>} : vector<40x8xbf16>, vector<8x64xbf16>, vector<40x64xf32> -> vector<40x64xf32>
    %89 = arith.addf %85, %88 : vector<40x64xf32>
    %c3_53 = arith.constant 3 : index
    %c0_54 = arith.constant 0 : index
    %c0_55 = arith.constant 0 : index
    %90 = vector.load %arg4[%c3_53, %c0_54, %c0_55] : memref<9x8x64xbf16, #tpu.memory_space<vmem>>, vector<1x8x64xbf16>
    %91 = vector.shape_cast %90 : vector<1x8x64xbf16> to vector<8x64xbf16>
    %cst_56 = arith.constant dense<0.000000e+00> : vector<40x64xf32>
    %92 = tpu.matmul %24, %91, %cst_56 {dimension_numbers = #tpu.dot_dimension_numbers<[1], [0], [0], [1], [0, 0, 1, 1], [], []>} : vector<40x8xbf16>, vector<8x64xbf16>, vector<40x64xf32> -> vector<40x64xf32>
    %93 = arith.addf %89, %92 : vector<40x64xf32>
    %c4_57 = arith.constant 4 : index
    %c0_58 = arith.constant 0 : index
    %c0_59 = arith.constant 0 : index
    %94 = vector.load %arg4[%c4_57, %c0_58, %c0_59] : memref<9x8x64xbf16, #tpu.memory_space<vmem>>, vector<1x8x64xbf16>
    %95 = vector.shape_cast %94 : vector<1x8x64xbf16> to vector<8x64xbf16>
    %cst_60 = arith.constant dense<0.000000e+00> : vector<40x64xf32>
    %96 = tpu.matmul %25, %95, %cst_60 {dimension_numbers = #tpu.dot_dimension_numbers<[1], [0], [0], [1], [0, 0, 1, 1], [], []>} : vector<40x8xbf16>, vector<8x64xbf16>, vector<40x64xf32> -> vector<40x64xf32>
    %97 = arith.addf %93, %96 : vector<40x64xf32>
    %c5_61 = arith.constant 5 : index
    %c0_62 = arith.constant 0 : index
    %c0_63 = arith.constant 0 : index
    %98 = vector.load %arg4[%c5_61, %c0_62, %c0_63] : memref<9x8x64xbf16, #tpu.memory_space<vmem>>, vector<1x8x64xbf16>
    %99 = vector.shape_cast %98 : vector<1x8x64xbf16> to vector<8x64xbf16>
    %cst_64 = arith.constant dense<0.000000e+00> : vector<40x64xf32>
    %100 = tpu.matmul %26, %99, %cst_64 {dimension_numbers = #tpu.dot_dimension_numbers<[1], [0], [0], [1], [0, 0, 1, 1], [], []>} : vector<40x8xbf16>, vector<8x64xbf16>, vector<40x64xf32> -> vector<40x64xf32>
    %101 = arith.addf %97, %100 : vector<40x64xf32>
    %c6_65 = arith.constant 6 : index
    %c0_66 = arith.constant 0 : index
    %c0_67 = arith.constant 0 : index
    %102 = vector.load %arg4[%c6_65, %c0_66, %c0_67] : memref<9x8x64xbf16, #tpu.memory_space<vmem>>, vector<1x8x64xbf16>
    %103 = vector.shape_cast %102 : vector<1x8x64xbf16> to vector<8x64xbf16>
    %cst_68 = arith.constant dense<0.000000e+00> : vector<40x64xf32>
    %104 = tpu.matmul %28, %103, %cst_68 {dimension_numbers = #tpu.dot_dimension_numbers<[1], [0], [0], [1], [0, 0, 1, 1], [], []>} : vector<40x8xbf16>, vector<8x64xbf16>, vector<40x64xf32> -> vector<40x64xf32>
    %105 = arith.addf %101, %104 : vector<40x64xf32>
    %c7_69 = arith.constant 7 : index
    %c0_70 = arith.constant 0 : index
    %c0_71 = arith.constant 0 : index
    %106 = vector.load %arg4[%c7_69, %c0_70, %c0_71] : memref<9x8x64xbf16, #tpu.memory_space<vmem>>, vector<1x8x64xbf16>
    %107 = vector.shape_cast %106 : vector<1x8x64xbf16> to vector<8x64xbf16>
    %cst_72 = arith.constant dense<0.000000e+00> : vector<40x64xf32>
    %108 = tpu.matmul %29, %107, %cst_72 {dimension_numbers = #tpu.dot_dimension_numbers<[1], [0], [0], [1], [0, 0, 1, 1], [], []>} : vector<40x8xbf16>, vector<8x64xbf16>, vector<40x64xf32> -> vector<40x64xf32>
    %109 = arith.addf %105, %108 : vector<40x64xf32>
    %c8_73 = arith.constant 8 : index
    %c0_74 = arith.constant 0 : index
    %c0_75 = arith.constant 0 : index
    %110 = vector.load %arg4[%c8_73, %c0_74, %c0_75] : memref<9x8x64xbf16, #tpu.memory_space<vmem>>, vector<1x8x64xbf16>
    %111 = vector.shape_cast %110 : vector<1x8x64xbf16> to vector<8x64xbf16>
    %cst_76 = arith.constant dense<0.000000e+00> : vector<40x64xf32>
    %112 = tpu.matmul %30, %111, %cst_76 {dimension_numbers = #tpu.dot_dimension_numbers<[1], [0], [0], [1], [0, 0, 1, 1], [], []>} : vector<40x8xbf16>, vector<8x64xbf16>, vector<40x64xf32> -> vector<40x64xf32>
    %113 = arith.addf %109, %112 : vector<40x64xf32>
    %114 = vector.broadcast %35 : vector<1x64xf32> to vector<40x64xf32>
    %115 = arith.addf %113, %114 : vector<40x64xf32>
    %cst_77 = arith.constant 0.000000e+00 : f32
    %116 = vector.broadcast %cst_77 : f32 to vector<40x64xf32>
    %117 = arith.maximumf %115, %116 : vector<40x64xf32>
    %118 = arith.maximumf %76, %117 : vector<40x64xf32>
    %cst_78 = arith.constant 0.000000e+00 : f32
    %119 = vector.broadcast %cst_78 : f32 to vector<40x64xf32>
    %c0_79 = arith.constant 0 : index
    %c0_80 = arith.constant 0 : index
    %c0_81 = arith.constant 0 : index
    %120 = vector.load %arg4[%c0_79, %c0_80, %c0_81] : memref<9x8x64xbf16, #tpu.memory_space<vmem>>, vector<1x8x64xbf16>
    %121 = vector.shape_cast %120 : vector<1x8x64xbf16> to vector<8x64xbf16>
    %cst_82 = arith.constant dense<0.000000e+00> : vector<40x64xf32>
    %122 = tpu.matmul %23, %121, %cst_82 {dimension_numbers = #tpu.dot_dimension_numbers<[1], [0], [0], [1], [0, 0, 1, 1], [], []>} : vector<40x8xbf16>, vector<8x64xbf16>, vector<40x64xf32> -> vector<40x64xf32>
    %123 = arith.addf %119, %122 : vector<40x64xf32>
    %c1_83 = arith.constant 1 : index
    %c0_84 = arith.constant 0 : index
    %c0_85 = arith.constant 0 : index
    %124 = vector.load %arg4[%c1_83, %c0_84, %c0_85] : memref<9x8x64xbf16, #tpu.memory_space<vmem>>, vector<1x8x64xbf16>
    %125 = vector.shape_cast %124 : vector<1x8x64xbf16> to vector<8x64xbf16>
    %cst_86 = arith.constant dense<0.000000e+00> : vector<40x64xf32>
    %126 = tpu.matmul %24, %125, %cst_86 {dimension_numbers = #tpu.dot_dimension_numbers<[1], [0], [0], [1], [0, 0, 1, 1], [], []>} : vector<40x8xbf16>, vector<8x64xbf16>, vector<40x64xf32> -> vector<40x64xf32>
    %127 = arith.addf %123, %126 : vector<40x64xf32>
    %c2_87 = arith.constant 2 : index
    %c0_88 = arith.constant 0 : index
    %c0_89 = arith.constant 0 : index
    %128 = vector.load %arg4[%c2_87, %c0_88, %c0_89] : memref<9x8x64xbf16, #tpu.memory_space<vmem>>, vector<1x8x64xbf16>
    %129 = vector.shape_cast %128 : vector<1x8x64xbf16> to vector<8x64xbf16>
    %cst_90 = arith.constant dense<0.000000e+00> : vector<40x64xf32>
    %130 = tpu.matmul %25, %129, %cst_90 {dimension_numbers = #tpu.dot_dimension_numbers<[1], [0], [0], [1], [0, 0, 1, 1], [], []>} : vector<40x8xbf16>, vector<8x64xbf16>, vector<40x64xf32> -> vector<40x64xf32>
    %131 = arith.addf %127, %130 : vector<40x64xf32>
    %c3_91 = arith.constant 3 : index
    %c0_92 = arith.constant 0 : index
    %c0_93 = arith.constant 0 : index
    %132 = vector.load %arg4[%c3_91, %c0_92, %c0_93] : memref<9x8x64xbf16, #tpu.memory_space<vmem>>, vector<1x8x64xbf16>
    %133 = vector.shape_cast %132 : vector<1x8x64xbf16> to vector<8x64xbf16>
    %cst_94 = arith.constant dense<0.000000e+00> : vector<40x64xf32>
    %134 = tpu.matmul %27, %133, %cst_94 {dimension_numbers = #tpu.dot_dimension_numbers<[1], [0], [0], [1], [0, 0, 1, 1], [], []>} : vector<40x8xbf16>, vector<8x64xbf16>, vector<40x64xf32> -> vector<40x64xf32>
    %135 = arith.addf %131, %134 : vector<40x64xf32>
    %c4_95 = arith.constant 4 : index
    %c0_96 = arith.constant 0 : index
    %c0_97 = arith.constant 0 : index
    %136 = vector.load %arg4[%c4_95, %c0_96, %c0_97] : memref<9x8x64xbf16, #tpu.memory_space<vmem>>, vector<1x8x64xbf16>
    %137 = vector.shape_cast %136 : vector<1x8x64xbf16> to vector<8x64xbf16>
    %cst_98 = arith.constant dense<0.000000e+00> : vector<40x64xf32>
    %138 = tpu.matmul %28, %137, %cst_98 {dimension_numbers = #tpu.dot_dimension_numbers<[1], [0], [0], [1], [0, 0, 1, 1], [], []>} : vector<40x8xbf16>, vector<8x64xbf16>, vector<40x64xf32> -> vector<40x64xf32>
    %139 = arith.addf %135, %138 : vector<40x64xf32>
    %c5_99 = arith.constant 5 : index
    %c0_100 = arith.constant 0 : index
    %c0_101 = arith.constant 0 : index
    %140 = vector.load %arg4[%c5_99, %c0_100, %c0_101] : memref<9x8x64xbf16, #tpu.memory_space<vmem>>, vector<1x8x64xbf16>
    %141 = vector.shape_cast %140 : vector<1x8x64xbf16> to vector<8x64xbf16>
    %cst_102 = arith.constant dense<0.000000e+00> : vector<40x64xf32>
    %142 = tpu.matmul %29, %141, %cst_102 {dimension_numbers = #tpu.dot_dimension_numbers<[1], [0], [0], [1], [0, 0, 1, 1], [], []>} : vector<40x8xbf16>, vector<8x64xbf16>, vector<40x64xf32> -> vector<40x64xf32>
    %143 = arith.addf %139, %142 : vector<40x64xf32>
    %c6_103 = arith.constant 6 : index
    %c0_104 = arith.constant 0 : index
    %c0_105 = arith.constant 0 : index
    %144 = vector.load %arg4[%c6_103, %c0_104, %c0_105] : memref<9x8x64xbf16, #tpu.memory_space<vmem>>, vector<1x8x64xbf16>
    %145 = vector.shape_cast %144 : vector<1x8x64xbf16> to vector<8x64xbf16>
    %cst_106 = arith.constant dense<0.000000e+00> : vector<40x64xf32>
    %146 = tpu.matmul %31, %145, %cst_106 {dimension_numbers = #tpu.dot_dimension_numbers<[1], [0], [0], [1], [0, 0, 1, 1], [], []>} : vector<40x8xbf16>, vector<8x64xbf16>, vector<40x64xf32> -> vector<40x64xf32>
    %147 = arith.addf %143, %146 : vector<40x64xf32>
    %c7_107 = arith.constant 7 : index
    %c0_108 = arith.constant 0 : index
    %c0_109 = arith.constant 0 : index
    %148 = vector.load %arg4[%c7_107, %c0_108, %c0_109] : memref<9x8x64xbf16, #tpu.memory_space<vmem>>, vector<1x8x64xbf16>
    %149 = vector.shape_cast %148 : vector<1x8x64xbf16> to vector<8x64xbf16>
    %cst_110 = arith.constant dense<0.000000e+00> : vector<40x64xf32>
    %150 = tpu.matmul %32, %149, %cst_110 {dimension_numbers = #tpu.dot_dimension_numbers<[1], [0], [0], [1], [0, 0, 1, 1], [], []>} : vector<40x8xbf16>, vector<8x64xbf16>, vector<40x64xf32> -> vector<40x64xf32>
    %151 = arith.addf %147, %150 : vector<40x64xf32>
    %c8_111 = arith.constant 8 : index
    %c0_112 = arith.constant 0 : index
    %c0_113 = arith.constant 0 : index
    %152 = vector.load %arg4[%c8_111, %c0_112, %c0_113] : memref<9x8x64xbf16, #tpu.memory_space<vmem>>, vector<1x8x64xbf16>
    %153 = vector.shape_cast %152 : vector<1x8x64xbf16> to vector<8x64xbf16>
    %cst_114 = arith.constant dense<0.000000e+00> : vector<40x64xf32>
    %154 = tpu.matmul %33, %153, %cst_114 {dimension_numbers = #tpu.dot_dimension_numbers<[1], [0], [0], [1], [0, 0, 1, 1], [], []>} : vector<40x8xbf16>, vector<8x64xbf16>, vector<40x64xf32> -> vector<40x64xf32>
    %155 = arith.addf %151, %154 : vector<40x64xf32>
    %156 = vector.broadcast %35 : vector<1x64xf32> to vector<40x64xf32>
    %157 = arith.addf %155, %156 : vector<40x64xf32>
    %cst_115 = arith.constant 0.000000e+00 : f32
    %158 = vector.broadcast %cst_115 : f32 to vector<40x64xf32>
    %159 = arith.maximumf %157, %158 : vector<40x64xf32>
    %160 = arith.maximumf %118, %159 : vector<40x64xf32>
    %cst_116 = arith.constant 0.000000e+00 : f32
    %161 = vector.broadcast %cst_116 : f32 to vector<40x64xf32>
    %c0_117 = arith.constant 0 : index
    %c0_118 = arith.constant 0 : index
    %c0_119 = arith.constant 0 : index
    %162 = vector.load %arg4[%c0_117, %c0_118, %c0_119] : memref<9x8x64xbf16, #tpu.memory_space<vmem>>, vector<1x8x64xbf16>
    %163 = vector.shape_cast %162 : vector<1x8x64xbf16> to vector<8x64xbf16>
    %cst_120 = arith.constant dense<0.000000e+00> : vector<40x64xf32>
    %164 = tpu.matmul %24, %163, %cst_120 {dimension_numbers = #tpu.dot_dimension_numbers<[1], [0], [0], [1], [0, 0, 1, 1], [], []>} : vector<40x8xbf16>, vector<8x64xbf16>, vector<40x64xf32> -> vector<40x64xf32>
    %165 = arith.addf %161, %164 : vector<40x64xf32>
    %c1_121 = arith.constant 1 : index
    %c0_122 = arith.constant 0 : index
    %c0_123 = arith.constant 0 : index
    %166 = vector.load %arg4[%c1_121, %c0_122, %c0_123] : memref<9x8x64xbf16, #tpu.memory_space<vmem>>, vector<1x8x64xbf16>
    %167 = vector.shape_cast %166 : vector<1x8x64xbf16> to vector<8x64xbf16>
    %cst_124 = arith.constant dense<0.000000e+00> : vector<40x64xf32>
    %168 = tpu.matmul %25, %167, %cst_124 {dimension_numbers = #tpu.dot_dimension_numbers<[1], [0], [0], [1], [0, 0, 1, 1], [], []>} : vector<40x8xbf16>, vector<8x64xbf16>, vector<40x64xf32> -> vector<40x64xf32>
    %169 = arith.addf %165, %168 : vector<40x64xf32>
    %c2_125 = arith.constant 2 : index
    %c0_126 = arith.constant 0 : index
    %c0_127 = arith.constant 0 : index
    %170 = vector.load %arg4[%c2_125, %c0_126, %c0_127] : memref<9x8x64xbf16, #tpu.memory_space<vmem>>, vector<1x8x64xbf16>
    %171 = vector.shape_cast %170 : vector<1x8x64xbf16> to vector<8x64xbf16>
    %cst_128 = arith.constant dense<0.000000e+00> : vector<40x64xf32>
    %172 = tpu.matmul %26, %171, %cst_128 {dimension_numbers = #tpu.dot_dimension_numbers<[1], [0], [0], [1], [0, 0, 1, 1], [], []>} : vector<40x8xbf16>, vector<8x64xbf16>, vector<40x64xf32> -> vector<40x64xf32>
    %173 = arith.addf %169, %172 : vector<40x64xf32>
    %c3_129 = arith.constant 3 : index
    %c0_130 = arith.constant 0 : index
    %c0_131 = arith.constant 0 : index
    %174 = vector.load %arg4[%c3_129, %c0_130, %c0_131] : memref<9x8x64xbf16, #tpu.memory_space<vmem>>, vector<1x8x64xbf16>
    %175 = vector.shape_cast %174 : vector<1x8x64xbf16> to vector<8x64xbf16>
    %cst_132 = arith.constant dense<0.000000e+00> : vector<40x64xf32>
    %176 = tpu.matmul %28, %175, %cst_132 {dimension_numbers = #tpu.dot_dimension_numbers<[1], [0], [0], [1], [0, 0, 1, 1], [], []>} : vector<40x8xbf16>, vector<8x64xbf16>, vector<40x64xf32> -> vector<40x64xf32>
    %177 = arith.addf %173, %176 : vector<40x64xf32>
    %c4_133 = arith.constant 4 : index
    %c0_134 = arith.constant 0 : index
    %c0_135 = arith.constant 0 : index
    %178 = vector.load %arg4[%c4_133, %c0_134, %c0_135] : memref<9x8x64xbf16, #tpu.memory_space<vmem>>, vector<1x8x64xbf16>
    %179 = vector.shape_cast %178 : vector<1x8x64xbf16> to vector<8x64xbf16>
    %cst_136 = arith.constant dense<0.000000e+00> : vector<40x64xf32>
    %180 = tpu.matmul %29, %179, %cst_136 {dimension_numbers = #tpu.dot_dimension_numbers<[1], [0], [0], [1], [0, 0, 1, 1], [], []>} : vector<40x8xbf16>, vector<8x64xbf16>, vector<40x64xf32> -> vector<40x64xf32>
    %181 = arith.addf %177, %180 : vector<40x64xf32>
    %c5_137 = arith.constant 5 : index
    %c0_138 = arith.constant 0 : index
    %c0_139 = arith.constant 0 : index
    %182 = vector.load %arg4[%c5_137, %c0_138, %c0_139] : memref<9x8x64xbf16, #tpu.memory_space<vmem>>, vector<1x8x64xbf16>
    %183 = vector.shape_cast %182 : vector<1x8x64xbf16> to vector<8x64xbf16>
    %cst_140 = arith.constant dense<0.000000e+00> : vector<40x64xf32>
    %184 = tpu.matmul %30, %183, %cst_140 {dimension_numbers = #tpu.dot_dimension_numbers<[1], [0], [0], [1], [0, 0, 1, 1], [], []>} : vector<40x8xbf16>, vector<8x64xbf16>, vector<40x64xf32> -> vector<40x64xf32>
    %185 = arith.addf %181, %184 : vector<40x64xf32>
    %c6_141 = arith.constant 6 : index
    %c0_142 = arith.constant 0 : index
    %c0_143 = arith.constant 0 : index
    %186 = vector.load %arg4[%c6_141, %c0_142, %c0_143] : memref<9x8x64xbf16, #tpu.memory_space<vmem>>, vector<1x8x64xbf16>
    %187 = vector.shape_cast %186 : vector<1x8x64xbf16> to vector<8x64xbf16>
    %cst_144 = arith.constant dense<0.000000e+00> : vector<40x64xf32>
    %188 = tpu.matmul %32, %187, %cst_144 {dimension_numbers = #tpu.dot_dimension_numbers<[1], [0], [0], [1], [0, 0, 1, 1], [], []>} : vector<40x8xbf16>, vector<8x64xbf16>, vector<40x64xf32> -> vector<40x64xf32>
    %189 = arith.addf %185, %188 : vector<40x64xf32>
    %c7_145 = arith.constant 7 : index
    %c0_146 = arith.constant 0 : index
    %c0_147 = arith.constant 0 : index
    %190 = vector.load %arg4[%c7_145, %c0_146, %c0_147] : memref<9x8x64xbf16, #tpu.memory_space<vmem>>, vector<1x8x64xbf16>
    %191 = vector.shape_cast %190 : vector<1x8x64xbf16> to vector<8x64xbf16>
    %cst_148 = arith.constant dense<0.000000e+00> : vector<40x64xf32>
    %192 = tpu.matmul %33, %191, %cst_148 {dimension_numbers = #tpu.dot_dimension_numbers<[1], [0], [0], [1], [0, 0, 1, 1], [], []>} : vector<40x8xbf16>, vector<8x64xbf16>, vector<40x64xf32> -> vector<40x64xf32>
    %193 = arith.addf %189, %192 : vector<40x64xf32>
    %c8_149 = arith.constant 8 : index
    %c0_150 = arith.constant 0 : index
    %c0_151 = arith.constant 0 : index
    %194 = vector.load %arg4[%c8_149, %c0_150, %c0_151] : memref<9x8x64xbf16, #tpu.memory_space<vmem>>, vector<1x8x64xbf16>
    %195 = vector.shape_cast %194 : vector<1x8x64xbf16> to vector<8x64xbf16>
    %cst_152 = arith.constant dense<0.000000e+00> : vector<40x64xf32>
    %196 = tpu.matmul %34, %195, %cst_152 {dimension_numbers = #tpu.dot_dimension_numbers<[1], [0], [0], [1], [0, 0, 1, 1], [], []>} : vector<40x8xbf16>, vector<8x64xbf16>, vector<40x64xf32> -> vector<40x64xf32>
    %197 = arith.addf %193, %196 : vector<40x64xf32>
    %198 = vector.broadcast %35 : vector<1x64xf32> to vector<40x64xf32>
    %199 = arith.addf %197, %198 : vector<40x64xf32>
    %cst_153 = arith.constant 0.000000e+00 : f32
    %200 = vector.broadcast %cst_153 : f32 to vector<40x64xf32>
    %201 = arith.maximumf %199, %200 : vector<40x64xf32>
    %202 = arith.maximumf %160, %201 : vector<40x64xf32>
    %203 = vector.extract_strided_slice %202 {offsets = [0, 0], sizes = [36, 64], strides = [1, 1]} : vector<40x64xf32> to vector<36x64xf32>
    %c0_154 = arith.constant 0 : index
    %c0_155 = arith.constant 0 : index
    %c0_156 = arith.constant 0 : index
    %204 = vector.load %arg6[%c0_154, %c0_155, %c0_156] : memref<1x36x64xf32, #tpu.memory_space<vmem>>, vector<1x36x64xf32>
    %205 = vector.shape_cast %204 : vector<1x36x64xf32> to vector<36x64xf32>
    %206 = vector.shape_cast %203 : vector<36x64xf32> to vector<1x36x64xf32>
    tpu.vector_store %arg6[%c0_154, %c0_155, %c0_156], %206 {strides = array<i32>} : memref<1x36x64xf32, #tpu.memory_space<vmem>>, vector<1x36x64xf32>,
    return
  }
  func.func @transform_0(%arg0: i32) -> (i32, i32, i32) {
    %c0_i32 = arith.constant 0 : i32
    %c0_i32_0 = arith.constant 0 : i32
    %c0_i32_1 = arith.constant 0 : i32
    return %arg0, %c0_i32, %c0_i32_0 : i32, i32, i32
  }
  func.func @transform_1(%arg0: i32) -> (i32, i32) {
    %c0_i32 = arith.constant 0 : i32
    %c0_i32_0 = arith.constant 0 : i32
    %c0_i32_1 = arith.constant 0 : i32
    return %c0_i32, %c0_i32_0 : i32, i32
  }
  func.func @transform_2(%arg0: i32) -> (i32, i32) {
    %c0_i32 = arith.constant 0 : i32
    %c0_i32_0 = arith.constant 0 : i32
    %c0_i32_1 = arith.constant 0 : i32
    return %c0_i32, %c0_i32_0 : i32, i32
  }
  func.func @transform_3(%arg0: i32) -> (i32, i32, i32) {
    %c0_i32 = arith.constant 0 : i32
    %c0_i32_0 = arith.constant 0 : i32
    %c0_i32_1 = arith.constant 0 : i32
    %c0_i32_2 = arith.constant 0 : i32
    return %c0_i32, %c0_i32_0, %c0_i32_1 : i32, i32, i32
  }
  func.func @transform_4(%arg0: i32) -> (i32, i32) {
    %c0_i32 = arith.constant 0 : i32
    %c0_i32_0 = arith.constant 0 : i32
    %c0_i32_1 = arith.constant 0 : i32
    return %c0_i32, %c0_i32_0 : i32, i32
  }
  func.func @transform_5(%arg0: i32) -> (i32, i32, i32) {
    %c0_i32 = arith.constant 0 : i32
    %c0_i32_0 = arith.constant 0 : i32
    %c0_i32_1 = arith.constant 0 : i32
    return %arg0, %c0_i32, %c0_i32_0 : i32, i32, i32
  }
}

module attributes {stable_mosaic.version = 11 : i64} {
  func.func @_mlp_kernel(%arg0: i32, %arg1: memref<2x2304xf32, #tpu.memory_space<vmem>>, %arg2: memref<2304x1000xbf16, #tpu.memory_space<vmem>>, %arg3: memref<1x1000xf32, #tpu.memory_space<vmem>>, %arg4: memref<1000x10xbf16, #tpu.memory_space<vmem>>, %arg5: memref<1x10xf32, #tpu.memory_space<vmem>>, %arg6: memref<2x10xf32, #tpu.memory_space<vmem>>) attributes {dimension_semantics = [#tpu.dimension_semantics<arbitrary>], iteration_bounds = array<i64: 1>, scalar_prefetch = 0 : i64, scratch_operands = 0 : i64, tpu.core_type = #tpu.core_type<tc>, window_params = [{pipeline_mode = #tpu.pipeline_mode<synchronous>, transform_indices = @transform_0, window_bounds = array<i64: 2, 2304>}, {pipeline_mode = #tpu.pipeline_mode<synchronous>, transform_indices = @transform_1, window_bounds = array<i64: 2304, 1000>}, {pipeline_mode = #tpu.pipeline_mode<synchronous>, transform_indices = @transform_2, window_bounds = array<i64: 1, 1000>}, {pipeline_mode = #tpu.pipeline_mode<synchronous>, transform_indices = @transform_3, window_bounds = array<i64: 1000, 10>}, {pipeline_mode = #tpu.pipeline_mode<synchronous>, transform_indices = @transform_4, window_bounds = array<i64: 1, 10>}, {pipeline_mode = #tpu.pipeline_mode<synchronous>, transform_indices = @transform_5, window_bounds = array<i64: 2, 10>}]} {
    %c0 = arith.constant 0 : index
    %c0_0 = arith.constant 0 : index
    %0 = vector.load %arg1[%c0, %c0_0] : memref<2x2304xf32, #tpu.memory_space<vmem>>, vector<2x2304xf32>
    %1 = arith.truncf %0 : vector<2x2304xf32> to vector<2x2304xbf16>
    %c0_1 = arith.constant 0 : index
    %c0_2 = arith.constant 0 : index
    %2 = vector.load %arg2[%c0_1, %c0_2] : memref<2304x1000xbf16, #tpu.memory_space<vmem>>, vector<2304x1000xbf16>
    %cst = arith.constant dense<0.000000e+00> : vector<2x1000xf32>
    %3 = tpu.matmul %1, %2, %cst {dimension_numbers = #tpu.dot_dimension_numbers<[1], [0], [0], [1], [0, 0, 1, 1], [], []>} : vector<2x2304xbf16>, vector<2304x1000xbf16>, vector<2x1000xf32> -> vector<2x1000xf32>
    %c0_3 = arith.constant 0 : index
    %c0_4 = arith.constant 0 : index
    %4 = vector.load %arg3[%c0_3, %c0_4] : memref<1x1000xf32, #tpu.memory_space<vmem>>, vector<1x1000xf32>
    %5 = vector.broadcast %4 : vector<1x1000xf32> to vector<2x1000xf32>
    %6 = arith.addf %3, %5 : vector<2x1000xf32>
    %cst_5 = arith.constant 0.000000e+00 : f32
    %7 = vector.broadcast %cst_5 : f32 to vector<2x1000xf32>
    %8 = arith.maximumf %6, %7 : vector<2x1000xf32>
    %9 = arith.truncf %8 : vector<2x1000xf32> to vector<2x1000xbf16>
    %c0_6 = arith.constant 0 : index
    %c0_7 = arith.constant 0 : index
    %10 = vector.load %arg4[%c0_6, %c0_7] : memref<1000x10xbf16, #tpu.memory_space<vmem>>, vector<1000x10xbf16>
    %cst_8 = arith.constant dense<0.000000e+00> : vector<2x10xf32>
    %11 = tpu.matmul %9, %10, %cst_8 {dimension_numbers = #tpu.dot_dimension_numbers<[1], [0], [0], [1], [0, 0, 1, 1], [], []>} : vector<2x1000xbf16>, vector<1000x10xbf16>, vector<2x10xf32> -> vector<2x10xf32>
    %c0_9 = arith.constant 0 : index
    %c0_10 = arith.constant 0 : index
    %12 = vector.load %arg5[%c0_9, %c0_10] : memref<1x10xf32, #tpu.memory_space<vmem>>, vector<1x10xf32>
    %13 = vector.broadcast %12 : vector<1x10xf32> to vector<2x10xf32>
    %14 = arith.addf %11, %13 : vector<2x10xf32>
    %c0_11 = arith.constant 0 : index
    %c0_12 = arith.constant 0 : index
    %15 = vector.load %arg6[%c0_11, %c0_12] : memref<2x10xf32, #tpu.memory_space<vmem>>, vector<2x10xf32>
    tpu.vector_store %arg6[%c0_11, %c0_12], %14 {strides = array<i32>} : memref<2x10xf32, #tpu.memory_space<vmem>>, vector<2x10xf32>,
    return
  }
  func.func @transform_0(%arg0: i32) -> (i32, i32) {
    %c0_i32 = arith.constant 0 : i32
    %c0_i32_0 = arith.constant 0 : i32
    %c0_i32_1 = arith.constant 0 : i32
    return %c0_i32, %c0_i32_0 : i32, i32
  }
  func.func @transform_1(%arg0: i32) -> (i32, i32) {
    %c0_i32 = arith.constant 0 : i32
    %c0_i32_0 = arith.constant 0 : i32
    %c0_i32_1 = arith.constant 0 : i32
    return %c0_i32, %c0_i32_0 : i32, i32
  }
  func.func @transform_2(%arg0: i32) -> (i32, i32) {
    %c0_i32 = arith.constant 0 : i32
    %c0_i32_0 = arith.constant 0 : i32
    %c0_i32_1 = arith.constant 0 : i32
    return %c0_i32, %c0_i32_0 : i32, i32
  }
  func.func @transform_3(%arg0: i32) -> (i32, i32) {
    %c0_i32 = arith.constant 0 : i32
    %c0_i32_0 = arith.constant 0 : i32
    %c0_i32_1 = arith.constant 0 : i32
    return %c0_i32, %c0_i32_0 : i32, i32
  }
  func.func @transform_4(%arg0: i32) -> (i32, i32) {
    %c0_i32 = arith.constant 0 : i32
    %c0_i32_0 = arith.constant 0 : i32
    %c0_i32_1 = arith.constant 0 : i32
    return %c0_i32, %c0_i32_0 : i32, i32
  }
  func.func @transform_5(%arg0: i32) -> (i32, i32) {
    %c0_i32 = arith.constant 0 : i32
    %c0_i32_0 = arith.constant 0 : i32
    %c0_i32_1 = arith.constant 0 : i32
    return %c0_i32, %c0_i32_0 : i32, i32
  }
}

</mosaic_0001>

<llo_original>
// kernel: model_forward.2
$region0: #{model_forward.2}
  #allocation0 [shape = 'u32[]', space=smem, size = 0x4, offset = 0x4, fixed_abs, tag = 'smem constant byte address 0x4 - core index']
  #allocation1 [shape = 'u32[72,128]{1,0:T(1,128)}', space=vmem, size = 0x9000, scoped, tag = 'internal scratch']
  %s0 = inlined_call_operand.vmem [shape: bf16[2,2560,25], index: 0, kind: input, shape index: {}]
  %s1 = inlined_call_operand.vmem [shape: bf16[25,8], index: 1, kind: input, shape index: {}]
  %s2 = inlined_call_operand.vmem [shape: f32[1,8], index: 2, kind: input, shape index: {}]
  %s3 = inlined_call_operand.vmem [shape: bf16[9,8,64], index: 3, kind: input, shape index: {}]
  %s4 = inlined_call_operand.vmem [shape: f32[1,64], index: 4, kind: input, shape index: {}]
  %s5 = inlined_call_operand.vmem [shape: f32[2,36,64], index: 5, kind: output, shape index: {}]
  %s6 = sld [smem:[#allocation0]]
  $region53: #{model_forward.2} parent=0
    _
  %s8 = ssub.s32 1, %s6
  %s9 = scalar_select 0, %s8, %s6
  loop: start=0, step=1, limit=4
  $region2: #{model_forward.2} parent=0 // loop_pre_header
    _
  $region3: #{model_forward.2} parent=0 // loop_header
    %s11 = sphi 0, %s15
    %p12 = scmp.ge.s32.totalorder %s11, 4
    %s21 = sphi 0, %s23
    %s24 = sphi 0, %s21
    %s25 = sphi 0, %s24
    %s41 = sphi 0, %s25
    %s45 = sphi 0, %s45
    %s47 = sphi 0, %s45
    %s48 = sphi 0, %s47
    %s62 = sphi 0, %s48
    %s66 = sphi 0, %s66
    %s68 = sphi 0, %s66
    %s69 = sphi 0, %s68
    %s83 = sphi 0, %s69
    %s87 = sphi 0, %s87
    %s89 = sphi 0, %s87
    %s90 = sphi 0, %s89
    %s104 = sphi 0, %s90
    %s108 = sphi 0, %s108
    %s110 = sphi 0, %s108
    %s111 = sphi 0, %s110
    %s125 = sphi 0, %s111
    %s131 = sphi 0, %s133
    %s134 = sphi 0, %s131
    %s135 = sphi 0, %s134
    %s151 = sphi 0, %s135
  $region4: #{model_forward.2} parent=0 // loop_header_branch
    %14 = sbr.rel (%p12) target = $region8
  $region5: #{model_forward.2} parent=0 // loop_body
    %s16 = ssub.s32 %s11, 1
    %s17 = ssub.s32 %s11, 2
    %s18 = sadd.s32 %s11, 1
    %s19 = ssub.s32 %s11, %s18
    %p20 = scmp.eq.s32.totalorder %s19, 0
    %s22 = sadd.s32 %s21, 1
    %s23 = scalar_select %p20, %s21, %s22
    %p26 = pneg %p20
    %p27 = scmp.eq.s32.totalorder %s11, 1
    %p28 = por %p26, %p27
    %p29 = scmp.ne.s32.totalorder %s21, %s24
    %p30 = scmp.eq.s32.totalorder %s11, 0
    %p31 = por %p29, %p30
    %p32 = scmp.ne.s32.totalorder %s21, %s24
    %p33 = scmp.eq.s32.totalorder %s16, 1
    %p34 = por %p32, %p33
    %p35 = scmp.ne.s32.totalorder %s24, %s25
    %p36 = scmp.eq.s32.totalorder %s16, 0
    %p37 = por %p35, %p36
    %p38 = scmp.ne.s32.totalorder %s24, %s25
    %p39 = scmp.eq.s32.totalorder %s17, 1
    %p40 = por %p38, %p39
    %p42 = scmp.ne.s32.totalorder %s25, %s41
    %p43 = scmp.eq.s32.totalorder %s17, 0
    %p44 = por %p42, %p43
    %s46 = sadd.s32 %s45, 1
    %p49 = scmp.eq.s32.totalorder %s11, 1
    %p50 = scmp.ne.s32.totalorder %s45, %s47
    %p51 = scmp.eq.s32.totalorder %s11, 0
    %p52 = por %p50, %p51
    %p53 = scmp.ne.s32.totalorder %s45, %s47
    %p54 = scmp.eq.s32.totalorder %s16, 1
    %p55 = por %p53, %p54
    %p56 = scmp.ne.s32.totalorder %s47, %s48
    %p57 = scmp.eq.s32.totalorder %s16, 0
    %p58 = por %p56, %p57
    %p59 = scmp.ne.s32.totalorder %s47, %s48
    %p60 = scmp.eq.s32.totalorder %s17, 1
    %p61 = por %p59, %p60
    %p63 = scmp.ne.s32.totalorder %s48, %s62
    %p64 = scmp.eq.s32.totalorder %s17, 0
    %p65 = por %p63, %p64
    %s67 = sadd.s32 %s66, 1
    %p70 = scmp.eq.s32.totalorder %s11, 1
    %p71 = scmp.ne.s32.totalorder %s66, %s68
    %p72 = scmp.eq.s32.totalorder %s11, 0
    %p73 = por %p71, %p72
    %p74 = scmp.ne.s32.totalorder %s66, %s68
    %p75 = scmp.eq.s32.totalorder %s16, 1
    %p76 = por %p74, %p75
    %p77 = scmp.ne.s32.totalorder %s68, %s69
    %p78 = scmp.eq.s32.totalorder %s16, 0
    %p79 = por %p77, %p78
    %p80 = scmp.ne.s32.totalorder %s68, %s69
    %p81 = scmp.eq.s32.totalorder %s17, 1
    %p82 = por %p80, %p81
    %p84 = scmp.ne.s32.totalorder %s69, %s83
    %p85 = scmp.eq.s32.totalorder %s17, 0
    %p86 = por %p84, %p85
    %s88 = sadd.s32 %s87, 1
    %p91 = scmp.eq.s32.totalorder %s11, 1
    %p92 = scmp.ne.s32.totalorder %s87, %s89
    %p93 = scmp.eq.s32.totalorder %s11, 0
    %p94 = por %p92, %p93
    %p95 = scmp.ne.s32.totalorder %s87, %s89
    %p96 = scmp.eq.s32.totalorder %s16, 1
    %p97 = por %p95, %p96
    %p98 = scmp.ne.s32.totalorder %s89, %s90
    %p99 = scmp.eq.s32.totalorder %s16, 0
    %p100 = por %p98, %p99
    %p101 = scmp.ne.s32.totalorder %s89, %s90
    %p102 = scmp.eq.s32.totalorder %s17, 1
    %p103 = por %p101, %p102
    %p105 = scmp.ne.s32.totalorder %s90, %s104
    %p106 = scmp.eq.s32.totalorder %s17, 0
    %p107 = por %p105, %p106
    %s109 = sadd.s32 %s108, 1
    %p112 = scmp.eq.s32.totalorder %s11, 1
    %p113 = scmp.ne.s32.totalorder %s108, %s110
    %p114 = scmp.eq.s32.totalorder %s11, 0
    %p115 = por %p113, %p114
    %p116 = scmp.ne.s32.totalorder %s108, %s110
    %p117 = scmp.eq.s32.totalorder %s16, 1
    %p118 = por %p116, %p117
    %p119 = scmp.ne.s32.totalorder %s110, %s111
    %p120 = scmp.eq.s32.totalorder %s16, 0
    %p121 = por %p119, %p120
    %p122 = scmp.ne.s32.totalorder %s110, %s111
    %p123 = scmp.eq.s32.totalorder %s17, 1
    %p124 = por %p122, %p123
    %p126 = scmp.ne.s32.totalorder %s111, %s125
    %p127 = scmp.eq.s32.totalorder %s17, 0
    %p128 = por %p126, %p127
    %s129 = ssub.s32 %s11, %s18
    %p130 = scmp.eq.s32.totalorder %s129, 0
    %s132 = sadd.s32 %s131, 1
    %s133 = scalar_select %p130, %s131, %s132
    %p136 = pneg %p130
    %p137 = scmp.eq.s32.totalorder %s11, 1
    %p138 = por %p136, %p137
    %p139 = scmp.ne.s32.totalorder %s131, %s134
    %p140 = scmp.eq.s32.totalorder %s11, 0
    %p141 = por %p139, %p140
    %p142 = scmp.ne.s32.totalorder %s131, %s134
    %p143 = scmp.eq.s32.totalorder %s16, 1
    %p144 = por %p142, %p143
    %p145 = scmp.ne.s32.totalorder %s134, %s135
    %p146 = scmp.eq.s32.totalorder %s16, 0
    %p147 = por %p145, %p146
    %p148 = scmp.ne.s32.totalorder %s134, %s135
    %p149 = scmp.eq.s32.totalorder %s17, 1
    %p150 = por %p148, %p149
    %p152 = scmp.ne.s32.totalorder %s135, %s151
    %p153 = scmp.eq.s32.totalorder %s17, 0
    %p154 = por %p152, %p153
    %p155 = scmp.le.s32.totalorder 1, %s11
    %p156 = scmp.lt.s32.totalorder %s11, 3
    %p157 = pnand %p155, %p156
    %p158 = pneg %p157
    // Predicated region
    $region9: #{model_forward.2} parent=5 // pred_check
      _
    $region10: #{model_forward.2} parent=5 // pred_check_branch
      %160 = sbr.rel (%p157) target = $region12
    $region11: #{model_forward.2} parent=5 // pred_region
      %s161 = ssub.s32 %s11, 1
      // Predicated region
      $region13: #{model_forward.2} parent=11 // pred_check
        %p162 = pneg %p58
      $region14: #{model_forward.2} parent=11 // pred_check_branch
        %164 = sbr.rel (%p162) target = $region16
      $region15: #{model_forward.2} parent=11 // pred_region
        _
      $region16: #{model_forward.2} parent=11 // pred_fallthru
        _
      // Predicated region
      $region17: #{model_forward.2} parent=11 // pred_check
        %p165 = pneg %p79
      $region18: #{model_forward.2} parent=11 // pred_check_branch
        %167 = sbr.rel (%p165) target = $region20
      $region19: #{model_forward.2} parent=11 // pred_region
        _
      $region20: #{model_forward.2} parent=11 // pred_fallthru
        _
      // Predicated region
      $region21: #{model_forward.2} parent=11 // pred_check
        %p168 = pneg %p100
      $region22: #{model_forward.2} parent=11 // pred_check_branch
        %170 = sbr.rel (%p168) target = $region24
      $region23: #{model_forward.2} parent=11 // pred_region
        _
      $region24: #{model_forward.2} parent=11 // pred_fallthru
        _
      // Predicated region
      $region25: #{model_forward.2} parent=11 // pred_check
        %p171 = pneg %p121
      $region26: #{model_forward.2} parent=11 // pred_check_branch
        %173 = sbr.rel (%p171) target = $region28
      $region27: #{model_forward.2} parent=11 // pred_region
        _
      $region28: #{model_forward.2} parent=11 // pred_fallthru
        _
    $region12: #{model_forward.2} parent=5 // pred_fallthru
      _
    %p174 = scmp.lt.s32.totalorder %s11, 2
    // Predicated region
    $region29: #{model_forward.2} parent=5 // pred_check
      %p175 = pneg %p174
    $region30: #{model_forward.2} parent=5 // pred_check_branch
      %177 = sbr.rel (%p175) target = $region32
    $region31: #{model_forward.2} parent=5 // pred_region
      // Predicated region
      $region33: #{model_forward.2} parent=31 // pred_check
        %p178 = pneg %p31
      $region34: #{model_forward.2} parent=31 // pred_check_branch
        %180 = sbr.rel (%p178) target = $region36
      $region35: #{model_forward.2} parent=31 // pred_region
        %p181 = scmp.lt.s32.totalorder %s11, 1
        %s182 = scalar_select %p181, %s11, 1
        %s183 = smul.addr %s182, 320
        %s184 = smul.addr %s183, 4
        %s185 = scalar_lea.vmem %s0, %s184
      $region36: #{model_forward.2} parent=31 // pred_fallthru
        _
    $region32: #{model_forward.2} parent=5 // pred_fallthru
      _
    %p186 = scmp.le.s32.totalorder 1, %s11
    %p187 = scmp.lt.s32.totalorder %s11, 3
    %p188 = pnand %p186, %p187
    %p189 = pneg %p188
    // Predicated region
    $region37: #{model_forward.2} parent=5 // pred_check
      _
    $region38: #{model_forward.2} parent=5 // pred_check_branch
      %191 = sbr.rel (%p188) target = $region40
    $region39: #{model_forward.2} parent=5 // pred_region
      %s192 = ssub.s32 %s11, 1
      %p193 = scmp.lt.s32.totalorder %s16, 1
      %s194 = scalar_select %p193, %s16, 1
      %s195 = smul.addr %s194, 320
      %s196 = smul.addr %s195, 4
      %s197 = scalar_lea.vmem %s0, %s196
      %p198 = pneg %p37
      %p199 = pneg %p34
      %p200 = pneg %p58
      %p201 = pneg %p55
      %p202 = pneg %p79
      %p203 = pneg %p76
      %p204 = pneg %p100
      %p205 = pneg %p97
      %p206 = pneg %p121
      %p207 = pneg %p118
      %p208 = pneg %p147
      %p209 = pneg %p144
      %p210 = scmp.lt.s32.totalorder %s16, 1
      %s211 = scalar_select %p210, %s16, 1
      %s212 = smul.addr %s211, 5
      %s213 = smul.addr %s212, 8
      %s214 = scalar_lea.vmem %s5, %s213
      %p215 = scmp.lt.s32.totalorder %s16, 1
      %s216 = scalar_select %p215, %s16, 1
      %s217 = smul.addr %s216, 320
      %s218 = smul.addr %s217, 4
      %s219 = scalar_lea.vmem %s0, %s218
      %p220 = scmp.lt.s32.totalorder %s16, 1
      %s221 = scalar_select %p220, %s16, 1
      %s222 = smul.addr %s221, 5
      %s223 = smul.addr %s222, 8
      %s224 = scalar_lea.vmem %s5, %s223
      %v226 = vld [vmem:[%s219] sm:$0xf]
      %v227 = vld [vmem:[%s219 + $0x4] sm:$0xf]
      %v228 = vld [vmem:[%s219 + $0x8] sm:$0xf]
      %v229 = vld [vmem:[%s219 + $0xc] sm:$0xf]
      %v230 = vld [vmem:[%s219 + $0x10] sm:$0xf]
      %v231 = vld [vmem:[%s219 + $0x14] sm:$0xf]
      %v232 = vld [vmem:[%s219 + $0x18] sm:$0xf]
      %v233 = vld [vmem:[%s219 + $0x1c] sm:$0xf]
      %v234 = vld [vmem:[%s219 + $0x20] sm:$0xf]
      %v235 = vld [vmem:[%s219 + $0x24] sm:$0xf]
      %v236 = vld [vmem:[%s219 + $0x28] sm:$0xf]
      %v237 = vld [vmem:[%s219 + $0x2c] sm:$0xf]
      %v238 = vld [vmem:[%s219 + $0x30] sm:$0xf]
      %v239 = vld [vmem:[%s219 + $0x34] sm:$0xf]
      %v240 = vld [vmem:[%s219 + $0x38] sm:$0xf]
      %v241 = vld [vmem:[%s219 + $0x3c] sm:$0xf]
      %v242 = vld [vmem:[%s219 + $0x40] sm:$0xf]
      %v243 = vld [vmem:[%s219 + $0x44] sm:$0xf]
      %v244 = vld [vmem:[%s219 + $0x48] sm:$0xf]
      %v245 = vld [vmem:[%s219 + $0x4c] sm:$0xf]
      %v246 = vld [vmem:[%s219 + $0x50] sm:$0xf]
      %v247 = vld [vmem:[%s219 + $0x54] sm:$0xf]
      %v248 = vld [vmem:[%s219 + $0x58] sm:$0xf]
      %v249 = vld [vmem:[%s219 + $0x5c] sm:$0xf]
      %v250 = vld [vmem:[%s219 + $0x60] sm:$0xf]
      %v251 = vld [vmem:[%s219 + $0x64] sm:$0xf]
      %v252 = vld [vmem:[%s219 + $0x68] sm:$0xf]
      %v253 = vld [vmem:[%s219 + $0x6c] sm:$0xf]
      %v254 = vld [vmem:[%s219 + $0x70] sm:$0xf]
      %v255 = vld [vmem:[%s219 + $0x74] sm:$0xf]
      %v256 = vld [vmem:[%s219 + $0x78] sm:$0xf]
      %v257 = vld [vmem:[%s219 + $0x7c] sm:$0xf]
      %v258 = vld [vmem:[%s219 + $0x80] sm:$0xf]
      %v259 = vld [vmem:[%s219 + $0x84] sm:$0xf]
      %v260 = vld [vmem:[%s219 + $0x88] sm:$0xf]
      %v261 = vld [vmem:[%s219 + $0x8c] sm:$0xf]
      %v262 = vld [vmem:[%s219 + $0x90] sm:$0xf]
      %v263 = vld [vmem:[%s219 + $0x94] sm:$0xf]
      %v264 = vld [vmem:[%s219 + $0x98] sm:$0xf]
      %v265 = vld [vmem:[%s219 + $0x9c] sm:$0xf]
      %v266 = vld [vmem:[%s219 + $0xa0] sm:$0xf]
      %v267 = vld [vmem:[%s219 + $0xa4] sm:$0xf]
      %v268 = vld [vmem:[%s219 + $0xa8] sm:$0xf]
      %v269 = vld [vmem:[%s219 + $0xac] sm:$0xf]
      %v270 = vld [vmem:[%s219 + $0xb0] sm:$0xf]
      %v271 = vld [vmem:[%s219 + $0xb4] sm:$0xf]
      %v272 = vld [vmem:[%s219 + $0xb8] sm:$0xf]
      %v273 = vld [vmem:[%s219 + $0xbc] sm:$0xf]
      %v274 = vld [vmem:[%s219 + $0xc0] sm:$0xf]
      %v275 = vld [vmem:[%s219 + $0xc4] sm:$0xf]
      %v276 = vld [vmem:[%s219 + $0xc8] sm:$0xf]
      %v277 = vld [vmem:[%s219 + $0xcc] sm:$0xf]
      %v278 = vld [vmem:[%s219 + $0xd0] sm:$0xf]
      %v279 = vld [vmem:[%s219 + $0xd4] sm:$0xf]
      %v280 = vld [vmem:[%s219 + $0xd8] sm:$0xf]
      %v281 = vld [vmem:[%s219 + $0xdc] sm:$0xf]
      %v282 = vld [vmem:[%s219 + $0xe0] sm:$0xf]
      %v283 = vld [vmem:[%s219 + $0xe4] sm:$0xf]
      %v284 = vld [vmem:[%s219 + $0xe8] sm:$0xf]
      %v285 = vld [vmem:[%s219 + $0xec] sm:$0xf]
      %v286 = vld [vmem:[%s219 + $0xf0] sm:$0xf]
      %v287 = vld [vmem:[%s219 + $0xf4] sm:$0xf]
      %v288 = vld [vmem:[%s219 + $0xf8] sm:$0xf]
      %v289 = vld [vmem:[%s219 + $0xfc] sm:$0xf]
      %v290 = vld [vmem:[%s219 + $0x100] sm:$0xf]
      %v291 = vld [vmem:[%s219 + $0x104] sm:$0xf]
      %v292 = vld [vmem:[%s219 + $0x108] sm:$0xf]
      %v293 = vld [vmem:[%s219 + $0x10c] sm:$0xf]
      %v294 = vld [vmem:[%s219 + $0x110] sm:$0xf]
      %v295 = vld [vmem:[%s219 + $0x114] sm:$0xf]
      %v296 = vld [vmem:[%s219 + $0x118] sm:$0xf]
      %v297 = vld [vmem:[%s219 + $0x11c] sm:$0xf]
      %v298 = vld [vmem:[%s219 + $0x120] sm:$0xf]
      %v299 = vld [vmem:[%s219 + $0x124] sm:$0xf]
      %v300 = vld [vmem:[%s219 + $0x128] sm:$0xf]
      %v301 = vld [vmem:[%s219 + $0x12c] sm:$0xf]
      %v302 = vld [vmem:[%s219 + $0x130] sm:$0xf]
      %v303 = vld [vmem:[%s219 + $0x134] sm:$0xf]
      %v304 = vld [vmem:[%s219 + $0x138] sm:$0xf]
      %v305 = vld [vmem:[%s219 + $0x13c] sm:$0xf]
      %v306 = vld [vmem:[%s219 + $0x140] sm:$0xf]
      %v307 = vld [vmem:[%s219 + $0x144] sm:$0xf]
      %v308 = vld [vmem:[%s219 + $0x148] sm:$0xf]
      %v309 = vld [vmem:[%s219 + $0x14c] sm:$0xf]
      %v310 = vld [vmem:[%s219 + $0x150] sm:$0xf]
      %v311 = vld [vmem:[%s219 + $0x154] sm:$0xf]
      %v312 = vld [vmem:[%s219 + $0x158] sm:$0xf]
      %v313 = vld [vmem:[%s219 + $0x15c] sm:$0xf]
      %v314 = vld [vmem:[%s219 + $0x160] sm:$0xf]
      %v315 = vld [vmem:[%s219 + $0x164] sm:$0xf]
      %v316 = vld [vmem:[%s219 + $0x168] sm:$0xf]
      %v317 = vld [vmem:[%s219 + $0x16c] sm:$0xf]
      %v318 = vld [vmem:[%s219 + $0x170] sm:$0xf]
      %v319 = vld [vmem:[%s219 + $0x174] sm:$0xf]
      %v320 = vld [vmem:[%s219 + $0x178] sm:$0xf]
      %v321 = vld [vmem:[%s219 + $0x17c] sm:$0xf]
      %v322 = vld [vmem:[%s219 + $0x180] sm:$0xf]
      %v323 = vld [vmem:[%s219 + $0x184] sm:$0xf]
      %v324 = vld [vmem:[%s219 + $0x188] sm:$0xf]
      %v325 = vld [vmem:[%s219 + $0x18c] sm:$0xf]
      %v326 = vld [vmem:[%s219 + $0x190] sm:$0xf]
      %v327 = vld [vmem:[%s219 + $0x194] sm:$0xf]
      %v328 = vld [vmem:[%s219 + $0x198] sm:$0xf]
      %v329 = vld [vmem:[%s219 + $0x19c] sm:$0xf]
      %v330 = vld [vmem:[%s219 + $0x1a0] sm:$0xf]
      %v331 = vld [vmem:[%s219 + $0x1a4] sm:$0xf]
      %v332 = vld [vmem:[%s219 + $0x1a8] sm:$0xf]
      %v333 = vld [vmem:[%s219 + $0x1ac] sm:$0xf]
      %v334 = vld [vmem:[%s219 + $0x1b0] sm:$0xf]
      %v335 = vld [vmem:[%s219 + $0x1b4] sm:$0xf]
      %v336 = vld [vmem:[%s219 + $0x1b8] sm:$0xf]
      %v337 = vld [vmem:[%s219 + $0x1bc] sm:$0xf]
      %v338 = vld [vmem:[%s219 + $0x1c0] sm:$0xf]
      %v339 = vld [vmem:[%s219 + $0x1c4] sm:$0xf]
      %v340 = vld [vmem:[%s219 + $0x1c8] sm:$0xf]
      %v341 = vld [vmem:[%s219 + $0x1cc] sm:$0xf]
      %v342 = vld [vmem:[%s219 + $0x1d0] sm:$0xf]
      %v343 = vld [vmem:[%s219 + $0x1d4] sm:$0xf]
      %v344 = vld [vmem:[%s219 + $0x1d8] sm:$0xf]
      %v345 = vld [vmem:[%s219 + $0x1dc] sm:$0xf]
      %v346 = vld [vmem:[%s219 + $0x1e0] sm:$0xf]
      %v347 = vld [vmem:[%s219 + $0x1e4] sm:$0xf]
      %v348 = vld [vmem:[%s219 + $0x1e8] sm:$0xf]
      %v349 = vld [vmem:[%s219 + $0x1ec] sm:$0xf]
      %v350 = vld [vmem:[%s219 + $0x1f0] sm:$0xf]
      %v351 = vld [vmem:[%s219 + $0x1f4] sm:$0xf]
      %v352 = vld [vmem:[%s219 + $0x1f8] sm:$0xf]
      %v353 = vld [vmem:[%s219 + $0x1fc] sm:$0xf]
      %v354 = vld [vmem:[%s219 + $0x200] sm:$0xf]
      %v355 = vld [vmem:[%s219 + $0x204] sm:$0xf]
      %v356 = vld [vmem:[%s219 + $0x208] sm:$0xf]
      %v357 = vld [vmem:[%s219 + $0x20c] sm:$0xf]
      %v358 = vld [vmem:[%s219 + $0x210] sm:$0xf]
      %v359 = vld [vmem:[%s219 + $0x214] sm:$0xf]
      %v360 = vld [vmem:[%s219 + $0x218] sm:$0xf]
      %v361 = vld [vmem:[%s219 + $0x21c] sm:$0xf]
      %v362 = vld [vmem:[%s219 + $0x220] sm:$0xf]
      %v363 = vld [vmem:[%s219 + $0x224] sm:$0xf]
      %v364 = vld [vmem:[%s219 + $0x228] sm:$0xf]
      %v365 = vld [vmem:[%s219 + $0x22c] sm:$0xf]
      %v366 = vld [vmem:[%s219 + $0x230] sm:$0xf]
      %v367 = vld [vmem:[%s219 + $0x234] sm:$0xf]
      %v368 = vld [vmem:[%s219 + $0x238] sm:$0xf]
      %v369 = vld [vmem:[%s219 + $0x23c] sm:$0xf]
      %v370 = vld [vmem:[%s219 + $0x240] sm:$0xf]
      %v371 = vld [vmem:[%s219 + $0x244] sm:$0xf]
      %v372 = vld [vmem:[%s219 + $0x248] sm:$0xf]
      %v373 = vld [vmem:[%s219 + $0x24c] sm:$0xf]
      %v374 = vld [vmem:[%s219 + $0x250] sm:$0xf]
      %v375 = vld [vmem:[%s219 + $0x254] sm:$0xf]
      %v376 = vld [vmem:[%s219 + $0x258] sm:$0xf]
      %v377 = vld [vmem:[%s219 + $0x25c] sm:$0xf]
      %v378 = vld [vmem:[%s219 + $0x260] sm:$0xf]
      %v379 = vld [vmem:[%s219 + $0x264] sm:$0xf]
      %v380 = vld [vmem:[%s219 + $0x268] sm:$0xf]
      %v381 = vld [vmem:[%s219 + $0x26c] sm:$0xf]
      %v382 = vld [vmem:[%s219 + $0x270] sm:$0xf]
      %v383 = vld [vmem:[%s219 + $0x274] sm:$0xf]
      %v384 = vld [vmem:[%s219 + $0x278] sm:$0xf]
      %v385 = vld [vmem:[%s219 + $0x27c] sm:$0xf]
      %v386 = vld [vmem:[%s219 + $0x280] sm:$0xf]
      %v387 = vld [vmem:[%s219 + $0x284] sm:$0xf]
      %v388 = vld [vmem:[%s219 + $0x288] sm:$0xf]
      %v389 = vld [vmem:[%s219 + $0x28c] sm:$0xf]
      %v390 = vld [vmem:[%s219 + $0x290] sm:$0xf]
      %v391 = vld [vmem:[%s219 + $0x294] sm:$0xf]
      %v392 = vld [vmem:[%s219 + $0x298] sm:$0xf]
      %v393 = vld [vmem:[%s219 + $0x29c] sm:$0xf]
      %v394 = vld [vmem:[%s219 + $0x2a0] sm:$0xf]
      %v395 = vld [vmem:[%s219 + $0x2a4] sm:$0xf]
      %v396 = vld [vmem:[%s219 + $0x2a8] sm:$0xf]
      %v397 = vld [vmem:[%s219 + $0x2ac] sm:$0xf]
      %v398 = vld [vmem:[%s219 + $0x2b0] sm:$0xf]
      %v399 = vld [vmem:[%s219 + $0x2b4] sm:$0xf]
      %v400 = vld [vmem:[%s219 + $0x2b8] sm:$0xf]
      %v401 = vld [vmem:[%s219 + $0x2bc] sm:$0xf]
      %v402 = vld [vmem:[%s219 + $0x2c0] sm:$0xf]
      %v403 = vld [vmem:[%s219 + $0x2c4] sm:$0xf]
      %v404 = vld [vmem:[%s219 + $0x2c8] sm:$0xf]
      %v405 = vld [vmem:[%s219 + $0x2cc] sm:$0xf]
      %v406 = vld [vmem:[%s219 + $0x2d0] sm:$0xf]
      %v407 = vld [vmem:[%s219 + $0x2d4] sm:$0xf]
      %v408 = vld [vmem:[%s219 + $0x2d8] sm:$0xf]
      %v409 = vld [vmem:[%s219 + $0x2dc] sm:$0xf]
      %v410 = vld [vmem:[%s219 + $0x2e0] sm:$0xf]
      %v411 = vld [vmem:[%s219 + $0x2e4] sm:$0xf]
      %v412 = vld [vmem:[%s219 + $0x2e8] sm:$0xf]
      %v413 = vld [vmem:[%s219 + $0x2ec] sm:$0xf]
      %v414 = vld [vmem:[%s219 + $0x2f0] sm:$0xf]
      %v415 = vld [vmem:[%s219 + $0x2f4] sm:$0xf]
      %v416 = vld [vmem:[%s219 + $0x2f8] sm:$0xf]
      %v417 = vld [vmem:[%s219 + $0x2fc] sm:$0xf]
      %v418 = vld [vmem:[%s219 + $0x300] sm:$0xf]
      %v419 = vld [vmem:[%s219 + $0x304] sm:$0xf]
      %v420 = vld [vmem:[%s219 + $0x308] sm:$0xf]
      %v421 = vld [vmem:[%s219 + $0x30c] sm:$0xf]
      %v422 = vld [vmem:[%s219 + $0x310] sm:$0xf]
      %v423 = vld [vmem:[%s219 + $0x314] sm:$0xf]
      %v424 = vld [vmem:[%s219 + $0x318] sm:$0xf]
      %v425 = vld [vmem:[%s219 + $0x31c] sm:$0xf]
      %v426 = vld [vmem:[%s219 + $0x320] sm:$0xf]
      %v427 = vld [vmem:[%s219 + $0x324] sm:$0xf]
      %v428 = vld [vmem:[%s219 + $0x328] sm:$0xf]
      %v429 = vld [vmem:[%s219 + $0x32c] sm:$0xf]
      %v430 = vld [vmem:[%s219 + $0x330] sm:$0xf]
      %v431 = vld [vmem:[%s219 + $0x334] sm:$0xf]
      %v432 = vld [vmem:[%s219 + $0x338] sm:$0xf]
      %v433 = vld [vmem:[%s219 + $0x33c] sm:$0xf]
      %v434 = vld [vmem:[%s219 + $0x340] sm:$0xf]
      %v435 = vld [vmem:[%s219 + $0x344] sm:$0xf]
      %v436 = vld [vmem:[%s219 + $0x348] sm:$0xf]
      %v437 = vld [vmem:[%s219 + $0x34c] sm:$0xf]
      %v438 = vld [vmem:[%s219 + $0x350] sm:$0xf]
      %v439 = vld [vmem:[%s219 + $0x354] sm:$0xf]
      %v440 = vld [vmem:[%s219 + $0x358] sm:$0xf]
      %v441 = vld [vmem:[%s219 + $0x35c] sm:$0xf]
      %v442 = vld [vmem:[%s219 + $0x360] sm:$0xf]
      %v443 = vld [vmem:[%s219 + $0x364] sm:$0xf]
      %v444 = vld [vmem:[%s219 + $0x368] sm:$0xf]
      %v445 = vld [vmem:[%s219 + $0x36c] sm:$0xf]
      %v446 = vld [vmem:[%s219 + $0x370] sm:$0xf]
      %v447 = vld [vmem:[%s219 + $0x374] sm:$0xf]
      %v448 = vld [vmem:[%s219 + $0x378] sm:$0xf]
      %v449 = vld [vmem:[%s219 + $0x37c] sm:$0xf]
      %v450 = vld [vmem:[%s219 + $0x380] sm:$0xf]
      %v451 = vld [vmem:[%s219 + $0x384] sm:$0xf]
      %v452 = vld [vmem:[%s219 + $0x388] sm:$0xf]
      %v453 = vld [vmem:[%s219 + $0x38c] sm:$0xf]
      %v454 = vld [vmem:[%s219 + $0x390] sm:$0xf]
      %v455 = vld [vmem:[%s219 + $0x394] sm:$0xf]
      %v456 = vld [vmem:[%s219 + $0x398] sm:$0xf]
      %v457 = vld [vmem:[%s219 + $0x39c] sm:$0xf]
      %v458 = vld [vmem:[%s219 + $0x3a0] sm:$0xf]
      %v459 = vld [vmem:[%s219 + $0x3a4] sm:$0xf]
      %v460 = vld [vmem:[%s219 + $0x3a8] sm:$0xf]
      %v461 = vld [vmem:[%s219 + $0x3ac] sm:$0xf]
      %v462 = vld [vmem:[%s219 + $0x3b0] sm:$0xf]
      %v463 = vld [vmem:[%s219 + $0x3b4] sm:$0xf]
      %v464 = vld [vmem:[%s219 + $0x3b8] sm:$0xf]
      %v465 = vld [vmem:[%s219 + $0x3bc] sm:$0xf]
      %v466 = vld [vmem:[%s219 + $0x3c0] sm:$0xf]
      %v467 = vld [vmem:[%s219 + $0x3c4] sm:$0xf]
      %v468 = vld [vmem:[%s219 + $0x3c8] sm:$0xf]
      %v469 = vld [vmem:[%s219 + $0x3cc] sm:$0xf]
      %v470 = vld [vmem:[%s219 + $0x3d0] sm:$0xf]
      %v471 = vld [vmem:[%s219 + $0x3d4] sm:$0xf]
      %v472 = vld [vmem:[%s219 + $0x3d8] sm:$0xf]
      %v473 = vld [vmem:[%s219 + $0x3dc] sm:$0xf]
      %v474 = vld [vmem:[%s219 + $0x3e0] sm:$0xf]
      %v475 = vld [vmem:[%s219 + $0x3e4] sm:$0xf]
      %v476 = vld [vmem:[%s219 + $0x3e8] sm:$0xf]
      %v477 = vld [vmem:[%s219 + $0x3ec] sm:$0xf]
      %v478 = vld [vmem:[%s219 + $0x3f0] sm:$0xf]
      %v479 = vld [vmem:[%s219 + $0x3f4] sm:$0xf]
      %v480 = vld [vmem:[%s219 + $0x3f8] sm:$0xf]
      %v481 = vld [vmem:[%s219 + $0x3fc] sm:$0xf]
      %v482 = vld [vmem:[%s219 + $0x400] sm:$0xf]
      %v483 = vld [vmem:[%s219 + $0x404] sm:$0xf]
      %v484 = vld [vmem:[%s219 + $0x408] sm:$0xf]
      %v485 = vld [vmem:[%s219 + $0x40c] sm:$0xf]
      %v486 = vld [vmem:[%s219 + $0x410] sm:$0xf]
      %v487 = vld [vmem:[%s219 + $0x414] sm:$0xf]
      %v488 = vld [vmem:[%s219 + $0x418] sm:$0xf]
      %v489 = vld [vmem:[%s219 + $0x41c] sm:$0xf]
      %v490 = vld [vmem:[%s219 + $0x420] sm:$0xf]
      %v491 = vld [vmem:[%s219 + $0x424] sm:$0xf]
      %v492 = vld [vmem:[%s219 + $0x428] sm:$0xf]
      %v493 = vld [vmem:[%s219 + $0x42c] sm:$0xf]
      %v494 = vld [vmem:[%s219 + $0x430] sm:$0xf]
      %v495 = vld [vmem:[%s219 + $0x434] sm:$0xf]
      %v496 = vld [vmem:[%s219 + $0x438] sm:$0xf]
      %v497 = vld [vmem:[%s219 + $0x43c] sm:$0xf]
      %v498 = vld [vmem:[%s219 + $0x440] sm:$0xf]
      %v499 = vld [vmem:[%s219 + $0x444] sm:$0xf]
      %v500 = vld [vmem:[%s219 + $0x448] sm:$0xf]
      %v501 = vld [vmem:[%s219 + $0x44c] sm:$0xf]
      %v502 = vld [vmem:[%s219 + $0x450] sm:$0xf]
      %v503 = vld [vmem:[%s219 + $0x454] sm:$0xf]
      %v504 = vld [vmem:[%s219 + $0x458] sm:$0xf]
      %v505 = vld [vmem:[%s219 + $0x45c] sm:$0xf]
      %v506 = vld [vmem:[%s219 + $0x460] sm:$0xf]
      %v507 = vld [vmem:[%s219 + $0x464] sm:$0xf]
      %v508 = vld [vmem:[%s219 + $0x468] sm:$0xf]
      %v509 = vld [vmem:[%s219 + $0x46c] sm:$0xf]
      %v510 = vld [vmem:[%s219 + $0x470] sm:$0xf]
      %v511 = vld [vmem:[%s219 + $0x474] sm:$0xf]
      %v512 = vld [vmem:[%s219 + $0x478] sm:$0xf]
      %v513 = vld [vmem:[%s219 + $0x47c] sm:$0xf]
      %v514 = vld [vmem:[%s219 + $0x480] sm:$0xf]
      %v515 = vld [vmem:[%s219 + $0x484] sm:$0xf]
      %v516 = vld [vmem:[%s219 + $0x488] sm:$0xf]
      %v517 = vld [vmem:[%s219 + $0x48c] sm:$0xf]
      %v518 = vld [vmem:[%s219 + $0x490] sm:$0xf]
      %v519 = vld [vmem:[%s219 + $0x494] sm:$0xf]
      %v520 = vld [vmem:[%s219 + $0x498] sm:$0xf]
      %v521 = vld [vmem:[%s219 + $0x49c] sm:$0xf]
      %v522 = vld [vmem:[%s219 + $0x4a0] sm:$0xf]
      %v523 = vld [vmem:[%s219 + $0x4a4] sm:$0xf]
      %v524 = vld [vmem:[%s219 + $0x4a8] sm:$0xf]
      %v525 = vld [vmem:[%s219 + $0x4ac] sm:$0xf]
      %v526 = vld [vmem:[%s219 + $0x4b0] sm:$0xf]
      %v527 = vld [vmem:[%s219 + $0x4b4] sm:$0xf]
      %v528 = vld [vmem:[%s219 + $0x4b8] sm:$0xf]
      %v529 = vld [vmem:[%s219 + $0x4bc] sm:$0xf]
      %v530 = vld [vmem:[%s219 + $0x4c0] sm:$0xf]
      %v531 = vld [vmem:[%s219 + $0x4c4] sm:$0xf]
      %v532 = vld [vmem:[%s219 + $0x4c8] sm:$0xf]
      %v533 = vld [vmem:[%s219 + $0x4cc] sm:$0xf]
      %v534 = vld [vmem:[%s219 + $0x4d0] sm:$0xf]
      %v535 = vld [vmem:[%s219 + $0x4d4] sm:$0xf]
      %v536 = vld [vmem:[%s219 + $0x4d8] sm:$0xf]
      %v537 = vld [vmem:[%s219 + $0x4dc] sm:$0xf]
      %v538 = vld [vmem:[%s219 + $0x4e0] sm:$0xf]
      %v539 = vld [vmem:[%s219 + $0x4e4] sm:$0xf]
      %v540 = vld [vmem:[%s219 + $0x4e8] sm:$0xf]
      %v541 = vld [vmem:[%s219 + $0x4ec] sm:$0xf]
      %v542 = vld [vmem:[%s219 + $0x4f0] sm:$0xf]
      %v543 = vld [vmem:[%s219 + $0x4f4] sm:$0xf]
      %v544 = vld [vmem:[%s219 + $0x4f8] sm:$0xf]
      %v545 = vld [vmem:[%s219 + $0x4fc] sm:$0xf]
      %v546 = vld [vmem:[%s1] sm:$0xf]
      %v547 = vld [vmem:[%s1 + $0x4] sm:$0xf]
      %v548 = vld [vmem:[%s1 + $0x8] sm:$0xf]
      %v549 = vld [vmem:[%s1 + $0xc] sm:$0x1]
      %v550 = vld [vmem:[%s2] sm:$0x1]
      %v552 = vperm.slane %v550, 0
      %v874 = vunpack.c.l.b16 %v226
      %v875 = vunpack.c.l.b16 %v227
      %v876 = vunpack.c.l.b16 %v228
      %v877 = vunpack.c.l.b16 %v229
      %v878 = vunpack.c.l.b16 %v230
      %v879 = vunpack.c.l.b16 %v231
      %v880 = vunpack.c.l.b16 %v232
      %v881 = vunpack.c.l.b16 %v233
      %v882 = vunpack.c.l.b16 %v234
      %v883 = vunpack.c.l.b16 %v235
      %v884 = vunpack.c.l.b16 %v236
      %v885 = vunpack.c.l.b16 %v237
      %v886 = vunpack.c.l.b16 %v238
      %v887 = vunpack.c.l.b16 %v239
      %v888 = vunpack.c.l.b16 %v240
      %v889 = vunpack.c.l.b16 %v241
      %v890 = vunpack.c.l.b16 %v242
      %v891 = vunpack.c.l.b16 %v243
      %v892 = vunpack.c.l.b16 %v244
      %v893 = vunpack.c.l.b16 %v245
      %v894 = vunpack.c.l.b16 %v246
      %v895 = vunpack.c.l.b16 %v247
      %v896 = vunpack.c.l.b16 %v248
      %v897 = vunpack.c.l.b16 %v249
      %v898 = vunpack.c.l.b16 %v250
      %v899 = vunpack.c.l.b16 %v251
      %v900 = vunpack.c.l.b16 %v252
      %v901 = vunpack.c.l.b16 %v253
      %v902 = vunpack.c.l.b16 %v254
      %v903 = vunpack.c.l.b16 %v255
      %v904 = vunpack.c.l.b16 %v256
      %v905 = vunpack.c.l.b16 %v257
      %v906 = vunpack.c.l.b16 %v258
      %v907 = vunpack.c.l.b16 %v259
      %v908 = vunpack.c.l.b16 %v260
      %v909 = vunpack.c.l.b16 %v261
      %v910 = vunpack.c.l.b16 %v262
      %v911 = vunpack.c.l.b16 %v263
      %v912 = vunpack.c.l.b16 %v264
      %v913 = vunpack.c.l.b16 %v265
      %v914 = vunpack.c.l.b16 %v266
      %v915 = vunpack.c.l.b16 %v267
      %v916 = vunpack.c.l.b16 %v268
      %v917 = vunpack.c.l.b16 %v269
      %v918 = vunpack.c.l.b16 %v270
      %v919 = vunpack.c.l.b16 %v271
      %v920 = vunpack.c.l.b16 %v272
      %v921 = vunpack.c.l.b16 %v273
      %v922 = vunpack.c.l.b16 %v274
      %v923 = vunpack.c.l.b16 %v275
      %v924 = vunpack.c.l.b16 %v276
      %v925 = vunpack.c.l.b16 %v277
      %v926 = vunpack.c.l.b16 %v278
      %v927 = vunpack.c.l.b16 %v279
      %v928 = vunpack.c.l.b16 %v280
      %v929 = vunpack.c.l.b16 %v281
      %v930 = vunpack.c.l.b16 %v282
      %v931 = vunpack.c.l.b16 %v283
      %v932 = vunpack.c.l.b16 %v284
      %v933 = vunpack.c.l.b16 %v285
      %v934 = vunpack.c.l.b16 %v286
      %v935 = vunpack.c.l.b16 %v287
      %v936 = vunpack.c.l.b16 %v288
      %v937 = vunpack.c.l.b16 %v289
      %v938 = vunpack.c.l.b16 %v290
      %v939 = vunpack.c.l.b16 %v291
      %v940 = vunpack.c.l.b16 %v292
      %v941 = vunpack.c.l.b16 %v293
      %v942 = vunpack.c.l.b16 %v294
      %v943 = vunpack.c.l.b16 %v295
      %v944 = vunpack.c.l.b16 %v296
      %v945 = vunpack.c.l.b16 %v297
      %v946 = vunpack.c.l.b16 %v298
      %v947 = vunpack.c.l.b16 %v299
      %v948 = vunpack.c.l.b16 %v300
      %v949 = vunpack.c.l.b16 %v301
      %v950 = vunpack.c.l.b16 %v302
      %v951 = vunpack.c.l.b16 %v303
      %v952 = vunpack.c.l.b16 %v304
      %v953 = vunpack.c.l.b16 %v305
      %v954 = vunpack.c.l.b16 %v306
      %v955 = vunpack.c.l.b16 %v307
      %v956 = vunpack.c.l.b16 %v308
      %v957 = vunpack.c.l.b16 %v309
      %v958 = vunpack.c.l.b16 %v310
      %v959 = vunpack.c.l.b16 %v311
      %v960 = vunpack.c.l.b16 %v312
      %v961 = vunpack.c.l.b16 %v313
      %v962 = vunpack.c.l.b16 %v314
      %v963 = vunpack.c.l.b16 %v315
      %v964 = vunpack.c.l.b16 %v316
      %v965 = vunpack.c.l.b16 %v317
      %v966 = vunpack.c.l.b16 %v318
      %v967 = vunpack.c.l.b16 %v319
      %v968 = vunpack.c.l.b16 %v320
      %v969 = vunpack.c.l.b16 %v321
      %v970 = vunpack.c.l.b16 %v322
      %v971 = vunpack.c.l.b16 %v323
      %v972 = vunpack.c.l.b16 %v324
      %v973 = vunpack.c.l.b16 %v325
      %v974 = vunpack.c.l.b16 %v326
      %v975 = vunpack.c.l.b16 %v327
      %v976 = vunpack.c.l.b16 %v328
      %v977 = vunpack.c.l.b16 %v329
      %v978 = vunpack.c.l.b16 %v330
      %v979 = vunpack.c.l.b16 %v331
      %v980 = vunpack.c.l.b16 %v332
      %v981 = vunpack.c.l.b16 %v333
      %v982 = vunpack.c.l.b16 %v334
      %v983 = vunpack.c.l.b16 %v335
      %v984 = vunpack.c.l.b16 %v336
      %v985 = vunpack.c.l.b16 %v337
      %v986 = vunpack.c.l.b16 %v338
      %v987 = vunpack.c.l.b16 %v339
      %v988 = vunpack.c.l.b16 %v340
      %v989 = vunpack.c.l.b16 %v341
      %v990 = vunpack.c.l.b16 %v342
      %v991 = vunpack.c.l.b16 %v343
      %v992 = vunpack.c.l.b16 %v344
      %v993 = vunpack.c.l.b16 %v345
      %v994 = vunpack.c.l.b16 %v346
      %v995 = vunpack.c.l.b16 %v347
      %v996 = vunpack.c.l.b16 %v348
      %v997 = vunpack.c.l.b16 %v349
      %v998 = vunpack.c.l.b16 %v350
      %v999 = vunpack.c.l.b16 %v351
      %v1000 = vunpack.c.l.b16 %v352
      %v1001 = vunpack.c.l.b16 %v353
      %v1002 = vunpack.c.l.b16 %v354
      %v1003 = vunpack.c.l.b16 %v355
      %v1004 = vunpack.c.l.b16 %v356
      %v1005 = vunpack.c.l.b16 %v357
      %v1006 = vunpack.c.l.b16 %v358
      %v1007 = vunpack.c.l.b16 %v359
      %v1008 = vunpack.c.l.b16 %v360
      %v1009 = vunpack.c.l.b16 %v361
      %v1010 = vunpack.c.l.b16 %v362
      %v1011 = vunpack.c.l.b16 %v363
      %v1012 = vunpack.c.l.b16 %v364
      %v1013 = vunpack.c.l.b16 %v365
      %v1014 = vunpack.c.l.b16 %v366
      %v1015 = vunpack.c.l.b16 %v367
      %v1016 = vunpack.c.l.b16 %v368
      %v1017 = vunpack.c.l.b16 %v369
      %v1018 = vunpack.c.l.b16 %v370
      %v1019 = vunpack.c.l.b16 %v371
      %v1020 = vunpack.c.l.b16 %v372
      %v1021 = vunpack.c.l.b16 %v373
      %v1022 = vunpack.c.l.b16 %v374
      %v1023 = vunpack.c.l.b16 %v375
      %v1024 = vunpack.c.l.b16 %v376
      %v1025 = vunpack.c.l.b16 %v377
      %v1026 = vunpack.c.l.b16 %v378
      %v1027 = vunpack.c.l.b16 %v379
      %v1028 = vunpack.c.l.b16 %v380
      %v1029 = vunpack.c.l.b16 %v381
      %v1030 = vunpack.c.l.b16 %v382
      %v1031 = vunpack.c.l.b16 %v383
      %v1032 = vunpack.c.l.b16 %v384
      %v1033 = vunpack.c.l.b16 %v385
      %v1034 = vunpack.c.l.b16 %v386
      %v1035 = vunpack.c.l.b16 %v387
      %v1036 = vunpack.c.l.b16 %v388
      %v1037 = vunpack.c.l.b16 %v389
      %v1038 = vunpack.c.l.b16 %v390
      %v1039 = vunpack.c.l.b16 %v391
      %v1040 = vunpack.c.l.b16 %v392
      %v1041 = vunpack.c.l.b16 %v393
      %v1042 = vunpack.c.l.b16 %v394
      %v1043 = vunpack.c.l.b16 %v395
      %v1044 = vunpack.c.l.b16 %v396
      %v1045 = vunpack.c.l.b16 %v397
      %v1046 = vunpack.c.l.b16 %v398
      %v1047 = vunpack.c.l.b16 %v399
      %v1048 = vunpack.c.l.b16 %v400
      %v1049 = vunpack.c.l.b16 %v401
      %v1050 = vunpack.c.l.b16 %v402
      %v1051 = vunpack.c.l.b16 %v403
      %v1052 = vunpack.c.l.b16 %v404
      %v1053 = vunpack.c.l.b16 %v405
      %v1054 = vunpack.c.l.b16 %v406
      %v1055 = vunpack.c.l.b16 %v407
      %v1056 = vunpack.c.l.b16 %v408
      %v1057 = vunpack.c.l.b16 %v409
      %v1058 = vunpack.c.l.b16 %v410
      %v1059 = vunpack.c.l.b16 %v411
      %v1060 = vunpack.c.l.b16 %v412
      %v1061 = vunpack.c.l.b16 %v413
      %v1062 = vunpack.c.l.b16 %v414
      %v1063 = vunpack.c.l.b16 %v415
      %v1064 = vunpack.c.l.b16 %v416
      %v1065 = vunpack.c.l.b16 %v417
      %v1066 = vunpack.c.l.b16 %v418
      %v1067 = vunpack.c.l.b16 %v419
      %v1068 = vunpack.c.l.b16 %v420
      %v1069 = vunpack.c.l.b16 %v421
      %v1070 = vunpack.c.l.b16 %v422
      %v1071 = vunpack.c.l.b16 %v423
      %v1072 = vunpack.c.l.b16 %v424
      %v1073 = vunpack.c.l.b16 %v425
      %v1074 = vunpack.c.l.b16 %v426
      %v1075 = vunpack.c.l.b16 %v427
      %v1076 = vunpack.c.l.b16 %v428
      %v1077 = vunpack.c.l.b16 %v429
      %v1078 = vunpack.c.l.b16 %v430
      %v1079 = vunpack.c.l.b16 %v431
      %v1080 = vunpack.c.l.b16 %v432
      %v1081 = vunpack.c.l.b16 %v433
      %v1082 = vunpack.c.l.b16 %v434
      %v1083 = vunpack.c.l.b16 %v435
      %v1084 = vunpack.c.l.b16 %v436
      %v1085 = vunpack.c.l.b16 %v437
      %v1086 = vunpack.c.l.b16 %v438
      %v1087 = vunpack.c.l.b16 %v439
      %v1088 = vunpack.c.l.b16 %v440
      %v1089 = vunpack.c.l.b16 %v441
      %v1090 = vunpack.c.l.b16 %v442
      %v1091 = vunpack.c.l.b16 %v443
      %v1092 = vunpack.c.l.b16 %v444
      %v1093 = vunpack.c.l.b16 %v445
      %v1094 = vunpack.c.l.b16 %v446
      %v1095 = vunpack.c.l.b16 %v447
      %v1096 = vunpack.c.l.b16 %v448
      %v1097 = vunpack.c.l.b16 %v449
      %v1098 = vunpack.c.l.b16 %v450
      %v1099 = vunpack.c.l.b16 %v451
      %v1100 = vunpack.c.l.b16 %v452
      %v1101 = vunpack.c.l.b16 %v453
      %v1102 = vunpack.c.l.b16 %v454
      %v1103 = vunpack.c.l.b16 %v455
      %v1104 = vunpack.c.l.b16 %v456
      %v1105 = vunpack.c.l.b16 %v457
      %v1106 = vunpack.c.l.b16 %v458
      %v1107 = vunpack.c.l.b16 %v459
      %v1108 = vunpack.c.l.b16 %v460
      %v1109 = vunpack.c.l.b16 %v461
      %v1110 = vunpack.c.l.b16 %v462
      %v1111 = vunpack.c.l.b16 %v463
      %v1112 = vunpack.c.l.b16 %v464
      %v1113 = vunpack.c.l.b16 %v465
      %v1114 = vunpack.c.l.b16 %v466
      %v1115 = vunpack.c.l.b16 %v467
      %v1116 = vunpack.c.l.b16 %v468
      %v1117 = vunpack.c.l.b16 %v469
      %v1118 = vunpack.c.l.b16 %v470
      %v1119 = vunpack.c.l.b16 %v471
      %v1120 = vunpack.c.l.b16 %v472
      %v1121 = vunpack.c.l.b16 %v473
      %v1122 = vunpack.c.l.b16 %v474
      %v1123 = vunpack.c.l.b16 %v475
      %v1124 = vunpack.c.l.b16 %v476
      %v1125 = vunpack.c.l.b16 %v477
      %v1126 = vunpack.c.l.b16 %v478
      %v1127 = vunpack.c.l.b16 %v479
      %v1128 = vunpack.c.l.b16 %v480
      %v1129 = vunpack.c.l.b16 %v481
      %v1130 = vunpack.c.l.b16 %v482
      %v1131 = vunpack.c.l.b16 %v483
      %v1132 = vunpack.c.l.b16 %v484
      %v1133 = vunpack.c.l.b16 %v485
      %v1134 = vunpack.c.l.b16 %v486
      %v1135 = vunpack.c.l.b16 %v487
      %v1136 = vunpack.c.l.b16 %v488
      %v1137 = vunpack.c.l.b16 %v489
      %v1138 = vunpack.c.l.b16 %v490
      %v1139 = vunpack.c.l.b16 %v491
      %v1140 = vunpack.c.l.b16 %v492
      %v1141 = vunpack.c.l.b16 %v493
      %v1142 = vunpack.c.l.b16 %v494
      %v1143 = vunpack.c.l.b16 %v495
      %v1144 = vunpack.c.l.b16 %v496
      %v1145 = vunpack.c.l.b16 %v497
      %v1146 = vunpack.c.l.b16 %v498
      %v1147 = vunpack.c.l.b16 %v499
      %v1148 = vunpack.c.l.b16 %v500
      %v1149 = vunpack.c.l.b16 %v501
      %v1150 = vunpack.c.l.b16 %v502
      %v1151 = vunpack.c.l.b16 %v503
      %v1152 = vunpack.c.l.b16 %v504
      %v1153 = vunpack.c.l.b16 %v505
      %v1154 = vunpack.c.l.b16 %v506
      %v1155 = vunpack.c.l.b16 %v507
      %v1156 = vunpack.c.l.b16 %v508
      %v1157 = vunpack.c.l.b16 %v509
      %v1158 = vunpack.c.l.b16 %v510
      %v1159 = vunpack.c.l.b16 %v511
      %v1160 = vunpack.c.l.b16 %v512
      %v1161 = vunpack.c.l.b16 %v513
      %v1162 = vunpack.c.l.b16 %v514
      %v1163 = vunpack.c.l.b16 %v515
      %v1164 = vunpack.c.l.b16 %v516
      %v1165 = vunpack.c.l.b16 %v517
      %v1166 = vunpack.c.l.b16 %v518
      %v1167 = vunpack.c.l.b16 %v519
      %v1168 = vunpack.c.l.b16 %v520
      %v1169 = vunpack.c.l.b16 %v521
      %v1170 = vunpack.c.l.b16 %v522
      %v1171 = vunpack.c.l.b16 %v523
      %v1172 = vunpack.c.l.b16 %v524
      %v1173 = vunpack.c.l.b16 %v525
      %v1174 = vunpack.c.l.b16 %v526
      %v1175 = vunpack.c.l.b16 %v527
      %v1176 = vunpack.c.l.b16 %v528
      %v1177 = vunpack.c.l.b16 %v529
      %v1178 = vunpack.c.l.b16 %v530
      %v1179 = vunpack.c.l.b16 %v531
      %v1180 = vunpack.c.l.b16 %v532
      %v1181 = vunpack.c.l.b16 %v533
      %v1182 = vunpack.c.l.b16 %v534
      %v1183 = vunpack.c.l.b16 %v535
      %v1184 = vunpack.c.l.b16 %v536
      %v1185 = vunpack.c.l.b16 %v537
      %v1186 = vunpack.c.l.b16 %v538
      %v1187 = vunpack.c.l.b16 %v539
      %v1188 = vunpack.c.l.b16 %v540
      %v1189 = vunpack.c.l.b16 %v541
      %v1190 = vunpack.c.l.b16 %v542
      %v1191 = vunpack.c.l.b16 %v543
      %v1192 = vunpack.c.l.b16 %v544
      %v1193 = vunpack.c.l.b16 %v545
      %v1194 = vpack.c.b16 %v875, %v874
      %v1195 = vpack.c.b16 %v877, %v876
      %v1196 = vpack.c.b16 %v879, %v878
      %v1197 = vpack.c.b16 %v881, %v880
      %v1198 = vpack.c.b16 %v883, %v882
      %v1199 = vpack.c.b16 %v885, %v884
      %v1200 = vpack.c.b16 %v887, %v886
      %v1201 = vpack.c.b16 %v889, %v888
      %v1202 = vpack.c.b16 %v891, %v890
      %v1203 = vpack.c.b16 %v893, %v892
      %v1204 = vpack.c.b16 %v895, %v894
      %v1205 = vpack.c.b16 %v897, %v896
      %v1206 = vpack.c.b16 %v899, %v898
      %v1207 = vpack.c.b16 %v901, %v900
      %v1208 = vpack.c.b16 %v903, %v902
      %v1209 = vpack.c.b16 %v905, %v904
      %v1210 = vpack.c.b16 %v907, %v906
      %v1211 = vpack.c.b16 %v909, %v908
      %v1212 = vpack.c.b16 %v911, %v910
      %v1213 = vpack.c.b16 %v913, %v912
      %v1214 = vpack.c.b16 %v915, %v914
      %v1215 = vpack.c.b16 %v917, %v916
      %v1216 = vpack.c.b16 %v919, %v918
      %v1217 = vpack.c.b16 %v921, %v920
      %v1218 = vpack.c.b16 %v923, %v922
      %v1219 = vpack.c.b16 %v925, %v924
      %v1220 = vpack.c.b16 %v927, %v926
      %v1221 = vpack.c.b16 %v929, %v928
      %v1222 = vpack.c.b16 %v931, %v930
      %v1223 = vpack.c.b16 %v933, %v932
      %v1224 = vpack.c.b16 %v935, %v934
      %v1225 = vpack.c.b16 %v937, %v936
      %v1226 = vpack.c.b16 %v939, %v938
      %v1227 = vpack.c.b16 %v941, %v940
      %v1228 = vpack.c.b16 %v943, %v942
      %v1229 = vpack.c.b16 %v945, %v944
      %v1230 = vpack.c.b16 %v947, %v946
      %v1231 = vpack.c.b16 %v949, %v948
      %v1232 = vpack.c.b16 %v951, %v950
      %v1233 = vpack.c.b16 %v953, %v952
      %v1234 = vpack.c.b16 %v955, %v954
      %v1235 = vpack.c.b16 %v957, %v956
      %v1236 = vpack.c.b16 %v959, %v958
      %v1237 = vpack.c.b16 %v961, %v960
      %v1238 = vpack.c.b16 %v963, %v962
      %v1239 = vpack.c.b16 %v965, %v964
      %v1240 = vpack.c.b16 %v967, %v966
      %v1241 = vpack.c.b16 %v969, %v968
      %v1242 = vpack.c.b16 %v971, %v970
      %v1243 = vpack.c.b16 %v973, %v972
      %v1244 = vpack.c.b16 %v975, %v974
      %v1245 = vpack.c.b16 %v977, %v976
      %v1246 = vpack.c.b16 %v979, %v978
      %v1247 = vpack.c.b16 %v981, %v980
      %v1248 = vpack.c.b16 %v983, %v982
      %v1249 = vpack.c.b16 %v985, %v984
      %v1250 = vpack.c.b16 %v987, %v986
      %v1251 = vpack.c.b16 %v989, %v988
      %v1252 = vpack.c.b16 %v991, %v990
      %v1253 = vpack.c.b16 %v993, %v992
      %v1254 = vpack.c.b16 %v995, %v994
      %v1255 = vpack.c.b16 %v997, %v996
      %v1256 = vpack.c.b16 %v999, %v998
      %v1257 = vpack.c.b16 %v1001, %v1000
      %v1258 = vpack.c.b16 %v1003, %v1002
      %v1259 = vpack.c.b16 %v1005, %v1004
      %v1260 = vpack.c.b16 %v1007, %v1006
      %v1261 = vpack.c.b16 %v1009, %v1008
      %v1262 = vpack.c.b16 %v1011, %v1010
      %v1263 = vpack.c.b16 %v1013, %v1012
      %v1264 = vpack.c.b16 %v1015, %v1014
      %v1265 = vpack.c.b16 %v1017, %v1016
      %v1266 = vpack.c.b16 %v1019, %v1018
      %v1267 = vpack.c.b16 %v1021, %v1020
      %v1268 = vpack.c.b16 %v1023, %v1022
      %v1269 = vpack.c.b16 %v1025, %v1024
      %v1270 = vpack.c.b16 %v1027, %v1026
      %v1271 = vpack.c.b16 %v1029, %v1028
      %v1272 = vpack.c.b16 %v1031, %v1030
      %v1273 = vpack.c.b16 %v1033, %v1032
      %v1274 = vpack.c.b16 %v1035, %v1034
      %v1275 = vpack.c.b16 %v1037, %v1036
      %v1276 = vpack.c.b16 %v1039, %v1038
      %v1277 = vpack.c.b16 %v1041, %v1040
      %v1278 = vpack.c.b16 %v1043, %v1042
      %v1279 = vpack.c.b16 %v1045, %v1044
      %v1280 = vpack.c.b16 %v1047, %v1046
      %v1281 = vpack.c.b16 %v1049, %v1048
      %v1282 = vpack.c.b16 %v1051, %v1050
      %v1283 = vpack.c.b16 %v1053, %v1052
      %v1284 = vpack.c.b16 %v1055, %v1054
      %v1285 = vpack.c.b16 %v1057, %v1056
      %v1286 = vpack.c.b16 %v1059, %v1058
      %v1287 = vpack.c.b16 %v1061, %v1060
      %v1288 = vpack.c.b16 %v1063, %v1062
      %v1289 = vpack.c.b16 %v1065, %v1064
      %v1290 = vpack.c.b16 %v1067, %v1066
      %v1291 = vpack.c.b16 %v1069, %v1068
      %v1292 = vpack.c.b16 %v1071, %v1070
      %v1293 = vpack.c.b16 %v1073, %v1072
      %v1294 = vpack.c.b16 %v1075, %v1074
      %v1295 = vpack.c.b16 %v1077, %v1076
      %v1296 = vpack.c.b16 %v1079, %v1078
      %v1297 = vpack.c.b16 %v1081, %v1080
      %v1298 = vpack.c.b16 %v1083, %v1082
      %v1299 = vpack.c.b16 %v1085, %v1084
      %v1300 = vpack.c.b16 %v1087, %v1086
      %v1301 = vpack.c.b16 %v1089, %v1088
      %v1302 = vpack.c.b16 %v1091, %v1090
      %v1303 = vpack.c.b16 %v1093, %v1092
      %v1304 = vpack.c.b16 %v1095, %v1094
      %v1305 = vpack.c.b16 %v1097, %v1096
      %v1306 = vpack.c.b16 %v1099, %v1098
      %v1307 = vpack.c.b16 %v1101, %v1100
      %v1308 = vpack.c.b16 %v1103, %v1102
      %v1309 = vpack.c.b16 %v1105, %v1104
      %v1310 = vpack.c.b16 %v1107, %v1106
      %v1311 = vpack.c.b16 %v1109, %v1108
      %v1312 = vpack.c.b16 %v1111, %v1110
      %v1313 = vpack.c.b16 %v1113, %v1112
      %v1314 = vpack.c.b16 %v1115, %v1114
      %v1315 = vpack.c.b16 %v1117, %v1116
      %v1316 = vpack.c.b16 %v1119, %v1118
      %v1317 = vpack.c.b16 %v1121, %v1120
      %v1318 = vpack.c.b16 %v1123, %v1122
      %v1319 = vpack.c.b16 %v1125, %v1124
      %v1320 = vpack.c.b16 %v1127, %v1126
      %v1321 = vpack.c.b16 %v1129, %v1128
      %v1322 = vpack.c.b16 %v1131, %v1130
      %v1323 = vpack.c.b16 %v1133, %v1132
      %v1324 = vpack.c.b16 %v1135, %v1134
      %v1325 = vpack.c.b16 %v1137, %v1136
      %v1326 = vpack.c.b16 %v1139, %v1138
      %v1327 = vpack.c.b16 %v1141, %v1140
      %v1328 = vpack.c.b16 %v1143, %v1142
      %v1329 = vpack.c.b16 %v1145, %v1144
      %v1330 = vpack.c.b16 %v1147, %v1146
      %v1331 = vpack.c.b16 %v1149, %v1148
      %v1332 = vpack.c.b16 %v1151, %v1150
      %v1333 = vpack.c.b16 %v1153, %v1152
      %v1334 = vpack.c.b16 %v1155, %v1154
      %v1335 = vpack.c.b16 %v1157, %v1156
      %v1336 = vpack.c.b16 %v1159, %v1158
      %v1337 = vpack.c.b16 %v1161, %v1160
      %v1338 = vpack.c.b16 %v1163, %v1162
      %v1339 = vpack.c.b16 %v1165, %v1164
      %v1340 = vpack.c.b16 %v1167, %v1166
      %v1341 = vpack.c.b16 %v1169, %v1168
      %v1342 = vpack.c.b16 %v1171, %v1170
      %v1343 = vpack.c.b16 %v1173, %v1172
      %v1344 = vpack.c.b16 %v1175, %v1174
      %v1345 = vpack.c.b16 %v1177, %v1176
      %v1346 = vpack.c.b16 %v1179, %v1178
      %v1347 = vpack.c.b16 %v1181, %v1180
      %v1348 = vpack.c.b16 %v1183, %v1182
      %v1349 = vpack.c.b16 %v1185, %v1184
      %v1350 = vpack.c.b16 %v1187, %v1186
      %v1351 = vpack.c.b16 %v1189, %v1188
      %v1352 = vpack.c.b16 %v1191, %v1190
      %v1353 = vpack.c.b16 %v1193, %v1192
      %v1358 = vunpack.c.l.b16 %v546
      %v1359 = vunpack.c.l.b16 %v547
      %v1360 = vunpack.c.l.b16 %v548
      %v1361 = vunpack.c.l.b16 %v549
      %v1362 = vpack.c.b16 %v1359, %v1358
      %v1363 = vpack.c.b16 %v1361, %v1360
      %vm1365 = vcmask 203776
      %v1367 = vsel %vm1365, %v1194, 0
      %v1370 = vsel %vm1365, %v1195, 0
      %v1373 = vsel %vm1365, %v1196, 0
      %v1376 = vsel %vm1365, %v1197, 0
      %v1379 = vsel %vm1365, %v1198, 0
      %v1382 = vsel %vm1365, %v1199, 0
      %v1385 = vsel %vm1365, %v1200, 0
      %v1388 = vsel %vm1365, %v1201, 0
      %v1391 = vsel %vm1365, %v1202, 0
      %v1394 = vsel %vm1365, %v1203, 0
      %v1397 = vsel %vm1365, %v1204, 0
      %v1400 = vsel %vm1365, %v1205, 0
      %v1403 = vsel %vm1365, %v1206, 0
      %v1406 = vsel %vm1365, %v1207, 0
      %v1409 = vsel %vm1365, %v1208, 0
      %v1412 = vsel %vm1365, %v1209, 0
      %v1415 = vsel %vm1365, %v1210, 0
      %v1418 = vsel %vm1365, %v1211, 0
      %v1421 = vsel %vm1365, %v1212, 0
      %v1424 = vsel %vm1365, %v1213, 0
      %v1427 = vsel %vm1365, %v1214, 0
      %v1430 = vsel %vm1365, %v1215, 0
      %v1433 = vsel %vm1365, %v1216, 0
      %v1436 = vsel %vm1365, %v1217, 0
      %v1439 = vsel %vm1365, %v1218, 0
      %v1442 = vsel %vm1365, %v1219, 0
      %v1445 = vsel %vm1365, %v1220, 0
      %v1448 = vsel %vm1365, %v1221, 0
      %v1451 = vsel %vm1365, %v1222, 0
      %v1454 = vsel %vm1365, %v1223, 0
      %v1457 = vsel %vm1365, %v1224, 0
      %v1460 = vsel %vm1365, %v1225, 0
      %v1463 = vsel %vm1365, %v1226, 0
      %v1466 = vsel %vm1365, %v1227, 0
      %v1469 = vsel %vm1365, %v1228, 0
      %v1472 = vsel %vm1365, %v1229, 0
      %v1475 = vsel %vm1365, %v1230, 0
      %v1478 = vsel %vm1365, %v1231, 0
      %v1481 = vsel %vm1365, %v1232, 0
      %v1484 = vsel %vm1365, %v1233, 0
      %v1487 = vsel %vm1365, %v1234, 0
      %v1490 = vsel %vm1365, %v1235, 0
      %v1493 = vsel %vm1365, %v1236, 0
      %v1496 = vsel %vm1365, %v1237, 0
      %v1499 = vsel %vm1365, %v1238, 0
      %v1502 = vsel %vm1365, %v1239, 0
      %v1505 = vsel %vm1365, %v1240, 0
      %v1508 = vsel %vm1365, %v1241, 0
      %v1511 = vsel %vm1365, %v1242, 0
      %v1514 = vsel %vm1365, %v1243, 0
      %v1517 = vsel %vm1365, %v1244, 0
      %v1520 = vsel %vm1365, %v1245, 0
      %v1523 = vsel %vm1365, %v1246, 0
      %v1526 = vsel %vm1365, %v1247, 0
      %v1529 = vsel %vm1365, %v1248, 0
      %v1532 = vsel %vm1365, %v1249, 0
      %v1535 = vsel %vm1365, %v1250, 0
      %v1538 = vsel %vm1365, %v1251, 0
      %v1541 = vsel %vm1365, %v1252, 0
      %v1544 = vsel %vm1365, %v1253, 0
      %v1547 = vsel %vm1365, %v1254, 0
      %v1550 = vsel %vm1365, %v1255, 0
      %v1553 = vsel %vm1365, %v1256, 0
      %v1556 = vsel %vm1365, %v1257, 0
      %v1559 = vsel %vm1365, %v1258, 0
      %v1562 = vsel %vm1365, %v1259, 0
      %v1565 = vsel %vm1365, %v1260, 0
      %v1568 = vsel %vm1365, %v1261, 0
      %v1571 = vsel %vm1365, %v1262, 0
      %v1574 = vsel %vm1365, %v1263, 0
      %v1577 = vsel %vm1365, %v1264, 0
      %v1580 = vsel %vm1365, %v1265, 0
      %v1583 = vsel %vm1365, %v1266, 0
      %v1586 = vsel %vm1365, %v1267, 0
      %v1589 = vsel %vm1365, %v1268, 0
      %v1592 = vsel %vm1365, %v1269, 0
      %v1595 = vsel %vm1365, %v1270, 0
      %v1598 = vsel %vm1365, %v1271, 0
      %v1601 = vsel %vm1365, %v1272, 0
      %v1604 = vsel %vm1365, %v1273, 0
      %v1607 = vsel %vm1365, %v1274, 0
      %v1610 = vsel %vm1365, %v1275, 0
      %v1613 = vsel %vm1365, %v1276, 0
      %v1616 = vsel %vm1365, %v1277, 0
      %v1619 = vsel %vm1365, %v1278, 0
      %v1622 = vsel %vm1365, %v1279, 0
      %v1625 = vsel %vm1365, %v1280, 0
      %v1628 = vsel %vm1365, %v1281, 0
      %v1631 = vsel %vm1365, %v1282, 0
      %v1634 = vsel %vm1365, %v1283, 0
      %v1637 = vsel %vm1365, %v1284, 0
      %v1640 = vsel %vm1365, %v1285, 0
      %v1643 = vsel %vm1365, %v1286, 0
      %v1646 = vsel %vm1365, %v1287, 0
      %v1649 = vsel %vm1365, %v1288, 0
      %v1652 = vsel %vm1365, %v1289, 0
      %v1655 = vsel %vm1365, %v1290, 0
      %v1658 = vsel %vm1365, %v1291, 0
      %v1661 = vsel %vm1365, %v1292, 0
      %v1664 = vsel %vm1365, %v1293, 0
      %v1667 = vsel %vm1365, %v1294, 0
      %v1670 = vsel %vm1365, %v1295, 0
      %v1673 = vsel %vm1365, %v1296, 0
      %v1676 = vsel %vm1365, %v1297, 0
      %v1679 = vsel %vm1365, %v1298, 0
      %v1682 = vsel %vm1365, %v1299, 0
      %v1685 = vsel %vm1365, %v1300, 0
      %v1688 = vsel %vm1365, %v1301, 0
      %v1691 = vsel %vm1365, %v1302, 0
      %v1694 = vsel %vm1365, %v1303, 0
      %v1697 = vsel %vm1365, %v1304, 0
      %v1700 = vsel %vm1365, %v1305, 0
      %v1703 = vsel %vm1365, %v1306, 0
      %v1706 = vsel %vm1365, %v1307, 0
      %v1709 = vsel %vm1365, %v1308, 0
      %v1712 = vsel %vm1365, %v1309, 0
      %v1715 = vsel %vm1365, %v1310, 0
      %v1718 = vsel %vm1365, %v1311, 0
      %v1721 = vsel %vm1365, %v1312, 0
      %v1724 = vsel %vm1365, %v1313, 0
      %v1727 = vsel %vm1365, %v1314, 0
      %v1730 = vsel %vm1365, %v1315, 0
      %v1733 = vsel %vm1365, %v1316, 0
      %v1736 = vsel %vm1365, %v1317, 0
      %v1739 = vsel %vm1365, %v1318, 0
      %v1742 = vsel %vm1365, %v1319, 0
      %v1745 = vsel %vm1365, %v1320, 0
      %v1748 = vsel %vm1365, %v1321, 0
      %v1751 = vsel %vm1365, %v1322, 0
      %v1754 = vsel %vm1365, %v1323, 0
      %v1757 = vsel %vm1365, %v1324, 0
      %v1760 = vsel %vm1365, %v1325, 0
      %v1763 = vsel %vm1365, %v1326, 0
      %v1766 = vsel %vm1365, %v1327, 0
      %v1769 = vsel %vm1365, %v1328, 0
      %v1772 = vsel %vm1365, %v1329, 0
      %v1775 = vsel %vm1365, %v1330, 0
      %v1778 = vsel %vm1365, %v1331, 0
      %v1781 = vsel %vm1365, %v1332, 0
      %v1784 = vsel %vm1365, %v1333, 0
      %v1787 = vsel %vm1365, %v1334, 0
      %v1790 = vsel %vm1365, %v1335, 0
      %v1793 = vsel %vm1365, %v1336, 0
      %v1796 = vsel %vm1365, %v1337, 0
      %v1799 = vsel %vm1365, %v1338, 0
      %v1802 = vsel %vm1365, %v1339, 0
      %v1805 = vsel %vm1365, %v1340, 0
      %v1808 = vsel %vm1365, %v1341, 0
      %v1811 = vsel %vm1365, %v1342, 0
      %v1814 = vsel %vm1365, %v1343, 0
      %v1817 = vsel %vm1365, %v1344, 0
      %v1820 = vsel %vm1365, %v1345, 0
      %v1823 = vsel %vm1365, %v1346, 0
      %v1826 = vsel %vm1365, %v1347, 0
      %v1829 = vsel %vm1365, %v1348, 0
      %v1832 = vsel %vm1365, %v1349, 0
      %v1835 = vsel %vm1365, %v1350, 0
      %v1838 = vsel %vm1365, %v1351, 0
      %v1841 = vsel %vm1365, %v1352, 0
      %v1844 = vsel %vm1365, %v1353, 0
      %vm1846 = vcmask 1043456
      %vm1847 = vcmask 1044480
      %v1848 = vsel %vm1846, 4294967295, 65535
      %v1849 = vsel %vm1847, %v1848, 0
      %v1851 = vand.u32 %v1363, %v1849
      %1853 = vmatpush.bf16.msra.mxu0 0
      %1854 = vmatpush.bf16.msra.mxu0 0
      %1855 = vmatpush.bf16.msra.mxu0 0
      %1856 = vmatpush.bf16.msra.mxu0 0
      %1857 = vmatpush.bf16.msra.mxu0 0
      %1858 = vmatpush.bf16.msra.mxu0 0
      %1859 = vmatpush.bf16.msra.mxu0 %v1851
      %1860 = vmatpush.bf16.msra.mxu0 %v1362
      %1861 = vmatmul.bf16.gmra.mxu0 %v1367
      %v1862 = vpop.f32.mrf.mxu0
      %v1863 = vadd.f32 %v552, %v1862
      %v1864 = vpop.f32.mrf.mxu0
      %v1865 = vadd.f32 %v552, %v1864
      %1866 = vmatmul.bf16.gmra.mxu0 %v1370
      %v1867 = vpop.f32.mrf.mxu0
      %v1868 = vadd.f32 %v552, %v1867
      %v1869 = vpop.f32.mrf.mxu0
      %v1870 = vadd.f32 %v552, %v1869
      %1871 = vmatmul.bf16.gmra.mxu0 %v1373
      %v1872 = vpop.f32.mrf.mxu0
      %v1873 = vadd.f32 %v552, %v1872
      %v1874 = vpop.f32.mrf.mxu0
      %v1875 = vadd.f32 %v552, %v1874
      %1876 = vmatmul.bf16.gmra.mxu0 %v1376
      %v1877 = vpop.f32.mrf.mxu0
      %v1878 = vadd.f32 %v552, %v1877
      %v1879 = vpop.f32.mrf.mxu0
      %v1880 = vadd.f32 %v552, %v1879
      %1881 = vmatmul.bf16.gmra.mxu0 %v1379
      %v1882 = vpop.f32.mrf.mxu0
      %v1883 = vadd.f32 %v552, %v1882
      %v1884 = vpop.f32.mrf.mxu0
      %v1885 = vadd.f32 %v552, %v1884
      %1886 = vmatmul.bf16.gmra.mxu0 %v1382
      %v1887 = vpop.f32.mrf.mxu0
      %v1888 = vadd.f32 %v552, %v1887
      %v1889 = vpop.f32.mrf.mxu0
      %v1890 = vadd.f32 %v552, %v1889
      %1891 = vmatmul.bf16.gmra.mxu0 %v1385
      %v1892 = vpop.f32.mrf.mxu0
      %v1893 = vadd.f32 %v552, %v1892
      %v1894 = vpop.f32.mrf.mxu0
      %v1895 = vadd.f32 %v552, %v1894
      %1896 = vmatmul.bf16.gmra.mxu0 %v1388
      %v1897 = vpop.f32.mrf.mxu0
      %v1898 = vadd.f32 %v552, %v1897
      %v1899 = vpop.f32.mrf.mxu0
      %v1900 = vadd.f32 %v552, %v1899
      %1901 = vmatmul.bf16.gmra.mxu0 %v1391
      %v1902 = vpop.f32.mrf.mxu0
      %v1903 = vadd.f32 %v552, %v1902
      %v1904 = vpop.f32.mrf.mxu0
      %v1905 = vadd.f32 %v552, %v1904
      %1906 = vmatmul.bf16.gmra.mxu0 %v1394
      %v1907 = vpop.f32.mrf.mxu0
      %v1908 = vadd.f32 %v552, %v1907
      %v1909 = vpop.f32.mrf.mxu0
      %v1910 = vadd.f32 %v552, %v1909
      %1911 = vmatmul.bf16.gmra.mxu0 %v1397
      %v1912 = vpop.f32.mrf.mxu0
      %v1913 = vadd.f32 %v552, %v1912
      %v1914 = vpop.f32.mrf.mxu0
      %v1915 = vadd.f32 %v552, %v1914
      %1916 = vmatmul.bf16.gmra.mxu0 %v1400
      %v1917 = vpop.f32.mrf.mxu0
      %v1918 = vadd.f32 %v552, %v1917
      %v1919 = vpop.f32.mrf.mxu0
      %v1920 = vadd.f32 %v552, %v1919
      %1921 = vmatmul.bf16.gmra.mxu0 %v1403
      %v1922 = vpop.f32.mrf.mxu0
      %v1923 = vadd.f32 %v552, %v1922
      %v1924 = vpop.f32.mrf.mxu0
      %v1925 = vadd.f32 %v552, %v1924
      %1926 = vmatmul.bf16.gmra.mxu0 %v1406
      %v1927 = vpop.f32.mrf.mxu0
      %v1928 = vadd.f32 %v552, %v1927
      %v1929 = vpop.f32.mrf.mxu0
      %v1930 = vadd.f32 %v552, %v1929
      %1931 = vmatmul.bf16.gmra.mxu0 %v1409
      %v1932 = vpop.f32.mrf.mxu0
      %v1933 = vadd.f32 %v552, %v1932
      %v1934 = vpop.f32.mrf.mxu0
      %v1935 = vadd.f32 %v552, %v1934
      %1936 = vmatmul.bf16.gmra.mxu0 %v1412
      %v1937 = vpop.f32.mrf.mxu0
      %v1938 = vadd.f32 %v552, %v1937
      %v1939 = vpop.f32.mrf.mxu0
      %v1940 = vadd.f32 %v552, %v1939
      %1941 = vmatmul.bf16.gmra.mxu0 %v1415
      %v1942 = vpop.f32.mrf.mxu0
      %v1943 = vadd.f32 %v552, %v1942
      %v1944 = vpop.f32.mrf.mxu0
      %v1945 = vadd.f32 %v552, %v1944
      %1946 = vmatmul.bf16.gmra.mxu0 %v1418
      %v1947 = vpop.f32.mrf.mxu0
      %v1948 = vadd.f32 %v552, %v1947
      %v1949 = vpop.f32.mrf.mxu0
      %v1950 = vadd.f32 %v552, %v1949
      %1951 = vmatmul.bf16.gmra.mxu0 %v1421
      %v1952 = vpop.f32.mrf.mxu0
      %v1953 = vadd.f32 %v552, %v1952
      %v1954 = vpop.f32.mrf.mxu0
      %v1955 = vadd.f32 %v552, %v1954
      %1956 = vmatmul.bf16.gmra.mxu0 %v1424
      %v1957 = vpop.f32.mrf.mxu0
      %v1958 = vadd.f32 %v552, %v1957
      %v1959 = vpop.f32.mrf.mxu0
      %v1960 = vadd.f32 %v552, %v1959
      %1961 = vmatmul.bf16.gmra.mxu0 %v1427
      %v1962 = vpop.f32.mrf.mxu0
      %v1963 = vadd.f32 %v552, %v1962
      %v1964 = vpop.f32.mrf.mxu0
      %v1965 = vadd.f32 %v552, %v1964
      %1966 = vmatmul.bf16.gmra.mxu0 %v1430
      %v1967 = vpop.f32.mrf.mxu0
      %v1968 = vadd.f32 %v552, %v1967
      %v1969 = vpop.f32.mrf.mxu0
      %v1970 = vadd.f32 %v552, %v1969
      %1971 = vmatmul.bf16.gmra.mxu0 %v1433
      %v1972 = vpop.f32.mrf.mxu0
      %v1973 = vadd.f32 %v552, %v1972
      %v1974 = vpop.f32.mrf.mxu0
      %v1975 = vadd.f32 %v552, %v1974
      %1976 = vmatmul.bf16.gmra.mxu0 %v1436
      %v1977 = vpop.f32.mrf.mxu0
      %v1978 = vadd.f32 %v552, %v1977
      %v1979 = vpop.f32.mrf.mxu0
      %v1980 = vadd.f32 %v552, %v1979
      %1981 = vmatmul.bf16.gmra.mxu0 %v1439
      %v1982 = vpop.f32.mrf.mxu0
      %v1983 = vadd.f32 %v552, %v1982
      %v1984 = vpop.f32.mrf.mxu0
      %v1985 = vadd.f32 %v552, %v1984
      %1986 = vmatmul.bf16.gmra.mxu0 %v1442
      %v1987 = vpop.f32.mrf.mxu0
      %v1988 = vadd.f32 %v552, %v1987
      %v1989 = vpop.f32.mrf.mxu0
      %v1990 = vadd.f32 %v552, %v1989
      %1991 = vmatmul.bf16.gmra.mxu0 %v1445
      %v1992 = vpop.f32.mrf.mxu0
      %v1993 = vadd.f32 %v552, %v1992
      %v1994 = vpop.f32.mrf.mxu0
      %v1995 = vadd.f32 %v552, %v1994
      %1996 = vmatmul.bf16.gmra.mxu0 %v1448
      %v1997 = vpop.f32.mrf.mxu0
      %v1998 = vadd.f32 %v552, %v1997
      %v1999 = vpop.f32.mrf.mxu0
      %v2000 = vadd.f32 %v552, %v1999
      %2001 = vmatmul.bf16.gmra.mxu0 %v1451
      %v2002 = vpop.f32.mrf.mxu0
      %v2003 = vadd.f32 %v552, %v2002
      %v2004 = vpop.f32.mrf.mxu0
      %v2005 = vadd.f32 %v552, %v2004
      %2006 = vmatmul.bf16.gmra.mxu0 %v1454
      %v2007 = vpop.f32.mrf.mxu0
      %v2008 = vadd.f32 %v552, %v2007
      %v2009 = vpop.f32.mrf.mxu0
      %v2010 = vadd.f32 %v552, %v2009
      %2011 = vmatmul.bf16.gmra.mxu0 %v1457
      %v2012 = vpop.f32.mrf.mxu0
      %v2013 = vadd.f32 %v552, %v2012
      %v2014 = vpop.f32.mrf.mxu0
      %v2015 = vadd.f32 %v552, %v2014
      %2016 = vmatmul.bf16.gmra.mxu0 %v1460
      %v2017 = vpop.f32.mrf.mxu0
      %v2018 = vadd.f32 %v552, %v2017
      %v2019 = vpop.f32.mrf.mxu0
      %v2020 = vadd.f32 %v552, %v2019
      %2021 = vmatmul.bf16.gmra.mxu0 %v1463
      %v2022 = vpop.f32.mrf.mxu0
      %v2023 = vadd.f32 %v552, %v2022
      %v2024 = vpop.f32.mrf.mxu0
      %v2025 = vadd.f32 %v552, %v2024
      %2026 = vmatmul.bf16.gmra.mxu0 %v1466
      %v2027 = vpop.f32.mrf.mxu0
      %v2028 = vadd.f32 %v552, %v2027
      %v2029 = vpop.f32.mrf.mxu0
      %v2030 = vadd.f32 %v552, %v2029
      %2031 = vmatmul.bf16.gmra.mxu0 %v1469
      %v2032 = vpop.f32.mrf.mxu0
      %v2033 = vadd.f32 %v552, %v2032
      %v2034 = vpop.f32.mrf.mxu0
      %v2035 = vadd.f32 %v552, %v2034
      %2036 = vmatmul.bf16.gmra.mxu0 %v1472
      %v2037 = vpop.f32.mrf.mxu0
      %v2038 = vadd.f32 %v552, %v2037
      %v2039 = vpop.f32.mrf.mxu0
      %v2040 = vadd.f32 %v552, %v2039
      %2041 = vmatmul.bf16.gmra.mxu0 %v1475
      %v2042 = vpop.f32.mrf.mxu0
      %v2043 = vadd.f32 %v552, %v2042
      %v2044 = vpop.f32.mrf.mxu0
      %v2045 = vadd.f32 %v552, %v2044
      %2046 = vmatmul.bf16.gmra.mxu0 %v1478
      %v2047 = vpop.f32.mrf.mxu0
      %v2048 = vadd.f32 %v552, %v2047
      %v2049 = vpop.f32.mrf.mxu0
      %v2050 = vadd.f32 %v552, %v2049
      %2051 = vmatmul.bf16.gmra.mxu0 %v1481
      %v2052 = vpop.f32.mrf.mxu0
      %v2053 = vadd.f32 %v552, %v2052
      %v2054 = vpop.f32.mrf.mxu0
      %v2055 = vadd.f32 %v552, %v2054
      %2056 = vmatmul.bf16.gmra.mxu0 %v1484
      %v2057 = vpop.f32.mrf.mxu0
      %v2058 = vadd.f32 %v552, %v2057
      %v2059 = vpop.f32.mrf.mxu0
      %v2060 = vadd.f32 %v552, %v2059
      %2061 = vmatmul.bf16.gmra.mxu0 %v1487
      %v2062 = vpop.f32.mrf.mxu0
      %v2063 = vadd.f32 %v552, %v2062
      %v2064 = vpop.f32.mrf.mxu0
      %v2065 = vadd.f32 %v552, %v2064
      %2066 = vmatmul.bf16.gmra.mxu0 %v1490
      %v2067 = vpop.f32.mrf.mxu0
      %v2068 = vadd.f32 %v552, %v2067
      %v2069 = vpop.f32.mrf.mxu0
      %v2070 = vadd.f32 %v552, %v2069
      %2071 = vmatmul.bf16.gmra.mxu0 %v1493
      %v2072 = vpop.f32.mrf.mxu0
      %v2073 = vadd.f32 %v552, %v2072
      %v2074 = vpop.f32.mrf.mxu0
      %v2075 = vadd.f32 %v552, %v2074
      %2076 = vmatmul.bf16.gmra.mxu0 %v1496
      %v2077 = vpop.f32.mrf.mxu0
      %v2078 = vadd.f32 %v552, %v2077
      %v2079 = vpop.f32.mrf.mxu0
      %v2080 = vadd.f32 %v552, %v2079
      %2081 = vmatmul.bf16.gmra.mxu0 %v1499
      %v2082 = vpop.f32.mrf.mxu0
      %v2083 = vadd.f32 %v552, %v2082
      %v2084 = vpop.f32.mrf.mxu0
      %v2085 = vadd.f32 %v552, %v2084
      %2086 = vmatmul.bf16.gmra.mxu0 %v1502
      %v2087 = vpop.f32.mrf.mxu0
      %v2088 = vadd.f32 %v552, %v2087
      %v2089 = vpop.f32.mrf.mxu0
      %v2090 = vadd.f32 %v552, %v2089
      %2091 = vmatmul.bf16.gmra.mxu0 %v1505
      %v2092 = vpop.f32.mrf.mxu0
      %v2093 = vadd.f32 %v552, %v2092
      %v2094 = vpop.f32.mrf.mxu0
      %v2095 = vadd.f32 %v552, %v2094
      %2096 = vmatmul.bf16.gmra.mxu0 %v1508
      %v2097 = vpop.f32.mrf.mxu0
      %v2098 = vadd.f32 %v552, %v2097
      %v2099 = vpop.f32.mrf.mxu0
      %v2100 = vadd.f32 %v552, %v2099
      %2101 = vmatmul.bf16.gmra.mxu0 %v1511
      %v2102 = vpop.f32.mrf.mxu0
      %v2103 = vadd.f32 %v552, %v2102
      %v2104 = vpop.f32.mrf.mxu0
      %v2105 = vadd.f32 %v552, %v2104
      %2106 = vmatmul.bf16.gmra.mxu0 %v1514
      %v2107 = vpop.f32.mrf.mxu0
      %v2108 = vadd.f32 %v552, %v2107
      %v2109 = vpop.f32.mrf.mxu0
      %v2110 = vadd.f32 %v552, %v2109
      %2111 = vmatmul.bf16.gmra.mxu0 %v1517
      %v2112 = vpop.f32.mrf.mxu0
      %v2113 = vadd.f32 %v552, %v2112
      %v2114 = vpop.f32.mrf.mxu0
      %v2115 = vadd.f32 %v552, %v2114
      %2116 = vmatmul.bf16.gmra.mxu0 %v1520
      %v2117 = vpop.f32.mrf.mxu0
      %v2118 = vadd.f32 %v552, %v2117
      %v2119 = vpop.f32.mrf.mxu0
      %v2120 = vadd.f32 %v552, %v2119
      %2121 = vmatmul.bf16.gmra.mxu0 %v1523
      %v2122 = vpop.f32.mrf.mxu0
      %v2123 = vadd.f32 %v552, %v2122
      %v2124 = vpop.f32.mrf.mxu0
      %v2125 = vadd.f32 %v552, %v2124
      %2126 = vmatmul.bf16.gmra.mxu0 %v1526
      %v2127 = vpop.f32.mrf.mxu0
      %v2128 = vadd.f32 %v552, %v2127
      %v2129 = vpop.f32.mrf.mxu0
      %v2130 = vadd.f32 %v552, %v2129
      %2131 = vmatmul.bf16.gmra.mxu0 %v1529
      %v2132 = vpop.f32.mrf.mxu0
      %v2133 = vadd.f32 %v552, %v2132
      %v2134 = vpop.f32.mrf.mxu0
      %v2135 = vadd.f32 %v552, %v2134
      %2136 = vmatmul.bf16.gmra.mxu0 %v1532
      %v2137 = vpop.f32.mrf.mxu0
      %v2138 = vadd.f32 %v552, %v2137
      %v2139 = vpop.f32.mrf.mxu0
      %v2140 = vadd.f32 %v552, %v2139
      %2141 = vmatmul.bf16.gmra.mxu0 %v1535
      %v2142 = vpop.f32.mrf.mxu0
      %v2143 = vadd.f32 %v552, %v2142
      %v2144 = vpop.f32.mrf.mxu0
      %v2145 = vadd.f32 %v552, %v2144
      %2146 = vmatmul.bf16.gmra.mxu0 %v1538
      %v2147 = vpop.f32.mrf.mxu0
      %v2148 = vadd.f32 %v552, %v2147
      %v2149 = vpop.f32.mrf.mxu0
      %v2150 = vadd.f32 %v552, %v2149
      %2151 = vmatmul.bf16.gmra.mxu0 %v1541
      %v2152 = vpop.f32.mrf.mxu0
      %v2153 = vadd.f32 %v552, %v2152
      %v2154 = vpop.f32.mrf.mxu0
      %v2155 = vadd.f32 %v552, %v2154
      %2156 = vmatmul.bf16.gmra.mxu0 %v1544
      %v2157 = vpop.f32.mrf.mxu0
      %v2158 = vadd.f32 %v552, %v2157
      %v2159 = vpop.f32.mrf.mxu0
      %v2160 = vadd.f32 %v552, %v2159
      %2161 = vmatmul.bf16.gmra.mxu0 %v1547
      %v2162 = vpop.f32.mrf.mxu0
      %v2163 = vadd.f32 %v552, %v2162
      %v2164 = vpop.f32.mrf.mxu0
      %v2165 = vadd.f32 %v552, %v2164
      %2166 = vmatmul.bf16.gmra.mxu0 %v1550
      %v2167 = vpop.f32.mrf.mxu0
      %v2168 = vadd.f32 %v552, %v2167
      %v2169 = vpop.f32.mrf.mxu0
      %v2170 = vadd.f32 %v552, %v2169
      %2171 = vmatmul.bf16.gmra.mxu0 %v1553
      %v2172 = vpop.f32.mrf.mxu0
      %v2173 = vadd.f32 %v552, %v2172
      %v2174 = vpop.f32.mrf.mxu0
      %v2175 = vadd.f32 %v552, %v2174
      %2176 = vmatmul.bf16.gmra.mxu0 %v1556
      %v2177 = vpop.f32.mrf.mxu0
      %v2178 = vadd.f32 %v552, %v2177
      %v2179 = vpop.f32.mrf.mxu0
      %v2180 = vadd.f32 %v552, %v2179
      %2181 = vmatmul.bf16.gmra.mxu0 %v1559
      %v2182 = vpop.f32.mrf.mxu0
      %v2183 = vadd.f32 %v552, %v2182
      %v2184 = vpop.f32.mrf.mxu0
      %v2185 = vadd.f32 %v552, %v2184
      %2186 = vmatmul.bf16.gmra.mxu0 %v1562
      %v2187 = vpop.f32.mrf.mxu0
      %v2188 = vadd.f32 %v552, %v2187
      %v2189 = vpop.f32.mrf.mxu0
      %v2190 = vadd.f32 %v552, %v2189
      %2191 = vmatmul.bf16.gmra.mxu0 %v1565
      %v2192 = vpop.f32.mrf.mxu0
      %v2193 = vadd.f32 %v552, %v2192
      %v2194 = vpop.f32.mrf.mxu0
      %v2195 = vadd.f32 %v552, %v2194
      %2196 = vmatmul.bf16.gmra.mxu0 %v1568
      %v2197 = vpop.f32.mrf.mxu0
      %v2198 = vadd.f32 %v552, %v2197
      %v2199 = vpop.f32.mrf.mxu0
      %v2200 = vadd.f32 %v552, %v2199
      %2201 = vmatmul.bf16.gmra.mxu0 %v1571
      %v2202 = vpop.f32.mrf.mxu0
      %v2203 = vadd.f32 %v552, %v2202
      %v2204 = vpop.f32.mrf.mxu0
      %v2205 = vadd.f32 %v552, %v2204
      %2206 = vmatmul.bf16.gmra.mxu0 %v1574
      %v2207 = vpop.f32.mrf.mxu0
      %v2208 = vadd.f32 %v552, %v2207
      %v2209 = vpop.f32.mrf.mxu0
      %v2210 = vadd.f32 %v552, %v2209
      %2211 = vmatmul.bf16.gmra.mxu0 %v1577
      %v2212 = vpop.f32.mrf.mxu0
      %v2213 = vadd.f32 %v552, %v2212
      %v2214 = vpop.f32.mrf.mxu0
      %v2215 = vadd.f32 %v552, %v2214
      %2216 = vmatmul.bf16.gmra.mxu0 %v1580
      %v2217 = vpop.f32.mrf.mxu0
      %v2218 = vadd.f32 %v552, %v2217
      %v2219 = vpop.f32.mrf.mxu0
      %v2220 = vadd.f32 %v552, %v2219
      %2221 = vmatmul.bf16.gmra.mxu0 %v1583
      %v2222 = vpop.f32.mrf.mxu0
      %v2223 = vadd.f32 %v552, %v2222
      %v2224 = vpop.f32.mrf.mxu0
      %v2225 = vadd.f32 %v552, %v2224
      %2226 = vmatmul.bf16.gmra.mxu0 %v1586
      %v2227 = vpop.f32.mrf.mxu0
      %v2228 = vadd.f32 %v552, %v2227
      %v2229 = vpop.f32.mrf.mxu0
      %v2230 = vadd.f32 %v552, %v2229
      %2231 = vmatmul.bf16.gmra.mxu0 %v1589
      %v2232 = vpop.f32.mrf.mxu0
      %v2233 = vadd.f32 %v552, %v2232
      %v2234 = vpop.f32.mrf.mxu0
      %v2235 = vadd.f32 %v552, %v2234
      %2236 = vmatmul.bf16.gmra.mxu0 %v1592
      %v2237 = vpop.f32.mrf.mxu0
      %v2238 = vadd.f32 %v552, %v2237
      %v2239 = vpop.f32.mrf.mxu0
      %v2240 = vadd.f32 %v552, %v2239
      %2241 = vmatmul.bf16.gmra.mxu0 %v1595
      %v2242 = vpop.f32.mrf.mxu0
      %v2243 = vadd.f32 %v552, %v2242
      %v2244 = vpop.f32.mrf.mxu0
      %v2245 = vadd.f32 %v552, %v2244
      %2246 = vmatmul.bf16.gmra.mxu0 %v1598
      %v2247 = vpop.f32.mrf.mxu0
      %v2248 = vadd.f32 %v552, %v2247
      %v2249 = vpop.f32.mrf.mxu0
      %v2250 = vadd.f32 %v552, %v2249
      %2251 = vmatmul.bf16.gmra.mxu0 %v1601
      %v2252 = vpop.f32.mrf.mxu0
      %v2253 = vadd.f32 %v552, %v2252
      %v2254 = vpop.f32.mrf.mxu0
      %v2255 = vadd.f32 %v552, %v2254
      %2256 = vmatmul.bf16.gmra.mxu0 %v1604
      %v2257 = vpop.f32.mrf.mxu0
      %v2258 = vadd.f32 %v552, %v2257
      %v2259 = vpop.f32.mrf.mxu0
      %v2260 = vadd.f32 %v552, %v2259
      %2261 = vmatmul.bf16.gmra.mxu0 %v1607
      %v2262 = vpop.f32.mrf.mxu0
      %v2263 = vadd.f32 %v552, %v2262
      %v2264 = vpop.f32.mrf.mxu0
      %v2265 = vadd.f32 %v552, %v2264
      %2266 = vmatmul.bf16.gmra.mxu0 %v1610
      %v2267 = vpop.f32.mrf.mxu0
      %v2268 = vadd.f32 %v552, %v2267
      %v2269 = vpop.f32.mrf.mxu0
      %v2270 = vadd.f32 %v552, %v2269
      %2271 = vmatmul.bf16.gmra.mxu0 %v1613
      %v2272 = vpop.f32.mrf.mxu0
      %v2273 = vadd.f32 %v552, %v2272
      %v2274 = vpop.f32.mrf.mxu0
      %v2275 = vadd.f32 %v552, %v2274
      %2276 = vmatmul.bf16.gmra.mxu0 %v1616
      %v2277 = vpop.f32.mrf.mxu0
      %v2278 = vadd.f32 %v552, %v2277
      %v2279 = vpop.f32.mrf.mxu0
      %v2280 = vadd.f32 %v552, %v2279
      %2281 = vmatmul.bf16.gmra.mxu0 %v1619
      %v2282 = vpop.f32.mrf.mxu0
      %v2283 = vadd.f32 %v552, %v2282
      %v2284 = vpop.f32.mrf.mxu0
      %v2285 = vadd.f32 %v552, %v2284
      %2286 = vmatmul.bf16.gmra.mxu0 %v1622
      %v2287 = vpop.f32.mrf.mxu0
      %v2288 = vadd.f32 %v552, %v2287
      %v2289 = vpop.f32.mrf.mxu0
      %v2290 = vadd.f32 %v552, %v2289
      %2291 = vmatmul.bf16.gmra.mxu0 %v1625
      %v2292 = vpop.f32.mrf.mxu0
      %v2293 = vadd.f32 %v552, %v2292
      %v2294 = vpop.f32.mrf.mxu0
      %v2295 = vadd.f32 %v552, %v2294
      %2296 = vmatmul.bf16.gmra.mxu0 %v1628
      %v2297 = vpop.f32.mrf.mxu0
      %v2298 = vadd.f32 %v552, %v2297
      %v2299 = vpop.f32.mrf.mxu0
      %v2300 = vadd.f32 %v552, %v2299
      %2301 = vmatmul.bf16.gmra.mxu0 %v1631
      %v2302 = vpop.f32.mrf.mxu0
      %v2303 = vadd.f32 %v552, %v2302
      %v2304 = vpop.f32.mrf.mxu0
      %v2305 = vadd.f32 %v552, %v2304
      %2306 = vmatmul.bf16.gmra.mxu0 %v1634
      %v2307 = vpop.f32.mrf.mxu0
      %v2308 = vadd.f32 %v552, %v2307
      %v2309 = vpop.f32.mrf.mxu0
      %v2310 = vadd.f32 %v552, %v2309
      %2311 = vmatmul.bf16.gmra.mxu0 %v1637
      %v2312 = vpop.f32.mrf.mxu0
      %v2313 = vadd.f32 %v552, %v2312
      %v2314 = vpop.f32.mrf.mxu0
      %v2315 = vadd.f32 %v552, %v2314
      %2316 = vmatmul.bf16.gmra.mxu0 %v1640
      %v2317 = vpop.f32.mrf.mxu0
      %v2318 = vadd.f32 %v552, %v2317
      %v2319 = vpop.f32.mrf.mxu0
      %v2320 = vadd.f32 %v552, %v2319
      %2321 = vmatmul.bf16.gmra.mxu0 %v1643
      %v2322 = vpop.f32.mrf.mxu0
      %v2323 = vadd.f32 %v552, %v2322
      %v2324 = vpop.f32.mrf.mxu0
      %v2325 = vadd.f32 %v552, %v2324
      %2326 = vmatmul.bf16.gmra.mxu0 %v1646
      %v2327 = vpop.f32.mrf.mxu0
      %v2328 = vadd.f32 %v552, %v2327
      %v2329 = vpop.f32.mrf.mxu0
      %v2330 = vadd.f32 %v552, %v2329
      %2331 = vmatmul.bf16.gmra.mxu0 %v1649
      %v2332 = vpop.f32.mrf.mxu0
      %v2333 = vadd.f32 %v552, %v2332
      %v2334 = vpop.f32.mrf.mxu0
      %v2335 = vadd.f32 %v552, %v2334
      %2336 = vmatmul.bf16.gmra.mxu0 %v1652
      %v2337 = vpop.f32.mrf.mxu0
      %v2338 = vadd.f32 %v552, %v2337
      %v2339 = vpop.f32.mrf.mxu0
      %v2340 = vadd.f32 %v552, %v2339
      %2341 = vmatmul.bf16.gmra.mxu0 %v1655
      %v2342 = vpop.f32.mrf.mxu0
      %v2343 = vadd.f32 %v552, %v2342
      %v2344 = vpop.f32.mrf.mxu0
      %v2345 = vadd.f32 %v552, %v2344
      %2346 = vmatmul.bf16.gmra.mxu0 %v1658
      %v2347 = vpop.f32.mrf.mxu0
      %v2348 = vadd.f32 %v552, %v2347
      %v2349 = vpop.f32.mrf.mxu0
      %v2350 = vadd.f32 %v552, %v2349
      %2351 = vmatmul.bf16.gmra.mxu0 %v1661
      %v2352 = vpop.f32.mrf.mxu0
      %v2353 = vadd.f32 %v552, %v2352
      %v2354 = vpop.f32.mrf.mxu0
      %v2355 = vadd.f32 %v552, %v2354
      %2356 = vmatmul.bf16.gmra.mxu0 %v1664
      %v2357 = vpop.f32.mrf.mxu0
      %v2358 = vadd.f32 %v552, %v2357
      %v2359 = vpop.f32.mrf.mxu0
      %v2360 = vadd.f32 %v552, %v2359
      %2361 = vmatmul.bf16.gmra.mxu0 %v1667
      %v2362 = vpop.f32.mrf.mxu0
      %v2363 = vadd.f32 %v552, %v2362
      %v2364 = vpop.f32.mrf.mxu0
      %v2365 = vadd.f32 %v552, %v2364
      %2366 = vmatmul.bf16.gmra.mxu0 %v1670
      %v2367 = vpop.f32.mrf.mxu0
      %v2368 = vadd.f32 %v552, %v2367
      %v2369 = vpop.f32.mrf.mxu0
      %v2370 = vadd.f32 %v552, %v2369
      %2371 = vmatmul.bf16.gmra.mxu0 %v1673
      %v2372 = vpop.f32.mrf.mxu0
      %v2373 = vadd.f32 %v552, %v2372
      %v2374 = vpop.f32.mrf.mxu0
      %v2375 = vadd.f32 %v552, %v2374
      %2376 = vmatmul.bf16.gmra.mxu0 %v1676
      %v2377 = vpop.f32.mrf.mxu0
      %v2378 = vadd.f32 %v552, %v2377
      %v2379 = vpop.f32.mrf.mxu0
      %v2380 = vadd.f32 %v552, %v2379
      %2381 = vmatmul.bf16.gmra.mxu0 %v1679
      %v2382 = vpop.f32.mrf.mxu0
      %v2383 = vadd.f32 %v552, %v2382
      %v2384 = vpop.f32.mrf.mxu0
      %v2385 = vadd.f32 %v552, %v2384
      %2386 = vmatmul.bf16.gmra.mxu0 %v1682
      %v2387 = vpop.f32.mrf.mxu0
      %v2388 = vadd.f32 %v552, %v2387
      %v2389 = vpop.f32.mrf.mxu0
      %v2390 = vadd.f32 %v552, %v2389
      %2391 = vmatmul.bf16.gmra.mxu0 %v1685
      %v2392 = vpop.f32.mrf.mxu0
      %v2393 = vadd.f32 %v552, %v2392
      %v2394 = vpop.f32.mrf.mxu0
      %v2395 = vadd.f32 %v552, %v2394
      %2396 = vmatmul.bf16.gmra.mxu0 %v1688
      %v2397 = vpop.f32.mrf.mxu0
      %v2398 = vadd.f32 %v552, %v2397
      %v2399 = vpop.f32.mrf.mxu0
      %v2400 = vadd.f32 %v552, %v2399
      %2401 = vmatmul.bf16.gmra.mxu0 %v1691
      %v2402 = vpop.f32.mrf.mxu0
      %v2403 = vadd.f32 %v552, %v2402
      %v2404 = vpop.f32.mrf.mxu0
      %v2405 = vadd.f32 %v552, %v2404
      %2406 = vmatmul.bf16.gmra.mxu0 %v1694
      %v2407 = vpop.f32.mrf.mxu0
      %v2408 = vadd.f32 %v552, %v2407
      %v2409 = vpop.f32.mrf.mxu0
      %v2410 = vadd.f32 %v552, %v2409
      %2411 = vmatmul.bf16.gmra.mxu0 %v1697
      %v2412 = vpop.f32.mrf.mxu0
      %v2413 = vadd.f32 %v552, %v2412
      %v2414 = vpop.f32.mrf.mxu0
      %v2415 = vadd.f32 %v552, %v2414
      %2416 = vmatmul.bf16.gmra.mxu0 %v1700
      %v2417 = vpop.f32.mrf.mxu0
      %v2418 = vadd.f32 %v552, %v2417
      %v2419 = vpop.f32.mrf.mxu0
      %v2420 = vadd.f32 %v552, %v2419
      %2421 = vmatmul.bf16.gmra.mxu0 %v1703
      %v2422 = vpop.f32.mrf.mxu0
      %v2423 = vadd.f32 %v552, %v2422
      %v2424 = vpop.f32.mrf.mxu0
      %v2425 = vadd.f32 %v552, %v2424
      %2426 = vmatmul.bf16.gmra.mxu0 %v1706
      %v2427 = vpop.f32.mrf.mxu0
      %v2428 = vadd.f32 %v552, %v2427
      %v2429 = vpop.f32.mrf.mxu0
      %v2430 = vadd.f32 %v552, %v2429
      %2431 = vmatmul.bf16.gmra.mxu0 %v1709
      %v2432 = vpop.f32.mrf.mxu0
      %v2433 = vadd.f32 %v552, %v2432
      %v2434 = vpop.f32.mrf.mxu0
      %v2435 = vadd.f32 %v552, %v2434
      %2436 = vmatmul.bf16.gmra.mxu0 %v1712
      %v2437 = vpop.f32.mrf.mxu0
      %v2438 = vadd.f32 %v552, %v2437
      %v2439 = vpop.f32.mrf.mxu0
      %v2440 = vadd.f32 %v552, %v2439
      %2441 = vmatmul.bf16.gmra.mxu0 %v1715
      %v2442 = vpop.f32.mrf.mxu0
      %v2443 = vadd.f32 %v552, %v2442
      %v2444 = vpop.f32.mrf.mxu0
      %v2445 = vadd.f32 %v552, %v2444
      %2446 = vmatmul.bf16.gmra.mxu0 %v1718
      %v2447 = vpop.f32.mrf.mxu0
      %v2448 = vadd.f32 %v552, %v2447
      %v2449 = vpop.f32.mrf.mxu0
      %v2450 = vadd.f32 %v552, %v2449
      %2451 = vmatmul.bf16.gmra.mxu0 %v1721
      %v2452 = vpop.f32.mrf.mxu0
      %v2453 = vadd.f32 %v552, %v2452
      %v2454 = vpop.f32.mrf.mxu0
      %v2455 = vadd.f32 %v552, %v2454
      %2456 = vmatmul.bf16.gmra.mxu0 %v1724
      %v2457 = vpop.f32.mrf.mxu0
      %v2458 = vadd.f32 %v552, %v2457
      %v2459 = vpop.f32.mrf.mxu0
      %v2460 = vadd.f32 %v552, %v2459
      %2461 = vmatmul.bf16.gmra.mxu0 %v1727
      %v2462 = vpop.f32.mrf.mxu0
      %v2463 = vadd.f32 %v552, %v2462
      %v2464 = vpop.f32.mrf.mxu0
      %v2465 = vadd.f32 %v552, %v2464
      %2466 = vmatmul.bf16.gmra.mxu0 %v1730
      %v2467 = vpop.f32.mrf.mxu0
      %v2468 = vadd.f32 %v552, %v2467
      %v2469 = vpop.f32.mrf.mxu0
      %v2470 = vadd.f32 %v552, %v2469
      %2471 = vmatmul.bf16.gmra.mxu0 %v1733
      %v2472 = vpop.f32.mrf.mxu0
      %v2473 = vadd.f32 %v552, %v2472
      %v2474 = vpop.f32.mrf.mxu0
      %v2475 = vadd.f32 %v552, %v2474
      %2476 = vmatmul.bf16.gmra.mxu0 %v1736
      %v2477 = vpop.f32.mrf.mxu0
      %v2478 = vadd.f32 %v552, %v2477
      %v2479 = vpop.f32.mrf.mxu0
      %v2480 = vadd.f32 %v552, %v2479
      %2481 = vmatmul.bf16.gmra.mxu0 %v1739
      %v2482 = vpop.f32.mrf.mxu0
      %v2483 = vadd.f32 %v552, %v2482
      %v2484 = vpop.f32.mrf.mxu0
      %v2485 = vadd.f32 %v552, %v2484
      %2486 = vmatmul.bf16.gmra.mxu0 %v1742
      %v2487 = vpop.f32.mrf.mxu0
      %v2488 = vadd.f32 %v552, %v2487
      %v2489 = vpop.f32.mrf.mxu0
      %v2490 = vadd.f32 %v552, %v2489
      %2491 = vmatmul.bf16.gmra.mxu0 %v1745
      %v2492 = vpop.f32.mrf.mxu0
      %v2493 = vadd.f32 %v552, %v2492
      %v2494 = vpop.f32.mrf.mxu0
      %v2495 = vadd.f32 %v552, %v2494
      %2496 = vmatmul.bf16.gmra.mxu0 %v1748
      %v2497 = vpop.f32.mrf.mxu0
      %v2498 = vadd.f32 %v552, %v2497
      %v2499 = vpop.f32.mrf.mxu0
      %v2500 = vadd.f32 %v552, %v2499
      %2501 = vmatmul.bf16.gmra.mxu0 %v1751
      %v2502 = vpop.f32.mrf.mxu0
      %v2503 = vadd.f32 %v552, %v2502
      %v2504 = vpop.f32.mrf.mxu0
      %v2505 = vadd.f32 %v552, %v2504
      %2506 = vmatmul.bf16.gmra.mxu0 %v1754
      %v2507 = vpop.f32.mrf.mxu0
      %v2508 = vadd.f32 %v552, %v2507
      %v2509 = vpop.f32.mrf.mxu0
      %v2510 = vadd.f32 %v552, %v2509
      %2511 = vmatmul.bf16.gmra.mxu0 %v1757
      %v2512 = vpop.f32.mrf.mxu0
      %v2513 = vadd.f32 %v552, %v2512
      %v2514 = vpop.f32.mrf.mxu0
      %v2515 = vadd.f32 %v552, %v2514
      %2516 = vmatmul.bf16.gmra.mxu0 %v1760
      %v2517 = vpop.f32.mrf.mxu0
      %v2518 = vadd.f32 %v552, %v2517
      %v2519 = vpop.f32.mrf.mxu0
      %v2520 = vadd.f32 %v552, %v2519
      %2521 = vmatmul.bf16.gmra.mxu0 %v1763
      %v2522 = vpop.f32.mrf.mxu0
      %v2523 = vadd.f32 %v552, %v2522
      %v2524 = vpop.f32.mrf.mxu0
      %v2525 = vadd.f32 %v552, %v2524
      %2526 = vmatmul.bf16.gmra.mxu0 %v1766
      %v2527 = vpop.f32.mrf.mxu0
      %v2528 = vadd.f32 %v552, %v2527
      %v2529 = vpop.f32.mrf.mxu0
      %v2530 = vadd.f32 %v552, %v2529
      %2531 = vmatmul.bf16.gmra.mxu0 %v1769
      %v2532 = vpop.f32.mrf.mxu0
      %v2533 = vadd.f32 %v552, %v2532
      %v2534 = vpop.f32.mrf.mxu0
      %v2535 = vadd.f32 %v552, %v2534
      %2536 = vmatmul.bf16.gmra.mxu0 %v1772
      %v2537 = vpop.f32.mrf.mxu0
      %v2538 = vadd.f32 %v552, %v2537
      %v2539 = vpop.f32.mrf.mxu0
      %v2540 = vadd.f32 %v552, %v2539
      %2541 = vmatmul.bf16.gmra.mxu0 %v1775
      %v2542 = vpop.f32.mrf.mxu0
      %v2543 = vadd.f32 %v552, %v2542
      %v2544 = vpop.f32.mrf.mxu0
      %v2545 = vadd.f32 %v552, %v2544
      %2546 = vmatmul.bf16.gmra.mxu0 %v1778
      %v2547 = vpop.f32.mrf.mxu0
      %v2548 = vadd.f32 %v552, %v2547
      %v2549 = vpop.f32.mrf.mxu0
      %v2550 = vadd.f32 %v552, %v2549
      %2551 = vmatmul.bf16.gmra.mxu0 %v1781
      %v2552 = vpop.f32.mrf.mxu0
      %v2553 = vadd.f32 %v552, %v2552
      %v2554 = vpop.f32.mrf.mxu0
      %v2555 = vadd.f32 %v552, %v2554
      %2556 = vmatmul.bf16.gmra.mxu0 %v1784
      %v2557 = vpop.f32.mrf.mxu0
      %v2558 = vadd.f32 %v552, %v2557
      %v2559 = vpop.f32.mrf.mxu0
      %v2560 = vadd.f32 %v552, %v2559
      %2561 = vmatmul.bf16.gmra.mxu0 %v1787
      %v2562 = vpop.f32.mrf.mxu0
      %v2563 = vadd.f32 %v552, %v2562
      %v2564 = vpop.f32.mrf.mxu0
      %v2565 = vadd.f32 %v552, %v2564
      %2566 = vmatmul.bf16.gmra.mxu0 %v1790
      %v2567 = vpop.f32.mrf.mxu0
      %v2568 = vadd.f32 %v552, %v2567
      %v2569 = vpop.f32.mrf.mxu0
      %v2570 = vadd.f32 %v552, %v2569
      %2571 = vmatmul.bf16.gmra.mxu0 %v1793
      %v2572 = vpop.f32.mrf.mxu0
      %v2573 = vadd.f32 %v552, %v2572
      %v2574 = vpop.f32.mrf.mxu0
      %v2575 = vadd.f32 %v552, %v2574
      %2576 = vmatmul.bf16.gmra.mxu0 %v1796
      %v2577 = vpop.f32.mrf.mxu0
      %v2578 = vadd.f32 %v552, %v2577
      %v2579 = vpop.f32.mrf.mxu0
      %v2580 = vadd.f32 %v552, %v2579
      %2581 = vmatmul.bf16.gmra.mxu0 %v1799
      %v2582 = vpop.f32.mrf.mxu0
      %v2583 = vadd.f32 %v552, %v2582
      %v2584 = vpop.f32.mrf.mxu0
      %v2585 = vadd.f32 %v552, %v2584
      %2586 = vmatmul.bf16.gmra.mxu0 %v1802
      %v2587 = vpop.f32.mrf.mxu0
      %v2588 = vadd.f32 %v552, %v2587
      %v2589 = vpop.f32.mrf.mxu0
      %v2590 = vadd.f32 %v552, %v2589
      %2591 = vmatmul.bf16.gmra.mxu0 %v1805
      %v2592 = vpop.f32.mrf.mxu0
      %v2593 = vadd.f32 %v552, %v2592
      %v2594 = vpop.f32.mrf.mxu0
      %v2595 = vadd.f32 %v552, %v2594
      %2596 = vmatmul.bf16.gmra.mxu0 %v1808
      %v2597 = vpop.f32.mrf.mxu0
      %v2598 = vadd.f32 %v552, %v2597
      %v2599 = vpop.f32.mrf.mxu0
      %v2600 = vadd.f32 %v552, %v2599
      %2601 = vmatmul.bf16.gmra.mxu0 %v1811
      %v2602 = vpop.f32.mrf.mxu0
      %v2603 = vadd.f32 %v552, %v2602
      %v2604 = vpop.f32.mrf.mxu0
      %v2605 = vadd.f32 %v552, %v2604
      %2606 = vmatmul.bf16.gmra.mxu0 %v1814
      %v2607 = vpop.f32.mrf.mxu0
      %v2608 = vadd.f32 %v552, %v2607
      %v2609 = vpop.f32.mrf.mxu0
      %v2610 = vadd.f32 %v552, %v2609
      %2611 = vmatmul.bf16.gmra.mxu0 %v1817
      %v2612 = vpop.f32.mrf.mxu0
      %v2613 = vadd.f32 %v552, %v2612
      %v2614 = vpop.f32.mrf.mxu0
      %v2615 = vadd.f32 %v552, %v2614
      %2616 = vmatmul.bf16.gmra.mxu0 %v1820
      %v2617 = vpop.f32.mrf.mxu0
      %v2618 = vadd.f32 %v552, %v2617
      %v2619 = vpop.f32.mrf.mxu0
      %v2620 = vadd.f32 %v552, %v2619
      %2621 = vmatmul.bf16.gmra.mxu0 %v1823
      %v2622 = vpop.f32.mrf.mxu0
      %v2623 = vadd.f32 %v552, %v2622
      %v2624 = vpop.f32.mrf.mxu0
      %v2625 = vadd.f32 %v552, %v2624
      %2626 = vmatmul.bf16.gmra.mxu0 %v1826
      %v2627 = vpop.f32.mrf.mxu0
      %v2628 = vadd.f32 %v552, %v2627
      %v2629 = vpop.f32.mrf.mxu0
      %v2630 = vadd.f32 %v552, %v2629
      %2631 = vmatmul.bf16.gmra.mxu0 %v1829
      %v2632 = vpop.f32.mrf.mxu0
      %v2633 = vadd.f32 %v552, %v2632
      %v2634 = vpop.f32.mrf.mxu0
      %v2635 = vadd.f32 %v552, %v2634
      %2636 = vmatmul.bf16.gmra.mxu0 %v1832
      %v2637 = vpop.f32.mrf.mxu0
      %v2638 = vadd.f32 %v552, %v2637
      %v2639 = vpop.f32.mrf.mxu0
      %v2640 = vadd.f32 %v552, %v2639
      %2641 = vmatmul.bf16.gmra.mxu0 %v1835
      %v2642 = vpop.f32.mrf.mxu0
      %v2643 = vadd.f32 %v552, %v2642
      %v2644 = vpop.f32.mrf.mxu0
      %v2645 = vadd.f32 %v552, %v2644
      %2646 = vmatmul.bf16.gmra.mxu0 %v1838
      %v2647 = vpop.f32.mrf.mxu0
      %v2648 = vadd.f32 %v552, %v2647
      %v2649 = vpop.f32.mrf.mxu0
      %v2650 = vadd.f32 %v552, %v2649
      %2651 = vmatmul.bf16.gmra.mxu0 %v1841
      %v2652 = vpop.f32.mrf.mxu0
      %v2653 = vadd.f32 %v552, %v2652
      %v2654 = vpop.f32.mrf.mxu0
      %v2655 = vadd.f32 %v552, %v2654
      %2656 = vmatmul.bf16.gmra.mxu0 %v1844
      %v2657 = vpop.f32.mrf.mxu0
      %v2658 = vadd.f32 %v552, %v2657
      %v2659 = vpop.f32.mrf.mxu0
      %v2660 = vadd.f32 %v552, %v2659
      %2661 = vdwg.mxu0
      %v2662 = vmax.f32 %v1863, 0.0
      %v2663 = vmax.f32 %v1865, 0.0
      %v2664 = vmax.f32 %v1868, 0.0
      %v2665 = vmax.f32 %v1870, 0.0
      %v2666 = vmax.f32 %v1873, 0.0
      %v2667 = vmax.f32 %v1875, 0.0
      %v2668 = vmax.f32 %v1878, 0.0
      %v2669 = vmax.f32 %v1880, 0.0
      %v2670 = vmax.f32 %v1883, 0.0
      %v2671 = vmax.f32 %v1885, 0.0
      %v2672 = vmax.f32 %v1888, 0.0
      %v2673 = vmax.f32 %v1890, 0.0
      %v2674 = vmax.f32 %v1893, 0.0
      %v2675 = vmax.f32 %v1895, 0.0
      %v2676 = vmax.f32 %v1898, 0.0
      %v2677 = vmax.f32 %v1900, 0.0
      %v2678 = vmax.f32 %v1903, 0.0
      %v2679 = vmax.f32 %v1905, 0.0
      %v2680 = vmax.f32 %v1908, 0.0
      %v2681 = vmax.f32 %v1910, 0.0
      %v2682 = vmax.f32 %v1913, 0.0
      %v2683 = vmax.f32 %v1915, 0.0
      %v2684 = vmax.f32 %v1918, 0.0
      %v2685 = vmax.f32 %v1920, 0.0
      %v2686 = vmax.f32 %v1923, 0.0
      %v2687 = vmax.f32 %v1925, 0.0
      %v2688 = vmax.f32 %v1928, 0.0
      %v2689 = vmax.f32 %v1930, 0.0
      %v2690 = vmax.f32 %v1933, 0.0
      %v2691 = vmax.f32 %v1935, 0.0
      %v2692 = vmax.f32 %v1938, 0.0
      %v2693 = vmax.f32 %v1940, 0.0
      %v2694 = vmax.f32 %v1943, 0.0
      %v2695 = vmax.f32 %v1945, 0.0
      %v2696 = vmax.f32 %v1948, 0.0
      %v2697 = vmax.f32 %v1950, 0.0
      %v2698 = vmax.f32 %v1953, 0.0
      %v2699 = vmax.f32 %v1955, 0.0
      %v2700 = vmax.f32 %v1958, 0.0
      %v2701 = vmax.f32 %v1960, 0.0
      %v2702 = vmax.f32 %v1963, 0.0
      %v2703 = vmax.f32 %v1965, 0.0
      %v2704 = vmax.f32 %v1968, 0.0
      %v2705 = vmax.f32 %v1970, 0.0
      %v2706 = vmax.f32 %v1973, 0.0
      %v2707 = vmax.f32 %v1975, 0.0
      %v2708 = vmax.f32 %v1978, 0.0
      %v2709 = vmax.f32 %v1980, 0.0
      %v2710 = vmax.f32 %v1983, 0.0
      %v2711 = vmax.f32 %v1985, 0.0
      %v2712 = vmax.f32 %v1988, 0.0
      %v2713 = vmax.f32 %v1990, 0.0
      %v2714 = vmax.f32 %v1993, 0.0
      %v2715 = vmax.f32 %v1995, 0.0
      %v2716 = vmax.f32 %v1998, 0.0
      %v2717 = vmax.f32 %v2000, 0.0
      %v2718 = vmax.f32 %v2003, 0.0
      %v2719 = vmax.f32 %v2005, 0.0
      %v2720 = vmax.f32 %v2008, 0.0
      %v2721 = vmax.f32 %v2010, 0.0
      %v2722 = vmax.f32 %v2013, 0.0
      %v2723 = vmax.f32 %v2015, 0.0
      %v2724 = vmax.f32 %v2018, 0.0
      %v2725 = vmax.f32 %v2020, 0.0
      %v2726 = vmax.f32 %v2023, 0.0
      %v2727 = vmax.f32 %v2025, 0.0
      %v2728 = vmax.f32 %v2028, 0.0
      %v2729 = vmax.f32 %v2030, 0.0
      %v2730 = vmax.f32 %v2033, 0.0
      %v2731 = vmax.f32 %v2035, 0.0
      %v2732 = vmax.f32 %v2038, 0.0
      %v2733 = vmax.f32 %v2040, 0.0
      %v2734 = vmax.f32 %v2043, 0.0
      %v2735 = vmax.f32 %v2045, 0.0
      %v2736 = vmax.f32 %v2048, 0.0
      %v2737 = vmax.f32 %v2050, 0.0
      %v2738 = vmax.f32 %v2053, 0.0
      %v2739 = vmax.f32 %v2055, 0.0
      %v2740 = vmax.f32 %v2058, 0.0
      %v2741 = vmax.f32 %v2060, 0.0
      %v2742 = vmax.f32 %v2063, 0.0
      %v2743 = vmax.f32 %v2065, 0.0
      %v2744 = vmax.f32 %v2068, 0.0
      %v2745 = vmax.f32 %v2070, 0.0
      %v2746 = vmax.f32 %v2073, 0.0
      %v2747 = vmax.f32 %v2075, 0.0
      %v2748 = vmax.f32 %v2078, 0.0
      %v2749 = vmax.f32 %v2080, 0.0
      %v2750 = vmax.f32 %v2083, 0.0
      %v2751 = vmax.f32 %v2085, 0.0
      %v2752 = vmax.f32 %v2088, 0.0
      %v2753 = vmax.f32 %v2090, 0.0
      %v2754 = vmax.f32 %v2093, 0.0
      %v2755 = vmax.f32 %v2095, 0.0
      %v2756 = vmax.f32 %v2098, 0.0
      %v2757 = vmax.f32 %v2100, 0.0
      %v2758 = vmax.f32 %v2103, 0.0
      %v2759 = vmax.f32 %v2105, 0.0
      %v2760 = vmax.f32 %v2108, 0.0
      %v2761 = vmax.f32 %v2110, 0.0
      %v2762 = vmax.f32 %v2113, 0.0
      %v2763 = vmax.f32 %v2115, 0.0
      %v2764 = vmax.f32 %v2118, 0.0
      %v2765 = vmax.f32 %v2120, 0.0
      %v2766 = vmax.f32 %v2123, 0.0
      %v2767 = vmax.f32 %v2125, 0.0
      %v2768 = vmax.f32 %v2128, 0.0
      %v2769 = vmax.f32 %v2130, 0.0
      %v2770 = vmax.f32 %v2133, 0.0
      %v2771 = vmax.f32 %v2135, 0.0
      %v2772 = vmax.f32 %v2138, 0.0
      %v2773 = vmax.f32 %v2140, 0.0
      %v2774 = vmax.f32 %v2143, 0.0
      %v2775 = vmax.f32 %v2145, 0.0
      %v2776 = vmax.f32 %v2148, 0.0
      %v2777 = vmax.f32 %v2150, 0.0
      %v2778 = vmax.f32 %v2153, 0.0
      %v2779 = vmax.f32 %v2155, 0.0
      %v2780 = vmax.f32 %v2158, 0.0
      %v2781 = vmax.f32 %v2160, 0.0
      %v2782 = vmax.f32 %v2163, 0.0
      %v2783 = vmax.f32 %v2165, 0.0
      %v2784 = vmax.f32 %v2168, 0.0
      %v2785 = vmax.f32 %v2170, 0.0
      %v2786 = vmax.f32 %v2173, 0.0
      %v2787 = vmax.f32 %v2175, 0.0
      %v2788 = vmax.f32 %v2178, 0.0
      %v2789 = vmax.f32 %v2180, 0.0
      %v2790 = vmax.f32 %v2183, 0.0
      %v2791 = vmax.f32 %v2185, 0.0
      %v2792 = vmax.f32 %v2188, 0.0
      %v2793 = vmax.f32 %v2190, 0.0
      %v2794 = vmax.f32 %v2193, 0.0
      %v2795 = vmax.f32 %v2195, 0.0
      %v2796 = vmax.f32 %v2198, 0.0
      %v2797 = vmax.f32 %v2200, 0.0
      %v2798 = vmax.f32 %v2203, 0.0
      %v2799 = vmax.f32 %v2205, 0.0
      %v2800 = vmax.f32 %v2208, 0.0
      %v2801 = vmax.f32 %v2210, 0.0
      %v2802 = vmax.f32 %v2213, 0.0
      %v2803 = vmax.f32 %v2215, 0.0
      %v2804 = vmax.f32 %v2218, 0.0
      %v2805 = vmax.f32 %v2220, 0.0
      %v2806 = vmax.f32 %v2223, 0.0
      %v2807 = vmax.f32 %v2225, 0.0
      %v2808 = vmax.f32 %v2228, 0.0
      %v2809 = vmax.f32 %v2230, 0.0
      %v2810 = vmax.f32 %v2233, 0.0
      %v2811 = vmax.f32 %v2235, 0.0
      %v2812 = vmax.f32 %v2238, 0.0
      %v2813 = vmax.f32 %v2240, 0.0
      %v2814 = vmax.f32 %v2243, 0.0
      %v2815 = vmax.f32 %v2245, 0.0
      %v2816 = vmax.f32 %v2248, 0.0
      %v2817 = vmax.f32 %v2250, 0.0
      %v2818 = vmax.f32 %v2253, 0.0
      %v2819 = vmax.f32 %v2255, 0.0
      %v2820 = vmax.f32 %v2258, 0.0
      %v2821 = vmax.f32 %v2260, 0.0
      %v2822 = vmax.f32 %v2263, 0.0
      %v2823 = vmax.f32 %v2265, 0.0
      %v2824 = vmax.f32 %v2268, 0.0
      %v2825 = vmax.f32 %v2270, 0.0
      %v2826 = vmax.f32 %v2273, 0.0
      %v2827 = vmax.f32 %v2275, 0.0
      %v2828 = vmax.f32 %v2278, 0.0
      %v2829 = vmax.f32 %v2280, 0.0
      %v2830 = vmax.f32 %v2283, 0.0
      %v2831 = vmax.f32 %v2285, 0.0
      %v2832 = vmax.f32 %v2288, 0.0
      %v2833 = vmax.f32 %v2290, 0.0
      %v2834 = vmax.f32 %v2293, 0.0
      %v2835 = vmax.f32 %v2295, 0.0
      %v2836 = vmax.f32 %v2298, 0.0
      %v2837 = vmax.f32 %v2300, 0.0
      %v2838 = vmax.f32 %v2303, 0.0
      %v2839 = vmax.f32 %v2305, 0.0
      %v2840 = vmax.f32 %v2308, 0.0
      %v2841 = vmax.f32 %v2310, 0.0
      %v2842 = vmax.f32 %v2313, 0.0
      %v2843 = vmax.f32 %v2315, 0.0
      %v2844 = vmax.f32 %v2318, 0.0
      %v2845 = vmax.f32 %v2320, 0.0
      %v2846 = vmax.f32 %v2323, 0.0
      %v2847 = vmax.f32 %v2325, 0.0
      %v2848 = vmax.f32 %v2328, 0.0
      %v2849 = vmax.f32 %v2330, 0.0
      %v2850 = vmax.f32 %v2333, 0.0
      %v2851 = vmax.f32 %v2335, 0.0
      %v2852 = vmax.f32 %v2338, 0.0
      %v2853 = vmax.f32 %v2340, 0.0
      %v2854 = vmax.f32 %v2343, 0.0
      %v2855 = vmax.f32 %v2345, 0.0
      %v2856 = vmax.f32 %v2348, 0.0
      %v2857 = vmax.f32 %v2350, 0.0
      %v2858 = vmax.f32 %v2353, 0.0
      %v2859 = vmax.f32 %v2355, 0.0
      %v2860 = vmax.f32 %v2358, 0.0
      %v2861 = vmax.f32 %v2360, 0.0
      %v2862 = vmax.f32 %v2363, 0.0
      %v2863 = vmax.f32 %v2365, 0.0
      %v2864 = vmax.f32 %v2368, 0.0
      %v2865 = vmax.f32 %v2370, 0.0
      %v2866 = vmax.f32 %v2373, 0.0
      %v2867 = vmax.f32 %v2375, 0.0
      %v2868 = vmax.f32 %v2378, 0.0
      %v2869 = vmax.f32 %v2380, 0.0
      %v2870 = vmax.f32 %v2383, 0.0
      %v2871 = vmax.f32 %v2385, 0.0
      %v2872 = vmax.f32 %v2388, 0.0
      %v2873 = vmax.f32 %v2390, 0.0
      %v2874 = vmax.f32 %v2393, 0.0
      %v2875 = vmax.f32 %v2395, 0.0
      %v2876 = vmax.f32 %v2398, 0.0
      %v2877 = vmax.f32 %v2400, 0.0
      %v2878 = vmax.f32 %v2403, 0.0
      %v2879 = vmax.f32 %v2405, 0.0
      %v2880 = vmax.f32 %v2408, 0.0
      %v2881 = vmax.f32 %v2410, 0.0
      %v2882 = vmax.f32 %v2413, 0.0
      %v2883 = vmax.f32 %v2415, 0.0
      %v2884 = vmax.f32 %v2418, 0.0
      %v2885 = vmax.f32 %v2420, 0.0
      %v2886 = vmax.f32 %v2423, 0.0
      %v2887 = vmax.f32 %v2425, 0.0
      %v2888 = vmax.f32 %v2428, 0.0
      %v2889 = vmax.f32 %v2430, 0.0
      %v2890 = vmax.f32 %v2433, 0.0
      %v2891 = vmax.f32 %v2435, 0.0
      %v2892 = vmax.f32 %v2438, 0.0
      %v2893 = vmax.f32 %v2440, 0.0
      %v2894 = vmax.f32 %v2443, 0.0
      %v2895 = vmax.f32 %v2445, 0.0
      %v2896 = vmax.f32 %v2448, 0.0
      %v2897 = vmax.f32 %v2450, 0.0
      %v2898 = vmax.f32 %v2453, 0.0
      %v2899 = vmax.f32 %v2455, 0.0
      %v2900 = vmax.f32 %v2458, 0.0
      %v2901 = vmax.f32 %v2460, 0.0
      %v2902 = vmax.f32 %v2463, 0.0
      %v2903 = vmax.f32 %v2465, 0.0
      %v2904 = vmax.f32 %v2468, 0.0
      %v2905 = vmax.f32 %v2470, 0.0
      %v2906 = vmax.f32 %v2473, 0.0
      %v2907 = vmax.f32 %v2475, 0.0
      %v2908 = vmax.f32 %v2478, 0.0
      %v2909 = vmax.f32 %v2480, 0.0
      %v2910 = vmax.f32 %v2483, 0.0
      %v2911 = vmax.f32 %v2485, 0.0
      %v2912 = vmax.f32 %v2488, 0.0
      %v2913 = vmax.f32 %v2490, 0.0
      %v2914 = vmax.f32 %v2493, 0.0
      %v2915 = vmax.f32 %v2495, 0.0
      %v2916 = vmax.f32 %v2498, 0.0
      %v2917 = vmax.f32 %v2500, 0.0
      %v2918 = vmax.f32 %v2503, 0.0
      %v2919 = vmax.f32 %v2505, 0.0
      %v2920 = vmax.f32 %v2508, 0.0
      %v2921 = vmax.f32 %v2510, 0.0
      %v2922 = vmax.f32 %v2513, 0.0
      %v2923 = vmax.f32 %v2515, 0.0
      %v2924 = vmax.f32 %v2518, 0.0
      %v2925 = vmax.f32 %v2520, 0.0
      %v2926 = vmax.f32 %v2523, 0.0
      %v2927 = vmax.f32 %v2525, 0.0
      %v2928 = vmax.f32 %v2528, 0.0
      %v2929 = vmax.f32 %v2530, 0.0
      %v2930 = vmax.f32 %v2533, 0.0
      %v2931 = vmax.f32 %v2535, 0.0
      %v2932 = vmax.f32 %v2538, 0.0
      %v2933 = vmax.f32 %v2540, 0.0
      %v2934 = vmax.f32 %v2543, 0.0
      %v2935 = vmax.f32 %v2545, 0.0
      %v2936 = vmax.f32 %v2548, 0.0
      %v2937 = vmax.f32 %v2550, 0.0
      %v2938 = vmax.f32 %v2553, 0.0
      %v2939 = vmax.f32 %v2555, 0.0
      %v2940 = vmax.f32 %v2558, 0.0
      %v2941 = vmax.f32 %v2560, 0.0
      %v2942 = vmax.f32 %v2563, 0.0
      %v2943 = vmax.f32 %v2565, 0.0
      %v2944 = vmax.f32 %v2568, 0.0
      %v2945 = vmax.f32 %v2570, 0.0
      %v2946 = vmax.f32 %v2573, 0.0
      %v2947 = vmax.f32 %v2575, 0.0
      %v2948 = vmax.f32 %v2578, 0.0
      %v2949 = vmax.f32 %v2580, 0.0
      %v2950 = vmax.f32 %v2583, 0.0
      %v2951 = vmax.f32 %v2585, 0.0
      %v2952 = vmax.f32 %v2588, 0.0
      %v2953 = vmax.f32 %v2590, 0.0
      %v2954 = vmax.f32 %v2593, 0.0
      %v2955 = vmax.f32 %v2595, 0.0
      %v2956 = vmax.f32 %v2598, 0.0
      %v2957 = vmax.f32 %v2600, 0.0
      %v2958 = vmax.f32 %v2603, 0.0
      %v2959 = vmax.f32 %v2605, 0.0
      %v2960 = vmax.f32 %v2608, 0.0
      %v2961 = vmax.f32 %v2610, 0.0
      %v2962 = vmax.f32 %v2613, 0.0
      %v2963 = vmax.f32 %v2615, 0.0
      %v2964 = vmax.f32 %v2618, 0.0
      %v2965 = vmax.f32 %v2620, 0.0
      %v2966 = vmax.f32 %v2623, 0.0
      %v2967 = vmax.f32 %v2625, 0.0
      %v2968 = vmax.f32 %v2628, 0.0
      %v2969 = vmax.f32 %v2630, 0.0
      %v2970 = vmax.f32 %v2633, 0.0
      %v2971 = vmax.f32 %v2635, 0.0
      %v2972 = vmax.f32 %v2638, 0.0
      %v2973 = vmax.f32 %v2640, 0.0
      %v2974 = vmax.f32 %v2643, 0.0
      %v2975 = vmax.f32 %v2645, 0.0
      %v2976 = vmax.f32 %v2648, 0.0
      %v2977 = vmax.f32 %v2650, 0.0
      %v2978 = vmax.f32 %v2653, 0.0
      %v2979 = vmax.f32 %v2655, 0.0
      %v2980 = vmax.f32 %v2658, 0.0
      %v2981 = vmax.f32 %v2660, 0.0
      %v2982 = vadd.f32 %v2662, %v2742
      %v2983 = vadd.f32 %v2663, %v2743
      %v2984 = vadd.f32 %v2664, %v2744
      %v2985 = vadd.f32 %v2665, %v2745
      %v2986 = vadd.f32 %v2666, %v2746
      %v2987 = vadd.f32 %v2667, %v2747
      %v2988 = vadd.f32 %v2668, %v2748
      %v2989 = vadd.f32 %v2669, %v2749
      %v2990 = vadd.f32 %v2670, %v2750
      %v2991 = vadd.f32 %v2671, %v2751
      %v2992 = vadd.f32 %v2672, %v2752
      %v2993 = vadd.f32 %v2673, %v2753
      %v2994 = vadd.f32 %v2674, %v2754
      %v2995 = vadd.f32 %v2675, %v2755
      %v2996 = vadd.f32 %v2676, %v2756
      %v2997 = vadd.f32 %v2677, %v2757
      %v2998 = vadd.f32 %v2678, %v2758
      %v2999 = vadd.f32 %v2679, %v2759
      %v3000 = vadd.f32 %v2680, %v2760
      %v3001 = vadd.f32 %v2681, %v2761
      %v3002 = vadd.f32 %v2682, %v2762
      %v3003 = vadd.f32 %v2683, %v2763
      %v3004 = vadd.f32 %v2684, %v2764
      %v3005 = vadd.f32 %v2685, %v2765
      %v3006 = vadd.f32 %v2686, %v2766
      %v3007 = vadd.f32 %v2687, %v2767
      %v3008 = vadd.f32 %v2688, %v2768
      %v3009 = vadd.f32 %v2689, %v2769
      %v3010 = vadd.f32 %v2690, %v2770
      %v3011 = vadd.f32 %v2691, %v2771
      %v3012 = vadd.f32 %v2692, %v2772
      %v3013 = vadd.f32 %v2693, %v2773
      %v3014 = vadd.f32 %v2694, %v2774
      %v3015 = vadd.f32 %v2695, %v2775
      %v3016 = vadd.f32 %v2696, %v2776
      %v3017 = vadd.f32 %v2697, %v2777
      %v3018 = vadd.f32 %v2698, %v2778
      %v3019 = vadd.f32 %v2699, %v2779
      %v3020 = vadd.f32 %v2700, %v2780
      %v3021 = vadd.f32 %v2701, %v2781
      %v3022 = vadd.f32 %v2702, %v2782
      %v3023 = vadd.f32 %v2703, %v2783
      %v3024 = vadd.f32 %v2704, %v2784
      %v3025 = vadd.f32 %v2705, %v2785
      %v3026 = vadd.f32 %v2706, %v2786
      %v3027 = vadd.f32 %v2707, %v2787
      %v3028 = vadd.f32 %v2708, %v2788
      %v3029 = vadd.f32 %v2709, %v2789
      %v3030 = vadd.f32 %v2710, %v2790
      %v3031 = vadd.f32 %v2711, %v2791
      %v3032 = vadd.f32 %v2712, %v2792
      %v3033 = vadd.f32 %v2713, %v2793
      %v3034 = vadd.f32 %v2714, %v2794
      %v3035 = vadd.f32 %v2715, %v2795
      %v3036 = vadd.f32 %v2716, %v2796
      %v3037 = vadd.f32 %v2717, %v2797
      %v3038 = vadd.f32 %v2718, %v2798
      %v3039 = vadd.f32 %v2719, %v2799
      %v3040 = vadd.f32 %v2720, %v2800
      %v3041 = vadd.f32 %v2721, %v2801
      %v3042 = vadd.f32 %v2722, %v2802
      %v3043 = vadd.f32 %v2723, %v2803
      %v3044 = vadd.f32 %v2724, %v2804
      %v3045 = vadd.f32 %v2725, %v2805
      %v3046 = vadd.f32 %v2726, %v2806
      %v3047 = vadd.f32 %v2727, %v2807
      %v3048 = vadd.f32 %v2728, %v2808
      %v3049 = vadd.f32 %v2729, %v2809
      %v3050 = vadd.f32 %v2730, %v2810
      %v3051 = vadd.f32 %v2731, %v2811
      %v3052 = vadd.f32 %v2732, %v2812
      %v3053 = vadd.f32 %v2733, %v2813
      %v3054 = vadd.f32 %v2734, %v2814
      %v3055 = vadd.f32 %v2735, %v2815
      %v3056 = vadd.f32 %v2736, %v2816
      %v3057 = vadd.f32 %v2737, %v2817
      %v3058 = vadd.f32 %v2738, %v2818
      %v3059 = vadd.f32 %v2739, %v2819
      %v3060 = vadd.f32 %v2740, %v2820
      %v3061 = vadd.f32 %v2741, %v2821
      %v3062 = vadd.f32 %v2982, %v2822
      %v3063 = vadd.f32 %v2983, %v2823
      %v3064 = vadd.f32 %v2984, %v2824
      %v3065 = vadd.f32 %v2985, %v2825
      %v3066 = vadd.f32 %v2986, %v2826
      %v3067 = vadd.f32 %v2987, %v2827
      %v3068 = vadd.f32 %v2988, %v2828
      %v3069 = vadd.f32 %v2989, %v2829
      %v3070 = vadd.f32 %v2990, %v2830
      %v3071 = vadd.f32 %v2991, %v2831
      %v3072 = vadd.f32 %v2992, %v2832
      %v3073 = vadd.f32 %v2993, %v2833
      %v3074 = vadd.f32 %v2994, %v2834
      %v3075 = vadd.f32 %v2995, %v2835
      %v3076 = vadd.f32 %v2996, %v2836
      %v3077 = vadd.f32 %v2997, %v2837
      %v3078 = vadd.f32 %v2998, %v2838
      %v3079 = vadd.f32 %v2999, %v2839
      %v3080 = vadd.f32 %v3000, %v2840
      %v3081 = vadd.f32 %v3001, %v2841
      %v3082 = vadd.f32 %v3002, %v2842
      %v3083 = vadd.f32 %v3003, %v2843
      %v3084 = vadd.f32 %v3004, %v2844
      %v3085 = vadd.f32 %v3005, %v2845
      %v3086 = vadd.f32 %v3006, %v2846
      %v3087 = vadd.f32 %v3007, %v2847
      %v3088 = vadd.f32 %v3008, %v2848
      %v3089 = vadd.f32 %v3009, %v2849
      %v3090 = vadd.f32 %v3010, %v2850
      %v3091 = vadd.f32 %v3011, %v2851
      %v3092 = vadd.f32 %v3012, %v2852
      %v3093 = vadd.f32 %v3013, %v2853
      %v3094 = vadd.f32 %v3014, %v2854
      %v3095 = vadd.f32 %v3015, %v2855
      %v3096 = vadd.f32 %v3016, %v2856
      %v3097 = vadd.f32 %v3017, %v2857
      %v3098 = vadd.f32 %v3018, %v2858
      %v3099 = vadd.f32 %v3019, %v2859
      %v3100 = vadd.f32 %v3020, %v2860
      %v3101 = vadd.f32 %v3021, %v2861
      %v3102 = vadd.f32 %v3022, %v2862
      %v3103 = vadd.f32 %v3023, %v2863
      %v3104 = vadd.f32 %v3024, %v2864
      %v3105 = vadd.f32 %v3025, %v2865
      %v3106 = vadd.f32 %v3026, %v2866
      %v3107 = vadd.f32 %v3027, %v2867
      %v3108 = vadd.f32 %v3028, %v2868
      %v3109 = vadd.f32 %v3029, %v2869
      %v3110 = vadd.f32 %v3030, %v2870
      %v3111 = vadd.f32 %v3031, %v2871
      %v3112 = vadd.f32 %v3032, %v2872
      %v3113 = vadd.f32 %v3033, %v2873
      %v3114 = vadd.f32 %v3034, %v2874
      %v3115 = vadd.f32 %v3035, %v2875
      %v3116 = vadd.f32 %v3036, %v2876
      %v3117 = vadd.f32 %v3037, %v2877
      %v3118 = vadd.f32 %v3038, %v2878
      %v3119 = vadd.f32 %v3039, %v2879
      %v3120 = vadd.f32 %v3040, %v2880
      %v3121 = vadd.f32 %v3041, %v2881
      %v3122 = vadd.f32 %v3042, %v2882
      %v3123 = vadd.f32 %v3043, %v2883
      %v3124 = vadd.f32 %v3044, %v2884
      %v3125 = vadd.f32 %v3045, %v2885
      %v3126 = vadd.f32 %v3046, %v2886
      %v3127 = vadd.f32 %v3047, %v2887
      %v3128 = vadd.f32 %v3048, %v2888
      %v3129 = vadd.f32 %v3049, %v2889
      %v3130 = vadd.f32 %v3050, %v2890
      %v3131 = vadd.f32 %v3051, %v2891
      %v3132 = vadd.f32 %v3052, %v2892
      %v3133 = vadd.f32 %v3053, %v2893
      %v3134 = vadd.f32 %v3054, %v2894
      %v3135 = vadd.f32 %v3055, %v2895
      %v3136 = vadd.f32 %v3056, %v2896
      %v3137 = vadd.f32 %v3057, %v2897
      %v3138 = vadd.f32 %v3058, %v2898
      %v3139 = vadd.f32 %v3059, %v2899
      %v3140 = vadd.f32 %v3060, %v2900
      %v3141 = vadd.f32 %v3061, %v2901
      %v3142 = vadd.f32 %v3062, %v2902
      %v3143 = vadd.f32 %v3063, %v2903
      %v3144 = vadd.f32 %v3064, %v2904
      %v3145 = vadd.f32 %v3065, %v2905
      %v3146 = vadd.f32 %v3066, %v2906
      %v3147 = vadd.f32 %v3067, %v2907
      %v3148 = vadd.f32 %v3068, %v2908
      %v3149 = vadd.f32 %v3069, %v2909
      %v3150 = vadd.f32 %v3070, %v2910
      %v3151 = vadd.f32 %v3071, %v2911
      %v3152 = vadd.f32 %v3072, %v2912
      %v3153 = vadd.f32 %v3073, %v2913
      %v3154 = vadd.f32 %v3074, %v2914
      %v3155 = vadd.f32 %v3075, %v2915
      %v3156 = vadd.f32 %v3076, %v2916
      %v3157 = vadd.f32 %v3077, %v2917
      %v3158 = vadd.f32 %v3078, %v2918
      %v3159 = vadd.f32 %v3079, %v2919
      %v3160 = vadd.f32 %v3080, %v2920
      %v3161 = vadd.f32 %v3081, %v2921
      %v3162 = vadd.f32 %v3082, %v2922
      %v3163 = vadd.f32 %v3083, %v2923
      %v3164 = vadd.f32 %v3084, %v2924
      %v3165 = vadd.f32 %v3085, %v2925
      %v3166 = vadd.f32 %v3086, %v2926
      %v3167 = vadd.f32 %v3087, %v2927
      %v3168 = vadd.f32 %v3088, %v2928
      %v3169 = vadd.f32 %v3089, %v2929
      %v3170 = vadd.f32 %v3090, %v2930
      %v3171 = vadd.f32 %v3091, %v2931
      %v3172 = vadd.f32 %v3092, %v2932
      %v3173 = vadd.f32 %v3093, %v2933
      %v3174 = vadd.f32 %v3094, %v2934
      %v3175 = vadd.f32 %v3095, %v2935
      %v3176 = vadd.f32 %v3096, %v2936
      %v3177 = vadd.f32 %v3097, %v2937
      %v3178 = vadd.f32 %v3098, %v2938
      %v3179 = vadd.f32 %v3099, %v2939
      %v3180 = vadd.f32 %v3100, %v2940
      %v3181 = vadd.f32 %v3101, %v2941
      %v3182 = vadd.f32 %v3102, %v2942
      %v3183 = vadd.f32 %v3103, %v2943
      %v3184 = vadd.f32 %v3104, %v2944
      %v3185 = vadd.f32 %v3105, %v2945
      %v3186 = vadd.f32 %v3106, %v2946
      %v3187 = vadd.f32 %v3107, %v2947
      %v3188 = vadd.f32 %v3108, %v2948
      %v3189 = vadd.f32 %v3109, %v2949
      %v3190 = vadd.f32 %v3110, %v2950
      %v3191 = vadd.f32 %v3111, %v2951
      %v3192 = vadd.f32 %v3112, %v2952
      %v3193 = vadd.f32 %v3113, %v2953
      %v3194 = vadd.f32 %v3114, %v2954
      %v3195 = vadd.f32 %v3115, %v2955
      %v3196 = vadd.f32 %v3116, %v2956
      %v3197 = vadd.f32 %v3117, %v2957
      %v3198 = vadd.f32 %v3118, %v2958
      %v3199 = vadd.f32 %v3119, %v2959
      %v3200 = vadd.f32 %v3120, %v2960
      %v3201 = vadd.f32 %v3121, %v2961
      %v3202 = vadd.f32 %v3122, %v2962
      %v3203 = vadd.f32 %v3123, %v2963
      %v3204 = vadd.f32 %v3124, %v2964
      %v3205 = vadd.f32 %v3125, %v2965
      %v3206 = vadd.f32 %v3126, %v2966
      %v3207 = vadd.f32 %v3127, %v2967
      %v3208 = vadd.f32 %v3128, %v2968
      %v3209 = vadd.f32 %v3129, %v2969
      %v3210 = vadd.f32 %v3130, %v2970
      %v3211 = vadd.f32 %v3131, %v2971
      %v3212 = vadd.f32 %v3132, %v2972
      %v3213 = vadd.f32 %v3133, %v2973
      %v3214 = vadd.f32 %v3134, %v2974
      %v3215 = vadd.f32 %v3135, %v2975
      %v3216 = vadd.f32 %v3136, %v2976
      %v3217 = vadd.f32 %v3137, %v2977
      %v3218 = vadd.f32 %v3138, %v2978
      %v3219 = vadd.f32 %v3139, %v2979
      %v3220 = vadd.f32 %v3140, %v2980
      %v3221 = vadd.f32 %v3141, %v2981
      %v3222 = vmul.f32 %v3142, 0.25
      %v3223 = vmul.f32 %v3143, 0.25
      %v3224 = vmul.f32 %v3144, 0.25
      %v3225 = vmul.f32 %v3145, 0.25
      %v3226 = vmul.f32 %v3146, 0.25
      %v3227 = vmul.f32 %v3147, 0.25
      %v3228 = vmul.f32 %v3148, 0.25
      %v3229 = vmul.f32 %v3149, 0.25
      %v3230 = vmul.f32 %v3150, 0.25
      %v3231 = vmul.f32 %v3151, 0.25
      %v3232 = vmul.f32 %v3152, 0.25
      %v3233 = vmul.f32 %v3153, 0.25
      %v3234 = vmul.f32 %v3154, 0.25
      %v3235 = vmul.f32 %v3155, 0.25
      %v3236 = vmul.f32 %v3156, 0.25
      %v3237 = vmul.f32 %v3157, 0.25
      %v3238 = vmul.f32 %v3158, 0.25
      %v3239 = vmul.f32 %v3159, 0.25
      %v3240 = vmul.f32 %v3160, 0.25
      %v3241 = vmul.f32 %v3161, 0.25
      %v3242 = vmul.f32 %v3162, 0.25
      %v3243 = vmul.f32 %v3163, 0.25
      %v3244 = vmul.f32 %v3164, 0.25
      %v3245 = vmul.f32 %v3165, 0.25
      %v3246 = vmul.f32 %v3166, 0.25
      %v3247 = vmul.f32 %v3167, 0.25
      %v3248 = vmul.f32 %v3168, 0.25
      %v3249 = vmul.f32 %v3169, 0.25
      %v3250 = vmul.f32 %v3170, 0.25
      %v3251 = vmul.f32 %v3171, 0.25
      %v3252 = vmul.f32 %v3172, 0.25
      %v3253 = vmul.f32 %v3173, 0.25
      %v3254 = vmul.f32 %v3174, 0.25
      %v3255 = vmul.f32 %v3175, 0.25
      %v3256 = vmul.f32 %v3176, 0.25
      %v3257 = vmul.f32 %v3177, 0.25
      %v3258 = vmul.f32 %v3178, 0.25
      %v3259 = vmul.f32 %v3179, 0.25
      %v3260 = vmul.f32 %v3180, 0.25
      %v3261 = vmul.f32 %v3181, 0.25
      %v3262 = vmul.f32 %v3182, 0.25
      %v3263 = vmul.f32 %v3183, 0.25
      %v3264 = vmul.f32 %v3184, 0.25
      %v3265 = vmul.f32 %v3185, 0.25
      %v3266 = vmul.f32 %v3186, 0.25
      %v3267 = vmul.f32 %v3187, 0.25
      %v3268 = vmul.f32 %v3188, 0.25
      %v3269 = vmul.f32 %v3189, 0.25
      %v3270 = vmul.f32 %v3190, 0.25
      %v3271 = vmul.f32 %v3191, 0.25
      %v3272 = vmul.f32 %v3192, 0.25
      %v3273 = vmul.f32 %v3193, 0.25
      %v3274 = vmul.f32 %v3194, 0.25
      %v3275 = vmul.f32 %v3195, 0.25
      %v3276 = vmul.f32 %v3196, 0.25
      %v3277 = vmul.f32 %v3197, 0.25
      %v3278 = vmul.f32 %v3198, 0.25
      %v3279 = vmul.f32 %v3199, 0.25
      %v3280 = vmul.f32 %v3200, 0.25
      %v3281 = vmul.f32 %v3201, 0.25
      %v3282 = vmul.f32 %v3202, 0.25
      %v3283 = vmul.f32 %v3203, 0.25
      %v3284 = vmul.f32 %v3204, 0.25
      %v3285 = vmul.f32 %v3205, 0.25
      %v3286 = vmul.f32 %v3206, 0.25
      %v3287 = vmul.f32 %v3207, 0.25
      %v3288 = vmul.f32 %v3208, 0.25
      %v3289 = vmul.f32 %v3209, 0.25
      %v3290 = vmul.f32 %v3210, 0.25
      %v3291 = vmul.f32 %v3211, 0.25
      %v3292 = vmul.f32 %v3212, 0.25
      %v3293 = vmul.f32 %v3213, 0.25
      %v3294 = vmul.f32 %v3214, 0.25
      %v3295 = vmul.f32 %v3215, 0.25
      %v3296 = vmul.f32 %v3216, 0.25
      %v3297 = vmul.f32 %v3217, 0.25
      %v3298 = vmul.f32 %v3218, 0.25
      %v3299 = vmul.f32 %v3219, 0.25
      %v3300 = vmul.f32 %v3220, 0.25
      %v3301 = vmul.f32 %v3221, 0.25
      %v3302 = vpack.c.bf16 %v3222, %v3222
      %v3303 = vpack.c.bf16 %v3223, %v3223
      %v3304 = vpack.c.bf16 %v3224, %v3224
      %v3305 = vpack.c.bf16 %v3225, %v3225
      %v3306 = vpack.c.bf16 %v3226, %v3226
      %v3307 = vpack.c.bf16 %v3227, %v3227
      %v3308 = vpack.c.bf16 %v3228, %v3228
      %v3309 = vpack.c.bf16 %v3229, %v3229
      %v3310 = vpack.c.bf16 %v3230, %v3230
      %v3311 = vpack.c.bf16 %v3231, %v3231
      %v3312 = vpack.c.bf16 %v3232, %v3232
      %v3313 = vpack.c.bf16 %v3233, %v3233
      %v3314 = vpack.c.bf16 %v3234, %v3234
      %v3315 = vpack.c.bf16 %v3235, %v3235
      %v3316 = vpack.c.bf16 %v3236, %v3236
      %v3317 = vpack.c.bf16 %v3237, %v3237
      %v3318 = vpack.c.bf16 %v3238, %v3238
      %v3319 = vpack.c.bf16 %v3239, %v3239
      %v3320 = vpack.c.bf16 %v3240, %v3240
      %v3321 = vpack.c.bf16 %v3241, %v3241
      %v3322 = vpack.c.bf16 %v3242, %v3242
      %v3323 = vpack.c.bf16 %v3243, %v3243
      %v3324 = vpack.c.bf16 %v3244, %v3244
      %v3325 = vpack.c.bf16 %v3245, %v3245
      %v3326 = vpack.c.bf16 %v3246, %v3246
      %v3327 = vpack.c.bf16 %v3247, %v3247
      %v3328 = vpack.c.bf16 %v3248, %v3248
      %v3329 = vpack.c.bf16 %v3249, %v3249
      %v3330 = vpack.c.bf16 %v3250, %v3250
      %v3331 = vpack.c.bf16 %v3251, %v3251
      %v3332 = vpack.c.bf16 %v3252, %v3252
      %v3333 = vpack.c.bf16 %v3253, %v3253
      %v3334 = vpack.c.bf16 %v3254, %v3254
      %v3335 = vpack.c.bf16 %v3255, %v3255
      %v3336 = vpack.c.bf16 %v3256, %v3256
      %v3337 = vpack.c.bf16 %v3257, %v3257
      %v3338 = vpack.c.bf16 %v3258, %v3258
      %v3339 = vpack.c.bf16 %v3259, %v3259
      %v3340 = vpack.c.bf16 %v3260, %v3260
      %v3341 = vpack.c.bf16 %v3261, %v3261
      %v3342 = vpack.c.bf16 %v3262, %v3262
      %v3343 = vpack.c.bf16 %v3263, %v3263
      %v3344 = vpack.c.bf16 %v3264, %v3264
      %v3345 = vpack.c.bf16 %v3265, %v3265
      %v3346 = vpack.c.bf16 %v3266, %v3266
      %v3347 = vpack.c.bf16 %v3267, %v3267
      %v3348 = vpack.c.bf16 %v3268, %v3268
      %v3349 = vpack.c.bf16 %v3269, %v3269
      %v3350 = vpack.c.bf16 %v3270, %v3270
      %v3351 = vpack.c.bf16 %v3271, %v3271
      %v3352 = vpack.c.bf16 %v3272, %v3272
      %v3353 = vpack.c.bf16 %v3273, %v3273
      %v3354 = vpack.c.bf16 %v3274, %v3274
      %v3355 = vpack.c.bf16 %v3275, %v3275
      %v3356 = vpack.c.bf16 %v3276, %v3276
      %v3357 = vpack.c.bf16 %v3277, %v3277
      %v3358 = vpack.c.bf16 %v3278, %v3278
      %v3359 = vpack.c.bf16 %v3279, %v3279
      %v3360 = vpack.c.bf16 %v3280, %v3280
      %v3361 = vpack.c.bf16 %v3281, %v3281
      %v3362 = vpack.c.bf16 %v3282, %v3282
      %v3363 = vpack.c.bf16 %v3283, %v3283
      %v3364 = vpack.c.bf16 %v3284, %v3284
      %v3365 = vpack.c.bf16 %v3285, %v3285
      %v3366 = vpack.c.bf16 %v3286, %v3286
      %v3367 = vpack.c.bf16 %v3287, %v3287
      %v3368 = vpack.c.bf16 %v3288, %v3288
      %v3369 = vpack.c.bf16 %v3289, %v3289
      %v3370 = vpack.c.bf16 %v3290, %v3290
      %v3371 = vpack.c.bf16 %v3291, %v3291
      %v3372 = vpack.c.bf16 %v3292, %v3292
      %v3373 = vpack.c.bf16 %v3293, %v3293
      %v3374 = vpack.c.bf16 %v3294, %v3294
      %v3375 = vpack.c.bf16 %v3295, %v3295
      %v3376 = vpack.c.bf16 %v3296, %v3296
      %v3377 = vpack.c.bf16 %v3297, %v3297
      %v3378 = vpack.c.bf16 %v3298, %v3298
      %v3379 = vpack.c.bf16 %v3299, %v3299
      %v3380 = vpack.c.bf16 %v3300, %v3300
      %v3381 = vpack.c.bf16 %v3301, %v3301
      %v3382 = vld [vmem:[%s4] sm:$0x1]
      %v3383 = vld [vmem:[%s3] sm:$0xf]
      %s3384 = scalar_lea.vmem %s3, 4
      %v3385 = vld [vmem:[%s3384] sm:$0xf]
      %v3391 = vunpack.c.l.b16 %v3307
      %v3392 = vunpack.c.l.b16 %v3308
      %v3393 = vunpack.c.l.b16 %v3309
      %v3394 = vunpack.c.l.b16 %v3310
      %v3395 = vunpack.c.l.b16 %v3311
      %v3396 = vpack.c.b16 %v3392, %v3391
      %v3397 = vpack.c.b16 %v3394, %v3393
      %v3398 = vpack.c.b16 %v3395, %v3395
      %vm3399 = vcmask 64512
      %v3401 = vsel %vm3399, %v3396, 0
      %v3404 = vsel %vm3399, %v3397, 0
      %v3407 = vsel %vm3399, %v3398, 0
      %v3410 = vsel %vm1846, %v3385, 0
      %3412 = vmatpush.bf16.msra.mxu0 0
      %3413 = vmatpush.bf16.msra.mxu0 0
      %3414 = vmatpush.bf16.msra.mxu0 0
      %3415 = vmatpush.bf16.msra.mxu0 0
      %3416 = vmatpush.bf16.msra.mxu0 0
      %3417 = vmatpush.bf16.msra.mxu0 0
      %3418 = vmatpush.bf16.msra.mxu0 0
      %3419 = vmatpush.bf16.msra.mxu0 %v3410
      %3420 = vmatmul.bf16.gmra.mxu0 %v3401
      %v3421 = vpop.f32.mrf.mxu0
      %v3422 = vadd.f32 0.0, %v3421
      %v3423 = vpop.f32.mrf.mxu0
      %v3424 = vadd.f32 0.0, %v3423
      %3425 = vmatmul.bf16.gmra.mxu0 %v3404
      %v3426 = vpop.f32.mrf.mxu0
      %v3427 = vadd.f32 0.0, %v3426
      %v3428 = vpop.f32.mrf.mxu0
      %v3429 = vadd.f32 0.0, %v3428
      %3430 = vmatmul.bf16.gmra.mxu0 %v3407
      %v3431 = vpop.f32.mrf.mxu0
      %v3432 = vadd.f32 0.0, %v3431
      %v3433 = vpop.f32.mrf.mxu0
      %3434 = vdwg.mxu0
      %v3440 = vunpack.c.l.b16 %v3302
      %v3441 = vunpack.c.l.b16 %v3303
      %v3442 = vunpack.c.l.b16 %v3304
      %v3443 = vunpack.c.l.b16 %v3305
      %v3444 = vunpack.c.l.b16 %v3306
      %v3445 = vpack.c.b16 %v3441, %v3440
      %v3446 = vpack.c.b16 %v3443, %v3442
      %v3447 = vpack.c.b16 %v3444, %v3444
      %v3449 = vsel %vm3399, %v3445, 0
      %v3452 = vsel %vm3399, %v3446, 0
      %v3455 = vsel %vm3399, %v3447, 0
      %v3458 = vsel %vm1846, %v3383, 0
      %3460 = vmatpush.bf16.msra.mxu0 0
      %3461 = vmatpush.bf16.msra.mxu0 0
      %3462 = vmatpush.bf16.msra.mxu0 0
      %3463 = vmatpush.bf16.msra.mxu0 0
      %3464 = vmatpush.bf16.msra.mxu0 0
      %3465 = vmatpush.bf16.msra.mxu0 0
      %3466 = vmatpush.bf16.msra.mxu0 0
      %3467 = vmatpush.bf16.msra.mxu0 %v3458
      %3468 = vmatmul.bf16.gmra.mxu0 %v3449
      %v3469 = vpop.f32.mrf.mxu0
      %v3470 = vadd.f32 %v3422, %v3469
      %v3471 = vpop.f32.mrf.mxu0
      %v3472 = vadd.f32 %v3424, %v3471
      %3473 = vmatmul.bf16.gmra.mxu0 %v3452
      %v3474 = vpop.f32.mrf.mxu0
      %v3475 = vadd.f32 %v3427, %v3474
      %v3476 = vpop.f32.mrf.mxu0
      %v3477 = vadd.f32 %v3429, %v3476
      %3478 = vmatmul.bf16.gmra.mxu0 %v3455
      %v3479 = vpop.f32.mrf.mxu0
      %v3480 = vadd.f32 %v3432, %v3479
      %v3481 = vpop.f32.mrf.mxu0
      %3482 = vdwg.mxu0
      %s3483 = scalar_lea.vmem %s3, 8
      %v3484 = vld [vmem:[%s3483] sm:$0xf]
      %v3490 = vunpack.c.l.b16 %v3312
      %v3491 = vunpack.c.l.b16 %v3313
      %v3492 = vunpack.c.l.b16 %v3314
      %v3493 = vunpack.c.l.b16 %v3315
      %v3494 = vunpack.c.l.b16 %v3316
      %v3495 = vpack.c.b16 %v3491, %v3490
      %v3496 = vpack.c.b16 %v3493, %v3492
      %v3497 = vpack.c.b16 %v3494, %v3494
      %v3499 = vsel %vm3399, %v3495, 0
      %v3502 = vsel %vm3399, %v3496, 0
      %v3505 = vsel %vm3399, %v3497, 0
      %v3508 = vsel %vm1846, %v3484, 0
      %3510 = vmatpush.bf16.msra.mxu0 0
      %3511 = vmatpush.bf16.msra.mxu0 0
      %3512 = vmatpush.bf16.msra.mxu0 0
      %3513 = vmatpush.bf16.msra.mxu0 0
      %3514 = vmatpush.bf16.msra.mxu0 0
      %3515 = vmatpush.bf16.msra.mxu0 0
      %3516 = vmatpush.bf16.msra.mxu0 0
      %3517 = vmatpush.bf16.msra.mxu0 %v3508
      %3518 = vmatmul.bf16.gmra.mxu0 %v3499
      %v3519 = vpop.f32.mrf.mxu0
      %v3520 = vadd.f32 0.0, %v3519
      %v3521 = vpop.f32.mrf.mxu0
      %v3522 = vadd.f32 0.0, %v3521
      %3523 = vmatmul.bf16.gmra.mxu0 %v3502
      %v3524 = vpop.f32.mrf.mxu0
      %v3525 = vadd.f32 0.0, %v3524
      %v3526 = vpop.f32.mrf.mxu0
      %v3527 = vadd.f32 0.0, %v3526
      %3528 = vmatmul.bf16.gmra.mxu0 %v3505
      %v3529 = vpop.f32.mrf.mxu0
      %v3530 = vadd.f32 0.0, %v3529
      %v3531 = vpop.f32.mrf.mxu0
      %3532 = vdwg.mxu0
      %v3533 = vadd.f32 %v3470, %v3520
      %v3534 = vadd.f32 %v3472, %v3522
      %v3535 = vadd.f32 %v3475, %v3525
      %v3536 = vadd.f32 %v3477, %v3527
      %v3537 = vadd.f32 %v3480, %v3530
      %s3538 = scalar_lea.vmem %s3, 12
      %v3539 = vld [vmem:[%s3538] sm:$0xf]
      %v3545 = vunpack.c.l.b16 %v3322
      %v3546 = vunpack.c.l.b16 %v3323
      %v3547 = vunpack.c.l.b16 %v3324
      %v3548 = vunpack.c.l.b16 %v3325
      %v3549 = vunpack.c.l.b16 %v3326
      %v3550 = vpack.c.b16 %v3546, %v3545
      %v3551 = vpack.c.b16 %v3548, %v3547
      %v3552 = vpack.c.b16 %v3549, %v3549
      %v3554 = vsel %vm3399, %v3550, 0
      %v3557 = vsel %vm3399, %v3551, 0
      %v3560 = vsel %vm3399, %v3552, 0
      %v3563 = vsel %vm1846, %v3539, 0
      %3565 = vmatpush.bf16.msra.mxu0 0
      %3566 = vmatpush.bf16.msra.mxu0 0
      %3567 = vmatpush.bf16.msra.mxu0 0
      %3568 = vmatpush.bf16.msra.mxu0 0
      %3569 = vmatpush.bf16.msra.mxu0 0
      %3570 = vmatpush.bf16.msra.mxu0 0
      %3571 = vmatpush.bf16.msra.mxu0 0
      %3572 = vmatpush.bf16.msra.mxu0 %v3563
      %3573 = vmatmul.bf16.gmra.mxu0 %v3554
      %v3574 = vpop.f32.mrf.mxu0
      %v3575 = vadd.f32 0.0, %v3574
      %v3576 = vpop.f32.mrf.mxu0
      %v3577 = vadd.f32 0.0, %v3576
      %3578 = vmatmul.bf16.gmra.mxu0 %v3557
      %v3579 = vpop.f32.mrf.mxu0
      %v3580 = vadd.f32 0.0, %v3579
      %v3581 = vpop.f32.mrf.mxu0
      %v3582 = vadd.f32 0.0, %v3581
      %3583 = vmatmul.bf16.gmra.mxu0 %v3560
      %v3584 = vpop.f32.mrf.mxu0
      %v3585 = vadd.f32 0.0, %v3584
      %v3586 = vpop.f32.mrf.mxu0
      %3587 = vdwg.mxu0
      %v3588 = vadd.f32 %v3533, %v3575
      %v3589 = vadd.f32 %v3534, %v3577
      %v3590 = vadd.f32 %v3535, %v3580
      %v3591 = vadd.f32 %v3536, %v3582
      %v3592 = vadd.f32 %v3537, %v3585
      %s3593 = scalar_lea.vmem %s3, 16
      %v3594 = vld [vmem:[%s3593] sm:$0xf]
      %v3600 = vunpack.c.l.b16 %v3327
      %v3601 = vunpack.c.l.b16 %v3328
      %v3602 = vunpack.c.l.b16 %v3329
      %v3603 = vunpack.c.l.b16 %v3330
      %v3604 = vunpack.c.l.b16 %v3331
      %v3605 = vpack.c.b16 %v3601, %v3600
      %v3606 = vpack.c.b16 %v3603, %v3602
      %v3607 = vpack.c.b16 %v3604, %v3604
      %v3609 = vsel %vm3399, %v3605, 0
      %v3612 = vsel %vm3399, %v3606, 0
      %v3615 = vsel %vm3399, %v3607, 0
      %v3618 = vsel %vm1846, %v3594, 0
      %3620 = vmatpush.bf16.msra.mxu0 0
      %3621 = vmatpush.bf16.msra.mxu0 0
      %3622 = vmatpush.bf16.msra.mxu0 0
      %3623 = vmatpush.bf16.msra.mxu0 0
      %3624 = vmatpush.bf16.msra.mxu0 0
      %3625 = vmatpush.bf16.msra.mxu0 0
      %3626 = vmatpush.bf16.msra.mxu0 0
      %3627 = vmatpush.bf16.msra.mxu0 %v3618
      %3628 = vmatmul.bf16.gmra.mxu0 %v3609
      %v3629 = vpop.f32.mrf.mxu0
      %v3630 = vadd.f32 0.0, %v3629
      %v3631 = vpop.f32.mrf.mxu0
      %v3632 = vadd.f32 0.0, %v3631
      %3633 = vmatmul.bf16.gmra.mxu0 %v3612
      %v3634 = vpop.f32.mrf.mxu0
      %v3635 = vadd.f32 0.0, %v3634
      %v3636 = vpop.f32.mrf.mxu0
      %v3637 = vadd.f32 0.0, %v3636
      %3638 = vmatmul.bf16.gmra.mxu0 %v3615
      %v3639 = vpop.f32.mrf.mxu0
      %v3640 = vadd.f32 0.0, %v3639
      %v3641 = vpop.f32.mrf.mxu0
      %3642 = vdwg.mxu0
      %v3643 = vadd.f32 %v3588, %v3630
      %v3644 = vadd.f32 %v3589, %v3632
      %v3645 = vadd.f32 %v3590, %v3635
      %v3646 = vadd.f32 %v3591, %v3637
      %v3647 = vadd.f32 %v3592, %v3640
      %s3648 = scalar_lea.vmem %s3, 20
      %v3649 = vld [vmem:[%s3648] sm:$0xf]
      %v3655 = vunpack.c.l.b16 %v3332
      %v3656 = vunpack.c.l.b16 %v3333
      %v3657 = vunpack.c.l.b16 %v3334
      %v3658 = vunpack.c.l.b16 %v3335
      %v3659 = vunpack.c.l.b16 %v3336
      %v3660 = vpack.c.b16 %v3656, %v3655
      %v3661 = vpack.c.b16 %v3658, %v3657
      %v3662 = vpack.c.b16 %v3659, %v3659
      %v3664 = vsel %vm3399, %v3660, 0
      %v3667 = vsel %vm3399, %v3661, 0
      %v3670 = vsel %vm3399, %v3662, 0
      %v3673 = vsel %vm1846, %v3649, 0
      %3675 = vmatpush.bf16.msra.mxu0 0
      %3676 = vmatpush.bf16.msra.mxu0 0
      %3677 = vmatpush.bf16.msra.mxu0 0
      %3678 = vmatpush.bf16.msra.mxu0 0
      %3679 = vmatpush.bf16.msra.mxu0 0
      %3680 = vmatpush.bf16.msra.mxu0 0
      %3681 = vmatpush.bf16.msra.mxu0 0
      %3682 = vmatpush.bf16.msra.mxu0 %v3673
      %3683 = vmatmul.bf16.gmra.mxu0 %v3664
      %v3684 = vpop.f32.mrf.mxu0
      %v3685 = vadd.f32 0.0, %v3684
      %v3686 = vpop.f32.mrf.mxu0
      %v3687 = vadd.f32 0.0, %v3686
      %3688 = vmatmul.bf16.gmra.mxu0 %v3667
      %v3689 = vpop.f32.mrf.mxu0
      %v3690 = vadd.f32 0.0, %v3689
      %v3691 = vpop.f32.mrf.mxu0
      %v3692 = vadd.f32 0.0, %v3691
      %3693 = vmatmul.bf16.gmra.mxu0 %v3670
      %v3694 = vpop.f32.mrf.mxu0
      %v3695 = vadd.f32 0.0, %v3694
      %v3696 = vpop.f32.mrf.mxu0
      %3697 = vdwg.mxu0
      %v3698 = vadd.f32 %v3643, %v3685
      %v3699 = vadd.f32 %v3644, %v3687
      %v3700 = vadd.f32 %v3645, %v3690
      %v3701 = vadd.f32 %v3646, %v3692
      %v3702 = vadd.f32 %v3647, %v3695
      %s3703 = scalar_lea.vmem %s3, 24
      %v3704 = vld [vmem:[%s3703] sm:$0xf]
      %v3710 = vunpack.c.l.b16 %v3342
      %v3711 = vunpack.c.l.b16 %v3343
      %v3712 = vunpack.c.l.b16 %v3344
      %v3713 = vunpack.c.l.b16 %v3345
      %v3714 = vunpack.c.l.b16 %v3346
      %v3715 = vpack.c.b16 %v3711, %v3710
      %v3716 = vpack.c.b16 %v3713, %v3712
      %v3717 = vpack.c.b16 %v3714, %v3714
      %v3719 = vsel %vm3399, %v3715, 0
      %v3722 = vsel %vm3399, %v3716, 0
      %v3725 = vsel %vm3399, %v3717, 0
      %v3728 = vsel %vm1846, %v3704, 0
      %3730 = vmatpush.bf16.msra.mxu0 0
      %3731 = vmatpush.bf16.msra.mxu0 0
      %3732 = vmatpush.bf16.msra.mxu0 0
      %3733 = vmatpush.bf16.msra.mxu0 0
      %3734 = vmatpush.bf16.msra.mxu0 0
      %3735 = vmatpush.bf16.msra.mxu0 0
      %3736 = vmatpush.bf16.msra.mxu0 0
      %3737 = vmatpush.bf16.msra.mxu0 %v3728
      %3738 = vmatmul.bf16.gmra.mxu0 %v3719
      %v3739 = vpop.f32.mrf.mxu0
      %v3740 = vadd.f32 0.0, %v3739
      %v3741 = vpop.f32.mrf.mxu0
      %v3742 = vadd.f32 0.0, %v3741
      %3743 = vmatmul.bf16.gmra.mxu0 %v3722
      %v3744 = vpop.f32.mrf.mxu0
      %v3745 = vadd.f32 0.0, %v3744
      %v3746 = vpop.f32.mrf.mxu0
      %v3747 = vadd.f32 0.0, %v3746
      %3748 = vmatmul.bf16.gmra.mxu0 %v3725
      %v3749 = vpop.f32.mrf.mxu0
      %v3750 = vadd.f32 0.0, %v3749
      %v3751 = vpop.f32.mrf.mxu0
      %3752 = vdwg.mxu0
      %v3753 = vadd.f32 %v3698, %v3740
      %v3754 = vadd.f32 %v3699, %v3742
      %v3755 = vadd.f32 %v3700, %v3745
      %v3756 = vadd.f32 %v3701, %v3747
      %v3757 = vadd.f32 %v3702, %v3750
      %s3758 = scalar_lea.vmem %s3, 28
      %v3759 = vld [vmem:[%s3758] sm:$0xf]
      %v3765 = vunpack.c.l.b16 %v3347
      %v3766 = vunpack.c.l.b16 %v3348
      %v3767 = vunpack.c.l.b16 %v3349
      %v3768 = vunpack.c.l.b16 %v3350
      %v3769 = vunpack.c.l.b16 %v3351
      %v3770 = vpack.c.b16 %v3766, %v3765
      %v3771 = vpack.c.b16 %v3768, %v3767
      %v3772 = vpack.c.b16 %v3769, %v3769
      %v3774 = vsel %vm3399, %v3770, 0
      %v3777 = vsel %vm3399, %v3771, 0
      %v3780 = vsel %vm3399, %v3772, 0
      %v3783 = vsel %vm1846, %v3759, 0
      %3785 = vmatpush.bf16.msra.mxu0 0
      %3786 = vmatpush.bf16.msra.mxu0 0
      %3787 = vmatpush.bf16.msra.mxu0 0
      %3788 = vmatpush.bf16.msra.mxu0 0
      %3789 = vmatpush.bf16.msra.mxu0 0
      %3790 = vmatpush.bf16.msra.mxu0 0
      %3791 = vmatpush.bf16.msra.mxu0 0
      %3792 = vmatpush.bf16.msra.mxu0 %v3783
      %3793 = vmatmul.bf16.gmra.mxu0 %v3774
      %v3794 = vpop.f32.mrf.mxu0
      %v3795 = vadd.f32 0.0, %v3794
      %v3796 = vpop.f32.mrf.mxu0
      %v3797 = vadd.f32 0.0, %v3796
      %3798 = vmatmul.bf16.gmra.mxu0 %v3777
      %v3799 = vpop.f32.mrf.mxu0
      %v3800 = vadd.f32 0.0, %v3799
      %v3801 = vpop.f32.mrf.mxu0
      %v3802 = vadd.f32 0.0, %v3801
      %3803 = vmatmul.bf16.gmra.mxu0 %v3780
      %v3804 = vpop.f32.mrf.mxu0
      %v3805 = vadd.f32 0.0, %v3804
      %v3806 = vpop.f32.mrf.mxu0
      %3807 = vdwg.mxu0
      %v3808 = vadd.f32 %v3753, %v3795
      %v3809 = vadd.f32 %v3754, %v3797
      %v3810 = vadd.f32 %v3755, %v3800
      %v3811 = vadd.f32 %v3756, %v3802
      %v3812 = vadd.f32 %v3757, %v3805
      %s3813 = scalar_lea.vmem %s3, 32
      %v3814 = vld [vmem:[%s3813] sm:$0xf]
      %v3820 = vunpack.c.l.b16 %v3352
      %v3821 = vunpack.c.l.b16 %v3353
      %v3822 = vunpack.c.l.b16 %v3354
      %v3823 = vunpack.c.l.b16 %v3355
      %v3824 = vunpack.c.l.b16 %v3356
      %v3825 = vpack.c.b16 %v3821, %v3820
      %v3826 = vpack.c.b16 %v3823, %v3822
      %v3827 = vpack.c.b16 %v3824, %v3824
      %v3829 = vsel %vm3399, %v3825, 0
      %v3832 = vsel %vm3399, %v3826, 0
      %v3835 = vsel %vm3399, %v3827, 0
      %v3838 = vsel %vm1846, %v3814, 0
      %3840 = vmatpush.bf16.msra.mxu0 0
      %3841 = vmatpush.bf16.msra.mxu0 0
      %3842 = vmatpush.bf16.msra.mxu0 0
      %3843 = vmatpush.bf16.msra.mxu0 0
      %3844 = vmatpush.bf16.msra.mxu0 0
      %3845 = vmatpush.bf16.msra.mxu0 0
      %3846 = vmatpush.bf16.msra.mxu0 0
      %3847 = vmatpush.bf16.msra.mxu0 %v3838
      %3848 = vmatmul.bf16.gmra.mxu0 %v3829
      %v3849 = vpop.f32.mrf.mxu0
      %v3850 = vadd.f32 0.0, %v3849
      %v3851 = vpop.f32.mrf.mxu0
      %v3852 = vadd.f32 0.0, %v3851
      %3853 = vmatmul.bf16.gmra.mxu0 %v3832
      %v3854 = vpop.f32.mrf.mxu0
      %v3855 = vadd.f32 0.0, %v3854
      %v3856 = vpop.f32.mrf.mxu0
      %v3857 = vadd.f32 0.0, %v3856
      %3858 = vmatmul.bf16.gmra.mxu0 %v3835
      %v3859 = vpop.f32.mrf.mxu0
      %v3860 = vadd.f32 0.0, %v3859
      %v3861 = vpop.f32.mrf.mxu0
      %3862 = vdwg.mxu0
      %v3863 = vadd.f32 %v3808, %v3850
      %v3864 = vadd.f32 %v3809, %v3852
      %v3865 = vadd.f32 %v3810, %v3855
      %v3866 = vadd.f32 %v3811, %v3857
      %v3867 = vadd.f32 %v3812, %v3860
      %v3869 = vperm.slane %v3382, 0
      %v3871 = vadd.f32 %v3863, %v3869
      %v3872 = vadd.f32 %v3864, %v3869
      %v3873 = vadd.f32 %v3865, %v3869
      %v3874 = vadd.f32 %v3866, %v3869
      %v3875 = vadd.f32 %v3867, %v3869
      %v3876 = vmax.f32 %v3871, 0.0
      %v3877 = vmax.f32 %v3872, 0.0
      %v3878 = vmax.f32 %v3873, 0.0
      %v3879 = vmax.f32 %v3874, 0.0
      %v3880 = vmax.f32 %v3875, 0.0
      %3881 = vmatpush.bf16.msra.mxu0 0
      %3882 = vmatpush.bf16.msra.mxu0 0
      %3883 = vmatpush.bf16.msra.mxu0 0
      %3884 = vmatpush.bf16.msra.mxu0 0
      %3885 = vmatpush.bf16.msra.mxu0 0
      %3886 = vmatpush.bf16.msra.mxu0 0
      %3887 = vmatpush.bf16.msra.mxu0 0
      %3888 = vmatpush.bf16.msra.mxu0 %v3410
      %3889 = vmatmul.bf16.gmra.mxu0 %v3499
      %v3890 = vpop.f32.mrf.mxu0
      %v3891 = vadd.f32 0.0, %v3890
      %v3892 = vpop.f32.mrf.mxu0
      %v3893 = vadd.f32 0.0, %v3892
      %3894 = vmatmul.bf16.gmra.mxu0 %v3502
      %v3895 = vpop.f32.mrf.mxu0
      %v3896 = vadd.f32 0.0, %v3895
      %v3897 = vpop.f32.mrf.mxu0
      %v3898 = vadd.f32 0.0, %v3897
      %3899 = vmatmul.bf16.gmra.mxu0 %v3505
      %v3900 = vpop.f32.mrf.mxu0
      %v3901 = vadd.f32 0.0, %v3900
      %v3902 = vpop.f32.mrf.mxu0
      %3903 = vdwg.mxu0
      %3904 = vmatpush.bf16.msra.mxu0 0
      %3905 = vmatpush.bf16.msra.mxu0 0
      %3906 = vmatpush.bf16.msra.mxu0 0
      %3907 = vmatpush.bf16.msra.mxu0 0
      %3908 = vmatpush.bf16.msra.mxu0 0
      %3909 = vmatpush.bf16.msra.mxu0 0
      %3910 = vmatpush.bf16.msra.mxu0 0
      %3911 = vmatpush.bf16.msra.mxu0 %v3458
      %3912 = vmatmul.bf16.gmra.mxu0 %v3401
      %v3913 = vpop.f32.mrf.mxu0
      %v3914 = vadd.f32 %v3891, %v3913
      %v3915 = vpop.f32.mrf.mxu0
      %v3916 = vadd.f32 %v3893, %v3915
      %3917 = vmatmul.bf16.gmra.mxu0 %v3404
      %v3918 = vpop.f32.mrf.mxu0
      %v3919 = vadd.f32 %v3896, %v3918
      %v3920 = vpop.f32.mrf.mxu0
      %v3921 = vadd.f32 %v3898, %v3920
      %3922 = vmatmul.bf16.gmra.mxu0 %v3407
      %v3923 = vpop.f32.mrf.mxu0
      %v3924 = vadd.f32 %v3901, %v3923
      %v3925 = vpop.f32.mrf.mxu0
      %3926 = vdwg.mxu0
      %v3932 = vunpack.c.l.b16 %v3317
      %v3933 = vunpack.c.l.b16 %v3318
      %v3934 = vunpack.c.l.b16 %v3319
      %v3935 = vunpack.c.l.b16 %v3320
      %v3936 = vunpack.c.l.b16 %v3321
      %v3937 = vpack.c.b16 %v3933, %v3932
      %v3938 = vpack.c.b16 %v3935, %v3934
      %v3939 = vpack.c.b16 %v3936, %v3936
      %v3941 = vsel %vm3399, %v3937, 0
      %v3944 = vsel %vm3399, %v3938, 0
      %v3947 = vsel %vm3399, %v3939, 0
      %3949 = vmatpush.bf16.msra.mxu0 0
      %3950 = vmatpush.bf16.msra.mxu0 0
      %3951 = vmatpush.bf16.msra.mxu0 0
      %3952 = vmatpush.bf16.msra.mxu0 0
      %3953 = vmatpush.bf16.msra.mxu0 0
      %3954 = vmatpush.bf16.msra.mxu0 0
      %3955 = vmatpush.bf16.msra.mxu0 0
      %3956 = vmatpush.bf16.msra.mxu0 %v3508
      %3957 = vmatmul.bf16.gmra.mxu0 %v3941
      %v3958 = vpop.f32.mrf.mxu0
      %v3959 = vadd.f32 0.0, %v3958
      %v3960 = vpop.f32.mrf.mxu0
      %v3961 = vadd.f32 0.0, %v3960
      %3962 = vmatmul.bf16.gmra.mxu0 %v3944
      %v3963 = vpop.f32.mrf.mxu0
      %v3964 = vadd.f32 0.0, %v3963
      %v3965 = vpop.f32.mrf.mxu0
      %v3966 = vadd.f32 0.0, %v3965
      %3967 = vmatmul.bf16.gmra.mxu0 %v3947
      %v3968 = vpop.f32.mrf.mxu0
      %v3969 = vadd.f32 0.0, %v3968
      %v3970 = vpop.f32.mrf.mxu0
      %3971 = vdwg.mxu0
      %v3972 = vadd.f32 %v3914, %v3959
      %v3973 = vadd.f32 %v3916, %v3961
      %v3974 = vadd.f32 %v3919, %v3964
      %v3975 = vadd.f32 %v3921, %v3966
      %v3976 = vadd.f32 %v3924, %v3969
      %3977 = vmatpush.bf16.msra.mxu0 0
      %3978 = vmatpush.bf16.msra.mxu0 0
      %3979 = vmatpush.bf16.msra.mxu0 0
      %3980 = vmatpush.bf16.msra.mxu0 0
      %3981 = vmatpush.bf16.msra.mxu0 0
      %3982 = vmatpush.bf16.msra.mxu0 0
      %3983 = vmatpush.bf16.msra.mxu0 0
      %3984 = vmatpush.bf16.msra.mxu0 %v3563
      %3985 = vmatmul.bf16.gmra.mxu0 %v3609
      %v3986 = vpop.f32.mrf.mxu0
      %v3987 = vadd.f32 0.0, %v3986
      %v3988 = vpop.f32.mrf.mxu0
      %v3989 = vadd.f32 0.0, %v3988
      %3990 = vmatmul.bf16.gmra.mxu0 %v3612
      %v3991 = vpop.f32.mrf.mxu0
      %v3992 = vadd.f32 0.0, %v3991
      %v3993 = vpop.f32.mrf.mxu0
      %v3994 = vadd.f32 0.0, %v3993
      %3995 = vmatmul.bf16.gmra.mxu0 %v3615
      %v3996 = vpop.f32.mrf.mxu0
      %v3997 = vadd.f32 0.0, %v3996
      %v3998 = vpop.f32.mrf.mxu0
      %3999 = vdwg.mxu0
      %v4000 = vadd.f32 %v3972, %v3987
      %v4001 = vadd.f32 %v3973, %v3989
      %v4002 = vadd.f32 %v3974, %v3992
      %v4003 = vadd.f32 %v3975, %v3994
      %v4004 = vadd.f32 %v3976, %v3997
      %4005 = vmatpush.bf16.msra.mxu0 0
      %4006 = vmatpush.bf16.msra.mxu0 0
      %4007 = vmatpush.bf16.msra.mxu0 0
      %4008 = vmatpush.bf16.msra.mxu0 0
      %4009 = vmatpush.bf16.msra.mxu0 0
      %4010 = vmatpush.bf16.msra.mxu0 0
      %4011 = vmatpush.bf16.msra.mxu0 0
      %4012 = vmatpush.bf16.msra.mxu0 %v3618
      %4013 = vmatmul.bf16.gmra.mxu0 %v3664
      %v4014 = vpop.f32.mrf.mxu0
      %v4015 = vadd.f32 0.0, %v4014
      %v4016 = vpop.f32.mrf.mxu0
      %v4017 = vadd.f32 0.0, %v4016
      %4018 = vmatmul.bf16.gmra.mxu0 %v3667
      %v4019 = vpop.f32.mrf.mxu0
      %v4020 = vadd.f32 0.0, %v4019
      %v4021 = vpop.f32.mrf.mxu0
      %v4022 = vadd.f32 0.0, %v4021
      %4023 = vmatmul.bf16.gmra.mxu0 %v3670
      %v4024 = vpop.f32.mrf.mxu0
      %v4025 = vadd.f32 0.0, %v4024
      %v4026 = vpop.f32.mrf.mxu0
      %4027 = vdwg.mxu0
      %v4028 = vadd.f32 %v4000, %v4015
      %v4029 = vadd.f32 %v4001, %v4017
      %v4030 = vadd.f32 %v4002, %v4020
      %v4031 = vadd.f32 %v4003, %v4022
      %v4032 = vadd.f32 %v4004, %v4025
      %v4038 = vunpack.c.l.b16 %v3337
      %v4039 = vunpack.c.l.b16 %v3338
      %v4040 = vunpack.c.l.b16 %v3339
      %v4041 = vunpack.c.l.b16 %v3340
      %v4042 = vunpack.c.l.b16 %v3341
      %v4043 = vpack.c.b16 %v4039, %v4038
      %v4044 = vpack.c.b16 %v4041, %v4040
      %v4045 = vpack.c.b16 %v4042, %v4042
      %v4047 = vsel %vm3399, %v4043, 0
      %v4050 = vsel %vm3399, %v4044, 0
      %v4053 = vsel %vm3399, %v4045, 0
      %4055 = vmatpush.bf16.msra.mxu0 0
      %4056 = vmatpush.bf16.msra.mxu0 0
      %4057 = vmatpush.bf16.msra.mxu0 0
      %4058 = vmatpush.bf16.msra.mxu0 0
      %4059 = vmatpush.bf16.msra.mxu0 0
      %4060 = vmatpush.bf16.msra.mxu0 0
      %4061 = vmatpush.bf16.msra.mxu0 0
      %4062 = vmatpush.bf16.msra.mxu0 %v3673
      %4063 = vmatmul.bf16.gmra.mxu0 %v4047
      %v4064 = vpop.f32.mrf.mxu0
      %v4065 = vadd.f32 0.0, %v4064
      %v4066 = vpop.f32.mrf.mxu0
      %v4067 = vadd.f32 0.0, %v4066
      %4068 = vmatmul.bf16.gmra.mxu0 %v4050
      %v4069 = vpop.f32.mrf.mxu0
      %v4070 = vadd.f32 0.0, %v4069
      %v4071 = vpop.f32.mrf.mxu0
      %v4072 = vadd.f32 0.0, %v4071
      %4073 = vmatmul.bf16.gmra.mxu0 %v4053
      %v4074 = vpop.f32.mrf.mxu0
      %v4075 = vadd.f32 0.0, %v4074
      %v4076 = vpop.f32.mrf.mxu0
      %4077 = vdwg.mxu0
      %v4078 = vadd.f32 %v4028, %v4065
      %v4079 = vadd.f32 %v4029, %v4067
      %v4080 = vadd.f32 %v4030, %v4070
      %v4081 = vadd.f32 %v4031, %v4072
      %v4082 = vadd.f32 %v4032, %v4075
      %4083 = vmatpush.bf16.msra.mxu0 0
      %4084 = vmatpush.bf16.msra.mxu0 0
      %4085 = vmatpush.bf16.msra.mxu0 0
      %4086 = vmatpush.bf16.msra.mxu0 0
      %4087 = vmatpush.bf16.msra.mxu0 0
      %4088 = vmatpush.bf16.msra.mxu0 0
      %4089 = vmatpush.bf16.msra.mxu0 0
      %4090 = vmatpush.bf16.msra.mxu0 %v3728
      %4091 = vmatmul.bf16.gmra.mxu0 %v3774
      %v4092 = vpop.f32.mrf.mxu0
      %v4093 = vadd.f32 0.0, %v4092
      %v4094 = vpop.f32.mrf.mxu0
      %v4095 = vadd.f32 0.0, %v4094
      %4096 = vmatmul.bf16.gmra.mxu0 %v3777
      %v4097 = vpop.f32.mrf.mxu0
      %v4098 = vadd.f32 0.0, %v4097
      %v4099 = vpop.f32.mrf.mxu0
      %v4100 = vadd.f32 0.0, %v4099
      %4101 = vmatmul.bf16.gmra.mxu0 %v3780
      %v4102 = vpop.f32.mrf.mxu0
      %v4103 = vadd.f32 0.0, %v4102
      %v4104 = vpop.f32.mrf.mxu0
      %4105 = vdwg.mxu0
      %v4106 = vadd.f32 %v4078, %v4093
      %v4107 = vadd.f32 %v4079, %v4095
      %v4108 = vadd.f32 %v4080, %v4098
      %v4109 = vadd.f32 %v4081, %v4100
      %v4110 = vadd.f32 %v4082, %v4103
      %4111 = vmatpush.bf16.msra.mxu0 0
      %4112 = vmatpush.bf16.msra.mxu0 0
      %4113 = vmatpush.bf16.msra.mxu0 0
      %4114 = vmatpush.bf16.msra.mxu0 0
      %4115 = vmatpush.bf16.msra.mxu0 0
      %4116 = vmatpush.bf16.msra.mxu0 0
      %4117 = vmatpush.bf16.msra.mxu0 0
      %4118 = vmatpush.bf16.msra.mxu0 %v3783
      %4119 = vmatmul.bf16.gmra.mxu0 %v3829
      %v4120 = vpop.f32.mrf.mxu0
      %v4121 = vadd.f32 0.0, %v4120
      %v4122 = vpop.f32.mrf.mxu0
      %v4123 = vadd.f32 0.0, %v4122
      %4124 = vmatmul.bf16.gmra.mxu0 %v3832
      %v4125 = vpop.f32.mrf.mxu0
      %v4126 = vadd.f32 0.0, %v4125
      %v4127 = vpop.f32.mrf.mxu0
      %v4128 = vadd.f32 0.0, %v4127
      %4129 = vmatmul.bf16.gmra.mxu0 %v3835
      %v4130 = vpop.f32.mrf.mxu0
      %v4131 = vadd.f32 0.0, %v4130
      %v4132 = vpop.f32.mrf.mxu0
      %4133 = vdwg.mxu0
      %v4134 = vadd.f32 %v4106, %v4121
      %v4135 = vadd.f32 %v4107, %v4123
      %v4136 = vadd.f32 %v4108, %v4126
      %v4137 = vadd.f32 %v4109, %v4128
      %v4138 = vadd.f32 %v4110, %v4131
      %v4144 = vunpack.c.l.b16 %v3357
      %v4145 = vunpack.c.l.b16 %v3358
      %v4146 = vunpack.c.l.b16 %v3359
      %v4147 = vunpack.c.l.b16 %v3360
      %v4148 = vunpack.c.l.b16 %v3361
      %v4149 = vpack.c.b16 %v4145, %v4144
      %v4150 = vpack.c.b16 %v4147, %v4146
      %v4151 = vpack.c.b16 %v4148, %v4148
      %v4153 = vsel %vm3399, %v4149, 0
      %v4156 = vsel %vm3399, %v4150, 0
      %v4159 = vsel %vm3399, %v4151, 0
      %4161 = vmatpush.bf16.msra.mxu0 0
      %4162 = vmatpush.bf16.msra.mxu0 0
      %4163 = vmatpush.bf16.msra.mxu0 0
      %4164 = vmatpush.bf16.msra.mxu0 0
      %4165 = vmatpush.bf16.msra.mxu0 0
      %4166 = vmatpush.bf16.msra.mxu0 0
      %4167 = vmatpush.bf16.msra.mxu0 0
      %4168 = vmatpush.bf16.msra.mxu0 %v3838
      %4169 = vmatmul.bf16.gmra.mxu0 %v4153
      %v4170 = vpop.f32.mrf.mxu0
      %v4171 = vadd.f32 0.0, %v4170
      %v4172 = vpop.f32.mrf.mxu0
      %v4173 = vadd.f32 0.0, %v4172
      %4174 = vmatmul.bf16.gmra.mxu0 %v4156
      %v4175 = vpop.f32.mrf.mxu0
      %v4176 = vadd.f32 0.0, %v4175
      %v4177 = vpop.f32.mrf.mxu0
      %v4178 = vadd.f32 0.0, %v4177
      %4179 = vmatmul.bf16.gmra.mxu0 %v4159
      %v4180 = vpop.f32.mrf.mxu0
      %v4181 = vadd.f32 0.0, %v4180
      %v4182 = vpop.f32.mrf.mxu0
      %4183 = vdwg.mxu0
      %v4184 = vadd.f32 %v4134, %v4171
      %v4185 = vadd.f32 %v4135, %v4173
      %v4186 = vadd.f32 %v4136, %v4176
      %v4187 = vadd.f32 %v4137, %v4178
      %v4188 = vadd.f32 %v4138, %v4181
      %v4189 = vadd.f32 %v4184, %v3869
      %v4190 = vadd.f32 %v4185, %v3869
      %v4191 = vadd.f32 %v4186, %v3869
      %v4192 = vadd.f32 %v4187, %v3869
      %v4193 = vadd.f32 %v4188, %v3869
      %v4194 = vmax.f32 %v4189, 0.0
      %v4195 = vmax.f32 %v4190, 0.0
      %v4196 = vmax.f32 %v4191, 0.0
      %v4197 = vmax.f32 %v4192, 0.0
      %v4198 = vmax.f32 %v4193, 0.0
      %v4199 = vmax.f32 %v3876, %v4194
      %v4200 = vmax.f32 %v3877, %v4195
      %v4201 = vmax.f32 %v3878, %v4196
      %v4202 = vmax.f32 %v3879, %v4197
      %v4203 = vmax.f32 %v3880, %v4198
      %4204 = vmatpush.bf16.msra.mxu0 0
      %4205 = vmatpush.bf16.msra.mxu0 0
      %4206 = vmatpush.bf16.msra.mxu0 0
      %4207 = vmatpush.bf16.msra.mxu0 0
      %4208 = vmatpush.bf16.msra.mxu0 0
      %4209 = vmatpush.bf16.msra.mxu0 0
      %4210 = vmatpush.bf16.msra.mxu0 0
      %4211 = vmatpush.bf16.msra.mxu0 %v3410
      %4212 = vmatmul.bf16.gmra.mxu0 %v3609
      %v4213 = vpop.f32.mrf.mxu0
      %v4214 = vadd.f32 0.0, %v4213
      %v4215 = vpop.f32.mrf.mxu0
      %v4216 = vadd.f32 0.0, %v4215
      %4217 = vmatmul.bf16.gmra.mxu0 %v3612
      %v4218 = vpop.f32.mrf.mxu0
      %v4219 = vadd.f32 0.0, %v4218
      %v4220 = vpop.f32.mrf.mxu0
      %v4221 = vadd.f32 0.0, %v4220
      %4222 = vmatmul.bf16.gmra.mxu0 %v3615
      %v4223 = vpop.f32.mrf.mxu0
      %v4224 = vadd.f32 0.0, %v4223
      %v4225 = vpop.f32.mrf.mxu0
      %4226 = vdwg.mxu0
      %4227 = vmatpush.bf16.msra.mxu0 0
      %4228 = vmatpush.bf16.msra.mxu0 0
      %4229 = vmatpush.bf16.msra.mxu0 0
      %4230 = vmatpush.bf16.msra.mxu0 0
      %4231 = vmatpush.bf16.msra.mxu0 0
      %4232 = vmatpush.bf16.msra.mxu0 0
      %4233 = vmatpush.bf16.msra.mxu0 0
      %4234 = vmatpush.bf16.msra.mxu0 %v3458
      %4235 = vmatmul.bf16.gmra.mxu0 %v3554
      %v4236 = vpop.f32.mrf.mxu0
      %v4237 = vadd.f32 %v4214, %v4236
      %v4238 = vpop.f32.mrf.mxu0
      %v4239 = vadd.f32 %v4216, %v4238
      %4240 = vmatmul.bf16.gmra.mxu0 %v3557
      %v4241 = vpop.f32.mrf.mxu0
      %v4242 = vadd.f32 %v4219, %v4241
      %v4243 = vpop.f32.mrf.mxu0
      %v4244 = vadd.f32 %v4221, %v4243
      %4245 = vmatmul.bf16.gmra.mxu0 %v3560
      %v4246 = vpop.f32.mrf.mxu0
      %v4247 = vadd.f32 %v4224, %v4246
      %v4248 = vpop.f32.mrf.mxu0
      %4249 = vdwg.mxu0
      %4250 = vmatpush.bf16.msra.mxu0 0
      %4251 = vmatpush.bf16.msra.mxu0 0
      %4252 = vmatpush.bf16.msra.mxu0 0
      %4253 = vmatpush.bf16.msra.mxu0 0
      %4254 = vmatpush.bf16.msra.mxu0 0
      %4255 = vmatpush.bf16.msra.mxu0 0
      %4256 = vmatpush.bf16.msra.mxu0 0
      %4257 = vmatpush.bf16.msra.mxu0 %v3508
      %4258 = vmatmul.bf16.gmra.mxu0 %v3664
      %v4259 = vpop.f32.mrf.mxu0
      %v4260 = vadd.f32 0.0, %v4259
      %v4261 = vpop.f32.mrf.mxu0
      %v4262 = vadd.f32 0.0, %v4261
      %4263 = vmatmul.bf16.gmra.mxu0 %v3667
      %v4264 = vpop.f32.mrf.mxu0
      %v4265 = vadd.f32 0.0, %v4264
      %v4266 = vpop.f32.mrf.mxu0
      %v4267 = vadd.f32 0.0, %v4266
      %4268 = vmatmul.bf16.gmra.mxu0 %v3670
      %v4269 = vpop.f32.mrf.mxu0
      %v4270 = vadd.f32 0.0, %v4269
      %v4271 = vpop.f32.mrf.mxu0
      %4272 = vdwg.mxu0
      %v4273 = vadd.f32 %v4237, %v4260
      %v4274 = vadd.f32 %v4239, %v4262
      %v4275 = vadd.f32 %v4242, %v4265
      %v4276 = vadd.f32 %v4244, %v4267
      %v4277 = vadd.f32 %v4247, %v4270
      %4278 = vmatpush.bf16.msra.mxu0 0
      %4279 = vmatpush.bf16.msra.mxu0 0
      %4280 = vmatpush.bf16.msra.mxu0 0
      %4281 = vmatpush.bf16.msra.mxu0 0
      %4282 = vmatpush.bf16.msra.mxu0 0
      %4283 = vmatpush.bf16.msra.mxu0 0
      %4284 = vmatpush.bf16.msra.mxu0 0
      %4285 = vmatpush.bf16.msra.mxu0 %v3563
      %4286 = vmatmul.bf16.gmra.mxu0 %v3719
      %v4287 = vpop.f32.mrf.mxu0
      %v4288 = vadd.f32 0.0, %v4287
      %v4289 = vpop.f32.mrf.mxu0
      %v4290 = vadd.f32 0.0, %v4289
      %4291 = vmatmul.bf16.gmra.mxu0 %v3722
      %v4292 = vpop.f32.mrf.mxu0
      %v4293 = vadd.f32 0.0, %v4292
      %v4294 = vpop.f32.mrf.mxu0
      %v4295 = vadd.f32 0.0, %v4294
      %4296 = vmatmul.bf16.gmra.mxu0 %v3725
      %v4297 = vpop.f32.mrf.mxu0
      %v4298 = vadd.f32 0.0, %v4297
      %v4299 = vpop.f32.mrf.mxu0
      %4300 = vdwg.mxu0
      %v4301 = vadd.f32 %v4273, %v4288
      %v4302 = vadd.f32 %v4274, %v4290
      %v4303 = vadd.f32 %v4275, %v4293
      %v4304 = vadd.f32 %v4276, %v4295
      %v4305 = vadd.f32 %v4277, %v4298
      %4306 = vmatpush.bf16.msra.mxu0 0
      %4307 = vmatpush.bf16.msra.mxu0 0
      %4308 = vmatpush.bf16.msra.mxu0 0
      %4309 = vmatpush.bf16.msra.mxu0 0
      %4310 = vmatpush.bf16.msra.mxu0 0
      %4311 = vmatpush.bf16.msra.mxu0 0
      %4312 = vmatpush.bf16.msra.mxu0 0
      %4313 = vmatpush.bf16.msra.mxu0 %v3618
      %4314 = vmatmul.bf16.gmra.mxu0 %v3774
      %v4315 = vpop.f32.mrf.mxu0
      %v4316 = vadd.f32 0.0, %v4315
      %v4317 = vpop.f32.mrf.mxu0
      %v4318 = vadd.f32 0.0, %v4317
      %4319 = vmatmul.bf16.gmra.mxu0 %v3777
      %v4320 = vpop.f32.mrf.mxu0
      %v4321 = vadd.f32 0.0, %v4320
      %v4322 = vpop.f32.mrf.mxu0
      %v4323 = vadd.f32 0.0, %v4322
      %4324 = vmatmul.bf16.gmra.mxu0 %v3780
      %v4325 = vpop.f32.mrf.mxu0
      %v4326 = vadd.f32 0.0, %v4325
      %v4327 = vpop.f32.mrf.mxu0
      %4328 = vdwg.mxu0
      %v4329 = vadd.f32 %v4301, %v4316
      %v4330 = vadd.f32 %v4302, %v4318
      %v4331 = vadd.f32 %v4303, %v4321
      %v4332 = vadd.f32 %v4304, %v4323
      %v4333 = vadd.f32 %v4305, %v4326
      %4334 = vmatpush.bf16.msra.mxu0 0
      %4335 = vmatpush.bf16.msra.mxu0 0
      %4336 = vmatpush.bf16.msra.mxu0 0
      %4337 = vmatpush.bf16.msra.mxu0 0
      %4338 = vmatpush.bf16.msra.mxu0 0
      %4339 = vmatpush.bf16.msra.mxu0 0
      %4340 = vmatpush.bf16.msra.mxu0 0
      %4341 = vmatpush.bf16.msra.mxu0 %v3673
      %4342 = vmatmul.bf16.gmra.mxu0 %v3829
      %v4343 = vpop.f32.mrf.mxu0
      %v4344 = vadd.f32 0.0, %v4343
      %v4345 = vpop.f32.mrf.mxu0
      %v4346 = vadd.f32 0.0, %v4345
      %4347 = vmatmul.bf16.gmra.mxu0 %v3832
      %v4348 = vpop.f32.mrf.mxu0
      %v4349 = vadd.f32 0.0, %v4348
      %v4350 = vpop.f32.mrf.mxu0
      %v4351 = vadd.f32 0.0, %v4350
      %4352 = vmatmul.bf16.gmra.mxu0 %v3835
      %v4353 = vpop.f32.mrf.mxu0
      %v4354 = vadd.f32 0.0, %v4353
      %v4355 = vpop.f32.mrf.mxu0
      %4356 = vdwg.mxu0
      %v4357 = vadd.f32 %v4329, %v4344
      %v4358 = vadd.f32 %v4330, %v4346
      %v4359 = vadd.f32 %v4331, %v4349
      %v4360 = vadd.f32 %v4332, %v4351
      %v4361 = vadd.f32 %v4333, %v4354
      %v4367 = vunpack.c.l.b16 %v3362
      %v4368 = vunpack.c.l.b16 %v3363
      %v4369 = vunpack.c.l.b16 %v3364
      %v4370 = vunpack.c.l.b16 %v3365
      %v4371 = vunpack.c.l.b16 %v3366
      %v4372 = vpack.c.b16 %v4368, %v4367
      %v4373 = vpack.c.b16 %v4370, %v4369
      %v4374 = vpack.c.b16 %v4371, %v4371
      %v4376 = vsel %vm3399, %v4372, 0
      %v4379 = vsel %vm3399, %v4373, 0
      %v4382 = vsel %vm3399, %v4374, 0
      %4384 = vmatpush.bf16.msra.mxu0 0
      %4385 = vmatpush.bf16.msra.mxu0 0
      %4386 = vmatpush.bf16.msra.mxu0 0
      %4387 = vmatpush.bf16.msra.mxu0 0
      %4388 = vmatpush.bf16.msra.mxu0 0
      %4389 = vmatpush.bf16.msra.mxu0 0
      %4390 = vmatpush.bf16.msra.mxu0 0
      %4391 = vmatpush.bf16.msra.mxu0 %v3728
      %4392 = vmatmul.bf16.gmra.mxu0 %v4376
      %v4393 = vpop.f32.mrf.mxu0
      %v4394 = vadd.f32 0.0, %v4393
      %v4395 = vpop.f32.mrf.mxu0
      %v4396 = vadd.f32 0.0, %v4395
      %4397 = vmatmul.bf16.gmra.mxu0 %v4379
      %v4398 = vpop.f32.mrf.mxu0
      %v4399 = vadd.f32 0.0, %v4398
      %v4400 = vpop.f32.mrf.mxu0
      %v4401 = vadd.f32 0.0, %v4400
      %4402 = vmatmul.bf16.gmra.mxu0 %v4382
      %v4403 = vpop.f32.mrf.mxu0
      %v4404 = vadd.f32 0.0, %v4403
      %v4405 = vpop.f32.mrf.mxu0
      %4406 = vdwg.mxu0
      %v4407 = vadd.f32 %v4357, %v4394
      %v4408 = vadd.f32 %v4358, %v4396
      %v4409 = vadd.f32 %v4359, %v4399
      %v4410 = vadd.f32 %v4360, %v4401
      %v4411 = vadd.f32 %v4361, %v4404
      %v4417 = vunpack.c.l.b16 %v3367
      %v4418 = vunpack.c.l.b16 %v3368
      %v4419 = vunpack.c.l.b16 %v3369
      %v4420 = vunpack.c.l.b16 %v3370
      %v4421 = vunpack.c.l.b16 %v3371
      %v4422 = vpack.c.b16 %v4418, %v4417
      %v4423 = vpack.c.b16 %v4420, %v4419
      %v4424 = vpack.c.b16 %v4421, %v4421
      %v4426 = vsel %vm3399, %v4422, 0
      %v4429 = vsel %vm3399, %v4423, 0
      %v4432 = vsel %vm3399, %v4424, 0
      %4434 = vmatpush.bf16.msra.mxu0 0
      %4435 = vmatpush.bf16.msra.mxu0 0
      %4436 = vmatpush.bf16.msra.mxu0 0
      %4437 = vmatpush.bf16.msra.mxu0 0
      %4438 = vmatpush.bf16.msra.mxu0 0
      %4439 = vmatpush.bf16.msra.mxu0 0
      %4440 = vmatpush.bf16.msra.mxu0 0
      %4441 = vmatpush.bf16.msra.mxu0 %v3783
      %4442 = vmatmul.bf16.gmra.mxu0 %v4426
      %v4443 = vpop.f32.mrf.mxu0
      %v4444 = vadd.f32 0.0, %v4443
      %v4445 = vpop.f32.mrf.mxu0
      %v4446 = vadd.f32 0.0, %v4445
      %4447 = vmatmul.bf16.gmra.mxu0 %v4429
      %v4448 = vpop.f32.mrf.mxu0
      %v4449 = vadd.f32 0.0, %v4448
      %v4450 = vpop.f32.mrf.mxu0
      %v4451 = vadd.f32 0.0, %v4450
      %4452 = vmatmul.bf16.gmra.mxu0 %v4432
      %v4453 = vpop.f32.mrf.mxu0
      %v4454 = vadd.f32 0.0, %v4453
      %v4455 = vpop.f32.mrf.mxu0
      %4456 = vdwg.mxu0
      %v4457 = vadd.f32 %v4407, %v4444
      %v4458 = vadd.f32 %v4408, %v4446
      %v4459 = vadd.f32 %v4409, %v4449
      %v4460 = vadd.f32 %v4410, %v4451
      %v4461 = vadd.f32 %v4411, %v4454
      %v4467 = vunpack.c.l.b16 %v3372
      %v4468 = vunpack.c.l.b16 %v3373
      %v4469 = vunpack.c.l.b16 %v3374
      %v4470 = vunpack.c.l.b16 %v3375
      %v4471 = vunpack.c.l.b16 %v3376
      %v4472 = vpack.c.b16 %v4468, %v4467
      %v4473 = vpack.c.b16 %v4470, %v4469
      %v4474 = vpack.c.b16 %v4471, %v4471
      %v4476 = vsel %vm3399, %v4472, 0
      %v4479 = vsel %vm3399, %v4473, 0
      %v4482 = vsel %vm3399, %v4474, 0
      %4484 = vmatpush.bf16.msra.mxu0 0
      %4485 = vmatpush.bf16.msra.mxu0 0
      %4486 = vmatpush.bf16.msra.mxu0 0
      %4487 = vmatpush.bf16.msra.mxu0 0
      %4488 = vmatpush.bf16.msra.mxu0 0
      %4489 = vmatpush.bf16.msra.mxu0 0
      %4490 = vmatpush.bf16.msra.mxu0 0
      %4491 = vmatpush.bf16.msra.mxu0 %v3838
      %4492 = vmatmul.bf16.gmra.mxu0 %v4476
      %v4493 = vpop.f32.mrf.mxu0
      %v4494 = vadd.f32 0.0, %v4493
      %v4495 = vpop.f32.mrf.mxu0
      %v4496 = vadd.f32 0.0, %v4495
      %4497 = vmatmul.bf16.gmra.mxu0 %v4479
      %v4498 = vpop.f32.mrf.mxu0
      %v4499 = vadd.f32 0.0, %v4498
      %v4500 = vpop.f32.mrf.mxu0
      %v4501 = vadd.f32 0.0, %v4500
      %4502 = vmatmul.bf16.gmra.mxu0 %v4482
      %v4503 = vpop.f32.mrf.mxu0
      %v4504 = vadd.f32 0.0, %v4503
      %v4505 = vpop.f32.mrf.mxu0
      %4506 = vdwg.mxu0
      %v4507 = vadd.f32 %v4457, %v4494
      %v4508 = vadd.f32 %v4458, %v4496
      %v4509 = vadd.f32 %v4459, %v4499
      %v4510 = vadd.f32 %v4460, %v4501
      %v4511 = vadd.f32 %v4461, %v4504
      %v4512 = vadd.f32 %v4507, %v3869
      %v4513 = vadd.f32 %v4508, %v3869
      %v4514 = vadd.f32 %v4509, %v3869
      %v4515 = vadd.f32 %v4510, %v3869
      %v4516 = vadd.f32 %v4511, %v3869
      %v4517 = vmax.f32 %v4512, 0.0
      %v4518 = vmax.f32 %v4513, 0.0
      %v4519 = vmax.f32 %v4514, 0.0
      %v4520 = vmax.f32 %v4515, 0.0
      %v4521 = vmax.f32 %v4516, 0.0
      %v4522 = vmax.f32 %v4199, %v4517
      %v4523 = vmax.f32 %v4200, %v4518
      %v4524 = vmax.f32 %v4201, %v4519
      %v4525 = vmax.f32 %v4202, %v4520
      %v4526 = vmax.f32 %v4203, %v4521
      %4527 = vmatpush.bf16.msra.mxu0 0
      %4528 = vmatpush.bf16.msra.mxu0 0
      %4529 = vmatpush.bf16.msra.mxu0 0
      %4530 = vmatpush.bf16.msra.mxu0 0
      %4531 = vmatpush.bf16.msra.mxu0 0
      %4532 = vmatpush.bf16.msra.mxu0 0
      %4533 = vmatpush.bf16.msra.mxu0 0
      %4534 = vmatpush.bf16.msra.mxu0 %v3410
      %4535 = vmatmul.bf16.gmra.mxu0 %v3664
      %v4536 = vpop.f32.mrf.mxu0
      %v4537 = vadd.f32 0.0, %v4536
      %v4538 = vpop.f32.mrf.mxu0
      %v4539 = vadd.f32 0.0, %v4538
      %4540 = vmatmul.bf16.gmra.mxu0 %v3667
      %v4541 = vpop.f32.mrf.mxu0
      %v4542 = vadd.f32 0.0, %v4541
      %v4543 = vpop.f32.mrf.mxu0
      %v4544 = vadd.f32 0.0, %v4543
      %4545 = vmatmul.bf16.gmra.mxu0 %v3670
      %v4546 = vpop.f32.mrf.mxu0
      %v4547 = vadd.f32 0.0, %v4546
      %v4548 = vpop.f32.mrf.mxu0
      %4549 = vdwg.mxu0
      %4550 = vmatpush.bf16.msra.mxu0 0
      %4551 = vmatpush.bf16.msra.mxu0 0
      %4552 = vmatpush.bf16.msra.mxu0 0
      %4553 = vmatpush.bf16.msra.mxu0 0
      %4554 = vmatpush.bf16.msra.mxu0 0
      %4555 = vmatpush.bf16.msra.mxu0 0
      %4556 = vmatpush.bf16.msra.mxu0 0
      %4557 = vmatpush.bf16.msra.mxu0 %v3458
      %4558 = vmatmul.bf16.gmra.mxu0 %v3609
      %v4559 = vpop.f32.mrf.mxu0
      %v4560 = vadd.f32 %v4537, %v4559
      %v4561 = vpop.f32.mrf.mxu0
      %v4562 = vadd.f32 %v4539, %v4561
      %4563 = vmatmul.bf16.gmra.mxu0 %v3612
      %v4564 = vpop.f32.mrf.mxu0
      %v4565 = vadd.f32 %v4542, %v4564
      %v4566 = vpop.f32.mrf.mxu0
      %v4567 = vadd.f32 %v4544, %v4566
      %4568 = vmatmul.bf16.gmra.mxu0 %v3615
      %v4569 = vpop.f32.mrf.mxu0
      %v4570 = vadd.f32 %v4547, %v4569
      %v4571 = vpop.f32.mrf.mxu0
      %4572 = vdwg.mxu0
      %4573 = vmatpush.bf16.msra.mxu0 0
      %4574 = vmatpush.bf16.msra.mxu0 0
      %4575 = vmatpush.bf16.msra.mxu0 0
      %4576 = vmatpush.bf16.msra.mxu0 0
      %4577 = vmatpush.bf16.msra.mxu0 0
      %4578 = vmatpush.bf16.msra.mxu0 0
      %4579 = vmatpush.bf16.msra.mxu0 0
      %4580 = vmatpush.bf16.msra.mxu0 %v3508
      %4581 = vmatmul.bf16.gmra.mxu0 %v4047
      %v4582 = vpop.f32.mrf.mxu0
      %v4583 = vadd.f32 0.0, %v4582
      %v4584 = vpop.f32.mrf.mxu0
      %v4585 = vadd.f32 0.0, %v4584
      %4586 = vmatmul.bf16.gmra.mxu0 %v4050
      %v4587 = vpop.f32.mrf.mxu0
      %v4588 = vadd.f32 0.0, %v4587
      %v4589 = vpop.f32.mrf.mxu0
      %v4590 = vadd.f32 0.0, %v4589
      %4591 = vmatmul.bf16.gmra.mxu0 %v4053
      %v4592 = vpop.f32.mrf.mxu0
      %v4593 = vadd.f32 0.0, %v4592
      %v4594 = vpop.f32.mrf.mxu0
      %4595 = vdwg.mxu0
      %v4596 = vadd.f32 %v4560, %v4583
      %v4597 = vadd.f32 %v4562, %v4585
      %v4598 = vadd.f32 %v4565, %v4588
      %v4599 = vadd.f32 %v4567, %v4590
      %v4600 = vadd.f32 %v4570, %v4593
      %4601 = vmatpush.bf16.msra.mxu0 0
      %4602 = vmatpush.bf16.msra.mxu0 0
      %4603 = vmatpush.bf16.msra.mxu0 0
      %4604 = vmatpush.bf16.msra.mxu0 0
      %4605 = vmatpush.bf16.msra.mxu0 0
      %4606 = vmatpush.bf16.msra.mxu0 0
      %4607 = vmatpush.bf16.msra.mxu0 0
      %4608 = vmatpush.bf16.msra.mxu0 %v3563
      %4609 = vmatmul.bf16.gmra.mxu0 %v3774
      %v4610 = vpop.f32.mrf.mxu0
      %v4611 = vadd.f32 0.0, %v4610
      %v4612 = vpop.f32.mrf.mxu0
      %v4613 = vadd.f32 0.0, %v4612
      %4614 = vmatmul.bf16.gmra.mxu0 %v3777
      %v4615 = vpop.f32.mrf.mxu0
      %v4616 = vadd.f32 0.0, %v4615
      %v4617 = vpop.f32.mrf.mxu0
      %v4618 = vadd.f32 0.0, %v4617
      %4619 = vmatmul.bf16.gmra.mxu0 %v3780
      %v4620 = vpop.f32.mrf.mxu0
      %v4621 = vadd.f32 0.0, %v4620
      %v4622 = vpop.f32.mrf.mxu0
      %4623 = vdwg.mxu0
      %v4624 = vadd.f32 %v4596, %v4611
      %v4625 = vadd.f32 %v4597, %v4613
      %v4626 = vadd.f32 %v4598, %v4616
      %v4627 = vadd.f32 %v4599, %v4618
      %v4628 = vadd.f32 %v4600, %v4621
      %4629 = vmatpush.bf16.msra.mxu0 0
      %4630 = vmatpush.bf16.msra.mxu0 0
      %4631 = vmatpush.bf16.msra.mxu0 0
      %4632 = vmatpush.bf16.msra.mxu0 0
      %4633 = vmatpush.bf16.msra.mxu0 0
      %4634 = vmatpush.bf16.msra.mxu0 0
      %4635 = vmatpush.bf16.msra.mxu0 0
      %4636 = vmatpush.bf16.msra.mxu0 %v3618
      %4637 = vmatmul.bf16.gmra.mxu0 %v3829
      %v4638 = vpop.f32.mrf.mxu0
      %v4639 = vadd.f32 0.0, %v4638
      %v4640 = vpop.f32.mrf.mxu0
      %v4641 = vadd.f32 0.0, %v4640
      %4642 = vmatmul.bf16.gmra.mxu0 %v3832
      %v4643 = vpop.f32.mrf.mxu0
      %v4644 = vadd.f32 0.0, %v4643
      %v4645 = vpop.f32.mrf.mxu0
      %v4646 = vadd.f32 0.0, %v4645
      %4647 = vmatmul.bf16.gmra.mxu0 %v3835
      %v4648 = vpop.f32.mrf.mxu0
      %v4649 = vadd.f32 0.0, %v4648
      %v4650 = vpop.f32.mrf.mxu0
      %4651 = vdwg.mxu0
      %v4652 = vadd.f32 %v4624, %v4639
      %v4653 = vadd.f32 %v4625, %v4641
      %v4654 = vadd.f32 %v4626, %v4644
      %v4655 = vadd.f32 %v4627, %v4646
      %v4656 = vadd.f32 %v4628, %v4649
      %4657 = vmatpush.bf16.msra.mxu0 0
      %4658 = vmatpush.bf16.msra.mxu0 0
      %4659 = vmatpush.bf16.msra.mxu0 0
      %4660 = vmatpush.bf16.msra.mxu0 0
      %4661 = vmatpush.bf16.msra.mxu0 0
      %4662 = vmatpush.bf16.msra.mxu0 0
      %4663 = vmatpush.bf16.msra.mxu0 0
      %4664 = vmatpush.bf16.msra.mxu0 %v3673
      %4665 = vmatmul.bf16.gmra.mxu0 %v4153
      %v4666 = vpop.f32.mrf.mxu0
      %v4667 = vadd.f32 0.0, %v4666
      %v4668 = vpop.f32.mrf.mxu0
      %v4669 = vadd.f32 0.0, %v4668
      %4670 = vmatmul.bf16.gmra.mxu0 %v4156
      %v4671 = vpop.f32.mrf.mxu0
      %v4672 = vadd.f32 0.0, %v4671
      %v4673 = vpop.f32.mrf.mxu0
      %v4674 = vadd.f32 0.0, %v4673
      %4675 = vmatmul.bf16.gmra.mxu0 %v4159
      %v4676 = vpop.f32.mrf.mxu0
      %v4677 = vadd.f32 0.0, %v4676
      %v4678 = vpop.f32.mrf.mxu0
      %4679 = vdwg.mxu0
      %v4680 = vadd.f32 %v4652, %v4667
      %v4681 = vadd.f32 %v4653, %v4669
      %v4682 = vadd.f32 %v4654, %v4672
      %v4683 = vadd.f32 %v4655, %v4674
      %v4684 = vadd.f32 %v4656, %v4677
      %4685 = vmatpush.bf16.msra.mxu0 0
      %4686 = vmatpush.bf16.msra.mxu0 0
      %4687 = vmatpush.bf16.msra.mxu0 0
      %4688 = vmatpush.bf16.msra.mxu0 0
      %4689 = vmatpush.bf16.msra.mxu0 0
      %4690 = vmatpush.bf16.msra.mxu0 0
      %4691 = vmatpush.bf16.msra.mxu0 0
      %4692 = vmatpush.bf16.msra.mxu0 %v3728
      %4693 = vmatmul.bf16.gmra.mxu0 %v4426
      %v4694 = vpop.f32.mrf.mxu0
      %v4695 = vadd.f32 0.0, %v4694
      %v4696 = vpop.f32.mrf.mxu0
      %v4697 = vadd.f32 0.0, %v4696
      %4698 = vmatmul.bf16.gmra.mxu0 %v4429
      %v4699 = vpop.f32.mrf.mxu0
      %v4700 = vadd.f32 0.0, %v4699
      %v4701 = vpop.f32.mrf.mxu0
      %v4702 = vadd.f32 0.0, %v4701
      %4703 = vmatmul.bf16.gmra.mxu0 %v4432
      %v4704 = vpop.f32.mrf.mxu0
      %v4705 = vadd.f32 0.0, %v4704
      %v4706 = vpop.f32.mrf.mxu0
      %4707 = vdwg.mxu0
      %v4708 = vadd.f32 %v4680, %v4695
      %v4709 = vadd.f32 %v4681, %v4697
      %v4710 = vadd.f32 %v4682, %v4700
      %v4711 = vadd.f32 %v4683, %v4702
      %v4712 = vadd.f32 %v4684, %v4705
      %4713 = vmatpush.bf16.msra.mxu0 0
      %4714 = vmatpush.bf16.msra.mxu0 0
      %4715 = vmatpush.bf16.msra.mxu0 0
      %4716 = vmatpush.bf16.msra.mxu0 0
      %4717 = vmatpush.bf16.msra.mxu0 0
      %4718 = vmatpush.bf16.msra.mxu0 0
      %4719 = vmatpush.bf16.msra.mxu0 0
      %4720 = vmatpush.bf16.msra.mxu0 %v3783
      %4721 = vmatmul.bf16.gmra.mxu0 %v4476
      %v4722 = vpop.f32.mrf.mxu0
      %v4723 = vadd.f32 0.0, %v4722
      %v4724 = vpop.f32.mrf.mxu0
      %v4725 = vadd.f32 0.0, %v4724
      %4726 = vmatmul.bf16.gmra.mxu0 %v4479
      %v4727 = vpop.f32.mrf.mxu0
      %v4728 = vadd.f32 0.0, %v4727
      %v4729 = vpop.f32.mrf.mxu0
      %v4730 = vadd.f32 0.0, %v4729
      %4731 = vmatmul.bf16.gmra.mxu0 %v4482
      %v4732 = vpop.f32.mrf.mxu0
      %v4733 = vadd.f32 0.0, %v4732
      %v4734 = vpop.f32.mrf.mxu0
      %4735 = vdwg.mxu0
      %v4736 = vadd.f32 %v4708, %v4723
      %v4737 = vadd.f32 %v4709, %v4725
      %v4738 = vadd.f32 %v4710, %v4728
      %v4739 = vadd.f32 %v4711, %v4730
      %v4740 = vadd.f32 %v4712, %v4733
      %v4746 = vunpack.c.l.b16 %v3377
      %v4747 = vunpack.c.l.b16 %v3378
      %v4748 = vunpack.c.l.b16 %v3379
      %v4749 = vunpack.c.l.b16 %v3380
      %v4750 = vunpack.c.l.b16 %v3381
      %v4751 = vpack.c.b16 %v4747, %v4746
      %v4752 = vpack.c.b16 %v4749, %v4748
      %v4753 = vpack.c.b16 %v4750, %v4750
      %v4755 = vsel %vm3399, %v4751, 0
      %v4758 = vsel %vm3399, %v4752, 0
      %v4761 = vsel %vm3399, %v4753, 0
      %4763 = vmatpush.bf16.msra.mxu0 0
      %4764 = vmatpush.bf16.msra.mxu0 0
      %4765 = vmatpush.bf16.msra.mxu0 0
      %4766 = vmatpush.bf16.msra.mxu0 0
      %4767 = vmatpush.bf16.msra.mxu0 0
      %4768 = vmatpush.bf16.msra.mxu0 0
      %4769 = vmatpush.bf16.msra.mxu0 0
      %4770 = vmatpush.bf16.msra.mxu0 %v3838
      %4771 = vmatmul.bf16.gmra.mxu0 %v4755
      %v4772 = vpop.f32.mrf.mxu0
      %v4773 = vadd.f32 0.0, %v4772
      %v4774 = vpop.f32.mrf.mxu0
      %v4775 = vadd.f32 0.0, %v4774
      %4776 = vmatmul.bf16.gmra.mxu0 %v4758
      %v4777 = vpop.f32.mrf.mxu0
      %v4778 = vadd.f32 0.0, %v4777
      %v4779 = vpop.f32.mrf.mxu0
      %v4780 = vadd.f32 0.0, %v4779
      %4781 = vmatmul.bf16.gmra.mxu0 %v4761
      %v4782 = vpop.f32.mrf.mxu0
      %v4783 = vadd.f32 0.0, %v4782
      %v4784 = vpop.f32.mrf.mxu0
      %4785 = vdwg.mxu0
      %v4786 = vadd.f32 %v4736, %v4773
      %v4787 = vadd.f32 %v4737, %v4775
      %v4788 = vadd.f32 %v4738, %v4778
      %v4789 = vadd.f32 %v4739, %v4780
      %v4790 = vadd.f32 %v4740, %v4783
      %v4791 = vadd.f32 %v4786, %v3869
      %v4792 = vadd.f32 %v4787, %v3869
      %v4793 = vadd.f32 %v4788, %v3869
      %v4794 = vadd.f32 %v4789, %v3869
      %v4795 = vadd.f32 %v4790, %v3869
      %v4796 = vmax.f32 %v4791, 0.0
      %v4797 = vmax.f32 %v4792, 0.0
      %v4798 = vmax.f32 %v4793, 0.0
      %v4799 = vmax.f32 %v4794, 0.0
      %v4800 = vmax.f32 %v4795, 0.0
      %v4801 = vmax.f32 %v4522, %v4796
      %v4802 = vmax.f32 %v4523, %v4797
      %v4803 = vmax.f32 %v4524, %v4798
      %v4804 = vmax.f32 %v4525, %v4799
      %v4805 = vmax.f32 %v4526, %v4800
      %vm4806 = vcmask 523264
      %4807 = vst.msk [vmem:[%s224] sm:$0xff] %vm4806, %v4801
      %4808 = vst.msk [vmem:[%s224 + $0x8] sm:$0xff] %vm4806, %v4802
      %4809 = vst.msk [vmem:[%s224 + $0x10] sm:$0xff] %vm4806, %v4803
      %4810 = vst.msk [vmem:[%s224 + $0x18] sm:$0xff] %vm4806, %v4804
      %vm4811 = vcmask 519168
      %4812 = vst.msk [vmem:[%s224 + $0x20] sm:$0xf] %vm4811, %v4805
      %p4813 = scmp.lt.s32.totalorder %s16, 1
      %s4814 = scalar_select %p4813, %s16, 1
      %s4815 = smul.addr %s4814, 5
      %s4816 = smul.addr %s4815, 8
      %s4817 = scalar_lea.vmem %s5, %s4816
      // Predicated region
      $region41: #{model_forward.2} parent=39 // pred_check
        %p4818 = pneg %p144
      $region42: #{model_forward.2} parent=39 // pred_check_branch
        %4820 = sbr.rel (%p4818) target = $region44
      $region43: #{model_forward.2} parent=39 // pred_region
        _
      $region44: #{model_forward.2} parent=39 // pred_fallthru
        _
    $region40: #{model_forward.2} parent=5 // pred_fallthru
      _
    %p4821 = scmp.le.s32.totalorder 2, %s11
    // Predicated region
    $region45: #{model_forward.2} parent=5 // pred_check
      %p4822 = pneg %p4821
    $region46: #{model_forward.2} parent=5 // pred_check_branch
      %4824 = sbr.rel (%p4822) target = $region48
    $region47: #{model_forward.2} parent=5 // pred_region
      %s4825 = ssub.s32 %s11, 2
      // Predicated region
      $region49: #{model_forward.2} parent=47 // pred_check
        %p4826 = pneg %p150
      $region50: #{model_forward.2} parent=47 // pred_check_branch
        %4828 = sbr.rel (%p4826) target = $region52
      $region51: #{model_forward.2} parent=47 // pred_region
        %p4829 = scmp.lt.s32.totalorder %s17, 1
        %s4830 = scalar_select %p4829, %s17, 1
        %s4831 = smul.addr %s4830, 5
        %s4832 = smul.addr %s4831, 8
        %s4833 = scalar_lea.vmem %s5, %s4832
      $region52: #{model_forward.2} parent=47 // pred_fallthru
        _
    $region48: #{model_forward.2} parent=5 // pred_fallthru
      _
  $region6: #{model_forward.2} parent=0 // loop_footer
    %s15 = sadd.s32 1, %s11
  $region7: #{model_forward.2} parent=0 // loop_footer_branch
    %10 = sbr.rel target = $region3
  $region8: #{model_forward.2} parent=0 // loop_exit
    _

// kernel: model_forward.3
$region0: #{model_forward.3}
  #allocation0 [shape = 'u32[]', space=smem, size = 0x4, offset = 0x4, fixed_abs, tag = 'smem constant byte address 0x4 - core index']
  #allocation1 [shape = 'u32[72,128]{1,0:T(1,128)}', space=vmem, size = 0x9000, scoped, tag = 'internal scratch']
  %s0 = inlined_call_operand.vmem [shape: f32[2,2304], index: 0, kind: input, shape index: {}]
  %s1 = inlined_call_operand.vmem [shape: bf16[2304,1000], index: 1, kind: input, shape index: {}]
  %s2 = inlined_call_operand.vmem [shape: f32[1,1000], index: 2, kind: input, shape index: {}]
  %s3 = inlined_call_operand.vmem [shape: bf16[1000,10], index: 3, kind: input, shape index: {}]
  %s4 = inlined_call_operand.vmem [shape: f32[1,10], index: 4, kind: input, shape index: {}]
  %s5 = inlined_call_operand.hbm [shape: f32[2,10], index: 5, kind: output, shape index: {}]
  %s6 = sld [smem:[#allocation0]]
  $region30: #{model_forward.3} parent=0
    _
  %s8 = ssub.s32 1, %s6
  %s9 = scalar_select 0, %s8, %s6
  $region1: #{model_forward.3} parent=0
    #allocation2 [shape = 'u8[1024]{0}', space=vmem, size = 0x400, scoped, tag = 'output window, operand 0, single buffered']
    #allocation3 [shape = 's32[1]{0}', space=sflag, size = 0x4, scoped, tag = 'scoped memory for model_forward.3']
    %10 = vsyncpa [#allocation3], 0
    // Predicated region
    $region2: #{model_forward.3} parent=1 // pred_check
      _
    $region3: #{model_forward.3} parent=1 // pred_check_branch
      %12 = sbr.rel (0) target = $region5
    $region4: #{model_forward.3} parent=1 // pred_region
      _
    $region5: #{model_forward.3} parent=1 // pred_fallthru
      _
    // Predicated region
    $region6: #{model_forward.3} parent=1 // pred_check
      _
    $region7: #{model_forward.3} parent=1 // pred_check_branch
      %14 = sbr.rel (0) target = $region9
    $region8: #{model_forward.3} parent=1 // pred_region
      _
    $region9: #{model_forward.3} parent=1 // pred_fallthru
      _
    // Predicated region
    $region10: #{model_forward.3} parent=1 // pred_check
      _
    $region11: #{model_forward.3} parent=1 // pred_check_branch
      %16 = sbr.rel (0) target = $region13
    $region12: #{model_forward.3} parent=1 // pred_region
      _
    $region13: #{model_forward.3} parent=1 // pred_fallthru
      _
    // Predicated region
    $region14: #{model_forward.3} parent=1 // pred_check
      _
    $region15: #{model_forward.3} parent=1 // pred_check_branch
      %18 = sbr.rel (0) target = $region17
    $region16: #{model_forward.3} parent=1 // pred_region
      _
    $region17: #{model_forward.3} parent=1 // pred_fallthru
      _
    // Predicated region
    $region18: #{model_forward.3} parent=1 // pred_check
      _
    $region19: #{model_forward.3} parent=1 // pred_check_branch
      %20 = sbr.rel (0) target = $region21
    $region20: #{model_forward.3} parent=1 // pred_region
      _
    $region21: #{model_forward.3} parent=1 // pred_fallthru
      _
    %v22 = vld [vmem:[%s0] sm:$0xff]
    %v23 = vld [vmem:[%s0 + $0x8] sm:$0xff]
    %v24 = vld [vmem:[%s0 + $0x10] sm:$0xff]
    %v25 = vld [vmem:[%s0 + $0x18] sm:$0xff]
    %v26 = vld [vmem:[%s0 + $0x20] sm:$0xf]
    %32 = vst [vmem:[#allocation1] ss:$4 sm:$0xff] %v22
    %s33 = scalar_lea.vmem [#allocation1], 32
    %34 = vst [vmem:[%s33] ss:$4 sm:$0xff] %v23
    %v35 = vld.sshfl [vmem:[#allocation1] sm:$0xff pattern:$0x73625140]
    %v36 = vld.sshfl [vmem:[#allocation1 + $0x8] sm:$0xff pattern:$0x73625140]
    %v37 = vld.sshfl [vmem:[#allocation1 + $0x10] sm:$0xff pattern:$0x73625140]
    %v38 = vld.sshfl [vmem:[#allocation1 + $0x18] sm:$0xff pattern:$0x73625140]
    %v39 = vld.sshfl [vmem:[#allocation1 + $0x20] sm:$0xff pattern:$0x73625140]
    %v40 = vld.sshfl [vmem:[#allocation1 + $0x28] sm:$0xff pattern:$0x73625140]
    %v41 = vld.sshfl [vmem:[#allocation1 + $0x30] sm:$0xff pattern:$0x73625140]
    %v42 = vld.sshfl [vmem:[#allocation1 + $0x38] sm:$0xff pattern:$0x73625140]
    %43 = vst [vmem:[#allocation1] ss:$4 sm:$0xff] %v24
    %44 = vst [vmem:[%s33] ss:$4 sm:$0xff] %v25
    %v45 = vld.sshfl [vmem:[#allocation1] sm:$0xff pattern:$0x73625140]
    %v46 = vld.sshfl [vmem:[#allocation1 + $0x8] sm:$0xff pattern:$0x73625140]
    %v47 = vld.sshfl [vmem:[#allocation1 + $0x10] sm:$0xff pattern:$0x73625140]
    %v48 = vld.sshfl [vmem:[#allocation1 + $0x18] sm:$0xff pattern:$0x73625140]
    %v49 = vld.sshfl [vmem:[#allocation1 + $0x20] sm:$0xff pattern:$0x73625140]
    %v50 = vld.sshfl [vmem:[#allocation1 + $0x28] sm:$0xff pattern:$0x73625140]
    %v51 = vld.sshfl [vmem:[#allocation1 + $0x30] sm:$0xff pattern:$0x73625140]
    %v52 = vld.sshfl [vmem:[#allocation1 + $0x38] sm:$0xff pattern:$0x73625140]
    %53 = vst [vmem:[#allocation1] ss:$4 sm:$0xff] %v26
    %v54 = vld.sshfl [vmem:[#allocation1] sm:$0xff pattern:$0x73625140]
    %v55 = vld.sshfl [vmem:[#allocation1 + $0x8] sm:$0xff pattern:$0x73625140]
    %v74 = vpack.c.bf16 %v35, %v35
    %v75 = vpack.c.bf16 %v36, %v36
    %v76 = vpack.c.bf16 %v37, %v37
    %v77 = vpack.c.bf16 %v38, %v38
    %v78 = vpack.c.bf16 %v39, %v39
    %v79 = vpack.c.bf16 %v40, %v40
    %v80 = vpack.c.bf16 %v41, %v41
    %v81 = vpack.c.bf16 %v42, %v42
    %v82 = vpack.c.bf16 %v45, %v45
    %v83 = vpack.c.bf16 %v46, %v46
    %v84 = vpack.c.bf16 %v47, %v47
    %v85 = vpack.c.bf16 %v48, %v48
    %v86 = vpack.c.bf16 %v49, %v49
    %v87 = vpack.c.bf16 %v50, %v50
    %v88 = vpack.c.bf16 %v51, %v51
    %v89 = vpack.c.bf16 %v52, %v52
    %v90 = vpack.c.bf16 %v54, %v54
    %v91 = vpack.c.bf16 %v55, %v55
    %v92 = vld [vmem:[%s1] sm:$0xff]
    %v93 = vld [vmem:[%s1 + $0x8] sm:$0xff]
    %v94 = vld [vmem:[%s1 + $0x10] sm:$0xff]
    %v95 = vld [vmem:[%s1 + $0x18] sm:$0xff]
    %v96 = vld [vmem:[%s1 + $0x20] sm:$0xff]
    %v97 = vld [vmem:[%s1 + $0x28] sm:$0xff]
    %v98 = vld [vmem:[%s1 + $0x30] sm:$0xff]
    %v99 = vld [vmem:[%s1 + $0x38] sm:$0xff]
    %v100 = vld [vmem:[%s1 + $0x40] sm:$0xff]
    %v101 = vld [vmem:[%s1 + $0x48] sm:$0xff]
    %v102 = vld [vmem:[%s1 + $0x50] sm:$0xff]
    %v103 = vld [vmem:[%s1 + $0x58] sm:$0xff]
    %v104 = vld [vmem:[%s1 + $0x60] sm:$0xff]
    %v105 = vld [vmem:[%s1 + $0x68] sm:$0xff]
    %v106 = vld [vmem:[%s1 + $0x70] sm:$0xff]
    %v107 = vld [vmem:[%s1 + $0x78] sm:$0xff]
    %v108 = vld [vmem:[%s1 + $0x80] sm:$0xff]
    %v109 = vld [vmem:[%s1 + $0x88] sm:$0xff]
    %v110 = vld [vmem:[%s1 + $0x90] sm:$0xff]
    %v111 = vld [vmem:[%s1 + $0x98] sm:$0xff]
    %v112 = vld [vmem:[%s1 + $0xa0] sm:$0xff]
    %v113 = vld [vmem:[%s1 + $0xa8] sm:$0xff]
    %v114 = vld [vmem:[%s1 + $0xb0] sm:$0xff]
    %v115 = vld [vmem:[%s1 + $0xb8] sm:$0xff]
    %v116 = vld [vmem:[%s1 + $0xc0] sm:$0xff]
    %v117 = vld [vmem:[%s1 + $0xc8] sm:$0xff]
    %v118 = vld [vmem:[%s1 + $0xd0] sm:$0xff]
    %v119 = vld [vmem:[%s1 + $0xd8] sm:$0xff]
    %v120 = vld [vmem:[%s1 + $0xe0] sm:$0xff]
    %v121 = vld [vmem:[%s1 + $0xe8] sm:$0xff]
    %v122 = vld [vmem:[%s1 + $0xf0] sm:$0xff]
    %v123 = vld [vmem:[%s1 + $0xf8] sm:$0xff]
    %v124 = vld [vmem:[%s1 + $0x100] sm:$0xff]
    %v125 = vld [vmem:[%s1 + $0x108] sm:$0xff]
    %v126 = vld [vmem:[%s1 + $0x110] sm:$0xff]
    %v127 = vld [vmem:[%s1 + $0x118] sm:$0xff]
    %v128 = vld [vmem:[%s1 + $0x120] sm:$0xff]
    %v129 = vld [vmem:[%s1 + $0x128] sm:$0xff]
    %v130 = vld [vmem:[%s1 + $0x130] sm:$0xff]
    %v131 = vld [vmem:[%s1 + $0x138] sm:$0xff]
    %v132 = vld [vmem:[%s1 + $0x140] sm:$0xff]
    %v133 = vld [vmem:[%s1 + $0x148] sm:$0xff]
    %v134 = vld [vmem:[%s1 + $0x150] sm:$0xff]
    %v135 = vld [vmem:[%s1 + $0x158] sm:$0xff]
    %v136 = vld [vmem:[%s1 + $0x160] sm:$0xff]
    %v137 = vld [vmem:[%s1 + $0x168] sm:$0xff]
    %v138 = vld [vmem:[%s1 + $0x170] sm:$0xff]
    %v139 = vld [vmem:[%s1 + $0x178] sm:$0xff]
    %v140 = vld [vmem:[%s1 + $0x180] sm:$0xff]
    %v141 = vld [vmem:[%s1 + $0x188] sm:$0xff]
    %v142 = vld [vmem:[%s1 + $0x190] sm:$0xff]
    %v143 = vld [vmem:[%s1 + $0x198] sm:$0xff]
    %v144 = vld [vmem:[%s1 + $0x1a0] sm:$0xff]
    %v145 = vld [vmem:[%s1 + $0x1a8] sm:$0xff]
    %v146 = vld [vmem:[%s1 + $0x1b0] sm:$0xff]
    %v147 = vld [vmem:[%s1 + $0x1b8] sm:$0xff]
    %v148 = vld [vmem:[%s1 + $0x1c0] sm:$0xff]
    %v149 = vld [vmem:[%s1 + $0x1c8] sm:$0xff]
    %v150 = vld [vmem:[%s1 + $0x1d0] sm:$0xff]
    %v151 = vld [vmem:[%s1 + $0x1d8] sm:$0xff]
    %v152 = vld [vmem:[%s1 + $0x1e0] sm:$0xff]
    %v153 = vld [vmem:[%s1 + $0x1e8] sm:$0xff]
    %v154 = vld [vmem:[%s1 + $0x1f0] sm:$0xff]
    %v155 = vld [vmem:[%s1 + $0x1f8] sm:$0xff]
    %v156 = vld [vmem:[%s1 + $0x200] sm:$0xff]
    %v157 = vld [vmem:[%s1 + $0x208] sm:$0xff]
    %v158 = vld [vmem:[%s1 + $0x210] sm:$0xff]
    %v159 = vld [vmem:[%s1 + $0x218] sm:$0xff]
    %v160 = vld [vmem:[%s1 + $0x220] sm:$0xff]
    %v161 = vld [vmem:[%s1 + $0x228] sm:$0xff]
    %v162 = vld [vmem:[%s1 + $0x230] sm:$0xff]
    %v163 = vld [vmem:[%s1 + $0x238] sm:$0xff]
    %v164 = vld [vmem:[%s1 + $0x240] sm:$0xff]
    %v165 = vld [vmem:[%s1 + $0x248] sm:$0xff]
    %v166 = vld [vmem:[%s1 + $0x250] sm:$0xff]
    %v167 = vld [vmem:[%s1 + $0x258] sm:$0xff]
    %v168 = vld [vmem:[%s1 + $0x260] sm:$0xff]
    %v169 = vld [vmem:[%s1 + $0x268] sm:$0xff]
    %v170 = vld [vmem:[%s1 + $0x270] sm:$0xff]
    %v171 = vld [vmem:[%s1 + $0x278] sm:$0xff]
    %v172 = vld [vmem:[%s1 + $0x280] sm:$0xff]
    %v173 = vld [vmem:[%s1 + $0x288] sm:$0xff]
    %v174 = vld [vmem:[%s1 + $0x290] sm:$0xff]
    %v175 = vld [vmem:[%s1 + $0x298] sm:$0xff]
    %v176 = vld [vmem:[%s1 + $0x2a0] sm:$0xff]
    %v177 = vld [vmem:[%s1 + $0x2a8] sm:$0xff]
    %v178 = vld [vmem:[%s1 + $0x2b0] sm:$0xff]
    %v179 = vld [vmem:[%s1 + $0x2b8] sm:$0xff]
    %v180 = vld [vmem:[%s1 + $0x2c0] sm:$0xff]
    %v181 = vld [vmem:[%s1 + $0x2c8] sm:$0xff]
    %v182 = vld [vmem:[%s1 + $0x2d0] sm:$0xff]
    %v183 = vld [vmem:[%s1 + $0x2d8] sm:$0xff]
    %v184 = vld [vmem:[%s1 + $0x2e0] sm:$0xff]
    %v185 = vld [vmem:[%s1 + $0x2e8] sm:$0xff]
    %v186 = vld [vmem:[%s1 + $0x2f0] sm:$0xff]
    %v187 = vld [vmem:[%s1 + $0x2f8] sm:$0xff]
    %v188 = vld [vmem:[%s1 + $0x300] sm:$0xff]
    %v189 = vld [vmem:[%s1 + $0x308] sm:$0xff]
    %v190 = vld [vmem:[%s1 + $0x310] sm:$0xff]
    %v191 = vld [vmem:[%s1 + $0x318] sm:$0xff]
    %v192 = vld [vmem:[%s1 + $0x320] sm:$0xff]
    %v193 = vld [vmem:[%s1 + $0x328] sm:$0xff]
    %v194 = vld [vmem:[%s1 + $0x330] sm:$0xff]
    %v195 = vld [vmem:[%s1 + $0x338] sm:$0xff]
    %v196 = vld [vmem:[%s1 + $0x340] sm:$0xff]
    %v197 = vld [vmem:[%s1 + $0x348] sm:$0xff]
    %v198 = vld [vmem:[%s1 + $0x350] sm:$0xff]
    %v199 = vld [vmem:[%s1 + $0x358] sm:$0xff]
    %v200 = vld [vmem:[%s1 + $0x360] sm:$0xff]
    %v201 = vld [vmem:[%s1 + $0x368] sm:$0xff]
    %v202 = vld [vmem:[%s1 + $0x370] sm:$0xff]
    %v203 = vld [vmem:[%s1 + $0x378] sm:$0xff]
    %v204 = vld [vmem:[%s1 + $0x380] sm:$0xff]
    %v205 = vld [vmem:[%s1 + $0x388] sm:$0xff]
    %v206 = vld [vmem:[%s1 + $0x390] sm:$0xff]
    %v207 = vld [vmem:[%s1 + $0x398] sm:$0xff]
    %v208 = vld [vmem:[%s1 + $0x3a0] sm:$0xff]
    %v209 = vld [vmem:[%s1 + $0x3a8] sm:$0xff]
    %v210 = vld [vmem:[%s1 + $0x3b0] sm:$0xff]
    %v211 = vld [vmem:[%s1 + $0x3b8] sm:$0xff]
    %v212 = vld [vmem:[%s1 + $0x3c0] sm:$0xff]
    %v213 = vld [vmem:[%s1 + $0x3c8] sm:$0xff]
    %v214 = vld [vmem:[%s1 + $0x3d0] sm:$0xff]
    %v215 = vld [vmem:[%s1 + $0x3d8] sm:$0xff]
    %v216 = vld [vmem:[%s1 + $0x3e0] sm:$0xff]
    %v217 = vld [vmem:[%s1 + $0x3e8] sm:$0xff]
    %v218 = vld [vmem:[%s1 + $0x3f0] sm:$0xff]
    %v219 = vld [vmem:[%s1 + $0x3f8] sm:$0xff]
    %v220 = vld [vmem:[%s1 + $0x400] sm:$0xff]
    %v221 = vld [vmem:[%s1 + $0x408] sm:$0xff]
    %v222 = vld [vmem:[%s1 + $0x410] sm:$0xff]
    %v223 = vld [vmem:[%s1 + $0x418] sm:$0xff]
    %v224 = vld [vmem:[%s1 + $0x420] sm:$0xff]
    %v225 = vld [vmem:[%s1 + $0x428] sm:$0xff]
    %v226 = vld [vmem:[%s1 + $0x430] sm:$0xff]
    %v227 = vld [vmem:[%s1 + $0x438] sm:$0xff]
    %v228 = vld [vmem:[%s1 + $0x440] sm:$0xff]
    %v229 = vld [vmem:[%s1 + $0x448] sm:$0xff]
    %v230 = vld [vmem:[%s1 + $0x450] sm:$0xff]
    %v231 = vld [vmem:[%s1 + $0x458] sm:$0xff]
    %v232 = vld [vmem:[%s1 + $0x460] sm:$0xff]
    %v233 = vld [vmem:[%s1 + $0x468] sm:$0xff]
    %v234 = vld [vmem:[%s1 + $0x470] sm:$0xff]
    %v235 = vld [vmem:[%s1 + $0x478] sm:$0xff]
    %v236 = vld [vmem:[%s1 + $0x480] sm:$0xff]
    %v237 = vld [vmem:[%s1 + $0x488] sm:$0xff]
    %v238 = vld [vmem:[%s1 + $0x490] sm:$0xff]
    %v239 = vld [vmem:[%s1 + $0x498] sm:$0xff]
    %v240 = vld [vmem:[%s1 + $0x4a0] sm:$0xff]
    %v241 = vld [vmem:[%s1 + $0x4a8] sm:$0xff]
    %v242 = vld [vmem:[%s1 + $0x4b0] sm:$0xff]
    %v243 = vld [vmem:[%s1 + $0x4b8] sm:$0xff]
    %v244 = vld [vmem:[%s1 + $0x4c0] sm:$0xff]
    %v245 = vld [vmem:[%s1 + $0x4c8] sm:$0xff]
    %v246 = vld [vmem:[%s1 + $0x4d0] sm:$0xff]
    %v247 = vld [vmem:[%s1 + $0x4d8] sm:$0xff]
    %v248 = vld [vmem:[%s1 + $0x4e0] sm:$0xff]
    %v249 = vld [vmem:[%s1 + $0x4e8] sm:$0xff]
    %v250 = vld [vmem:[%s1 + $0x4f0] sm:$0xff]
    %v251 = vld [vmem:[%s1 + $0x4f8] sm:$0xff]
    %v252 = vld [vmem:[%s1 + $0x500] sm:$0xff]
    %v253 = vld [vmem:[%s1 + $0x508] sm:$0xff]
    %v254 = vld [vmem:[%s1 + $0x510] sm:$0xff]
    %v255 = vld [vmem:[%s1 + $0x518] sm:$0xff]
    %v256 = vld [vmem:[%s1 + $0x520] sm:$0xff]
    %v257 = vld [vmem:[%s1 + $0x528] sm:$0xff]
    %v258 = vld [vmem:[%s1 + $0x530] sm:$0xff]
    %v259 = vld [vmem:[%s1 + $0x538] sm:$0xff]
    %v260 = vld [vmem:[%s1 + $0x540] sm:$0xff]
    %v261 = vld [vmem:[%s1 + $0x548] sm:$0xff]
    %v262 = vld [vmem:[%s1 + $0x550] sm:$0xff]
    %v263 = vld [vmem:[%s1 + $0x558] sm:$0xff]
    %v264 = vld [vmem:[%s1 + $0x560] sm:$0xff]
    %v265 = vld [vmem:[%s1 + $0x568] sm:$0xff]
    %v266 = vld [vmem:[%s1 + $0x570] sm:$0xff]
    %v267 = vld [vmem:[%s1 + $0x578] sm:$0xff]
    %v268 = vld [vmem:[%s1 + $0x580] sm:$0xff]
    %v269 = vld [vmem:[%s1 + $0x588] sm:$0xff]
    %v270 = vld [vmem:[%s1 + $0x590] sm:$0xff]
    %v271 = vld [vmem:[%s1 + $0x598] sm:$0xff]
    %v272 = vld [vmem:[%s1 + $0x5a0] sm:$0xff]
    %v273 = vld [vmem:[%s1 + $0x5a8] sm:$0xff]
    %v274 = vld [vmem:[%s1 + $0x5b0] sm:$0xff]
    %v275 = vld [vmem:[%s1 + $0x5b8] sm:$0xff]
    %v276 = vld [vmem:[%s1 + $0x5c0] sm:$0xff]
    %v277 = vld [vmem:[%s1 + $0x5c8] sm:$0xff]
    %v278 = vld [vmem:[%s1 + $0x5d0] sm:$0xff]
    %v279 = vld [vmem:[%s1 + $0x5d8] sm:$0xff]
    %v280 = vld [vmem:[%s1 + $0x5e0] sm:$0xff]
    %v281 = vld [vmem:[%s1 + $0x5e8] sm:$0xff]
    %v282 = vld [vmem:[%s1 + $0x5f0] sm:$0xff]
    %v283 = vld [vmem:[%s1 + $0x5f8] sm:$0xff]
    %v284 = vld [vmem:[%s1 + $0x600] sm:$0xff]
    %v285 = vld [vmem:[%s1 + $0x608] sm:$0xff]
    %v286 = vld [vmem:[%s1 + $0x610] sm:$0xff]
    %v287 = vld [vmem:[%s1 + $0x618] sm:$0xff]
    %v288 = vld [vmem:[%s1 + $0x620] sm:$0xff]
    %v289 = vld [vmem:[%s1 + $0x628] sm:$0xff]
    %v290 = vld [vmem:[%s1 + $0x630] sm:$0xff]
    %v291 = vld [vmem:[%s1 + $0x638] sm:$0xff]
    %v292 = vld [vmem:[%s1 + $0x640] sm:$0xff]
    %v293 = vld [vmem:[%s1 + $0x648] sm:$0xff]
    %v294 = vld [vmem:[%s1 + $0x650] sm:$0xff]
    %v295 = vld [vmem:[%s1 + $0x658] sm:$0xff]
    %v296 = vld [vmem:[%s1 + $0x660] sm:$0xff]
    %v297 = vld [vmem:[%s1 + $0x668] sm:$0xff]
    %v298 = vld [vmem:[%s1 + $0x670] sm:$0xff]
    %v299 = vld [vmem:[%s1 + $0x678] sm:$0xff]
    %v300 = vld [vmem:[%s1 + $0x680] sm:$0xff]
    %v301 = vld [vmem:[%s1 + $0x688] sm:$0xff]
    %v302 = vld [vmem:[%s1 + $0x690] sm:$0xff]
    %v303 = vld [vmem:[%s1 + $0x698] sm:$0xff]
    %v304 = vld [vmem:[%s1 + $0x6a0] sm:$0xff]
    %v305 = vld [vmem:[%s1 + $0x6a8] sm:$0xff]
    %v306 = vld [vmem:[%s1 + $0x6b0] sm:$0xff]
    %v307 = vld [vmem:[%s1 + $0x6b8] sm:$0xff]
    %v308 = vld [vmem:[%s1 + $0x6c0] sm:$0xff]
    %v309 = vld [vmem:[%s1 + $0x6c8] sm:$0xff]
    %v310 = vld [vmem:[%s1 + $0x6d0] sm:$0xff]
    %v311 = vld [vmem:[%s1 + $0x6d8] sm:$0xff]
    %v312 = vld [vmem:[%s1 + $0x6e0] sm:$0xff]
    %v313 = vld [vmem:[%s1 + $0x6e8] sm:$0xff]
    %v314 = vld [vmem:[%s1 + $0x6f0] sm:$0xff]
    %v315 = vld [vmem:[%s1 + $0x6f8] sm:$0xff]
    %v316 = vld [vmem:[%s1 + $0x700] sm:$0xff]
    %v317 = vld [vmem:[%s1 + $0x708] sm:$0xff]
    %v318 = vld [vmem:[%s1 + $0x710] sm:$0xff]
    %v319 = vld [vmem:[%s1 + $0x718] sm:$0xff]
    %v320 = vld [vmem:[%s1 + $0x720] sm:$0xff]
    %v321 = vld [vmem:[%s1 + $0x728] sm:$0xff]
    %v322 = vld [vmem:[%s1 + $0x730] sm:$0xff]
    %v323 = vld [vmem:[%s1 + $0x738] sm:$0xff]
    %v324 = vld [vmem:[%s1 + $0x740] sm:$0xff]
    %v325 = vld [vmem:[%s1 + $0x748] sm:$0xff]
    %v326 = vld [vmem:[%s1 + $0x750] sm:$0xff]
    %v327 = vld [vmem:[%s1 + $0x758] sm:$0xff]
    %v328 = vld [vmem:[%s1 + $0x760] sm:$0xff]
    %v329 = vld [vmem:[%s1 + $0x768] sm:$0xff]
    %v330 = vld [vmem:[%s1 + $0x770] sm:$0xff]
    %v331 = vld [vmem:[%s1 + $0x778] sm:$0xff]
    %v332 = vld [vmem:[%s1 + $0x780] sm:$0xff]
    %v333 = vld [vmem:[%s1 + $0x788] sm:$0xff]
    %v334 = vld [vmem:[%s1 + $0x790] sm:$0xff]
    %v335 = vld [vmem:[%s1 + $0x798] sm:$0xff]
    %v336 = vld [vmem:[%s1 + $0x7a0] sm:$0xff]
    %v337 = vld [vmem:[%s1 + $0x7a8] sm:$0xff]
    %v338 = vld [vmem:[%s1 + $0x7b0] sm:$0xff]
    %v339 = vld [vmem:[%s1 + $0x7b8] sm:$0xff]
    %v340 = vld [vmem:[%s1 + $0x7c0] sm:$0xff]
    %v341 = vld [vmem:[%s1 + $0x7c8] sm:$0xff]
    %v342 = vld [vmem:[%s1 + $0x7d0] sm:$0xff]
    %v343 = vld [vmem:[%s1 + $0x7d8] sm:$0xff]
    %v344 = vld [vmem:[%s1 + $0x7e0] sm:$0xff]
    %v345 = vld [vmem:[%s1 + $0x7e8] sm:$0xff]
    %v346 = vld [vmem:[%s1 + $0x7f0] sm:$0xff]
    %v347 = vld [vmem:[%s1 + $0x7f8] sm:$0xff]
    %v348 = vld [vmem:[%s1 + $0x800] sm:$0xff]
    %v349 = vld [vmem:[%s1 + $0x808] sm:$0xff]
    %v350 = vld [vmem:[%s1 + $0x810] sm:$0xff]
    %v351 = vld [vmem:[%s1 + $0x818] sm:$0xff]
    %v352 = vld [vmem:[%s1 + $0x820] sm:$0xff]
    %v353 = vld [vmem:[%s1 + $0x828] sm:$0xff]
    %v354 = vld [vmem:[%s1 + $0x830] sm:$0xff]
    %v355 = vld [vmem:[%s1 + $0x838] sm:$0xff]
    %v356 = vld [vmem:[%s1 + $0x840] sm:$0xff]
    %v357 = vld [vmem:[%s1 + $0x848] sm:$0xff]
    %v358 = vld [vmem:[%s1 + $0x850] sm:$0xff]
    %v359 = vld [vmem:[%s1 + $0x858] sm:$0xff]
    %v360 = vld [vmem:[%s1 + $0x860] sm:$0xff]
    %v361 = vld [vmem:[%s1 + $0x868] sm:$0xff]
    %v362 = vld [vmem:[%s1 + $0x870] sm:$0xff]
    %v363 = vld [vmem:[%s1 + $0x878] sm:$0xff]
    %v364 = vld [vmem:[%s1 + $0x880] sm:$0xff]
    %v365 = vld [vmem:[%s1 + $0x888] sm:$0xff]
    %v366 = vld [vmem:[%s1 + $0x890] sm:$0xff]
    %v367 = vld [vmem:[%s1 + $0x898] sm:$0xff]
    %v368 = vld [vmem:[%s1 + $0x8a0] sm:$0xff]
    %v369 = vld [vmem:[%s1 + $0x8a8] sm:$0xff]
    %v370 = vld [vmem:[%s1 + $0x8b0] sm:$0xff]
    %v371 = vld [vmem:[%s1 + $0x8b8] sm:$0xff]
    %v372 = vld [vmem:[%s1 + $0x8c0] sm:$0xff]
    %v373 = vld [vmem:[%s1 + $0x8c8] sm:$0xff]
    %v374 = vld [vmem:[%s1 + $0x8d0] sm:$0xff]
    %v375 = vld [vmem:[%s1 + $0x8d8] sm:$0xff]
    %v376 = vld [vmem:[%s1 + $0x8e0] sm:$0xff]
    %v377 = vld [vmem:[%s1 + $0x8e8] sm:$0xff]
    %v378 = vld [vmem:[%s1 + $0x8f0] sm:$0xff]
    %v379 = vld [vmem:[%s1 + $0x8f8] sm:$0xff]
    %v380 = vld [vmem:[%s1 + $0x900] sm:$0xff]
    %v381 = vld [vmem:[%s1 + $0x908] sm:$0xff]
    %v382 = vld [vmem:[%s1 + $0x910] sm:$0xff]
    %v383 = vld [vmem:[%s1 + $0x918] sm:$0xff]
    %v384 = vld [vmem:[%s1 + $0x920] sm:$0xff]
    %v385 = vld [vmem:[%s1 + $0x928] sm:$0xff]
    %v386 = vld [vmem:[%s1 + $0x930] sm:$0xff]
    %v387 = vld [vmem:[%s1 + $0x938] sm:$0xff]
    %v388 = vld [vmem:[%s1 + $0x940] sm:$0xff]
    %v389 = vld [vmem:[%s1 + $0x948] sm:$0xff]
    %v390 = vld [vmem:[%s1 + $0x950] sm:$0xff]
    %v391 = vld [vmem:[%s1 + $0x958] sm:$0xff]
    %v392 = vld [vmem:[%s1 + $0x960] sm:$0xff]
    %v393 = vld [vmem:[%s1 + $0x968] sm:$0xff]
    %v394 = vld [vmem:[%s1 + $0x970] sm:$0xff]
    %v395 = vld [vmem:[%s1 + $0x978] sm:$0xff]
    %v396 = vld [vmem:[%s1 + $0x980] sm:$0xff]
    %v397 = vld [vmem:[%s1 + $0x988] sm:$0xff]
    %v398 = vld [vmem:[%s1 + $0x990] sm:$0xff]
    %v399 = vld [vmem:[%s1 + $0x998] sm:$0xff]
    %v400 = vld [vmem:[%s1 + $0x9a0] sm:$0xff]
    %v401 = vld [vmem:[%s1 + $0x9a8] sm:$0xff]
    %v402 = vld [vmem:[%s1 + $0x9b0] sm:$0xff]
    %v403 = vld [vmem:[%s1 + $0x9b8] sm:$0xff]
    %v404 = vld [vmem:[%s1 + $0x9c0] sm:$0xff]
    %v405 = vld [vmem:[%s1 + $0x9c8] sm:$0xff]
    %v406 = vld [vmem:[%s1 + $0x9d0] sm:$0xff]
    %v407 = vld [vmem:[%s1 + $0x9d8] sm:$0xff]
    %v408 = vld [vmem:[%s1 + $0x9e0] sm:$0xff]
    %v409 = vld [vmem:[%s1 + $0x9e8] sm:$0xff]
    %v410 = vld [vmem:[%s1 + $0x9f0] sm:$0xff]
    %v411 = vld [vmem:[%s1 + $0x9f8] sm:$0xff]
    %v412 = vld [vmem:[%s1 + $0xa00] sm:$0xff]
    %v413 = vld [vmem:[%s1 + $0xa08] sm:$0xff]
    %v414 = vld [vmem:[%s1 + $0xa10] sm:$0xff]
    %v415 = vld [vmem:[%s1 + $0xa18] sm:$0xff]
    %v416 = vld [vmem:[%s1 + $0xa20] sm:$0xff]
    %v417 = vld [vmem:[%s1 + $0xa28] sm:$0xff]
    %v418 = vld [vmem:[%s1 + $0xa30] sm:$0xff]
    %v419 = vld [vmem:[%s1 + $0xa38] sm:$0xff]
    %v420 = vld [vmem:[%s1 + $0xa40] sm:$0xff]
    %v421 = vld [vmem:[%s1 + $0xa48] sm:$0xff]
    %v422 = vld [vmem:[%s1 + $0xa50] sm:$0xff]
    %v423 = vld [vmem:[%s1 + $0xa58] sm:$0xff]
    %v424 = vld [vmem:[%s1 + $0xa60] sm:$0xff]
    %v425 = vld [vmem:[%s1 + $0xa68] sm:$0xff]
    %v426 = vld [vmem:[%s1 + $0xa70] sm:$0xff]
    %v427 = vld [vmem:[%s1 + $0xa78] sm:$0xff]
    %v428 = vld [vmem:[%s1 + $0xa80] sm:$0xff]
    %v429 = vld [vmem:[%s1 + $0xa88] sm:$0xff]
    %v430 = vld [vmem:[%s1 + $0xa90] sm:$0xff]
    %v431 = vld [vmem:[%s1 + $0xa98] sm:$0xff]
    %v432 = vld [vmem:[%s1 + $0xaa0] sm:$0xff]
    %v433 = vld [vmem:[%s1 + $0xaa8] sm:$0xff]
    %v434 = vld [vmem:[%s1 + $0xab0] sm:$0xff]
    %v435 = vld [vmem:[%s1 + $0xab8] sm:$0xff]
    %v436 = vld [vmem:[%s1 + $0xac0] sm:$0xff]
    %v437 = vld [vmem:[%s1 + $0xac8] sm:$0xff]
    %v438 = vld [vmem:[%s1 + $0xad0] sm:$0xff]
    %v439 = vld [vmem:[%s1 + $0xad8] sm:$0xff]
    %v440 = vld [vmem:[%s1 + $0xae0] sm:$0xff]
    %v441 = vld [vmem:[%s1 + $0xae8] sm:$0xff]
    %v442 = vld [vmem:[%s1 + $0xaf0] sm:$0xff]
    %v443 = vld [vmem:[%s1 + $0xaf8] sm:$0xff]
    %v444 = vld [vmem:[%s1 + $0xb00] sm:$0xff]
    %v445 = vld [vmem:[%s1 + $0xb08] sm:$0xff]
    %v446 = vld [vmem:[%s1 + $0xb10] sm:$0xff]
    %v447 = vld [vmem:[%s1 + $0xb18] sm:$0xff]
    %v448 = vld [vmem:[%s1 + $0xb20] sm:$0xff]
    %v449 = vld [vmem:[%s1 + $0xb28] sm:$0xff]
    %v450 = vld [vmem:[%s1 + $0xb30] sm:$0xff]
    %v451 = vld [vmem:[%s1 + $0xb38] sm:$0xff]
    %v452 = vld [vmem:[%s1 + $0xb40] sm:$0xff]
    %v453 = vld [vmem:[%s1 + $0xb48] sm:$0xff]
    %v454 = vld [vmem:[%s1 + $0xb50] sm:$0xff]
    %v455 = vld [vmem:[%s1 + $0xb58] sm:$0xff]
    %v456 = vld [vmem:[%s1 + $0xb60] sm:$0xff]
    %v457 = vld [vmem:[%s1 + $0xb68] sm:$0xff]
    %v458 = vld [vmem:[%s1 + $0xb70] sm:$0xff]
    %v459 = vld [vmem:[%s1 + $0xb78] sm:$0xff]
    %v460 = vld [vmem:[%s1 + $0xb80] sm:$0xff]
    %v461 = vld [vmem:[%s1 + $0xb88] sm:$0xff]
    %v462 = vld [vmem:[%s1 + $0xb90] sm:$0xff]
    %v463 = vld [vmem:[%s1 + $0xb98] sm:$0xff]
    %v464 = vld [vmem:[%s1 + $0xba0] sm:$0xff]
    %v465 = vld [vmem:[%s1 + $0xba8] sm:$0xff]
    %v466 = vld [vmem:[%s1 + $0xbb0] sm:$0xff]
    %v467 = vld [vmem:[%s1 + $0xbb8] sm:$0xff]
    %v468 = vld [vmem:[%s1 + $0xbc0] sm:$0xff]
    %v469 = vld [vmem:[%s1 + $0xbc8] sm:$0xff]
    %v470 = vld [vmem:[%s1 + $0xbd0] sm:$0xff]
    %v471 = vld [vmem:[%s1 + $0xbd8] sm:$0xff]
    %v472 = vld [vmem:[%s1 + $0xbe0] sm:$0xff]
    %v473 = vld [vmem:[%s1 + $0xbe8] sm:$0xff]
    %v474 = vld [vmem:[%s1 + $0xbf0] sm:$0xff]
    %v475 = vld [vmem:[%s1 + $0xbf8] sm:$0xff]
    %v476 = vld [vmem:[%s1 + $0xc00] sm:$0xff]
    %v477 = vld [vmem:[%s1 + $0xc08] sm:$0xff]
    %v478 = vld [vmem:[%s1 + $0xc10] sm:$0xff]
    %v479 = vld [vmem:[%s1 + $0xc18] sm:$0xff]
    %v480 = vld [vmem:[%s1 + $0xc20] sm:$0xff]
    %v481 = vld [vmem:[%s1 + $0xc28] sm:$0xff]
    %v482 = vld [vmem:[%s1 + $0xc30] sm:$0xff]
    %v483 = vld [vmem:[%s1 + $0xc38] sm:$0xff]
    %v484 = vld [vmem:[%s1 + $0xc40] sm:$0xff]
    %v485 = vld [vmem:[%s1 + $0xc48] sm:$0xff]
    %v486 = vld [vmem:[%s1 + $0xc50] sm:$0xff]
    %v487 = vld [vmem:[%s1 + $0xc58] sm:$0xff]
    %v488 = vld [vmem:[%s1 + $0xc60] sm:$0xff]
    %v489 = vld [vmem:[%s1 + $0xc68] sm:$0xff]
    %v490 = vld [vmem:[%s1 + $0xc70] sm:$0xff]
    %v491 = vld [vmem:[%s1 + $0xc78] sm:$0xff]
    %v492 = vld [vmem:[%s1 + $0xc80] sm:$0xff]
    %v493 = vld [vmem:[%s1 + $0xc88] sm:$0xff]
    %v494 = vld [vmem:[%s1 + $0xc90] sm:$0xff]
    %v495 = vld [vmem:[%s1 + $0xc98] sm:$0xff]
    %v496 = vld [vmem:[%s1 + $0xca0] sm:$0xff]
    %v497 = vld [vmem:[%s1 + $0xca8] sm:$0xff]
    %v498 = vld [vmem:[%s1 + $0xcb0] sm:$0xff]
    %v499 = vld [vmem:[%s1 + $0xcb8] sm:$0xff]
    %v500 = vld [vmem:[%s1 + $0xcc0] sm:$0xff]
    %v501 = vld [vmem:[%s1 + $0xcc8] sm:$0xff]
    %v502 = vld [vmem:[%s1 + $0xcd0] sm:$0xff]
    %v503 = vld [vmem:[%s1 + $0xcd8] sm:$0xff]
    %v504 = vld [vmem:[%s1 + $0xce0] sm:$0xff]
    %v505 = vld [vmem:[%s1 + $0xce8] sm:$0xff]
    %v506 = vld [vmem:[%s1 + $0xcf0] sm:$0xff]
    %v507 = vld [vmem:[%s1 + $0xcf8] sm:$0xff]
    %v508 = vld [vmem:[%s1 + $0xd00] sm:$0xff]
    %v509 = vld [vmem:[%s1 + $0xd08] sm:$0xff]
    %v510 = vld [vmem:[%s1 + $0xd10] sm:$0xff]
    %v511 = vld [vmem:[%s1 + $0xd18] sm:$0xff]
    %v512 = vld [vmem:[%s1 + $0xd20] sm:$0xff]
    %v513 = vld [vmem:[%s1 + $0xd28] sm:$0xff]
    %v514 = vld [vmem:[%s1 + $0xd30] sm:$0xff]
    %v515 = vld [vmem:[%s1 + $0xd38] sm:$0xff]
    %v516 = vld [vmem:[%s1 + $0xd40] sm:$0xff]
    %v517 = vld [vmem:[%s1 + $0xd48] sm:$0xff]
    %v518 = vld [vmem:[%s1 + $0xd50] sm:$0xff]
    %v519 = vld [vmem:[%s1 + $0xd58] sm:$0xff]
    %v520 = vld [vmem:[%s1 + $0xd60] sm:$0xff]
    %v521 = vld [vmem:[%s1 + $0xd68] sm:$0xff]
    %v522 = vld [vmem:[%s1 + $0xd70] sm:$0xff]
    %v523 = vld [vmem:[%s1 + $0xd78] sm:$0xff]
    %v524 = vld [vmem:[%s1 + $0xd80] sm:$0xff]
    %v525 = vld [vmem:[%s1 + $0xd88] sm:$0xff]
    %v526 = vld [vmem:[%s1 + $0xd90] sm:$0xff]
    %v527 = vld [vmem:[%s1 + $0xd98] sm:$0xff]
    %v528 = vld [vmem:[%s1 + $0xda0] sm:$0xff]
    %v529 = vld [vmem:[%s1 + $0xda8] sm:$0xff]
    %v530 = vld [vmem:[%s1 + $0xdb0] sm:$0xff]
    %v531 = vld [vmem:[%s1 + $0xdb8] sm:$0xff]
    %v532 = vld [vmem:[%s1 + $0xdc0] sm:$0xff]
    %v533 = vld [vmem:[%s1 + $0xdc8] sm:$0xff]
    %v534 = vld [vmem:[%s1 + $0xdd0] sm:$0xff]
    %v535 = vld [vmem:[%s1 + $0xdd8] sm:$0xff]
    %v536 = vld [vmem:[%s1 + $0xde0] sm:$0xff]
    %v537 = vld [vmem:[%s1 + $0xde8] sm:$0xff]
    %v538 = vld [vmem:[%s1 + $0xdf0] sm:$0xff]
    %v539 = vld [vmem:[%s1 + $0xdf8] sm:$0xff]
    %v540 = vld [vmem:[%s1 + $0xe00] sm:$0xff]
    %v541 = vld [vmem:[%s1 + $0xe08] sm:$0xff]
    %v542 = vld [vmem:[%s1 + $0xe10] sm:$0xff]
    %v543 = vld [vmem:[%s1 + $0xe18] sm:$0xff]
    %v544 = vld [vmem:[%s1 + $0xe20] sm:$0xff]
    %v545 = vld [vmem:[%s1 + $0xe28] sm:$0xff]
    %v546 = vld [vmem:[%s1 + $0xe30] sm:$0xff]
    %v547 = vld [vmem:[%s1 + $0xe38] sm:$0xff]
    %v548 = vld [vmem:[%s1 + $0xe40] sm:$0xff]
    %v549 = vld [vmem:[%s1 + $0xe48] sm:$0xff]
    %v550 = vld [vmem:[%s1 + $0xe50] sm:$0xff]
    %v551 = vld [vmem:[%s1 + $0xe58] sm:$0xff]
    %v552 = vld [vmem:[%s1 + $0xe60] sm:$0xff]
    %v553 = vld [vmem:[%s1 + $0xe68] sm:$0xff]
    %v554 = vld [vmem:[%s1 + $0xe70] sm:$0xff]
    %v555 = vld [vmem:[%s1 + $0xe78] sm:$0xff]
    %v556 = vld [vmem:[%s1 + $0xe80] sm:$0xff]
    %v557 = vld [vmem:[%s1 + $0xe88] sm:$0xff]
    %v558 = vld [vmem:[%s1 + $0xe90] sm:$0xff]
    %v559 = vld [vmem:[%s1 + $0xe98] sm:$0xff]
    %v560 = vld [vmem:[%s1 + $0xea0] sm:$0xff]
    %v561 = vld [vmem:[%s1 + $0xea8] sm:$0xff]
    %v562 = vld [vmem:[%s1 + $0xeb0] sm:$0xff]
    %v563 = vld [vmem:[%s1 + $0xeb8] sm:$0xff]
    %v564 = vld [vmem:[%s1 + $0xec0] sm:$0xff]
    %v565 = vld [vmem:[%s1 + $0xec8] sm:$0xff]
    %v566 = vld [vmem:[%s1 + $0xed0] sm:$0xff]
    %v567 = vld [vmem:[%s1 + $0xed8] sm:$0xff]
    %v568 = vld [vmem:[%s1 + $0xee0] sm:$0xff]
    %v569 = vld [vmem:[%s1 + $0xee8] sm:$0xff]
    %v570 = vld [vmem:[%s1 + $0xef0] sm:$0xff]
    %v571 = vld [vmem:[%s1 + $0xef8] sm:$0xff]
    %v572 = vld [vmem:[%s1 + $0xf00] sm:$0xff]
    %v573 = vld [vmem:[%s1 + $0xf08] sm:$0xff]
    %v574 = vld [vmem:[%s1 + $0xf10] sm:$0xff]
    %v575 = vld [vmem:[%s1 + $0xf18] sm:$0xff]
    %v576 = vld [vmem:[%s1 + $0xf20] sm:$0xff]
    %v577 = vld [vmem:[%s1 + $0xf28] sm:$0xff]
    %v578 = vld [vmem:[%s1 + $0xf30] sm:$0xff]
    %v579 = vld [vmem:[%s1 + $0xf38] sm:$0xff]
    %v580 = vld [vmem:[%s1 + $0xf40] sm:$0xff]
    %v581 = vld [vmem:[%s1 + $0xf48] sm:$0xff]
    %v582 = vld [vmem:[%s1 + $0xf50] sm:$0xff]
    %v583 = vld [vmem:[%s1 + $0xf58] sm:$0xff]
    %v584 = vld [vmem:[%s1 + $0xf60] sm:$0xff]
    %v585 = vld [vmem:[%s1 + $0xf68] sm:$0xff]
    %v586 = vld [vmem:[%s1 + $0xf70] sm:$0xff]
    %v587 = vld [vmem:[%s1 + $0xf78] sm:$0xff]
    %v588 = vld [vmem:[%s1 + $0xf80] sm:$0xff]
    %v589 = vld [vmem:[%s1 + $0xf88] sm:$0xff]
    %v590 = vld [vmem:[%s1 + $0xf90] sm:$0xff]
    %v591 = vld [vmem:[%s1 + $0xf98] sm:$0xff]
    %v592 = vld [vmem:[%s1 + $0xfa0] sm:$0xff]
    %v593 = vld [vmem:[%s1 + $0xfa8] sm:$0xff]
    %v594 = vld [vmem:[%s1 + $0xfb0] sm:$0xff]
    %v595 = vld [vmem:[%s1 + $0xfb8] sm:$0xff]
    %v596 = vld [vmem:[%s1 + $0xfc0] sm:$0xff]
    %v597 = vld [vmem:[%s1 + $0xfc8] sm:$0xff]
    %v598 = vld [vmem:[%s1 + $0xfd0] sm:$0xff]
    %v599 = vld [vmem:[%s1 + $0xfd8] sm:$0xff]
    %v600 = vld [vmem:[%s1 + $0xfe0] sm:$0xff]
    %v601 = vld [vmem:[%s1 + $0xfe8] sm:$0xff]
    %v602 = vld [vmem:[%s1 + $0xff0] sm:$0xff]
    %v603 = vld [vmem:[%s1 + $0xff8] sm:$0xff]
    %v604 = vld [vmem:[%s1 + $0x1000] sm:$0xff]
    %v605 = vld [vmem:[%s1 + $0x1008] sm:$0xff]
    %v606 = vld [vmem:[%s1 + $0x1010] sm:$0xff]
    %v607 = vld [vmem:[%s1 + $0x1018] sm:$0xff]
    %v608 = vld [vmem:[%s1 + $0x1020] sm:$0xff]
    %v609 = vld [vmem:[%s1 + $0x1028] sm:$0xff]
    %v610 = vld [vmem:[%s1 + $0x1030] sm:$0xff]
    %v611 = vld [vmem:[%s1 + $0x1038] sm:$0xff]
    %v612 = vld [vmem:[%s1 + $0x1040] sm:$0xff]
    %v613 = vld [vmem:[%s1 + $0x1048] sm:$0xff]
    %v614 = vld [vmem:[%s1 + $0x1050] sm:$0xff]
    %v615 = vld [vmem:[%s1 + $0x1058] sm:$0xff]
    %v616 = vld [vmem:[%s1 + $0x1060] sm:$0xff]
    %v617 = vld [vmem:[%s1 + $0x1068] sm:$0xff]
    %v618 = vld [vmem:[%s1 + $0x1070] sm:$0xff]
    %v619 = vld [vmem:[%s1 + $0x1078] sm:$0xff]
    %v620 = vld [vmem:[%s1 + $0x1080] sm:$0xff]
    %v621 = vld [vmem:[%s1 + $0x1088] sm:$0xff]
    %v622 = vld [vmem:[%s1 + $0x1090] sm:$0xff]
    %v623 = vld [vmem:[%s1 + $0x1098] sm:$0xff]
    %v624 = vld [vmem:[%s1 + $0x10a0] sm:$0xff]
    %v625 = vld [vmem:[%s1 + $0x10a8] sm:$0xff]
    %v626 = vld [vmem:[%s1 + $0x10b0] sm:$0xff]
    %v627 = vld [vmem:[%s1 + $0x10b8] sm:$0xff]
    %v628 = vld [vmem:[%s1 + $0x10c0] sm:$0xff]
    %v629 = vld [vmem:[%s1 + $0x10c8] sm:$0xff]
    %v630 = vld [vmem:[%s1 + $0x10d0] sm:$0xff]
    %v631 = vld [vmem:[%s1 + $0x10d8] sm:$0xff]
    %v632 = vld [vmem:[%s1 + $0x10e0] sm:$0xff]
    %v633 = vld [vmem:[%s1 + $0x10e8] sm:$0xff]
    %v634 = vld [vmem:[%s1 + $0x10f0] sm:$0xff]
    %v635 = vld [vmem:[%s1 + $0x10f8] sm:$0xff]
    %v636 = vld [vmem:[%s1 + $0x1100] sm:$0xff]
    %v637 = vld [vmem:[%s1 + $0x1108] sm:$0xff]
    %v638 = vld [vmem:[%s1 + $0x1110] sm:$0xff]
    %v639 = vld [vmem:[%s1 + $0x1118] sm:$0xff]
    %v640 = vld [vmem:[%s1 + $0x1120] sm:$0xff]
    %v641 = vld [vmem:[%s1 + $0x1128] sm:$0xff]
    %v642 = vld [vmem:[%s1 + $0x1130] sm:$0xff]
    %v643 = vld [vmem:[%s1 + $0x1138] sm:$0xff]
    %v644 = vld [vmem:[%s1 + $0x1140] sm:$0xff]
    %v645 = vld [vmem:[%s1 + $0x1148] sm:$0xff]
    %v646 = vld [vmem:[%s1 + $0x1150] sm:$0xff]
    %v647 = vld [vmem:[%s1 + $0x1158] sm:$0xff]
    %v648 = vld [vmem:[%s1 + $0x1160] sm:$0xff]
    %v649 = vld [vmem:[%s1 + $0x1168] sm:$0xff]
    %v650 = vld [vmem:[%s1 + $0x1170] sm:$0xff]
    %v651 = vld [vmem:[%s1 + $0x1178] sm:$0xff]
    %v652 = vld [vmem:[%s1 + $0x1180] sm:$0xff]
    %v653 = vld [vmem:[%s1 + $0x1188] sm:$0xff]
    %v654 = vld [vmem:[%s1 + $0x1190] sm:$0xff]
    %v655 = vld [vmem:[%s1 + $0x1198] sm:$0xff]
    %v656 = vld [vmem:[%s1 + $0x11a0] sm:$0xff]
    %v657 = vld [vmem:[%s1 + $0x11a8] sm:$0xff]
    %v658 = vld [vmem:[%s1 + $0x11b0] sm:$0xff]
    %v659 = vld [vmem:[%s1 + $0x11b8] sm:$0xff]
    %v660 = vld [vmem:[%s1 + $0x11c0] sm:$0xff]
    %v661 = vld [vmem:[%s1 + $0x11c8] sm:$0xff]
    %v662 = vld [vmem:[%s1 + $0x11d0] sm:$0xff]
    %v663 = vld [vmem:[%s1 + $0x11d8] sm:$0xff]
    %v664 = vld [vmem:[%s1 + $0x11e0] sm:$0xff]
    %v665 = vld [vmem:[%s1 + $0x11e8] sm:$0xff]
    %v666 = vld [vmem:[%s1 + $0x11f0] sm:$0xff]
    %v667 = vld [vmem:[%s1 + $0x11f8] sm:$0xff]
    %v668 = vld [vmem:[%s1 + $0x1200] sm:$0xff]
    %v669 = vld [vmem:[%s1 + $0x1208] sm:$0xff]
    %v670 = vld [vmem:[%s1 + $0x1210] sm:$0xff]
    %v671 = vld [vmem:[%s1 + $0x1218] sm:$0xff]
    %v672 = vld [vmem:[%s1 + $0x1220] sm:$0xff]
    %v673 = vld [vmem:[%s1 + $0x1228] sm:$0xff]
    %v674 = vld [vmem:[%s1 + $0x1230] sm:$0xff]
    %v675 = vld [vmem:[%s1 + $0x1238] sm:$0xff]
    %v676 = vld [vmem:[%s1 + $0x1240] sm:$0xff]
    %v677 = vld [vmem:[%s1 + $0x1248] sm:$0xff]
    %v678 = vld [vmem:[%s1 + $0x1250] sm:$0xff]
    %v679 = vld [vmem:[%s1 + $0x1258] sm:$0xff]
    %v680 = vld [vmem:[%s1 + $0x1260] sm:$0xff]
    %v681 = vld [vmem:[%s1 + $0x1268] sm:$0xff]
    %v682 = vld [vmem:[%s1 + $0x1270] sm:$0xff]
    %v683 = vld [vmem:[%s1 + $0x1278] sm:$0xff]
    %v684 = vld [vmem:[%s1 + $0x1280] sm:$0xff]
    %v685 = vld [vmem:[%s1 + $0x1288] sm:$0xff]
    %v686 = vld [vmem:[%s1 + $0x1290] sm:$0xff]
    %v687 = vld [vmem:[%s1 + $0x1298] sm:$0xff]
    %v688 = vld [vmem:[%s1 + $0x12a0] sm:$0xff]
    %v689 = vld [vmem:[%s1 + $0x12a8] sm:$0xff]
    %v690 = vld [vmem:[%s1 + $0x12b0] sm:$0xff]
    %v691 = vld [vmem:[%s1 + $0x12b8] sm:$0xff]
    %v692 = vld [vmem:[%s1 + $0x12c0] sm:$0xff]
    %v693 = vld [vmem:[%s1 + $0x12c8] sm:$0xff]
    %v694 = vld [vmem:[%s1 + $0x12d0] sm:$0xff]
    %v695 = vld [vmem:[%s1 + $0x12d8] sm:$0xff]
    %v696 = vld [vmem:[%s1 + $0x12e0] sm:$0xff]
    %v697 = vld [vmem:[%s1 + $0x12e8] sm:$0xff]
    %v698 = vld [vmem:[%s1 + $0x12f0] sm:$0xff]
    %v699 = vld [vmem:[%s1 + $0x12f8] sm:$0xff]
    %v700 = vld [vmem:[%s1 + $0x1300] sm:$0xff]
    %v701 = vld [vmem:[%s1 + $0x1308] sm:$0xff]
    %v702 = vld [vmem:[%s1 + $0x1310] sm:$0xff]
    %v703 = vld [vmem:[%s1 + $0x1318] sm:$0xff]
    %v704 = vld [vmem:[%s1 + $0x1320] sm:$0xff]
    %v705 = vld [vmem:[%s1 + $0x1328] sm:$0xff]
    %v706 = vld [vmem:[%s1 + $0x1330] sm:$0xff]
    %v707 = vld [vmem:[%s1 + $0x1338] sm:$0xff]
    %v708 = vld [vmem:[%s1 + $0x1340] sm:$0xff]
    %v709 = vld [vmem:[%s1 + $0x1348] sm:$0xff]
    %v710 = vld [vmem:[%s1 + $0x1350] sm:$0xff]
    %v711 = vld [vmem:[%s1 + $0x1358] sm:$0xff]
    %v712 = vld [vmem:[%s1 + $0x1360] sm:$0xff]
    %v713 = vld [vmem:[%s1 + $0x1368] sm:$0xff]
    %v714 = vld [vmem:[%s1 + $0x1370] sm:$0xff]
    %v715 = vld [vmem:[%s1 + $0x1378] sm:$0xff]
    %v716 = vld [vmem:[%s1 + $0x1380] sm:$0xff]
    %v717 = vld [vmem:[%s1 + $0x1388] sm:$0xff]
    %v718 = vld [vmem:[%s1 + $0x1390] sm:$0xff]
    %v719 = vld [vmem:[%s1 + $0x1398] sm:$0xff]
    %v720 = vld [vmem:[%s1 + $0x13a0] sm:$0xff]
    %v721 = vld [vmem:[%s1 + $0x13a8] sm:$0xff]
    %v722 = vld [vmem:[%s1 + $0x13b0] sm:$0xff]
    %v723 = vld [vmem:[%s1 + $0x13b8] sm:$0xff]
    %v724 = vld [vmem:[%s1 + $0x13c0] sm:$0xff]
    %v725 = vld [vmem:[%s1 + $0x13c8] sm:$0xff]
    %v726 = vld [vmem:[%s1 + $0x13d0] sm:$0xff]
    %v727 = vld [vmem:[%s1 + $0x13d8] sm:$0xff]
    %v728 = vld [vmem:[%s1 + $0x13e0] sm:$0xff]
    %v729 = vld [vmem:[%s1 + $0x13e8] sm:$0xff]
    %v730 = vld [vmem:[%s1 + $0x13f0] sm:$0xff]
    %v731 = vld [vmem:[%s1 + $0x13f8] sm:$0xff]
    %v732 = vld [vmem:[%s1 + $0x1400] sm:$0xff]
    %v733 = vld [vmem:[%s1 + $0x1408] sm:$0xff]
    %v734 = vld [vmem:[%s1 + $0x1410] sm:$0xff]
    %v735 = vld [vmem:[%s1 + $0x1418] sm:$0xff]
    %v736 = vld [vmem:[%s1 + $0x1420] sm:$0xff]
    %v737 = vld [vmem:[%s1 + $0x1428] sm:$0xff]
    %v738 = vld [vmem:[%s1 + $0x1430] sm:$0xff]
    %v739 = vld [vmem:[%s1 + $0x1438] sm:$0xff]
    %v740 = vld [vmem:[%s1 + $0x1440] sm:$0xff]
    %v741 = vld [vmem:[%s1 + $0x1448] sm:$0xff]
    %v742 = vld [vmem:[%s1 + $0x1450] sm:$0xff]
    %v743 = vld [vmem:[%s1 + $0x1458] sm:$0xff]
    %v744 = vld [vmem:[%s1 + $0x1460] sm:$0xff]
    %v745 = vld [vmem:[%s1 + $0x1468] sm:$0xff]
    %v746 = vld [vmem:[%s1 + $0x1470] sm:$0xff]
    %v747 = vld [vmem:[%s1 + $0x1478] sm:$0xff]
    %v748 = vld [vmem:[%s1 + $0x1480] sm:$0xff]
    %v749 = vld [vmem:[%s1 + $0x1488] sm:$0xff]
    %v750 = vld [vmem:[%s1 + $0x1490] sm:$0xff]
    %v751 = vld [vmem:[%s1 + $0x1498] sm:$0xff]
    %v752 = vld [vmem:[%s1 + $0x14a0] sm:$0xff]
    %v753 = vld [vmem:[%s1 + $0x14a8] sm:$0xff]
    %v754 = vld [vmem:[%s1 + $0x14b0] sm:$0xff]
    %v755 = vld [vmem:[%s1 + $0x14b8] sm:$0xff]
    %v756 = vld [vmem:[%s1 + $0x14c0] sm:$0xff]
    %v757 = vld [vmem:[%s1 + $0x14c8] sm:$0xff]
    %v758 = vld [vmem:[%s1 + $0x14d0] sm:$0xff]
    %v759 = vld [vmem:[%s1 + $0x14d8] sm:$0xff]
    %v760 = vld [vmem:[%s1 + $0x14e0] sm:$0xff]
    %v761 = vld [vmem:[%s1 + $0x14e8] sm:$0xff]
    %v762 = vld [vmem:[%s1 + $0x14f0] sm:$0xff]
    %v763 = vld [vmem:[%s1 + $0x14f8] sm:$0xff]
    %v764 = vld [vmem:[%s1 + $0x1500] sm:$0xff]
    %v765 = vld [vmem:[%s1 + $0x1508] sm:$0xff]
    %v766 = vld [vmem:[%s1 + $0x1510] sm:$0xff]
    %v767 = vld [vmem:[%s1 + $0x1518] sm:$0xff]
    %v768 = vld [vmem:[%s1 + $0x1520] sm:$0xff]
    %v769 = vld [vmem:[%s1 + $0x1528] sm:$0xff]
    %v770 = vld [vmem:[%s1 + $0x1530] sm:$0xff]
    %v771 = vld [vmem:[%s1 + $0x1538] sm:$0xff]
    %v772 = vld [vmem:[%s1 + $0x1540] sm:$0xff]
    %v773 = vld [vmem:[%s1 + $0x1548] sm:$0xff]
    %v774 = vld [vmem:[%s1 + $0x1550] sm:$0xff]
    %v775 = vld [vmem:[%s1 + $0x1558] sm:$0xff]
    %v776 = vld [vmem:[%s1 + $0x1560] sm:$0xff]
    %v777 = vld [vmem:[%s1 + $0x1568] sm:$0xff]
    %v778 = vld [vmem:[%s1 + $0x1570] sm:$0xff]
    %v779 = vld [vmem:[%s1 + $0x1578] sm:$0xff]
    %v780 = vld [vmem:[%s1 + $0x1580] sm:$0xff]
    %v781 = vld [vmem:[%s1 + $0x1588] sm:$0xff]
    %v782 = vld [vmem:[%s1 + $0x1590] sm:$0xff]
    %v783 = vld [vmem:[%s1 + $0x1598] sm:$0xff]
    %v784 = vld [vmem:[%s1 + $0x15a0] sm:$0xff]
    %v785 = vld [vmem:[%s1 + $0x15a8] sm:$0xff]
    %v786 = vld [vmem:[%s1 + $0x15b0] sm:$0xff]
    %v787 = vld [vmem:[%s1 + $0x15b8] sm:$0xff]
    %v788 = vld [vmem:[%s1 + $0x15c0] sm:$0xff]
    %v789 = vld [vmem:[%s1 + $0x15c8] sm:$0xff]
    %v790 = vld [vmem:[%s1 + $0x15d0] sm:$0xff]
    %v791 = vld [vmem:[%s1 + $0x15d8] sm:$0xff]
    %v792 = vld [vmem:[%s1 + $0x15e0] sm:$0xff]
    %v793 = vld [vmem:[%s1 + $0x15e8] sm:$0xff]
    %v794 = vld [vmem:[%s1 + $0x15f0] sm:$0xff]
    %v795 = vld [vmem:[%s1 + $0x15f8] sm:$0xff]
    %v796 = vld [vmem:[%s1 + $0x1600] sm:$0xff]
    %v797 = vld [vmem:[%s1 + $0x1608] sm:$0xff]
    %v798 = vld [vmem:[%s1 + $0x1610] sm:$0xff]
    %v799 = vld [vmem:[%s1 + $0x1618] sm:$0xff]
    %v800 = vld [vmem:[%s1 + $0x1620] sm:$0xff]
    %v801 = vld [vmem:[%s1 + $0x1628] sm:$0xff]
    %v802 = vld [vmem:[%s1 + $0x1630] sm:$0xff]
    %v803 = vld [vmem:[%s1 + $0x1638] sm:$0xff]
    %v804 = vld [vmem:[%s1 + $0x1640] sm:$0xff]
    %v805 = vld [vmem:[%s1 + $0x1648] sm:$0xff]
    %v806 = vld [vmem:[%s1 + $0x1650] sm:$0xff]
    %v807 = vld [vmem:[%s1 + $0x1658] sm:$0xff]
    %v808 = vld [vmem:[%s1 + $0x1660] sm:$0xff]
    %v809 = vld [vmem:[%s1 + $0x1668] sm:$0xff]
    %v810 = vld [vmem:[%s1 + $0x1670] sm:$0xff]
    %v811 = vld [vmem:[%s1 + $0x1678] sm:$0xff]
    %v812 = vld [vmem:[%s1 + $0x1680] sm:$0xff]
    %v813 = vld [vmem:[%s1 + $0x1688] sm:$0xff]
    %v814 = vld [vmem:[%s1 + $0x1690] sm:$0xff]
    %v815 = vld [vmem:[%s1 + $0x1698] sm:$0xff]
    %v816 = vld [vmem:[%s1 + $0x16a0] sm:$0xff]
    %v817 = vld [vmem:[%s1 + $0x16a8] sm:$0xff]
    %v818 = vld [vmem:[%s1 + $0x16b0] sm:$0xff]
    %v819 = vld [vmem:[%s1 + $0x16b8] sm:$0xff]
    %v820 = vld [vmem:[%s1 + $0x16c0] sm:$0xff]
    %v821 = vld [vmem:[%s1 + $0x16c8] sm:$0xff]
    %v822 = vld [vmem:[%s1 + $0x16d0] sm:$0xff]
    %v823 = vld [vmem:[%s1 + $0x16d8] sm:$0xff]
    %v824 = vld [vmem:[%s1 + $0x16e0] sm:$0xff]
    %v825 = vld [vmem:[%s1 + $0x16e8] sm:$0xff]
    %v826 = vld [vmem:[%s1 + $0x16f0] sm:$0xff]
    %v827 = vld [vmem:[%s1 + $0x16f8] sm:$0xff]
    %v828 = vld [vmem:[%s1 + $0x1700] sm:$0xff]
    %v829 = vld [vmem:[%s1 + $0x1708] sm:$0xff]
    %v830 = vld [vmem:[%s1 + $0x1710] sm:$0xff]
    %v831 = vld [vmem:[%s1 + $0x1718] sm:$0xff]
    %v832 = vld [vmem:[%s1 + $0x1720] sm:$0xff]
    %v833 = vld [vmem:[%s1 + $0x1728] sm:$0xff]
    %v834 = vld [vmem:[%s1 + $0x1730] sm:$0xff]
    %v835 = vld [vmem:[%s1 + $0x1738] sm:$0xff]
    %v836 = vld [vmem:[%s1 + $0x1740] sm:$0xff]
    %v837 = vld [vmem:[%s1 + $0x1748] sm:$0xff]
    %v838 = vld [vmem:[%s1 + $0x1750] sm:$0xff]
    %v839 = vld [vmem:[%s1 + $0x1758] sm:$0xff]
    %v840 = vld [vmem:[%s1 + $0x1760] sm:$0xff]
    %v841 = vld [vmem:[%s1 + $0x1768] sm:$0xff]
    %v842 = vld [vmem:[%s1 + $0x1770] sm:$0xff]
    %v843 = vld [vmem:[%s1 + $0x1778] sm:$0xff]
    %v844 = vld [vmem:[%s1 + $0x1780] sm:$0xff]
    %v845 = vld [vmem:[%s1 + $0x1788] sm:$0xff]
    %v846 = vld [vmem:[%s1 + $0x1790] sm:$0xff]
    %v847 = vld [vmem:[%s1 + $0x1798] sm:$0xff]
    %v848 = vld [vmem:[%s1 + $0x17a0] sm:$0xff]
    %v849 = vld [vmem:[%s1 + $0x17a8] sm:$0xff]
    %v850 = vld [vmem:[%s1 + $0x17b0] sm:$0xff]
    %v851 = vld [vmem:[%s1 + $0x17b8] sm:$0xff]
    %v852 = vld [vmem:[%s1 + $0x17c0] sm:$0xff]
    %v853 = vld [vmem:[%s1 + $0x17c8] sm:$0xff]
    %v854 = vld [vmem:[%s1 + $0x17d0] sm:$0xff]
    %v855 = vld [vmem:[%s1 + $0x17d8] sm:$0xff]
    %v856 = vld [vmem:[%s1 + $0x17e0] sm:$0xff]
    %v857 = vld [vmem:[%s1 + $0x17e8] sm:$0xff]
    %v858 = vld [vmem:[%s1 + $0x17f0] sm:$0xff]
    %v859 = vld [vmem:[%s1 + $0x17f8] sm:$0xff]
    %v860 = vld [vmem:[%s1 + $0x1800] sm:$0xff]
    %v861 = vld [vmem:[%s1 + $0x1808] sm:$0xff]
    %v862 = vld [vmem:[%s1 + $0x1810] sm:$0xff]
    %v863 = vld [vmem:[%s1 + $0x1818] sm:$0xff]
    %v864 = vld [vmem:[%s1 + $0x1820] sm:$0xff]
    %v865 = vld [vmem:[%s1 + $0x1828] sm:$0xff]
    %v866 = vld [vmem:[%s1 + $0x1830] sm:$0xff]
    %v867 = vld [vmem:[%s1 + $0x1838] sm:$0xff]
    %v868 = vld [vmem:[%s1 + $0x1840] sm:$0xff]
    %v869 = vld [vmem:[%s1 + $0x1848] sm:$0xff]
    %v870 = vld [vmem:[%s1 + $0x1850] sm:$0xff]
    %v871 = vld [vmem:[%s1 + $0x1858] sm:$0xff]
    %v872 = vld [vmem:[%s1 + $0x1860] sm:$0xff]
    %v873 = vld [vmem:[%s1 + $0x1868] sm:$0xff]
    %v874 = vld [vmem:[%s1 + $0x1870] sm:$0xff]
    %v875 = vld [vmem:[%s1 + $0x1878] sm:$0xff]
    %v876 = vld [vmem:[%s1 + $0x1880] sm:$0xff]
    %v877 = vld [vmem:[%s1 + $0x1888] sm:$0xff]
    %v878 = vld [vmem:[%s1 + $0x1890] sm:$0xff]
    %v879 = vld [vmem:[%s1 + $0x1898] sm:$0xff]
    %v880 = vld [vmem:[%s1 + $0x18a0] sm:$0xff]
    %v881 = vld [vmem:[%s1 + $0x18a8] sm:$0xff]
    %v882 = vld [vmem:[%s1 + $0x18b0] sm:$0xff]
    %v883 = vld [vmem:[%s1 + $0x18b8] sm:$0xff]
    %v884 = vld [vmem:[%s1 + $0x18c0] sm:$0xff]
    %v885 = vld [vmem:[%s1 + $0x18c8] sm:$0xff]
    %v886 = vld [vmem:[%s1 + $0x18d0] sm:$0xff]
    %v887 = vld [vmem:[%s1 + $0x18d8] sm:$0xff]
    %v888 = vld [vmem:[%s1 + $0x18e0] sm:$0xff]
    %v889 = vld [vmem:[%s1 + $0x18e8] sm:$0xff]
    %v890 = vld [vmem:[%s1 + $0x18f0] sm:$0xff]
    %v891 = vld [vmem:[%s1 + $0x18f8] sm:$0xff]
    %v892 = vld [vmem:[%s1 + $0x1900] sm:$0xff]
    %v893 = vld [vmem:[%s1 + $0x1908] sm:$0xff]
    %v894 = vld [vmem:[%s1 + $0x1910] sm:$0xff]
    %v895 = vld [vmem:[%s1 + $0x1918] sm:$0xff]
    %v896 = vld [vmem:[%s1 + $0x1920] sm:$0xff]
    %v897 = vld [vmem:[%s1 + $0x1928] sm:$0xff]
    %v898 = vld [vmem:[%s1 + $0x1930] sm:$0xff]
    %v899 = vld [vmem:[%s1 + $0x1938] sm:$0xff]
    %v900 = vld [vmem:[%s1 + $0x1940] sm:$0xff]
    %v901 = vld [vmem:[%s1 + $0x1948] sm:$0xff]
    %v902 = vld [vmem:[%s1 + $0x1950] sm:$0xff]
    %v903 = vld [vmem:[%s1 + $0x1958] sm:$0xff]
    %v904 = vld [vmem:[%s1 + $0x1960] sm:$0xff]
    %v905 = vld [vmem:[%s1 + $0x1968] sm:$0xff]
    %v906 = vld [vmem:[%s1 + $0x1970] sm:$0xff]
    %v907 = vld [vmem:[%s1 + $0x1978] sm:$0xff]
    %v908 = vld [vmem:[%s1 + $0x1980] sm:$0xff]
    %v909 = vld [vmem:[%s1 + $0x1988] sm:$0xff]
    %v910 = vld [vmem:[%s1 + $0x1990] sm:$0xff]
    %v911 = vld [vmem:[%s1 + $0x1998] sm:$0xff]
    %v912 = vld [vmem:[%s1 + $0x19a0] sm:$0xff]
    %v913 = vld [vmem:[%s1 + $0x19a8] sm:$0xff]
    %v914 = vld [vmem:[%s1 + $0x19b0] sm:$0xff]
    %v915 = vld [vmem:[%s1 + $0x19b8] sm:$0xff]
    %v916 = vld [vmem:[%s1 + $0x19c0] sm:$0xff]
    %v917 = vld [vmem:[%s1 + $0x19c8] sm:$0xff]
    %v918 = vld [vmem:[%s1 + $0x19d0] sm:$0xff]
    %v919 = vld [vmem:[%s1 + $0x19d8] sm:$0xff]
    %v920 = vld [vmem:[%s1 + $0x19e0] sm:$0xff]
    %v921 = vld [vmem:[%s1 + $0x19e8] sm:$0xff]
    %v922 = vld [vmem:[%s1 + $0x19f0] sm:$0xff]
    %v923 = vld [vmem:[%s1 + $0x19f8] sm:$0xff]
    %v924 = vld [vmem:[%s1 + $0x1a00] sm:$0xff]
    %v925 = vld [vmem:[%s1 + $0x1a08] sm:$0xff]
    %v926 = vld [vmem:[%s1 + $0x1a10] sm:$0xff]
    %v927 = vld [vmem:[%s1 + $0x1a18] sm:$0xff]
    %v928 = vld [vmem:[%s1 + $0x1a20] sm:$0xff]
    %v929 = vld [vmem:[%s1 + $0x1a28] sm:$0xff]
    %v930 = vld [vmem:[%s1 + $0x1a30] sm:$0xff]
    %v931 = vld [vmem:[%s1 + $0x1a38] sm:$0xff]
    %v932 = vld [vmem:[%s1 + $0x1a40] sm:$0xff]
    %v933 = vld [vmem:[%s1 + $0x1a48] sm:$0xff]
    %v934 = vld [vmem:[%s1 + $0x1a50] sm:$0xff]
    %v935 = vld [vmem:[%s1 + $0x1a58] sm:$0xff]
    %v936 = vld [vmem:[%s1 + $0x1a60] sm:$0xff]
    %v937 = vld [vmem:[%s1 + $0x1a68] sm:$0xff]
    %v938 = vld [vmem:[%s1 + $0x1a70] sm:$0xff]
    %v939 = vld [vmem:[%s1 + $0x1a78] sm:$0xff]
    %v940 = vld [vmem:[%s1 + $0x1a80] sm:$0xff]
    %v941 = vld [vmem:[%s1 + $0x1a88] sm:$0xff]
    %v942 = vld [vmem:[%s1 + $0x1a90] sm:$0xff]
    %v943 = vld [vmem:[%s1 + $0x1a98] sm:$0xff]
    %v944 = vld [vmem:[%s1 + $0x1aa0] sm:$0xff]
    %v945 = vld [vmem:[%s1 + $0x1aa8] sm:$0xff]
    %v946 = vld [vmem:[%s1 + $0x1ab0] sm:$0xff]
    %v947 = vld [vmem:[%s1 + $0x1ab8] sm:$0xff]
    %v948 = vld [vmem:[%s1 + $0x1ac0] sm:$0xff]
    %v949 = vld [vmem:[%s1 + $0x1ac8] sm:$0xff]
    %v950 = vld [vmem:[%s1 + $0x1ad0] sm:$0xff]
    %v951 = vld [vmem:[%s1 + $0x1ad8] sm:$0xff]
    %v952 = vld [vmem:[%s1 + $0x1ae0] sm:$0xff]
    %v953 = vld [vmem:[%s1 + $0x1ae8] sm:$0xff]
    %v954 = vld [vmem:[%s1 + $0x1af0] sm:$0xff]
    %v955 = vld [vmem:[%s1 + $0x1af8] sm:$0xff]
    %v956 = vld [vmem:[%s1 + $0x1b00] sm:$0xff]
    %v957 = vld [vmem:[%s1 + $0x1b08] sm:$0xff]
    %v958 = vld [vmem:[%s1 + $0x1b10] sm:$0xff]
    %v959 = vld [vmem:[%s1 + $0x1b18] sm:$0xff]
    %v960 = vld [vmem:[%s1 + $0x1b20] sm:$0xff]
    %v961 = vld [vmem:[%s1 + $0x1b28] sm:$0xff]
    %v962 = vld [vmem:[%s1 + $0x1b30] sm:$0xff]
    %v963 = vld [vmem:[%s1 + $0x1b38] sm:$0xff]
    %v964 = vld [vmem:[%s1 + $0x1b40] sm:$0xff]
    %v965 = vld [vmem:[%s1 + $0x1b48] sm:$0xff]
    %v966 = vld [vmem:[%s1 + $0x1b50] sm:$0xff]
    %v967 = vld [vmem:[%s1 + $0x1b58] sm:$0xff]
    %v968 = vld [vmem:[%s1 + $0x1b60] sm:$0xff]
    %v969 = vld [vmem:[%s1 + $0x1b68] sm:$0xff]
    %v970 = vld [vmem:[%s1 + $0x1b70] sm:$0xff]
    %v971 = vld [vmem:[%s1 + $0x1b78] sm:$0xff]
    %v972 = vld [vmem:[%s1 + $0x1b80] sm:$0xff]
    %v973 = vld [vmem:[%s1 + $0x1b88] sm:$0xff]
    %v974 = vld [vmem:[%s1 + $0x1b90] sm:$0xff]
    %v975 = vld [vmem:[%s1 + $0x1b98] sm:$0xff]
    %v976 = vld [vmem:[%s1 + $0x1ba0] sm:$0xff]
    %v977 = vld [vmem:[%s1 + $0x1ba8] sm:$0xff]
    %v978 = vld [vmem:[%s1 + $0x1bb0] sm:$0xff]
    %v979 = vld [vmem:[%s1 + $0x1bb8] sm:$0xff]
    %v980 = vld [vmem:[%s1 + $0x1bc0] sm:$0xff]
    %v981 = vld [vmem:[%s1 + $0x1bc8] sm:$0xff]
    %v982 = vld [vmem:[%s1 + $0x1bd0] sm:$0xff]
    %v983 = vld [vmem:[%s1 + $0x1bd8] sm:$0xff]
    %v984 = vld [vmem:[%s1 + $0x1be0] sm:$0xff]
    %v985 = vld [vmem:[%s1 + $0x1be8] sm:$0xff]
    %v986 = vld [vmem:[%s1 + $0x1bf0] sm:$0xff]
    %v987 = vld [vmem:[%s1 + $0x1bf8] sm:$0xff]
    %v988 = vld [vmem:[%s1 + $0x1c00] sm:$0xff]
    %v989 = vld [vmem:[%s1 + $0x1c08] sm:$0xff]
    %v990 = vld [vmem:[%s1 + $0x1c10] sm:$0xff]
    %v991 = vld [vmem:[%s1 + $0x1c18] sm:$0xff]
    %v992 = vld [vmem:[%s1 + $0x1c20] sm:$0xff]
    %v993 = vld [vmem:[%s1 + $0x1c28] sm:$0xff]
    %v994 = vld [vmem:[%s1 + $0x1c30] sm:$0xff]
    %v995 = vld [vmem:[%s1 + $0x1c38] sm:$0xff]
    %v996 = vld [vmem:[%s1 + $0x1c40] sm:$0xff]
    %v997 = vld [vmem:[%s1 + $0x1c48] sm:$0xff]
    %v998 = vld [vmem:[%s1 + $0x1c50] sm:$0xff]
    %v999 = vld [vmem:[%s1 + $0x1c58] sm:$0xff]
    %v1000 = vld [vmem:[%s1 + $0x1c60] sm:$0xff]
    %v1001 = vld [vmem:[%s1 + $0x1c68] sm:$0xff]
    %v1002 = vld [vmem:[%s1 + $0x1c70] sm:$0xff]
    %v1003 = vld [vmem:[%s1 + $0x1c78] sm:$0xff]
    %v1004 = vld [vmem:[%s1 + $0x1c80] sm:$0xff]
    %v1005 = vld [vmem:[%s1 + $0x1c88] sm:$0xff]
    %v1006 = vld [vmem:[%s1 + $0x1c90] sm:$0xff]
    %v1007 = vld [vmem:[%s1 + $0x1c98] sm:$0xff]
    %v1008 = vld [vmem:[%s1 + $0x1ca0] sm:$0xff]
    %v1009 = vld [vmem:[%s1 + $0x1ca8] sm:$0xff]
    %v1010 = vld [vmem:[%s1 + $0x1cb0] sm:$0xff]
    %v1011 = vld [vmem:[%s1 + $0x1cb8] sm:$0xff]
    %v1012 = vld [vmem:[%s1 + $0x1cc0] sm:$0xff]
    %v1013 = vld [vmem:[%s1 + $0x1cc8] sm:$0xff]
    %v1014 = vld [vmem:[%s1 + $0x1cd0] sm:$0xff]
    %v1015 = vld [vmem:[%s1 + $0x1cd8] sm:$0xff]
    %v1016 = vld [vmem:[%s1 + $0x1ce0] sm:$0xff]
    %v1017 = vld [vmem:[%s1 + $0x1ce8] sm:$0xff]
    %v1018 = vld [vmem:[%s1 + $0x1cf0] sm:$0xff]
    %v1019 = vld [vmem:[%s1 + $0x1cf8] sm:$0xff]
    %v1020 = vld [vmem:[%s1 + $0x1d00] sm:$0xff]
    %v1021 = vld [vmem:[%s1 + $0x1d08] sm:$0xff]
    %v1022 = vld [vmem:[%s1 + $0x1d10] sm:$0xff]
    %v1023 = vld [vmem:[%s1 + $0x1d18] sm:$0xff]
    %v1024 = vld [vmem:[%s1 + $0x1d20] sm:$0xff]
    %v1025 = vld [vmem:[%s1 + $0x1d28] sm:$0xff]
    %v1026 = vld [vmem:[%s1 + $0x1d30] sm:$0xff]
    %v1027 = vld [vmem:[%s1 + $0x1d38] sm:$0xff]
    %v1028 = vld [vmem:[%s1 + $0x1d40] sm:$0xff]
    %v1029 = vld [vmem:[%s1 + $0x1d48] sm:$0xff]
    %v1030 = vld [vmem:[%s1 + $0x1d50] sm:$0xff]
    %v1031 = vld [vmem:[%s1 + $0x1d58] sm:$0xff]
    %v1032 = vld [vmem:[%s1 + $0x1d60] sm:$0xff]
    %v1033 = vld [vmem:[%s1 + $0x1d68] sm:$0xff]
    %v1034 = vld [vmem:[%s1 + $0x1d70] sm:$0xff]
    %v1035 = vld [vmem:[%s1 + $0x1d78] sm:$0xff]
    %v1036 = vld [vmem:[%s1 + $0x1d80] sm:$0xff]
    %v1037 = vld [vmem:[%s1 + $0x1d88] sm:$0xff]
    %v1038 = vld [vmem:[%s1 + $0x1d90] sm:$0xff]
    %v1039 = vld [vmem:[%s1 + $0x1d98] sm:$0xff]
    %v1040 = vld [vmem:[%s1 + $0x1da0] sm:$0xff]
    %v1041 = vld [vmem:[%s1 + $0x1da8] sm:$0xff]
    %v1042 = vld [vmem:[%s1 + $0x1db0] sm:$0xff]
    %v1043 = vld [vmem:[%s1 + $0x1db8] sm:$0xff]
    %v1044 = vld [vmem:[%s1 + $0x1dc0] sm:$0xff]
    %v1045 = vld [vmem:[%s1 + $0x1dc8] sm:$0xff]
    %v1046 = vld [vmem:[%s1 + $0x1dd0] sm:$0xff]
    %v1047 = vld [vmem:[%s1 + $0x1dd8] sm:$0xff]
    %v1048 = vld [vmem:[%s1 + $0x1de0] sm:$0xff]
    %v1049 = vld [vmem:[%s1 + $0x1de8] sm:$0xff]
    %v1050 = vld [vmem:[%s1 + $0x1df0] sm:$0xff]
    %v1051 = vld [vmem:[%s1 + $0x1df8] sm:$0xff]
    %v1052 = vld [vmem:[%s1 + $0x1e00] sm:$0xff]
    %v1053 = vld [vmem:[%s1 + $0x1e08] sm:$0xff]
    %v1054 = vld [vmem:[%s1 + $0x1e10] sm:$0xff]
    %v1055 = vld [vmem:[%s1 + $0x1e18] sm:$0xff]
    %v1056 = vld [vmem:[%s1 + $0x1e20] sm:$0xff]
    %v1057 = vld [vmem:[%s1 + $0x1e28] sm:$0xff]
    %v1058 = vld [vmem:[%s1 + $0x1e30] sm:$0xff]
    %v1059 = vld [vmem:[%s1 + $0x1e38] sm:$0xff]
    %v1060 = vld [vmem:[%s1 + $0x1e40] sm:$0xff]
    %v1061 = vld [vmem:[%s1 + $0x1e48] sm:$0xff]
    %v1062 = vld [vmem:[%s1 + $0x1e50] sm:$0xff]
    %v1063 = vld [vmem:[%s1 + $0x1e58] sm:$0xff]
    %v1064 = vld [vmem:[%s1 + $0x1e60] sm:$0xff]
    %v1065 = vld [vmem:[%s1 + $0x1e68] sm:$0xff]
    %v1066 = vld [vmem:[%s1 + $0x1e70] sm:$0xff]
    %v1067 = vld [vmem:[%s1 + $0x1e78] sm:$0xff]
    %v1068 = vld [vmem:[%s1 + $0x1e80] sm:$0xff]
    %v1069 = vld [vmem:[%s1 + $0x1e88] sm:$0xff]
    %v1070 = vld [vmem:[%s1 + $0x1e90] sm:$0xff]
    %v1071 = vld [vmem:[%s1 + $0x1e98] sm:$0xff]
    %v1072 = vld [vmem:[%s1 + $0x1ea0] sm:$0xff]
    %v1073 = vld [vmem:[%s1 + $0x1ea8] sm:$0xff]
    %v1074 = vld [vmem:[%s1 + $0x1eb0] sm:$0xff]
    %v1075 = vld [vmem:[%s1 + $0x1eb8] sm:$0xff]
    %v1076 = vld [vmem:[%s1 + $0x1ec0] sm:$0xff]
    %v1077 = vld [vmem:[%s1 + $0x1ec8] sm:$0xff]
    %v1078 = vld [vmem:[%s1 + $0x1ed0] sm:$0xff]
    %v1079 = vld [vmem:[%s1 + $0x1ed8] sm:$0xff]
    %v1080 = vld [vmem:[%s1 + $0x1ee0] sm:$0xff]
    %v1081 = vld [vmem:[%s1 + $0x1ee8] sm:$0xff]
    %v1082 = vld [vmem:[%s1 + $0x1ef0] sm:$0xff]
    %v1083 = vld [vmem:[%s1 + $0x1ef8] sm:$0xff]
    %v1084 = vld [vmem:[%s1 + $0x1f00] sm:$0xff]
    %v1085 = vld [vmem:[%s1 + $0x1f08] sm:$0xff]
    %v1086 = vld [vmem:[%s1 + $0x1f10] sm:$0xff]
    %v1087 = vld [vmem:[%s1 + $0x1f18] sm:$0xff]
    %v1088 = vld [vmem:[%s1 + $0x1f20] sm:$0xff]
    %v1089 = vld [vmem:[%s1 + $0x1f28] sm:$0xff]
    %v1090 = vld [vmem:[%s1 + $0x1f30] sm:$0xff]
    %v1091 = vld [vmem:[%s1 + $0x1f38] sm:$0xff]
    %v1092 = vld [vmem:[%s1 + $0x1f40] sm:$0xff]
    %v1093 = vld [vmem:[%s1 + $0x1f48] sm:$0xff]
    %v1094 = vld [vmem:[%s1 + $0x1f50] sm:$0xff]
    %v1095 = vld [vmem:[%s1 + $0x1f58] sm:$0xff]
    %v1096 = vld [vmem:[%s1 + $0x1f60] sm:$0xff]
    %v1097 = vld [vmem:[%s1 + $0x1f68] sm:$0xff]
    %v1098 = vld [vmem:[%s1 + $0x1f70] sm:$0xff]
    %v1099 = vld [vmem:[%s1 + $0x1f78] sm:$0xff]
    %v1100 = vld [vmem:[%s1 + $0x1f80] sm:$0xff]
    %v1101 = vld [vmem:[%s1 + $0x1f88] sm:$0xff]
    %v1102 = vld [vmem:[%s1 + $0x1f90] sm:$0xff]
    %v1103 = vld [vmem:[%s1 + $0x1f98] sm:$0xff]
    %v1104 = vld [vmem:[%s1 + $0x1fa0] sm:$0xff]
    %v1105 = vld [vmem:[%s1 + $0x1fa8] sm:$0xff]
    %v1106 = vld [vmem:[%s1 + $0x1fb0] sm:$0xff]
    %v1107 = vld [vmem:[%s1 + $0x1fb8] sm:$0xff]
    %v1108 = vld [vmem:[%s1 + $0x1fc0] sm:$0xff]
    %v1109 = vld [vmem:[%s1 + $0x1fc8] sm:$0xff]
    %v1110 = vld [vmem:[%s1 + $0x1fd0] sm:$0xff]
    %v1111 = vld [vmem:[%s1 + $0x1fd8] sm:$0xff]
    %v1112 = vld [vmem:[%s1 + $0x1fe0] sm:$0xff]
    %v1113 = vld [vmem:[%s1 + $0x1fe8] sm:$0xff]
    %v1114 = vld [vmem:[%s1 + $0x1ff0] sm:$0xff]
    %v1115 = vld [vmem:[%s1 + $0x1ff8] sm:$0xff]
    %v1116 = vld [vmem:[%s1 + $0x2000] sm:$0xff]
    %v1117 = vld [vmem:[%s1 + $0x2008] sm:$0xff]
    %v1118 = vld [vmem:[%s1 + $0x2010] sm:$0xff]
    %v1119 = vld [vmem:[%s1 + $0x2018] sm:$0xff]
    %v1120 = vld [vmem:[%s1 + $0x2020] sm:$0xff]
    %v1121 = vld [vmem:[%s1 + $0x2028] sm:$0xff]
    %v1122 = vld [vmem:[%s1 + $0x2030] sm:$0xff]
    %v1123 = vld [vmem:[%s1 + $0x2038] sm:$0xff]
    %v1124 = vld [vmem:[%s1 + $0x2040] sm:$0xff]
    %v1125 = vld [vmem:[%s1 + $0x2048] sm:$0xff]
    %v1126 = vld [vmem:[%s1 + $0x2050] sm:$0xff]
    %v1127 = vld [vmem:[%s1 + $0x2058] sm:$0xff]
    %v1128 = vld [vmem:[%s1 + $0x2060] sm:$0xff]
    %v1129 = vld [vmem:[%s1 + $0x2068] sm:$0xff]
    %v1130 = vld [vmem:[%s1 + $0x2070] sm:$0xff]
    %v1131 = vld [vmem:[%s1 + $0x2078] sm:$0xff]
    %v1132 = vld [vmem:[%s1 + $0x2080] sm:$0xff]
    %v1133 = vld [vmem:[%s1 + $0x2088] sm:$0xff]
    %v1134 = vld [vmem:[%s1 + $0x2090] sm:$0xff]
    %v1135 = vld [vmem:[%s1 + $0x2098] sm:$0xff]
    %v1136 = vld [vmem:[%s1 + $0x20a0] sm:$0xff]
    %v1137 = vld [vmem:[%s1 + $0x20a8] sm:$0xff]
    %v1138 = vld [vmem:[%s1 + $0x20b0] sm:$0xff]
    %v1139 = vld [vmem:[%s1 + $0x20b8] sm:$0xff]
    %v1140 = vld [vmem:[%s1 + $0x20c0] sm:$0xff]
    %v1141 = vld [vmem:[%s1 + $0x20c8] sm:$0xff]
    %v1142 = vld [vmem:[%s1 + $0x20d0] sm:$0xff]
    %v1143 = vld [vmem:[%s1 + $0x20d8] sm:$0xff]
    %v1144 = vld [vmem:[%s1 + $0x20e0] sm:$0xff]
    %v1145 = vld [vmem:[%s1 + $0x20e8] sm:$0xff]
    %v1146 = vld [vmem:[%s1 + $0x20f0] sm:$0xff]
    %v1147 = vld [vmem:[%s1 + $0x20f8] sm:$0xff]
    %v1148 = vld [vmem:[%s1 + $0x2100] sm:$0xff]
    %v1149 = vld [vmem:[%s1 + $0x2108] sm:$0xff]
    %v1150 = vld [vmem:[%s1 + $0x2110] sm:$0xff]
    %v1151 = vld [vmem:[%s1 + $0x2118] sm:$0xff]
    %v1152 = vld [vmem:[%s1 + $0x2120] sm:$0xff]
    %v1153 = vld [vmem:[%s1 + $0x2128] sm:$0xff]
    %v1154 = vld [vmem:[%s1 + $0x2130] sm:$0xff]
    %v1155 = vld [vmem:[%s1 + $0x2138] sm:$0xff]
    %v1156 = vld [vmem:[%s1 + $0x2140] sm:$0xff]
    %v1157 = vld [vmem:[%s1 + $0x2148] sm:$0xff]
    %v1158 = vld [vmem:[%s1 + $0x2150] sm:$0xff]
    %v1159 = vld [vmem:[%s1 + $0x2158] sm:$0xff]
    %v1160 = vld [vmem:[%s1 + $0x2160] sm:$0xff]
    %v1161 = vld [vmem:[%s1 + $0x2168] sm:$0xff]
    %v1162 = vld [vmem:[%s1 + $0x2170] sm:$0xff]
    %v1163 = vld [vmem:[%s1 + $0x2178] sm:$0xff]
    %v1164 = vld [vmem:[%s1 + $0x2180] sm:$0xff]
    %v1165 = vld [vmem:[%s1 + $0x2188] sm:$0xff]
    %v1166 = vld [vmem:[%s1 + $0x2190] sm:$0xff]
    %v1167 = vld [vmem:[%s1 + $0x2198] sm:$0xff]
    %v1168 = vld [vmem:[%s1 + $0x21a0] sm:$0xff]
    %v1169 = vld [vmem:[%s1 + $0x21a8] sm:$0xff]
    %v1170 = vld [vmem:[%s1 + $0x21b0] sm:$0xff]
    %v1171 = vld [vmem:[%s1 + $0x21b8] sm:$0xff]
    %v1172 = vld [vmem:[%s1 + $0x21c0] sm:$0xff]
    %v1173 = vld [vmem:[%s1 + $0x21c8] sm:$0xff]
    %v1174 = vld [vmem:[%s1 + $0x21d0] sm:$0xff]
    %v1175 = vld [vmem:[%s1 + $0x21d8] sm:$0xff]
    %v1176 = vld [vmem:[%s1 + $0x21e0] sm:$0xff]
    %v1177 = vld [vmem:[%s1 + $0x21e8] sm:$0xff]
    %v1178 = vld [vmem:[%s1 + $0x21f0] sm:$0xff]
    %v1179 = vld [vmem:[%s1 + $0x21f8] sm:$0xff]
    %v1180 = vld [vmem:[%s1 + $0x2200] sm:$0xff]
    %v1181 = vld [vmem:[%s1 + $0x2208] sm:$0xff]
    %v1182 = vld [vmem:[%s1 + $0x2210] sm:$0xff]
    %v1183 = vld [vmem:[%s1 + $0x2218] sm:$0xff]
    %v1184 = vld [vmem:[%s1 + $0x2220] sm:$0xff]
    %v1185 = vld [vmem:[%s1 + $0x2228] sm:$0xff]
    %v1186 = vld [vmem:[%s1 + $0x2230] sm:$0xff]
    %v1187 = vld [vmem:[%s1 + $0x2238] sm:$0xff]
    %v1188 = vld [vmem:[%s1 + $0x2240] sm:$0xff]
    %v1189 = vld [vmem:[%s1 + $0x2248] sm:$0xff]
    %v1190 = vld [vmem:[%s1 + $0x2250] sm:$0xff]
    %v1191 = vld [vmem:[%s1 + $0x2258] sm:$0xff]
    %v1192 = vld [vmem:[%s1 + $0x2260] sm:$0xff]
    %v1193 = vld [vmem:[%s1 + $0x2268] sm:$0xff]
    %v1194 = vld [vmem:[%s1 + $0x2270] sm:$0xff]
    %v1195 = vld [vmem:[%s1 + $0x2278] sm:$0xff]
    %v1196 = vld [vmem:[%s1 + $0x2280] sm:$0xff]
    %v1197 = vld [vmem:[%s1 + $0x2288] sm:$0xff]
    %v1198 = vld [vmem:[%s1 + $0x2290] sm:$0xff]
    %v1199 = vld [vmem:[%s1 + $0x2298] sm:$0xff]
    %v1200 = vld [vmem:[%s1 + $0x22a0] sm:$0xff]
    %v1201 = vld [vmem:[%s1 + $0x22a8] sm:$0xff]
    %v1202 = vld [vmem:[%s1 + $0x22b0] sm:$0xff]
    %v1203 = vld [vmem:[%s1 + $0x22b8] sm:$0xff]
    %v1204 = vld [vmem:[%s1 + $0x22c0] sm:$0xff]
    %v1205 = vld [vmem:[%s1 + $0x22c8] sm:$0xff]
    %v1206 = vld [vmem:[%s1 + $0x22d0] sm:$0xff]
    %v1207 = vld [vmem:[%s1 + $0x22d8] sm:$0xff]
    %v1208 = vld [vmem:[%s1 + $0x22e0] sm:$0xff]
    %v1209 = vld [vmem:[%s1 + $0x22e8] sm:$0xff]
    %v1210 = vld [vmem:[%s1 + $0x22f0] sm:$0xff]
    %v1211 = vld [vmem:[%s1 + $0x22f8] sm:$0xff]
    %v1212 = vld [vmem:[%s1 + $0x2300] sm:$0xff]
    %v1213 = vld [vmem:[%s1 + $0x2308] sm:$0xff]
    %v1214 = vld [vmem:[%s1 + $0x2310] sm:$0xff]
    %v1215 = vld [vmem:[%s1 + $0x2318] sm:$0xff]
    %v1216 = vld [vmem:[%s1 + $0x2320] sm:$0xff]
    %v1217 = vld [vmem:[%s1 + $0x2328] sm:$0xff]
    %v1218 = vld [vmem:[%s1 + $0x2330] sm:$0xff]
    %v1219 = vld [vmem:[%s1 + $0x2338] sm:$0xff]
    %v1220 = vld [vmem:[%s1 + $0x2340] sm:$0xff]
    %v1221 = vld [vmem:[%s1 + $0x2348] sm:$0xff]
    %v1222 = vld [vmem:[%s1 + $0x2350] sm:$0xff]
    %v1223 = vld [vmem:[%s1 + $0x2358] sm:$0xff]
    %v1224 = vld [vmem:[%s1 + $0x2360] sm:$0xff]
    %v1225 = vld [vmem:[%s1 + $0x2368] sm:$0xff]
    %v1226 = vld [vmem:[%s1 + $0x2370] sm:$0xff]
    %v1227 = vld [vmem:[%s1 + $0x2378] sm:$0xff]
    %v1228 = vld [vmem:[%s1 + $0x2380] sm:$0xff]
    %v1229 = vld [vmem:[%s1 + $0x2388] sm:$0xff]
    %v1230 = vld [vmem:[%s1 + $0x2390] sm:$0xff]
    %v1231 = vld [vmem:[%s1 + $0x2398] sm:$0xff]
    %v1232 = vld [vmem:[%s1 + $0x23a0] sm:$0xff]
    %v1233 = vld [vmem:[%s1 + $0x23a8] sm:$0xff]
    %v1234 = vld [vmem:[%s1 + $0x23b0] sm:$0xff]
    %v1235 = vld [vmem:[%s1 + $0x23b8] sm:$0xff]
    %v1236 = vld [vmem:[%s1 + $0x23c0] sm:$0xff]
    %v1237 = vld [vmem:[%s1 + $0x23c8] sm:$0xff]
    %v1238 = vld [vmem:[%s1 + $0x23d0] sm:$0xff]
    %v1239 = vld [vmem:[%s1 + $0x23d8] sm:$0xff]
    %v1240 = vld [vmem:[%s1 + $0x23e0] sm:$0xff]
    %v1241 = vld [vmem:[%s1 + $0x23e8] sm:$0xff]
    %v1242 = vld [vmem:[%s1 + $0x23f0] sm:$0xff]
    %v1243 = vld [vmem:[%s1 + $0x23f8] sm:$0xff]
    %v1244 = vld [vmem:[%s2] sm:$0xff]
    %v1246 = vperm.slane %v1244, 0
    %v1247 = vperm.slane %v1244, 1
    %v1248 = vperm.slane %v1244, 2
    %v1249 = vperm.slane %v1244, 3
    %v1250 = vperm.slane %v1244, 4
    %v1251 = vperm.slane %v1244, 5
    %v1252 = vperm.slane %v1244, 6
    %v1253 = vperm.slane %v1244, 7
    %v2414 = vunpack.c.l.b16 %v92
    %v2415 = vunpack.c.h.b16 %v92
    %v2416 = vunpack.c.l.b16 %v93
    %v2417 = vunpack.c.h.b16 %v93
    %v2418 = vunpack.c.l.b16 %v94
    %v2419 = vunpack.c.h.b16 %v94
    %v2420 = vunpack.c.l.b16 %v95
    %v2421 = vunpack.c.h.b16 %v95
    %v2422 = vunpack.c.l.b16 %v96
    %v2423 = vunpack.c.h.b16 %v96
    %v2424 = vunpack.c.l.b16 %v97
    %v2425 = vunpack.c.h.b16 %v97
    %v2426 = vunpack.c.l.b16 %v98
    %v2427 = vunpack.c.h.b16 %v98
    %v2428 = vunpack.c.l.b16 %v99
    %v2429 = vunpack.c.h.b16 %v99
    %v2430 = vunpack.c.l.b16 %v100
    %v2431 = vunpack.c.h.b16 %v100
    %v2432 = vunpack.c.l.b16 %v101
    %v2433 = vunpack.c.h.b16 %v101
    %v2434 = vunpack.c.l.b16 %v102
    %v2435 = vunpack.c.h.b16 %v102
    %v2436 = vunpack.c.l.b16 %v103
    %v2437 = vunpack.c.h.b16 %v103
    %v2438 = vunpack.c.l.b16 %v104
    %v2439 = vunpack.c.h.b16 %v104
    %v2440 = vunpack.c.l.b16 %v105
    %v2441 = vunpack.c.h.b16 %v105
    %v2442 = vunpack.c.l.b16 %v106
    %v2443 = vunpack.c.h.b16 %v106
    %v2444 = vunpack.c.l.b16 %v107
    %v2445 = vunpack.c.h.b16 %v107
    %v2446 = vunpack.c.l.b16 %v108
    %v2447 = vunpack.c.h.b16 %v108
    %v2448 = vunpack.c.l.b16 %v109
    %v2449 = vunpack.c.h.b16 %v109
    %v2450 = vunpack.c.l.b16 %v110
    %v2451 = vunpack.c.h.b16 %v110
    %v2452 = vunpack.c.l.b16 %v111
    %v2453 = vunpack.c.h.b16 %v111
    %v2454 = vunpack.c.l.b16 %v112
    %v2455 = vunpack.c.h.b16 %v112
    %v2456 = vunpack.c.l.b16 %v113
    %v2457 = vunpack.c.h.b16 %v113
    %v2458 = vunpack.c.l.b16 %v114
    %v2459 = vunpack.c.h.b16 %v114
    %v2460 = vunpack.c.l.b16 %v115
    %v2461 = vunpack.c.h.b16 %v115
    %v2462 = vunpack.c.l.b16 %v116
    %v2463 = vunpack.c.h.b16 %v116
    %v2464 = vunpack.c.l.b16 %v117
    %v2465 = vunpack.c.h.b16 %v117
    %v2466 = vunpack.c.l.b16 %v118
    %v2467 = vunpack.c.h.b16 %v118
    %v2468 = vunpack.c.l.b16 %v119
    %v2469 = vunpack.c.h.b16 %v119
    %v2470 = vunpack.c.l.b16 %v120
    %v2471 = vunpack.c.h.b16 %v120
    %v2472 = vunpack.c.l.b16 %v121
    %v2473 = vunpack.c.h.b16 %v121
    %v2474 = vunpack.c.l.b16 %v122
    %v2475 = vunpack.c.h.b16 %v122
    %v2476 = vunpack.c.l.b16 %v123
    %v2477 = vunpack.c.h.b16 %v123
    %v2478 = vunpack.c.l.b16 %v124
    %v2479 = vunpack.c.h.b16 %v124
    %v2480 = vunpack.c.l.b16 %v125
    %v2481 = vunpack.c.h.b16 %v125
    %v2482 = vunpack.c.l.b16 %v126
    %v2483 = vunpack.c.h.b16 %v126
    %v2484 = vunpack.c.l.b16 %v127
    %v2485 = vunpack.c.h.b16 %v127
    %v2486 = vunpack.c.l.b16 %v128
    %v2487 = vunpack.c.h.b16 %v128
    %v2488 = vunpack.c.l.b16 %v129
    %v2489 = vunpack.c.h.b16 %v129
    %v2490 = vunpack.c.l.b16 %v130
    %v2491 = vunpack.c.h.b16 %v130
    %v2492 = vunpack.c.l.b16 %v131
    %v2493 = vunpack.c.h.b16 %v131
    %v2494 = vunpack.c.l.b16 %v132
    %v2495 = vunpack.c.h.b16 %v132
    %v2496 = vunpack.c.l.b16 %v133
    %v2497 = vunpack.c.h.b16 %v133
    %v2498 = vunpack.c.l.b16 %v134
    %v2499 = vunpack.c.h.b16 %v134
    %v2500 = vunpack.c.l.b16 %v135
    %v2501 = vunpack.c.h.b16 %v135
    %v2502 = vunpack.c.l.b16 %v136
    %v2503 = vunpack.c.h.b16 %v136
    %v2504 = vunpack.c.l.b16 %v137
    %v2505 = vunpack.c.h.b16 %v137
    %v2506 = vunpack.c.l.b16 %v138
    %v2507 = vunpack.c.h.b16 %v138
    %v2508 = vunpack.c.l.b16 %v139
    %v2509 = vunpack.c.h.b16 %v139
    %v2510 = vunpack.c.l.b16 %v140
    %v2511 = vunpack.c.h.b16 %v140
    %v2512 = vunpack.c.l.b16 %v141
    %v2513 = vunpack.c.h.b16 %v141
    %v2514 = vunpack.c.l.b16 %v142
    %v2515 = vunpack.c.h.b16 %v142
    %v2516 = vunpack.c.l.b16 %v143
    %v2517 = vunpack.c.h.b16 %v143
    %v2518 = vunpack.c.l.b16 %v144
    %v2519 = vunpack.c.h.b16 %v144
    %v2520 = vunpack.c.l.b16 %v145
    %v2521 = vunpack.c.h.b16 %v145
    %v2522 = vunpack.c.l.b16 %v146
    %v2523 = vunpack.c.h.b16 %v146
    %v2524 = vunpack.c.l.b16 %v147
    %v2525 = vunpack.c.h.b16 %v147
    %v2526 = vunpack.c.l.b16 %v148
    %v2527 = vunpack.c.h.b16 %v148
    %v2528 = vunpack.c.l.b16 %v149
    %v2529 = vunpack.c.h.b16 %v149
    %v2530 = vunpack.c.l.b16 %v150
    %v2531 = vunpack.c.h.b16 %v150
    %v2532 = vunpack.c.l.b16 %v151
    %v2533 = vunpack.c.h.b16 %v151
    %v2534 = vunpack.c.l.b16 %v152
    %v2535 = vunpack.c.h.b16 %v152
    %v2536 = vunpack.c.l.b16 %v153
    %v2537 = vunpack.c.h.b16 %v153
    %v2538 = vunpack.c.l.b16 %v154
    %v2539 = vunpack.c.h.b16 %v154
    %v2540 = vunpack.c.l.b16 %v155
    %v2541 = vunpack.c.h.b16 %v155
    %v2542 = vunpack.c.l.b16 %v156
    %v2543 = vunpack.c.h.b16 %v156
    %v2544 = vunpack.c.l.b16 %v157
    %v2545 = vunpack.c.h.b16 %v157
    %v2546 = vunpack.c.l.b16 %v158
    %v2547 = vunpack.c.h.b16 %v158
    %v2548 = vunpack.c.l.b16 %v159
    %v2549 = vunpack.c.h.b16 %v159
    %v2550 = vunpack.c.l.b16 %v160
    %v2551 = vunpack.c.h.b16 %v160
    %v2552 = vunpack.c.l.b16 %v161
    %v2553 = vunpack.c.h.b16 %v161
    %v2554 = vunpack.c.l.b16 %v162
    %v2555 = vunpack.c.h.b16 %v162
    %v2556 = vunpack.c.l.b16 %v163
    %v2557 = vunpack.c.h.b16 %v163
    %v2558 = vunpack.c.l.b16 %v164
    %v2559 = vunpack.c.h.b16 %v164
    %v2560 = vunpack.c.l.b16 %v165
    %v2561 = vunpack.c.h.b16 %v165
    %v2562 = vunpack.c.l.b16 %v166
    %v2563 = vunpack.c.h.b16 %v166
    %v2564 = vunpack.c.l.b16 %v167
    %v2565 = vunpack.c.h.b16 %v167
    %v2566 = vunpack.c.l.b16 %v168
    %v2567 = vunpack.c.h.b16 %v168
    %v2568 = vunpack.c.l.b16 %v169
    %v2569 = vunpack.c.h.b16 %v169
    %v2570 = vunpack.c.l.b16 %v170
    %v2571 = vunpack.c.h.b16 %v170
    %v2572 = vunpack.c.l.b16 %v171
    %v2573 = vunpack.c.h.b16 %v171
    %v2574 = vunpack.c.l.b16 %v172
    %v2575 = vunpack.c.h.b16 %v172
    %v2576 = vunpack.c.l.b16 %v173
    %v2577 = vunpack.c.h.b16 %v173
    %v2578 = vunpack.c.l.b16 %v174
    %v2579 = vunpack.c.h.b16 %v174
    %v2580 = vunpack.c.l.b16 %v175
    %v2581 = vunpack.c.h.b16 %v175
    %v2582 = vunpack.c.l.b16 %v176
    %v2583 = vunpack.c.h.b16 %v176
    %v2584 = vunpack.c.l.b16 %v177
    %v2585 = vunpack.c.h.b16 %v177
    %v2586 = vunpack.c.l.b16 %v178
    %v2587 = vunpack.c.h.b16 %v178
    %v2588 = vunpack.c.l.b16 %v179
    %v2589 = vunpack.c.h.b16 %v179
    %v2590 = vunpack.c.l.b16 %v180
    %v2591 = vunpack.c.h.b16 %v180
    %v2592 = vunpack.c.l.b16 %v181
    %v2593 = vunpack.c.h.b16 %v181
    %v2594 = vunpack.c.l.b16 %v182
    %v2595 = vunpack.c.h.b16 %v182
    %v2596 = vunpack.c.l.b16 %v183
    %v2597 = vunpack.c.h.b16 %v183
    %v2598 = vunpack.c.l.b16 %v184
    %v2599 = vunpack.c.h.b16 %v184
    %v2600 = vunpack.c.l.b16 %v185
    %v2601 = vunpack.c.h.b16 %v185
    %v2602 = vunpack.c.l.b16 %v186
    %v2603 = vunpack.c.h.b16 %v186
    %v2604 = vunpack.c.l.b16 %v187
    %v2605 = vunpack.c.h.b16 %v187
    %v2606 = vunpack.c.l.b16 %v188
    %v2607 = vunpack.c.h.b16 %v188
    %v2608 = vunpack.c.l.b16 %v189
    %v2609 = vunpack.c.h.b16 %v189
    %v2610 = vunpack.c.l.b16 %v190
    %v2611 = vunpack.c.h.b16 %v190
    %v2612 = vunpack.c.l.b16 %v191
    %v2613 = vunpack.c.h.b16 %v191
    %v2614 = vunpack.c.l.b16 %v192
    %v2615 = vunpack.c.h.b16 %v192
    %v2616 = vunpack.c.l.b16 %v193
    %v2617 = vunpack.c.h.b16 %v193
    %v2618 = vunpack.c.l.b16 %v194
    %v2619 = vunpack.c.h.b16 %v194
    %v2620 = vunpack.c.l.b16 %v195
    %v2621 = vunpack.c.h.b16 %v195
    %v2622 = vunpack.c.l.b16 %v196
    %v2623 = vunpack.c.h.b16 %v196
    %v2624 = vunpack.c.l.b16 %v197
    %v2625 = vunpack.c.h.b16 %v197
    %v2626 = vunpack.c.l.b16 %v198
    %v2627 = vunpack.c.h.b16 %v198
    %v2628 = vunpack.c.l.b16 %v199
    %v2629 = vunpack.c.h.b16 %v199
    %v2630 = vunpack.c.l.b16 %v200
    %v2631 = vunpack.c.h.b16 %v200
    %v2632 = vunpack.c.l.b16 %v201
    %v2633 = vunpack.c.h.b16 %v201
    %v2634 = vunpack.c.l.b16 %v202
    %v2635 = vunpack.c.h.b16 %v202
    %v2636 = vunpack.c.l.b16 %v203
    %v2637 = vunpack.c.h.b16 %v203
    %v2638 = vunpack.c.l.b16 %v204
    %v2639 = vunpack.c.h.b16 %v204
    %v2640 = vunpack.c.l.b16 %v205
    %v2641 = vunpack.c.h.b16 %v205
    %v2642 = vunpack.c.l.b16 %v206
    %v2643 = vunpack.c.h.b16 %v206
    %v2644 = vunpack.c.l.b16 %v207
    %v2645 = vunpack.c.h.b16 %v207
    %v2646 = vunpack.c.l.b16 %v208
    %v2647 = vunpack.c.h.b16 %v208
    %v2648 = vunpack.c.l.b16 %v209
    %v2649 = vunpack.c.h.b16 %v209
    %v2650 = vunpack.c.l.b16 %v210
    %v2651 = vunpack.c.h.b16 %v210
    %v2652 = vunpack.c.l.b16 %v211
    %v2653 = vunpack.c.h.b16 %v211
    %v2654 = vunpack.c.l.b16 %v212
    %v2655 = vunpack.c.h.b16 %v212
    %v2656 = vunpack.c.l.b16 %v213
    %v2657 = vunpack.c.h.b16 %v213
    %v2658 = vunpack.c.l.b16 %v214
    %v2659 = vunpack.c.h.b16 %v214
    %v2660 = vunpack.c.l.b16 %v215
    %v2661 = vunpack.c.h.b16 %v215
    %v2662 = vunpack.c.l.b16 %v216
    %v2663 = vunpack.c.h.b16 %v216
    %v2664 = vunpack.c.l.b16 %v217
    %v2665 = vunpack.c.h.b16 %v217
    %v2666 = vunpack.c.l.b16 %v218
    %v2667 = vunpack.c.h.b16 %v218
    %v2668 = vunpack.c.l.b16 %v219
    %v2669 = vunpack.c.h.b16 %v219
    %v2670 = vunpack.c.l.b16 %v220
    %v2671 = vunpack.c.h.b16 %v220
    %v2672 = vunpack.c.l.b16 %v221
    %v2673 = vunpack.c.h.b16 %v221
    %v2674 = vunpack.c.l.b16 %v222
    %v2675 = vunpack.c.h.b16 %v222
    %v2676 = vunpack.c.l.b16 %v223
    %v2677 = vunpack.c.h.b16 %v223
    %v2678 = vunpack.c.l.b16 %v224
    %v2679 = vunpack.c.h.b16 %v224
    %v2680 = vunpack.c.l.b16 %v225
    %v2681 = vunpack.c.h.b16 %v225
    %v2682 = vunpack.c.l.b16 %v226
    %v2683 = vunpack.c.h.b16 %v226
    %v2684 = vunpack.c.l.b16 %v227
    %v2685 = vunpack.c.h.b16 %v227
    %v2686 = vunpack.c.l.b16 %v228
    %v2687 = vunpack.c.h.b16 %v228
    %v2688 = vunpack.c.l.b16 %v229
    %v2689 = vunpack.c.h.b16 %v229
    %v2690 = vunpack.c.l.b16 %v230
    %v2691 = vunpack.c.h.b16 %v230
    %v2692 = vunpack.c.l.b16 %v231
    %v2693 = vunpack.c.h.b16 %v231
    %v2694 = vunpack.c.l.b16 %v232
    %v2695 = vunpack.c.h.b16 %v232
    %v2696 = vunpack.c.l.b16 %v233
    %v2697 = vunpack.c.h.b16 %v233
    %v2698 = vunpack.c.l.b16 %v234
    %v2699 = vunpack.c.h.b16 %v234
    %v2700 = vunpack.c.l.b16 %v235
    %v2701 = vunpack.c.h.b16 %v235
    %v2702 = vunpack.c.l.b16 %v236
    %v2703 = vunpack.c.h.b16 %v236
    %v2704 = vunpack.c.l.b16 %v237
    %v2705 = vunpack.c.h.b16 %v237
    %v2706 = vunpack.c.l.b16 %v238
    %v2707 = vunpack.c.h.b16 %v238
    %v2708 = vunpack.c.l.b16 %v239
    %v2709 = vunpack.c.h.b16 %v239
    %v2710 = vunpack.c.l.b16 %v240
    %v2711 = vunpack.c.h.b16 %v240
    %v2712 = vunpack.c.l.b16 %v241
    %v2713 = vunpack.c.h.b16 %v241
    %v2714 = vunpack.c.l.b16 %v242
    %v2715 = vunpack.c.h.b16 %v242
    %v2716 = vunpack.c.l.b16 %v243
    %v2717 = vunpack.c.h.b16 %v243
    %v2718 = vunpack.c.l.b16 %v244
    %v2719 = vunpack.c.h.b16 %v244
    %v2720 = vunpack.c.l.b16 %v245
    %v2721 = vunpack.c.h.b16 %v245
    %v2722 = vunpack.c.l.b16 %v246
    %v2723 = vunpack.c.h.b16 %v246
    %v2724 = vunpack.c.l.b16 %v247
    %v2725 = vunpack.c.h.b16 %v247
    %v2726 = vunpack.c.l.b16 %v248
    %v2727 = vunpack.c.h.b16 %v248
    %v2728 = vunpack.c.l.b16 %v249
    %v2729 = vunpack.c.h.b16 %v249
    %v2730 = vunpack.c.l.b16 %v250
    %v2731 = vunpack.c.h.b16 %v250
    %v2732 = vunpack.c.l.b16 %v251
    %v2733 = vunpack.c.h.b16 %v251
    %v2734 = vunpack.c.l.b16 %v252
    %v2735 = vunpack.c.h.b16 %v252
    %v2736 = vunpack.c.l.b16 %v253
    %v2737 = vunpack.c.h.b16 %v253
    %v2738 = vunpack.c.l.b16 %v254
    %v2739 = vunpack.c.h.b16 %v254
    %v2740 = vunpack.c.l.b16 %v255
    %v2741 = vunpack.c.h.b16 %v255
    %v2742 = vunpack.c.l.b16 %v256
    %v2743 = vunpack.c.h.b16 %v256
    %v2744 = vunpack.c.l.b16 %v257
    %v2745 = vunpack.c.h.b16 %v257
    %v2746 = vunpack.c.l.b16 %v258
    %v2747 = vunpack.c.h.b16 %v258
    %v2748 = vunpack.c.l.b16 %v259
    %v2749 = vunpack.c.h.b16 %v259
    %v2750 = vunpack.c.l.b16 %v260
    %v2751 = vunpack.c.h.b16 %v260
    %v2752 = vunpack.c.l.b16 %v261
    %v2753 = vunpack.c.h.b16 %v261
    %v2754 = vunpack.c.l.b16 %v262
    %v2755 = vunpack.c.h.b16 %v262
    %v2756 = vunpack.c.l.b16 %v263
    %v2757 = vunpack.c.h.b16 %v263
    %v2758 = vunpack.c.l.b16 %v264
    %v2759 = vunpack.c.h.b16 %v264
    %v2760 = vunpack.c.l.b16 %v265
    %v2761 = vunpack.c.h.b16 %v265
    %v2762 = vunpack.c.l.b16 %v266
    %v2763 = vunpack.c.h.b16 %v266
    %v2764 = vunpack.c.l.b16 %v267
    %v2765 = vunpack.c.h.b16 %v267
    %v2766 = vunpack.c.l.b16 %v268
    %v2767 = vunpack.c.h.b16 %v268
    %v2768 = vunpack.c.l.b16 %v269
    %v2769 = vunpack.c.h.b16 %v269
    %v2770 = vunpack.c.l.b16 %v270
    %v2771 = vunpack.c.h.b16 %v270
    %v2772 = vunpack.c.l.b16 %v271
    %v2773 = vunpack.c.h.b16 %v271
    %v2774 = vunpack.c.l.b16 %v272
    %v2775 = vunpack.c.h.b16 %v272
    %v2776 = vunpack.c.l.b16 %v273
    %v2777 = vunpack.c.h.b16 %v273
    %v2778 = vunpack.c.l.b16 %v274
    %v2779 = vunpack.c.h.b16 %v274
    %v2780 = vunpack.c.l.b16 %v275
    %v2781 = vunpack.c.h.b16 %v275
    %v2782 = vunpack.c.l.b16 %v276
    %v2783 = vunpack.c.h.b16 %v276
    %v2784 = vunpack.c.l.b16 %v277
    %v2785 = vunpack.c.h.b16 %v277
    %v2786 = vunpack.c.l.b16 %v278
    %v2787 = vunpack.c.h.b16 %v278
    %v2788 = vunpack.c.l.b16 %v279
    %v2789 = vunpack.c.h.b16 %v279
    %v2790 = vunpack.c.l.b16 %v280
    %v2791 = vunpack.c.h.b16 %v280
    %v2792 = vunpack.c.l.b16 %v281
    %v2793 = vunpack.c.h.b16 %v281
    %v2794 = vunpack.c.l.b16 %v282
    %v2795 = vunpack.c.h.b16 %v282
    %v2796 = vunpack.c.l.b16 %v283
    %v2797 = vunpack.c.h.b16 %v283
    %v2798 = vunpack.c.l.b16 %v284
    %v2799 = vunpack.c.h.b16 %v284
    %v2800 = vunpack.c.l.b16 %v285
    %v2801 = vunpack.c.h.b16 %v285
    %v2802 = vunpack.c.l.b16 %v286
    %v2803 = vunpack.c.h.b16 %v286
    %v2804 = vunpack.c.l.b16 %v287
    %v2805 = vunpack.c.h.b16 %v287
    %v2806 = vunpack.c.l.b16 %v288
    %v2807 = vunpack.c.h.b16 %v288
    %v2808 = vunpack.c.l.b16 %v289
    %v2809 = vunpack.c.h.b16 %v289
    %v2810 = vunpack.c.l.b16 %v290
    %v2811 = vunpack.c.h.b16 %v290
    %v2812 = vunpack.c.l.b16 %v291
    %v2813 = vunpack.c.h.b16 %v291
    %v2814 = vunpack.c.l.b16 %v292
    %v2815 = vunpack.c.h.b16 %v292
    %v2816 = vunpack.c.l.b16 %v293
    %v2817 = vunpack.c.h.b16 %v293
    %v2818 = vunpack.c.l.b16 %v294
    %v2819 = vunpack.c.h.b16 %v294
    %v2820 = vunpack.c.l.b16 %v295
    %v2821 = vunpack.c.h.b16 %v295
    %v2822 = vunpack.c.l.b16 %v296
    %v2823 = vunpack.c.h.b16 %v296
    %v2824 = vunpack.c.l.b16 %v297
    %v2825 = vunpack.c.h.b16 %v297
    %v2826 = vunpack.c.l.b16 %v298
    %v2827 = vunpack.c.h.b16 %v298
    %v2828 = vunpack.c.l.b16 %v299
    %v2829 = vunpack.c.h.b16 %v299
    %v2830 = vunpack.c.l.b16 %v300
    %v2831 = vunpack.c.h.b16 %v300
    %v2832 = vunpack.c.l.b16 %v301
    %v2833 = vunpack.c.h.b16 %v301
    %v2834 = vunpack.c.l.b16 %v302
    %v2835 = vunpack.c.h.b16 %v302
    %v2836 = vunpack.c.l.b16 %v303
    %v2837 = vunpack.c.h.b16 %v303
    %v2838 = vunpack.c.l.b16 %v304
    %v2839 = vunpack.c.h.b16 %v304
    %v2840 = vunpack.c.l.b16 %v305
    %v2841 = vunpack.c.h.b16 %v305
    %v2842 = vunpack.c.l.b16 %v306
    %v2843 = vunpack.c.h.b16 %v306
    %v2844 = vunpack.c.l.b16 %v307
    %v2845 = vunpack.c.h.b16 %v307
    %v2846 = vunpack.c.l.b16 %v308
    %v2847 = vunpack.c.h.b16 %v308
    %v2848 = vunpack.c.l.b16 %v309
    %v2849 = vunpack.c.h.b16 %v309
    %v2850 = vunpack.c.l.b16 %v310
    %v2851 = vunpack.c.h.b16 %v310
    %v2852 = vunpack.c.l.b16 %v311
    %v2853 = vunpack.c.h.b16 %v311
    %v2854 = vunpack.c.l.b16 %v312
    %v2855 = vunpack.c.h.b16 %v312
    %v2856 = vunpack.c.l.b16 %v313
    %v2857 = vunpack.c.h.b16 %v313
    %v2858 = vunpack.c.l.b16 %v314
    %v2859 = vunpack.c.h.b16 %v314
    %v2860 = vunpack.c.l.b16 %v315
    %v2861 = vunpack.c.h.b16 %v315
    %v2862 = vunpack.c.l.b16 %v316
    %v2863 = vunpack.c.h.b16 %v316
    %v2864 = vunpack.c.l.b16 %v317
    %v2865 = vunpack.c.h.b16 %v317
    %v2866 = vunpack.c.l.b16 %v318
    %v2867 = vunpack.c.h.b16 %v318
    %v2868 = vunpack.c.l.b16 %v319
    %v2869 = vunpack.c.h.b16 %v319
    %v2870 = vunpack.c.l.b16 %v320
    %v2871 = vunpack.c.h.b16 %v320
    %v2872 = vunpack.c.l.b16 %v321
    %v2873 = vunpack.c.h.b16 %v321
    %v2874 = vunpack.c.l.b16 %v322
    %v2875 = vunpack.c.h.b16 %v322
    %v2876 = vunpack.c.l.b16 %v323
    %v2877 = vunpack.c.h.b16 %v323
    %v2878 = vunpack.c.l.b16 %v324
    %v2879 = vunpack.c.h.b16 %v324
    %v2880 = vunpack.c.l.b16 %v325
    %v2881 = vunpack.c.h.b16 %v325
    %v2882 = vunpack.c.l.b16 %v326
    %v2883 = vunpack.c.h.b16 %v326
    %v2884 = vunpack.c.l.b16 %v327
    %v2885 = vunpack.c.h.b16 %v327
    %v2886 = vunpack.c.l.b16 %v328
    %v2887 = vunpack.c.h.b16 %v328
    %v2888 = vunpack.c.l.b16 %v329
    %v2889 = vunpack.c.h.b16 %v329
    %v2890 = vunpack.c.l.b16 %v330
    %v2891 = vunpack.c.h.b16 %v330
    %v2892 = vunpack.c.l.b16 %v331
    %v2893 = vunpack.c.h.b16 %v331
    %v2894 = vunpack.c.l.b16 %v332
    %v2895 = vunpack.c.h.b16 %v332
    %v2896 = vunpack.c.l.b16 %v333
    %v2897 = vunpack.c.h.b16 %v333
    %v2898 = vunpack.c.l.b16 %v334
    %v2899 = vunpack.c.h.b16 %v334
    %v2900 = vunpack.c.l.b16 %v335
    %v2901 = vunpack.c.h.b16 %v335
    %v2902 = vunpack.c.l.b16 %v336
    %v2903 = vunpack.c.h.b16 %v336
    %v2904 = vunpack.c.l.b16 %v337
    %v2905 = vunpack.c.h.b16 %v337
    %v2906 = vunpack.c.l.b16 %v338
    %v2907 = vunpack.c.h.b16 %v338
    %v2908 = vunpack.c.l.b16 %v339
    %v2909 = vunpack.c.h.b16 %v339
    %v2910 = vunpack.c.l.b16 %v340
    %v2911 = vunpack.c.h.b16 %v340
    %v2912 = vunpack.c.l.b16 %v341
    %v2913 = vunpack.c.h.b16 %v341
    %v2914 = vunpack.c.l.b16 %v342
    %v2915 = vunpack.c.h.b16 %v342
    %v2916 = vunpack.c.l.b16 %v343
    %v2917 = vunpack.c.h.b16 %v343
    %v2918 = vunpack.c.l.b16 %v344
    %v2919 = vunpack.c.h.b16 %v344
    %v2920 = vunpack.c.l.b16 %v345
    %v2921 = vunpack.c.h.b16 %v345
    %v2922 = vunpack.c.l.b16 %v346
    %v2923 = vunpack.c.h.b16 %v346
    %v2924 = vunpack.c.l.b16 %v347
    %v2925 = vunpack.c.h.b16 %v347
    %v2926 = vunpack.c.l.b16 %v348
    %v2927 = vunpack.c.h.b16 %v348
    %v2928 = vunpack.c.l.b16 %v349
    %v2929 = vunpack.c.h.b16 %v349
    %v2930 = vunpack.c.l.b16 %v350
    %v2931 = vunpack.c.h.b16 %v350
    %v2932 = vunpack.c.l.b16 %v351
    %v2933 = vunpack.c.h.b16 %v351
    %v2934 = vunpack.c.l.b16 %v352
    %v2935 = vunpack.c.h.b16 %v352
    %v2936 = vunpack.c.l.b16 %v353
    %v2937 = vunpack.c.h.b16 %v353
    %v2938 = vunpack.c.l.b16 %v354
    %v2939 = vunpack.c.h.b16 %v354
    %v2940 = vunpack.c.l.b16 %v355
    %v2941 = vunpack.c.h.b16 %v355
    %v2942 = vunpack.c.l.b16 %v356
    %v2943 = vunpack.c.h.b16 %v356
    %v2944 = vunpack.c.l.b16 %v357
    %v2945 = vunpack.c.h.b16 %v357
    %v2946 = vunpack.c.l.b16 %v358
    %v2947 = vunpack.c.h.b16 %v358
    %v2948 = vunpack.c.l.b16 %v359
    %v2949 = vunpack.c.h.b16 %v359
    %v2950 = vunpack.c.l.b16 %v360
    %v2951 = vunpack.c.h.b16 %v360
    %v2952 = vunpack.c.l.b16 %v361
    %v2953 = vunpack.c.h.b16 %v361
    %v2954 = vunpack.c.l.b16 %v362
    %v2955 = vunpack.c.h.b16 %v362
    %v2956 = vunpack.c.l.b16 %v363
    %v2957 = vunpack.c.h.b16 %v363
    %v2958 = vunpack.c.l.b16 %v364
    %v2959 = vunpack.c.h.b16 %v364
    %v2960 = vunpack.c.l.b16 %v365
    %v2961 = vunpack.c.h.b16 %v365
    %v2962 = vunpack.c.l.b16 %v366
    %v2963 = vunpack.c.h.b16 %v366
    %v2964 = vunpack.c.l.b16 %v367
    %v2965 = vunpack.c.h.b16 %v367
    %v2966 = vunpack.c.l.b16 %v368
    %v2967 = vunpack.c.h.b16 %v368
    %v2968 = vunpack.c.l.b16 %v369
    %v2969 = vunpack.c.h.b16 %v369
    %v2970 = vunpack.c.l.b16 %v370
    %v2971 = vunpack.c.h.b16 %v370
    %v2972 = vunpack.c.l.b16 %v371
    %v2973 = vunpack.c.h.b16 %v371
    %v2974 = vunpack.c.l.b16 %v372
    %v2975 = vunpack.c.h.b16 %v372
    %v2976 = vunpack.c.l.b16 %v373
    %v2977 = vunpack.c.h.b16 %v373
    %v2978 = vunpack.c.l.b16 %v374
    %v2979 = vunpack.c.h.b16 %v374
    %v2980 = vunpack.c.l.b16 %v375
    %v2981 = vunpack.c.h.b16 %v375
    %v2982 = vunpack.c.l.b16 %v376
    %v2983 = vunpack.c.h.b16 %v376
    %v2984 = vunpack.c.l.b16 %v377
    %v2985 = vunpack.c.h.b16 %v377
    %v2986 = vunpack.c.l.b16 %v378
    %v2987 = vunpack.c.h.b16 %v378
    %v2988 = vunpack.c.l.b16 %v379
    %v2989 = vunpack.c.h.b16 %v379
    %v2990 = vunpack.c.l.b16 %v380
    %v2991 = vunpack.c.h.b16 %v380
    %v2992 = vunpack.c.l.b16 %v381
    %v2993 = vunpack.c.h.b16 %v381
    %v2994 = vunpack.c.l.b16 %v382
    %v2995 = vunpack.c.h.b16 %v382
    %v2996 = vunpack.c.l.b16 %v383
    %v2997 = vunpack.c.h.b16 %v383
    %v2998 = vunpack.c.l.b16 %v384
    %v2999 = vunpack.c.h.b16 %v384
    %v3000 = vunpack.c.l.b16 %v385
    %v3001 = vunpack.c.h.b16 %v385
    %v3002 = vunpack.c.l.b16 %v386
    %v3003 = vunpack.c.h.b16 %v386
    %v3004 = vunpack.c.l.b16 %v387
    %v3005 = vunpack.c.h.b16 %v387
    %v3006 = vunpack.c.l.b16 %v388
    %v3007 = vunpack.c.h.b16 %v388
    %v3008 = vunpack.c.l.b16 %v389
    %v3009 = vunpack.c.h.b16 %v389
    %v3010 = vunpack.c.l.b16 %v390
    %v3011 = vunpack.c.h.b16 %v390
    %v3012 = vunpack.c.l.b16 %v391
    %v3013 = vunpack.c.h.b16 %v391
    %v3014 = vunpack.c.l.b16 %v392
    %v3015 = vunpack.c.h.b16 %v392
    %v3016 = vunpack.c.l.b16 %v393
    %v3017 = vunpack.c.h.b16 %v393
    %v3018 = vunpack.c.l.b16 %v394
    %v3019 = vunpack.c.h.b16 %v394
    %v3020 = vunpack.c.l.b16 %v395
    %v3021 = vunpack.c.h.b16 %v395
    %v3022 = vunpack.c.l.b16 %v396
    %v3023 = vunpack.c.h.b16 %v396
    %v3024 = vunpack.c.l.b16 %v397
    %v3025 = vunpack.c.h.b16 %v397
    %v3026 = vunpack.c.l.b16 %v398
    %v3027 = vunpack.c.h.b16 %v398
    %v3028 = vunpack.c.l.b16 %v399
    %v3029 = vunpack.c.h.b16 %v399
    %v3030 = vunpack.c.l.b16 %v400
    %v3031 = vunpack.c.h.b16 %v400
    %v3032 = vunpack.c.l.b16 %v401
    %v3033 = vunpack.c.h.b16 %v401
    %v3034 = vunpack.c.l.b16 %v402
    %v3035 = vunpack.c.h.b16 %v402
    %v3036 = vunpack.c.l.b16 %v403
    %v3037 = vunpack.c.h.b16 %v403
    %v3038 = vunpack.c.l.b16 %v404
    %v3039 = vunpack.c.h.b16 %v404
    %v3040 = vunpack.c.l.b16 %v405
    %v3041 = vunpack.c.h.b16 %v405
    %v3042 = vunpack.c.l.b16 %v406
    %v3043 = vunpack.c.h.b16 %v406
    %v3044 = vunpack.c.l.b16 %v407
    %v3045 = vunpack.c.h.b16 %v407
    %v3046 = vunpack.c.l.b16 %v408
    %v3047 = vunpack.c.h.b16 %v408
    %v3048 = vunpack.c.l.b16 %v409
    %v3049 = vunpack.c.h.b16 %v409
    %v3050 = vunpack.c.l.b16 %v410
    %v3051 = vunpack.c.h.b16 %v410
    %v3052 = vunpack.c.l.b16 %v411
    %v3053 = vunpack.c.h.b16 %v411
    %v3054 = vunpack.c.l.b16 %v412
    %v3055 = vunpack.c.h.b16 %v412
    %v3056 = vunpack.c.l.b16 %v413
    %v3057 = vunpack.c.h.b16 %v413
    %v3058 = vunpack.c.l.b16 %v414
    %v3059 = vunpack.c.h.b16 %v414
    %v3060 = vunpack.c.l.b16 %v415
    %v3061 = vunpack.c.h.b16 %v415
    %v3062 = vunpack.c.l.b16 %v416
    %v3063 = vunpack.c.h.b16 %v416
    %v3064 = vunpack.c.l.b16 %v417
    %v3065 = vunpack.c.h.b16 %v417
    %v3066 = vunpack.c.l.b16 %v418
    %v3067 = vunpack.c.h.b16 %v418
    %v3068 = vunpack.c.l.b16 %v419
    %v3069 = vunpack.c.h.b16 %v419
    %v3070 = vunpack.c.l.b16 %v420
    %v3071 = vunpack.c.h.b16 %v420
    %v3072 = vunpack.c.l.b16 %v421
    %v3073 = vunpack.c.h.b16 %v421
    %v3074 = vunpack.c.l.b16 %v422
    %v3075 = vunpack.c.h.b16 %v422
    %v3076 = vunpack.c.l.b16 %v423
    %v3077 = vunpack.c.h.b16 %v423
    %v3078 = vunpack.c.l.b16 %v424
    %v3079 = vunpack.c.h.b16 %v424
    %v3080 = vunpack.c.l.b16 %v425
    %v3081 = vunpack.c.h.b16 %v425
    %v3082 = vunpack.c.l.b16 %v426
    %v3083 = vunpack.c.h.b16 %v426
    %v3084 = vunpack.c.l.b16 %v427
    %v3085 = vunpack.c.h.b16 %v427
    %v3086 = vunpack.c.l.b16 %v428
    %v3087 = vunpack.c.h.b16 %v428
    %v3088 = vunpack.c.l.b16 %v429
    %v3089 = vunpack.c.h.b16 %v429
    %v3090 = vunpack.c.l.b16 %v430
    %v3091 = vunpack.c.h.b16 %v430
    %v3092 = vunpack.c.l.b16 %v431
    %v3093 = vunpack.c.h.b16 %v431
    %v3094 = vunpack.c.l.b16 %v432
    %v3095 = vunpack.c.h.b16 %v432
    %v3096 = vunpack.c.l.b16 %v433
    %v3097 = vunpack.c.h.b16 %v433
    %v3098 = vunpack.c.l.b16 %v434
    %v3099 = vunpack.c.h.b16 %v434
    %v3100 = vunpack.c.l.b16 %v435
    %v3101 = vunpack.c.h.b16 %v435
    %v3102 = vunpack.c.l.b16 %v436
    %v3103 = vunpack.c.h.b16 %v436
    %v3104 = vunpack.c.l.b16 %v437
    %v3105 = vunpack.c.h.b16 %v437
    %v3106 = vunpack.c.l.b16 %v438
    %v3107 = vunpack.c.h.b16 %v438
    %v3108 = vunpack.c.l.b16 %v439
    %v3109 = vunpack.c.h.b16 %v439
    %v3110 = vunpack.c.l.b16 %v440
    %v3111 = vunpack.c.h.b16 %v440
    %v3112 = vunpack.c.l.b16 %v441
    %v3113 = vunpack.c.h.b16 %v441
    %v3114 = vunpack.c.l.b16 %v442
    %v3115 = vunpack.c.h.b16 %v442
    %v3116 = vunpack.c.l.b16 %v443
    %v3117 = vunpack.c.h.b16 %v443
    %v3118 = vunpack.c.l.b16 %v444
    %v3119 = vunpack.c.h.b16 %v444
    %v3120 = vunpack.c.l.b16 %v445
    %v3121 = vunpack.c.h.b16 %v445
    %v3122 = vunpack.c.l.b16 %v446
    %v3123 = vunpack.c.h.b16 %v446
    %v3124 = vunpack.c.l.b16 %v447
    %v3125 = vunpack.c.h.b16 %v447
    %v3126 = vunpack.c.l.b16 %v448
    %v3127 = vunpack.c.h.b16 %v448
    %v3128 = vunpack.c.l.b16 %v449
    %v3129 = vunpack.c.h.b16 %v449
    %v3130 = vunpack.c.l.b16 %v450
    %v3131 = vunpack.c.h.b16 %v450
    %v3132 = vunpack.c.l.b16 %v451
    %v3133 = vunpack.c.h.b16 %v451
    %v3134 = vunpack.c.l.b16 %v452
    %v3135 = vunpack.c.h.b16 %v452
    %v3136 = vunpack.c.l.b16 %v453
    %v3137 = vunpack.c.h.b16 %v453
    %v3138 = vunpack.c.l.b16 %v454
    %v3139 = vunpack.c.h.b16 %v454
    %v3140 = vunpack.c.l.b16 %v455
    %v3141 = vunpack.c.h.b16 %v455
    %v3142 = vunpack.c.l.b16 %v456
    %v3143 = vunpack.c.h.b16 %v456
    %v3144 = vunpack.c.l.b16 %v457
    %v3145 = vunpack.c.h.b16 %v457
    %v3146 = vunpack.c.l.b16 %v458
    %v3147 = vunpack.c.h.b16 %v458
    %v3148 = vunpack.c.l.b16 %v459
    %v3149 = vunpack.c.h.b16 %v459
    %v3150 = vunpack.c.l.b16 %v460
    %v3151 = vunpack.c.h.b16 %v460
    %v3152 = vunpack.c.l.b16 %v461
    %v3153 = vunpack.c.h.b16 %v461
    %v3154 = vunpack.c.l.b16 %v462
    %v3155 = vunpack.c.h.b16 %v462
    %v3156 = vunpack.c.l.b16 %v463
    %v3157 = vunpack.c.h.b16 %v463
    %v3158 = vunpack.c.l.b16 %v464
    %v3159 = vunpack.c.h.b16 %v464
    %v3160 = vunpack.c.l.b16 %v465
    %v3161 = vunpack.c.h.b16 %v465
    %v3162 = vunpack.c.l.b16 %v466
    %v3163 = vunpack.c.h.b16 %v466
    %v3164 = vunpack.c.l.b16 %v467
    %v3165 = vunpack.c.h.b16 %v467
    %v3166 = vunpack.c.l.b16 %v468
    %v3167 = vunpack.c.h.b16 %v468
    %v3168 = vunpack.c.l.b16 %v469
    %v3169 = vunpack.c.h.b16 %v469
    %v3170 = vunpack.c.l.b16 %v470
    %v3171 = vunpack.c.h.b16 %v470
    %v3172 = vunpack.c.l.b16 %v471
    %v3173 = vunpack.c.h.b16 %v471
    %v3174 = vunpack.c.l.b16 %v472
    %v3175 = vunpack.c.h.b16 %v472
    %v3176 = vunpack.c.l.b16 %v473
    %v3177 = vunpack.c.h.b16 %v473
    %v3178 = vunpack.c.l.b16 %v474
    %v3179 = vunpack.c.h.b16 %v474
    %v3180 = vunpack.c.l.b16 %v475
    %v3181 = vunpack.c.h.b16 %v475
    %v3182 = vunpack.c.l.b16 %v476
    %v3183 = vunpack.c.h.b16 %v476
    %v3184 = vunpack.c.l.b16 %v477
    %v3185 = vunpack.c.h.b16 %v477
    %v3186 = vunpack.c.l.b16 %v478
    %v3187 = vunpack.c.h.b16 %v478
    %v3188 = vunpack.c.l.b16 %v479
    %v3189 = vunpack.c.h.b16 %v479
    %v3190 = vunpack.c.l.b16 %v480
    %v3191 = vunpack.c.h.b16 %v480
    %v3192 = vunpack.c.l.b16 %v481
    %v3193 = vunpack.c.h.b16 %v481
    %v3194 = vunpack.c.l.b16 %v482
    %v3195 = vunpack.c.h.b16 %v482
    %v3196 = vunpack.c.l.b16 %v483
    %v3197 = vunpack.c.h.b16 %v483
    %v3198 = vunpack.c.l.b16 %v484
    %v3199 = vunpack.c.h.b16 %v484
    %v3200 = vunpack.c.l.b16 %v485
    %v3201 = vunpack.c.h.b16 %v485
    %v3202 = vunpack.c.l.b16 %v486
    %v3203 = vunpack.c.h.b16 %v486
    %v3204 = vunpack.c.l.b16 %v487
    %v3205 = vunpack.c.h.b16 %v487
    %v3206 = vunpack.c.l.b16 %v488
    %v3207 = vunpack.c.h.b16 %v488
    %v3208 = vunpack.c.l.b16 %v489
    %v3209 = vunpack.c.h.b16 %v489
    %v3210 = vunpack.c.l.b16 %v490
    %v3211 = vunpack.c.h.b16 %v490
    %v3212 = vunpack.c.l.b16 %v491
    %v3213 = vunpack.c.h.b16 %v491
    %v3214 = vunpack.c.l.b16 %v492
    %v3215 = vunpack.c.h.b16 %v492
    %v3216 = vunpack.c.l.b16 %v493
    %v3217 = vunpack.c.h.b16 %v493
    %v3218 = vunpack.c.l.b16 %v494
    %v3219 = vunpack.c.h.b16 %v494
    %v3220 = vunpack.c.l.b16 %v495
    %v3221 = vunpack.c.h.b16 %v495
    %v3222 = vunpack.c.l.b16 %v496
    %v3223 = vunpack.c.h.b16 %v496
    %v3224 = vunpack.c.l.b16 %v497
    %v3225 = vunpack.c.h.b16 %v497
    %v3226 = vunpack.c.l.b16 %v498
    %v3227 = vunpack.c.h.b16 %v498
    %v3228 = vunpack.c.l.b16 %v499
    %v3229 = vunpack.c.h.b16 %v499
    %v3230 = vunpack.c.l.b16 %v500
    %v3231 = vunpack.c.h.b16 %v500
    %v3232 = vunpack.c.l.b16 %v501
    %v3233 = vunpack.c.h.b16 %v501
    %v3234 = vunpack.c.l.b16 %v502
    %v3235 = vunpack.c.h.b16 %v502
    %v3236 = vunpack.c.l.b16 %v503
    %v3237 = vunpack.c.h.b16 %v503
    %v3238 = vunpack.c.l.b16 %v504
    %v3239 = vunpack.c.h.b16 %v504
    %v3240 = vunpack.c.l.b16 %v505
    %v3241 = vunpack.c.h.b16 %v505
    %v3242 = vunpack.c.l.b16 %v506
    %v3243 = vunpack.c.h.b16 %v506
    %v3244 = vunpack.c.l.b16 %v507
    %v3245 = vunpack.c.h.b16 %v507
    %v3246 = vunpack.c.l.b16 %v508
    %v3247 = vunpack.c.h.b16 %v508
    %v3248 = vunpack.c.l.b16 %v509
    %v3249 = vunpack.c.h.b16 %v509
    %v3250 = vunpack.c.l.b16 %v510
    %v3251 = vunpack.c.h.b16 %v510
    %v3252 = vunpack.c.l.b16 %v511
    %v3253 = vunpack.c.h.b16 %v511
    %v3254 = vunpack.c.l.b16 %v512
    %v3255 = vunpack.c.h.b16 %v512
    %v3256 = vunpack.c.l.b16 %v513
    %v3257 = vunpack.c.h.b16 %v513
    %v3258 = vunpack.c.l.b16 %v514
    %v3259 = vunpack.c.h.b16 %v514
    %v3260 = vunpack.c.l.b16 %v515
    %v3261 = vunpack.c.h.b16 %v515
    %v3262 = vunpack.c.l.b16 %v516
    %v3263 = vunpack.c.h.b16 %v516
    %v3264 = vunpack.c.l.b16 %v517
    %v3265 = vunpack.c.h.b16 %v517
    %v3266 = vunpack.c.l.b16 %v518
    %v3267 = vunpack.c.h.b16 %v518
    %v3268 = vunpack.c.l.b16 %v519
    %v3269 = vunpack.c.h.b16 %v519
    %v3270 = vunpack.c.l.b16 %v520
    %v3271 = vunpack.c.h.b16 %v520
    %v3272 = vunpack.c.l.b16 %v521
    %v3273 = vunpack.c.h.b16 %v521
    %v3274 = vunpack.c.l.b16 %v522
    %v3275 = vunpack.c.h.b16 %v522
    %v3276 = vunpack.c.l.b16 %v523
    %v3277 = vunpack.c.h.b16 %v523
    %v3278 = vunpack.c.l.b16 %v524
    %v3279 = vunpack.c.h.b16 %v524
    %v3280 = vunpack.c.l.b16 %v525
    %v3281 = vunpack.c.h.b16 %v525
    %v3282 = vunpack.c.l.b16 %v526
    %v3283 = vunpack.c.h.b16 %v526
    %v3284 = vunpack.c.l.b16 %v527
    %v3285 = vunpack.c.h.b16 %v527
    %v3286 = vunpack.c.l.b16 %v528
    %v3287 = vunpack.c.h.b16 %v528
    %v3288 = vunpack.c.l.b16 %v529
    %v3289 = vunpack.c.h.b16 %v529
    %v3290 = vunpack.c.l.b16 %v530
    %v3291 = vunpack.c.h.b16 %v530
    %v3292 = vunpack.c.l.b16 %v531
    %v3293 = vunpack.c.h.b16 %v531
    %v3294 = vunpack.c.l.b16 %v532
    %v3295 = vunpack.c.h.b16 %v532
    %v3296 = vunpack.c.l.b16 %v533
    %v3297 = vunpack.c.h.b16 %v533
    %v3298 = vunpack.c.l.b16 %v534
    %v3299 = vunpack.c.h.b16 %v534
    %v3300 = vunpack.c.l.b16 %v535
    %v3301 = vunpack.c.h.b16 %v535
    %v3302 = vunpack.c.l.b16 %v536
    %v3303 = vunpack.c.h.b16 %v536
    %v3304 = vunpack.c.l.b16 %v537
    %v3305 = vunpack.c.h.b16 %v537
    %v3306 = vunpack.c.l.b16 %v538
    %v3307 = vunpack.c.h.b16 %v538
    %v3308 = vunpack.c.l.b16 %v539
    %v3309 = vunpack.c.h.b16 %v539
    %v3310 = vunpack.c.l.b16 %v540
    %v3311 = vunpack.c.h.b16 %v540
    %v3312 = vunpack.c.l.b16 %v541
    %v3313 = vunpack.c.h.b16 %v541
    %v3314 = vunpack.c.l.b16 %v542
    %v3315 = vunpack.c.h.b16 %v542
    %v3316 = vunpack.c.l.b16 %v543
    %v3317 = vunpack.c.h.b16 %v543
    %v3318 = vunpack.c.l.b16 %v544
    %v3319 = vunpack.c.h.b16 %v544
    %v3320 = vunpack.c.l.b16 %v545
    %v3321 = vunpack.c.h.b16 %v545
    %v3322 = vunpack.c.l.b16 %v546
    %v3323 = vunpack.c.h.b16 %v546
    %v3324 = vunpack.c.l.b16 %v547
    %v3325 = vunpack.c.h.b16 %v547
    %v3326 = vunpack.c.l.b16 %v548
    %v3327 = vunpack.c.h.b16 %v548
    %v3328 = vunpack.c.l.b16 %v549
    %v3329 = vunpack.c.h.b16 %v549
    %v3330 = vunpack.c.l.b16 %v550
    %v3331 = vunpack.c.h.b16 %v550
    %v3332 = vunpack.c.l.b16 %v551
    %v3333 = vunpack.c.h.b16 %v551
    %v3334 = vunpack.c.l.b16 %v552
    %v3335 = vunpack.c.h.b16 %v552
    %v3336 = vunpack.c.l.b16 %v553
    %v3337 = vunpack.c.h.b16 %v553
    %v3338 = vunpack.c.l.b16 %v554
    %v3339 = vunpack.c.h.b16 %v554
    %v3340 = vunpack.c.l.b16 %v555
    %v3341 = vunpack.c.h.b16 %v555
    %v3342 = vunpack.c.l.b16 %v556
    %v3343 = vunpack.c.h.b16 %v556
    %v3344 = vunpack.c.l.b16 %v557
    %v3345 = vunpack.c.h.b16 %v557
    %v3346 = vunpack.c.l.b16 %v558
    %v3347 = vunpack.c.h.b16 %v558
    %v3348 = vunpack.c.l.b16 %v559
    %v3349 = vunpack.c.h.b16 %v559
    %v3350 = vunpack.c.l.b16 %v560
    %v3351 = vunpack.c.h.b16 %v560
    %v3352 = vunpack.c.l.b16 %v561
    %v3353 = vunpack.c.h.b16 %v561
    %v3354 = vunpack.c.l.b16 %v562
    %v3355 = vunpack.c.h.b16 %v562
    %v3356 = vunpack.c.l.b16 %v563
    %v3357 = vunpack.c.h.b16 %v563
    %v3358 = vunpack.c.l.b16 %v564
    %v3359 = vunpack.c.h.b16 %v564
    %v3360 = vunpack.c.l.b16 %v565
    %v3361 = vunpack.c.h.b16 %v565
    %v3362 = vunpack.c.l.b16 %v566
    %v3363 = vunpack.c.h.b16 %v566
    %v3364 = vunpack.c.l.b16 %v567
    %v3365 = vunpack.c.h.b16 %v567
    %v3366 = vunpack.c.l.b16 %v568
    %v3367 = vunpack.c.h.b16 %v568
    %v3368 = vunpack.c.l.b16 %v569
    %v3369 = vunpack.c.h.b16 %v569
    %v3370 = vunpack.c.l.b16 %v570
    %v3371 = vunpack.c.h.b16 %v570
    %v3372 = vunpack.c.l.b16 %v571
    %v3373 = vunpack.c.h.b16 %v571
    %v3374 = vunpack.c.l.b16 %v572
    %v3375 = vunpack.c.h.b16 %v572
    %v3376 = vunpack.c.l.b16 %v573
    %v3377 = vunpack.c.h.b16 %v573
    %v3378 = vunpack.c.l.b16 %v574
    %v3379 = vunpack.c.h.b16 %v574
    %v3380 = vunpack.c.l.b16 %v575
    %v3381 = vunpack.c.h.b16 %v575
    %v3382 = vunpack.c.l.b16 %v576
    %v3383 = vunpack.c.h.b16 %v576
    %v3384 = vunpack.c.l.b16 %v577
    %v3385 = vunpack.c.h.b16 %v577
    %v3386 = vunpack.c.l.b16 %v578
    %v3387 = vunpack.c.h.b16 %v578
    %v3388 = vunpack.c.l.b16 %v579
    %v3389 = vunpack.c.h.b16 %v579
    %v3390 = vunpack.c.l.b16 %v580
    %v3391 = vunpack.c.h.b16 %v580
    %v3392 = vunpack.c.l.b16 %v581
    %v3393 = vunpack.c.h.b16 %v581
    %v3394 = vunpack.c.l.b16 %v582
    %v3395 = vunpack.c.h.b16 %v582
    %v3396 = vunpack.c.l.b16 %v583
    %v3397 = vunpack.c.h.b16 %v583
    %v3398 = vunpack.c.l.b16 %v584
    %v3399 = vunpack.c.h.b16 %v584
    %v3400 = vunpack.c.l.b16 %v585
    %v3401 = vunpack.c.h.b16 %v585
    %v3402 = vunpack.c.l.b16 %v586
    %v3403 = vunpack.c.h.b16 %v586
    %v3404 = vunpack.c.l.b16 %v587
    %v3405 = vunpack.c.h.b16 %v587
    %v3406 = vunpack.c.l.b16 %v588
    %v3407 = vunpack.c.h.b16 %v588
    %v3408 = vunpack.c.l.b16 %v589
    %v3409 = vunpack.c.h.b16 %v589
    %v3410 = vunpack.c.l.b16 %v590
    %v3411 = vunpack.c.h.b16 %v590
    %v3412 = vunpack.c.l.b16 %v591
    %v3413 = vunpack.c.h.b16 %v591
    %v3414 = vunpack.c.l.b16 %v592
    %v3415 = vunpack.c.h.b16 %v592
    %v3416 = vunpack.c.l.b16 %v593
    %v3417 = vunpack.c.h.b16 %v593
    %v3418 = vunpack.c.l.b16 %v594
    %v3419 = vunpack.c.h.b16 %v594
    %v3420 = vunpack.c.l.b16 %v595
    %v3421 = vunpack.c.h.b16 %v595
    %v3422 = vunpack.c.l.b16 %v596
    %v3423 = vunpack.c.h.b16 %v596
    %v3424 = vunpack.c.l.b16 %v597
    %v3425 = vunpack.c.h.b16 %v597
    %v3426 = vunpack.c.l.b16 %v598
    %v3427 = vunpack.c.h.b16 %v598
    %v3428 = vunpack.c.l.b16 %v599
    %v3429 = vunpack.c.h.b16 %v599
    %v3430 = vunpack.c.l.b16 %v600
    %v3431 = vunpack.c.h.b16 %v600
    %v3432 = vunpack.c.l.b16 %v601
    %v3433 = vunpack.c.h.b16 %v601
    %v3434 = vunpack.c.l.b16 %v602
    %v3435 = vunpack.c.h.b16 %v602
    %v3436 = vunpack.c.l.b16 %v603
    %v3437 = vunpack.c.h.b16 %v603
    %v3438 = vunpack.c.l.b16 %v604
    %v3439 = vunpack.c.h.b16 %v604
    %v3440 = vunpack.c.l.b16 %v605
    %v3441 = vunpack.c.h.b16 %v605
    %v3442 = vunpack.c.l.b16 %v606
    %v3443 = vunpack.c.h.b16 %v606
    %v3444 = vunpack.c.l.b16 %v607
    %v3445 = vunpack.c.h.b16 %v607
    %v3446 = vunpack.c.l.b16 %v608
    %v3447 = vunpack.c.h.b16 %v608
    %v3448 = vunpack.c.l.b16 %v609
    %v3449 = vunpack.c.h.b16 %v609
    %v3450 = vunpack.c.l.b16 %v610
    %v3451 = vunpack.c.h.b16 %v610
    %v3452 = vunpack.c.l.b16 %v611
    %v3453 = vunpack.c.h.b16 %v611
    %v3454 = vunpack.c.l.b16 %v612
    %v3455 = vunpack.c.h.b16 %v612
    %v3456 = vunpack.c.l.b16 %v613
    %v3457 = vunpack.c.h.b16 %v613
    %v3458 = vunpack.c.l.b16 %v614
    %v3459 = vunpack.c.h.b16 %v614
    %v3460 = vunpack.c.l.b16 %v615
    %v3461 = vunpack.c.h.b16 %v615
    %v3462 = vunpack.c.l.b16 %v616
    %v3463 = vunpack.c.h.b16 %v616
    %v3464 = vunpack.c.l.b16 %v617
    %v3465 = vunpack.c.h.b16 %v617
    %v3466 = vunpack.c.l.b16 %v618
    %v3467 = vunpack.c.h.b16 %v618
    %v3468 = vunpack.c.l.b16 %v619
    %v3469 = vunpack.c.h.b16 %v619
    %v3470 = vunpack.c.l.b16 %v620
    %v3471 = vunpack.c.h.b16 %v620
    %v3472 = vunpack.c.l.b16 %v621
    %v3473 = vunpack.c.h.b16 %v621
    %v3474 = vunpack.c.l.b16 %v622
    %v3475 = vunpack.c.h.b16 %v622
    %v3476 = vunpack.c.l.b16 %v623
    %v3477 = vunpack.c.h.b16 %v623
    %v3478 = vunpack.c.l.b16 %v624
    %v3479 = vunpack.c.h.b16 %v624
    %v3480 = vunpack.c.l.b16 %v625
    %v3481 = vunpack.c.h.b16 %v625
    %v3482 = vunpack.c.l.b16 %v626
    %v3483 = vunpack.c.h.b16 %v626
    %v3484 = vunpack.c.l.b16 %v627
    %v3485 = vunpack.c.h.b16 %v627
    %v3486 = vunpack.c.l.b16 %v628
    %v3487 = vunpack.c.h.b16 %v628
    %v3488 = vunpack.c.l.b16 %v629
    %v3489 = vunpack.c.h.b16 %v629
    %v3490 = vunpack.c.l.b16 %v630
    %v3491 = vunpack.c.h.b16 %v630
    %v3492 = vunpack.c.l.b16 %v631
    %v3493 = vunpack.c.h.b16 %v631
    %v3494 = vunpack.c.l.b16 %v632
    %v3495 = vunpack.c.h.b16 %v632
    %v3496 = vunpack.c.l.b16 %v633
    %v3497 = vunpack.c.h.b16 %v633
    %v3498 = vunpack.c.l.b16 %v634
    %v3499 = vunpack.c.h.b16 %v634
    %v3500 = vunpack.c.l.b16 %v635
    %v3501 = vunpack.c.h.b16 %v635
    %v3502 = vunpack.c.l.b16 %v636
    %v3503 = vunpack.c.h.b16 %v636
    %v3504 = vunpack.c.l.b16 %v637
    %v3505 = vunpack.c.h.b16 %v637
    %v3506 = vunpack.c.l.b16 %v638
    %v3507 = vunpack.c.h.b16 %v638
    %v3508 = vunpack.c.l.b16 %v639
    %v3509 = vunpack.c.h.b16 %v639
    %v3510 = vunpack.c.l.b16 %v640
    %v3511 = vunpack.c.h.b16 %v640
    %v3512 = vunpack.c.l.b16 %v641
    %v3513 = vunpack.c.h.b16 %v641
    %v3514 = vunpack.c.l.b16 %v642
    %v3515 = vunpack.c.h.b16 %v642
    %v3516 = vunpack.c.l.b16 %v643
    %v3517 = vunpack.c.h.b16 %v643
    %v3518 = vunpack.c.l.b16 %v644
    %v3519 = vunpack.c.h.b16 %v644
    %v3520 = vunpack.c.l.b16 %v645
    %v3521 = vunpack.c.h.b16 %v645
    %v3522 = vunpack.c.l.b16 %v646
    %v3523 = vunpack.c.h.b16 %v646
    %v3524 = vunpack.c.l.b16 %v647
    %v3525 = vunpack.c.h.b16 %v647
    %v3526 = vunpack.c.l.b16 %v648
    %v3527 = vunpack.c.h.b16 %v648
    %v3528 = vunpack.c.l.b16 %v649
    %v3529 = vunpack.c.h.b16 %v649
    %v3530 = vunpack.c.l.b16 %v650
    %v3531 = vunpack.c.h.b16 %v650
    %v3532 = vunpack.c.l.b16 %v651
    %v3533 = vunpack.c.h.b16 %v651
    %v3534 = vunpack.c.l.b16 %v652
    %v3535 = vunpack.c.h.b16 %v652
    %v3536 = vunpack.c.l.b16 %v653
    %v3537 = vunpack.c.h.b16 %v653
    %v3538 = vunpack.c.l.b16 %v654
    %v3539 = vunpack.c.h.b16 %v654
    %v3540 = vunpack.c.l.b16 %v655
    %v3541 = vunpack.c.h.b16 %v655
    %v3542 = vunpack.c.l.b16 %v656
    %v3543 = vunpack.c.h.b16 %v656
    %v3544 = vunpack.c.l.b16 %v657
    %v3545 = vunpack.c.h.b16 %v657
    %v3546 = vunpack.c.l.b16 %v658
    %v3547 = vunpack.c.h.b16 %v658
    %v3548 = vunpack.c.l.b16 %v659
    %v3549 = vunpack.c.h.b16 %v659
    %v3550 = vunpack.c.l.b16 %v660
    %v3551 = vunpack.c.h.b16 %v660
    %v3552 = vunpack.c.l.b16 %v661
    %v3553 = vunpack.c.h.b16 %v661
    %v3554 = vunpack.c.l.b16 %v662
    %v3555 = vunpack.c.h.b16 %v662
    %v3556 = vunpack.c.l.b16 %v663
    %v3557 = vunpack.c.h.b16 %v663
    %v3558 = vunpack.c.l.b16 %v664
    %v3559 = vunpack.c.h.b16 %v664
    %v3560 = vunpack.c.l.b16 %v665
    %v3561 = vunpack.c.h.b16 %v665
    %v3562 = vunpack.c.l.b16 %v666
    %v3563 = vunpack.c.h.b16 %v666
    %v3564 = vunpack.c.l.b16 %v667
    %v3565 = vunpack.c.h.b16 %v667
    %v3566 = vunpack.c.l.b16 %v668
    %v3567 = vunpack.c.h.b16 %v668
    %v3568 = vunpack.c.l.b16 %v669
    %v3569 = vunpack.c.h.b16 %v669
    %v3570 = vunpack.c.l.b16 %v670
    %v3571 = vunpack.c.h.b16 %v670
    %v3572 = vunpack.c.l.b16 %v671
    %v3573 = vunpack.c.h.b16 %v671
    %v3574 = vunpack.c.l.b16 %v672
    %v3575 = vunpack.c.h.b16 %v672
    %v3576 = vunpack.c.l.b16 %v673
    %v3577 = vunpack.c.h.b16 %v673
    %v3578 = vunpack.c.l.b16 %v674
    %v3579 = vunpack.c.h.b16 %v674
    %v3580 = vunpack.c.l.b16 %v675
    %v3581 = vunpack.c.h.b16 %v675
    %v3582 = vunpack.c.l.b16 %v676
    %v3583 = vunpack.c.h.b16 %v676
    %v3584 = vunpack.c.l.b16 %v677
    %v3585 = vunpack.c.h.b16 %v677
    %v3586 = vunpack.c.l.b16 %v678
    %v3587 = vunpack.c.h.b16 %v678
    %v3588 = vunpack.c.l.b16 %v679
    %v3589 = vunpack.c.h.b16 %v679
    %v3590 = vunpack.c.l.b16 %v680
    %v3591 = vunpack.c.h.b16 %v680
    %v3592 = vunpack.c.l.b16 %v681
    %v3593 = vunpack.c.h.b16 %v681
    %v3594 = vunpack.c.l.b16 %v682
    %v3595 = vunpack.c.h.b16 %v682
    %v3596 = vunpack.c.l.b16 %v683
    %v3597 = vunpack.c.h.b16 %v683
    %v3598 = vunpack.c.l.b16 %v684
    %v3599 = vunpack.c.h.b16 %v684
    %v3600 = vunpack.c.l.b16 %v685
    %v3601 = vunpack.c.h.b16 %v685
    %v3602 = vunpack.c.l.b16 %v686
    %v3603 = vunpack.c.h.b16 %v686
    %v3604 = vunpack.c.l.b16 %v687
    %v3605 = vunpack.c.h.b16 %v687
    %v3606 = vunpack.c.l.b16 %v688
    %v3607 = vunpack.c.h.b16 %v688
    %v3608 = vunpack.c.l.b16 %v689
    %v3609 = vunpack.c.h.b16 %v689
    %v3610 = vunpack.c.l.b16 %v690
    %v3611 = vunpack.c.h.b16 %v690
    %v3612 = vunpack.c.l.b16 %v691
    %v3613 = vunpack.c.h.b16 %v691
    %v3614 = vunpack.c.l.b16 %v692
    %v3615 = vunpack.c.h.b16 %v692
    %v3616 = vunpack.c.l.b16 %v693
    %v3617 = vunpack.c.h.b16 %v693
    %v3618 = vunpack.c.l.b16 %v694
    %v3619 = vunpack.c.h.b16 %v694
    %v3620 = vunpack.c.l.b16 %v695
    %v3621 = vunpack.c.h.b16 %v695
    %v3622 = vunpack.c.l.b16 %v696
    %v3623 = vunpack.c.h.b16 %v696
    %v3624 = vunpack.c.l.b16 %v697
    %v3625 = vunpack.c.h.b16 %v697
    %v3626 = vunpack.c.l.b16 %v698
    %v3627 = vunpack.c.h.b16 %v698
    %v3628 = vunpack.c.l.b16 %v699
    %v3629 = vunpack.c.h.b16 %v699
    %v3630 = vunpack.c.l.b16 %v700
    %v3631 = vunpack.c.h.b16 %v700
    %v3632 = vunpack.c.l.b16 %v701
    %v3633 = vunpack.c.h.b16 %v701
    %v3634 = vunpack.c.l.b16 %v702
    %v3635 = vunpack.c.h.b16 %v702
    %v3636 = vunpack.c.l.b16 %v703
    %v3637 = vunpack.c.h.b16 %v703
    %v3638 = vunpack.c.l.b16 %v704
    %v3639 = vunpack.c.h.b16 %v704
    %v3640 = vunpack.c.l.b16 %v705
    %v3641 = vunpack.c.h.b16 %v705
    %v3642 = vunpack.c.l.b16 %v706
    %v3643 = vunpack.c.h.b16 %v706
    %v3644 = vunpack.c.l.b16 %v707
    %v3645 = vunpack.c.h.b16 %v707
    %v3646 = vunpack.c.l.b16 %v708
    %v3647 = vunpack.c.h.b16 %v708
    %v3648 = vunpack.c.l.b16 %v709
    %v3649 = vunpack.c.h.b16 %v709
    %v3650 = vunpack.c.l.b16 %v710
    %v3651 = vunpack.c.h.b16 %v710
    %v3652 = vunpack.c.l.b16 %v711
    %v3653 = vunpack.c.h.b16 %v711
    %v3654 = vunpack.c.l.b16 %v712
    %v3655 = vunpack.c.h.b16 %v712
    %v3656 = vunpack.c.l.b16 %v713
    %v3657 = vunpack.c.h.b16 %v713
    %v3658 = vunpack.c.l.b16 %v714
    %v3659 = vunpack.c.h.b16 %v714
    %v3660 = vunpack.c.l.b16 %v715
    %v3661 = vunpack.c.h.b16 %v715
    %v3662 = vunpack.c.l.b16 %v716
    %v3663 = vunpack.c.h.b16 %v716
    %v3664 = vunpack.c.l.b16 %v717
    %v3665 = vunpack.c.h.b16 %v717
    %v3666 = vunpack.c.l.b16 %v718
    %v3667 = vunpack.c.h.b16 %v718
    %v3668 = vunpack.c.l.b16 %v719
    %v3669 = vunpack.c.h.b16 %v719
    %v3670 = vunpack.c.l.b16 %v720
    %v3671 = vunpack.c.h.b16 %v720
    %v3672 = vunpack.c.l.b16 %v721
    %v3673 = vunpack.c.h.b16 %v721
    %v3674 = vunpack.c.l.b16 %v722
    %v3675 = vunpack.c.h.b16 %v722
    %v3676 = vunpack.c.l.b16 %v723
    %v3677 = vunpack.c.h.b16 %v723
    %v3678 = vunpack.c.l.b16 %v724
    %v3679 = vunpack.c.h.b16 %v724
    %v3680 = vunpack.c.l.b16 %v725
    %v3681 = vunpack.c.h.b16 %v725
    %v3682 = vunpack.c.l.b16 %v726
    %v3683 = vunpack.c.h.b16 %v726
    %v3684 = vunpack.c.l.b16 %v727
    %v3685 = vunpack.c.h.b16 %v727
    %v3686 = vunpack.c.l.b16 %v728
    %v3687 = vunpack.c.h.b16 %v728
    %v3688 = vunpack.c.l.b16 %v729
    %v3689 = vunpack.c.h.b16 %v729
    %v3690 = vunpack.c.l.b16 %v730
    %v3691 = vunpack.c.h.b16 %v730
    %v3692 = vunpack.c.l.b16 %v731
    %v3693 = vunpack.c.h.b16 %v731
    %v3694 = vunpack.c.l.b16 %v732
    %v3695 = vunpack.c.h.b16 %v732
    %v3696 = vunpack.c.l.b16 %v733
    %v3697 = vunpack.c.h.b16 %v733
    %v3698 = vunpack.c.l.b16 %v734
    %v3699 = vunpack.c.h.b16 %v734
    %v3700 = vunpack.c.l.b16 %v735
    %v3701 = vunpack.c.h.b16 %v735
    %v3702 = vunpack.c.l.b16 %v736
    %v3703 = vunpack.c.h.b16 %v736
    %v3704 = vunpack.c.l.b16 %v737
    %v3705 = vunpack.c.h.b16 %v737
    %v3706 = vunpack.c.l.b16 %v738
    %v3707 = vunpack.c.h.b16 %v738
    %v3708 = vunpack.c.l.b16 %v739
    %v3709 = vunpack.c.h.b16 %v739
    %v3710 = vunpack.c.l.b16 %v740
    %v3711 = vunpack.c.h.b16 %v740
    %v3712 = vunpack.c.l.b16 %v741
    %v3713 = vunpack.c.h.b16 %v741
    %v3714 = vunpack.c.l.b16 %v742
    %v3715 = vunpack.c.h.b16 %v742
    %v3716 = vunpack.c.l.b16 %v743
    %v3717 = vunpack.c.h.b16 %v743
    %v3718 = vunpack.c.l.b16 %v744
    %v3719 = vunpack.c.h.b16 %v744
    %v3720 = vunpack.c.l.b16 %v745
    %v3721 = vunpack.c.h.b16 %v745
    %v3722 = vunpack.c.l.b16 %v746
    %v3723 = vunpack.c.h.b16 %v746
    %v3724 = vunpack.c.l.b16 %v747
    %v3725 = vunpack.c.h.b16 %v747
    %v3726 = vunpack.c.l.b16 %v748
    %v3727 = vunpack.c.h.b16 %v748
    %v3728 = vunpack.c.l.b16 %v749
    %v3729 = vunpack.c.h.b16 %v749
    %v3730 = vunpack.c.l.b16 %v750
    %v3731 = vunpack.c.h.b16 %v750
    %v3732 = vunpack.c.l.b16 %v751
    %v3733 = vunpack.c.h.b16 %v751
    %v3734 = vunpack.c.l.b16 %v752
    %v3735 = vunpack.c.h.b16 %v752
    %v3736 = vunpack.c.l.b16 %v753
    %v3737 = vunpack.c.h.b16 %v753
    %v3738 = vunpack.c.l.b16 %v754
    %v3739 = vunpack.c.h.b16 %v754
    %v3740 = vunpack.c.l.b16 %v755
    %v3741 = vunpack.c.h.b16 %v755
    %v3742 = vunpack.c.l.b16 %v756
    %v3743 = vunpack.c.h.b16 %v756
    %v3744 = vunpack.c.l.b16 %v757
    %v3745 = vunpack.c.h.b16 %v757
    %v3746 = vunpack.c.l.b16 %v758
    %v3747 = vunpack.c.h.b16 %v758
    %v3748 = vunpack.c.l.b16 %v759
    %v3749 = vunpack.c.h.b16 %v759
    %v3750 = vunpack.c.l.b16 %v760
    %v3751 = vunpack.c.h.b16 %v760
    %v3752 = vunpack.c.l.b16 %v761
    %v3753 = vunpack.c.h.b16 %v761
    %v3754 = vunpack.c.l.b16 %v762
    %v3755 = vunpack.c.h.b16 %v762
    %v3756 = vunpack.c.l.b16 %v763
    %v3757 = vunpack.c.h.b16 %v763
    %v3758 = vunpack.c.l.b16 %v764
    %v3759 = vunpack.c.h.b16 %v764
    %v3760 = vunpack.c.l.b16 %v765
    %v3761 = vunpack.c.h.b16 %v765
    %v3762 = vunpack.c.l.b16 %v766
    %v3763 = vunpack.c.h.b16 %v766
    %v3764 = vunpack.c.l.b16 %v767
    %v3765 = vunpack.c.h.b16 %v767
    %v3766 = vunpack.c.l.b16 %v768
    %v3767 = vunpack.c.h.b16 %v768
    %v3768 = vunpack.c.l.b16 %v769
    %v3769 = vunpack.c.h.b16 %v769
    %v3770 = vunpack.c.l.b16 %v770
    %v3771 = vunpack.c.h.b16 %v770
    %v3772 = vunpack.c.l.b16 %v771
    %v3773 = vunpack.c.h.b16 %v771
    %v3774 = vunpack.c.l.b16 %v772
    %v3775 = vunpack.c.h.b16 %v772
    %v3776 = vunpack.c.l.b16 %v773
    %v3777 = vunpack.c.h.b16 %v773
    %v3778 = vunpack.c.l.b16 %v774
    %v3779 = vunpack.c.h.b16 %v774
    %v3780 = vunpack.c.l.b16 %v775
    %v3781 = vunpack.c.h.b16 %v775
    %v3782 = vunpack.c.l.b16 %v776
    %v3783 = vunpack.c.h.b16 %v776
    %v3784 = vunpack.c.l.b16 %v777
    %v3785 = vunpack.c.h.b16 %v777
    %v3786 = vunpack.c.l.b16 %v778
    %v3787 = vunpack.c.h.b16 %v778
    %v3788 = vunpack.c.l.b16 %v779
    %v3789 = vunpack.c.h.b16 %v779
    %v3790 = vunpack.c.l.b16 %v780
    %v3791 = vunpack.c.h.b16 %v780
    %v3792 = vunpack.c.l.b16 %v781
    %v3793 = vunpack.c.h.b16 %v781
    %v3794 = vunpack.c.l.b16 %v782
    %v3795 = vunpack.c.h.b16 %v782
    %v3796 = vunpack.c.l.b16 %v783
    %v3797 = vunpack.c.h.b16 %v783
    %v3798 = vunpack.c.l.b16 %v784
    %v3799 = vunpack.c.h.b16 %v784
    %v3800 = vunpack.c.l.b16 %v785
    %v3801 = vunpack.c.h.b16 %v785
    %v3802 = vunpack.c.l.b16 %v786
    %v3803 = vunpack.c.h.b16 %v786
    %v3804 = vunpack.c.l.b16 %v787
    %v3805 = vunpack.c.h.b16 %v787
    %v3806 = vunpack.c.l.b16 %v788
    %v3807 = vunpack.c.h.b16 %v788
    %v3808 = vunpack.c.l.b16 %v789
    %v3809 = vunpack.c.h.b16 %v789
    %v3810 = vunpack.c.l.b16 %v790
    %v3811 = vunpack.c.h.b16 %v790
    %v3812 = vunpack.c.l.b16 %v791
    %v3813 = vunpack.c.h.b16 %v791
    %v3814 = vunpack.c.l.b16 %v792
    %v3815 = vunpack.c.h.b16 %v792
    %v3816 = vunpack.c.l.b16 %v793
    %v3817 = vunpack.c.h.b16 %v793
    %v3818 = vunpack.c.l.b16 %v794
    %v3819 = vunpack.c.h.b16 %v794
    %v3820 = vunpack.c.l.b16 %v795
    %v3821 = vunpack.c.h.b16 %v795
    %v3822 = vunpack.c.l.b16 %v796
    %v3823 = vunpack.c.h.b16 %v796
    %v3824 = vunpack.c.l.b16 %v797
    %v3825 = vunpack.c.h.b16 %v797
    %v3826 = vunpack.c.l.b16 %v798
    %v3827 = vunpack.c.h.b16 %v798
    %v3828 = vunpack.c.l.b16 %v799
    %v3829 = vunpack.c.h.b16 %v799
    %v3830 = vunpack.c.l.b16 %v800
    %v3831 = vunpack.c.h.b16 %v800
    %v3832 = vunpack.c.l.b16 %v801
    %v3833 = vunpack.c.h.b16 %v801
    %v3834 = vunpack.c.l.b16 %v802
    %v3835 = vunpack.c.h.b16 %v802
    %v3836 = vunpack.c.l.b16 %v803
    %v3837 = vunpack.c.h.b16 %v803
    %v3838 = vunpack.c.l.b16 %v804
    %v3839 = vunpack.c.h.b16 %v804
    %v3840 = vunpack.c.l.b16 %v805
    %v3841 = vunpack.c.h.b16 %v805
    %v3842 = vunpack.c.l.b16 %v806
    %v3843 = vunpack.c.h.b16 %v806
    %v3844 = vunpack.c.l.b16 %v807
    %v3845 = vunpack.c.h.b16 %v807
    %v3846 = vunpack.c.l.b16 %v808
    %v3847 = vunpack.c.h.b16 %v808
    %v3848 = vunpack.c.l.b16 %v809
    %v3849 = vunpack.c.h.b16 %v809
    %v3850 = vunpack.c.l.b16 %v810
    %v3851 = vunpack.c.h.b16 %v810
    %v3852 = vunpack.c.l.b16 %v811
    %v3853 = vunpack.c.h.b16 %v811
    %v3854 = vunpack.c.l.b16 %v812
    %v3855 = vunpack.c.h.b16 %v812
    %v3856 = vunpack.c.l.b16 %v813
    %v3857 = vunpack.c.h.b16 %v813
    %v3858 = vunpack.c.l.b16 %v814
    %v3859 = vunpack.c.h.b16 %v814
    %v3860 = vunpack.c.l.b16 %v815
    %v3861 = vunpack.c.h.b16 %v815
    %v3862 = vunpack.c.l.b16 %v816
    %v3863 = vunpack.c.h.b16 %v816
    %v3864 = vunpack.c.l.b16 %v817
    %v3865 = vunpack.c.h.b16 %v817
    %v3866 = vunpack.c.l.b16 %v818
    %v3867 = vunpack.c.h.b16 %v818
    %v3868 = vunpack.c.l.b16 %v819
    %v3869 = vunpack.c.h.b16 %v819
    %v3870 = vunpack.c.l.b16 %v820
    %v3871 = vunpack.c.h.b16 %v820
    %v3872 = vunpack.c.l.b16 %v821
    %v3873 = vunpack.c.h.b16 %v821
    %v3874 = vunpack.c.l.b16 %v822
    %v3875 = vunpack.c.h.b16 %v822
    %v3876 = vunpack.c.l.b16 %v823
    %v3877 = vunpack.c.h.b16 %v823
    %v3878 = vunpack.c.l.b16 %v824
    %v3879 = vunpack.c.h.b16 %v824
    %v3880 = vunpack.c.l.b16 %v825
    %v3881 = vunpack.c.h.b16 %v825
    %v3882 = vunpack.c.l.b16 %v826
    %v3883 = vunpack.c.h.b16 %v826
    %v3884 = vunpack.c.l.b16 %v827
    %v3885 = vunpack.c.h.b16 %v827
    %v3886 = vunpack.c.l.b16 %v828
    %v3887 = vunpack.c.h.b16 %v828
    %v3888 = vunpack.c.l.b16 %v829
    %v3889 = vunpack.c.h.b16 %v829
    %v3890 = vunpack.c.l.b16 %v830
    %v3891 = vunpack.c.h.b16 %v830
    %v3892 = vunpack.c.l.b16 %v831
    %v3893 = vunpack.c.h.b16 %v831
    %v3894 = vunpack.c.l.b16 %v832
    %v3895 = vunpack.c.h.b16 %v832
    %v3896 = vunpack.c.l.b16 %v833
    %v3897 = vunpack.c.h.b16 %v833
    %v3898 = vunpack.c.l.b16 %v834
    %v3899 = vunpack.c.h.b16 %v834
    %v3900 = vunpack.c.l.b16 %v835
    %v3901 = vunpack.c.h.b16 %v835
    %v3902 = vunpack.c.l.b16 %v836
    %v3903 = vunpack.c.h.b16 %v836
    %v3904 = vunpack.c.l.b16 %v837
    %v3905 = vunpack.c.h.b16 %v837
    %v3906 = vunpack.c.l.b16 %v838
    %v3907 = vunpack.c.h.b16 %v838
    %v3908 = vunpack.c.l.b16 %v839
    %v3909 = vunpack.c.h.b16 %v839
    %v3910 = vunpack.c.l.b16 %v840
    %v3911 = vunpack.c.h.b16 %v840
    %v3912 = vunpack.c.l.b16 %v841
    %v3913 = vunpack.c.h.b16 %v841
    %v3914 = vunpack.c.l.b16 %v842
    %v3915 = vunpack.c.h.b16 %v842
    %v3916 = vunpack.c.l.b16 %v843
    %v3917 = vunpack.c.h.b16 %v843
    %v3918 = vunpack.c.l.b16 %v844
    %v3919 = vunpack.c.h.b16 %v844
    %v3920 = vunpack.c.l.b16 %v845
    %v3921 = vunpack.c.h.b16 %v845
    %v3922 = vunpack.c.l.b16 %v846
    %v3923 = vunpack.c.h.b16 %v846
    %v3924 = vunpack.c.l.b16 %v847
    %v3925 = vunpack.c.h.b16 %v847
    %v3926 = vunpack.c.l.b16 %v848
    %v3927 = vunpack.c.h.b16 %v848
    %v3928 = vunpack.c.l.b16 %v849
    %v3929 = vunpack.c.h.b16 %v849
    %v3930 = vunpack.c.l.b16 %v850
    %v3931 = vunpack.c.h.b16 %v850
    %v3932 = vunpack.c.l.b16 %v851
    %v3933 = vunpack.c.h.b16 %v851
    %v3934 = vunpack.c.l.b16 %v852
    %v3935 = vunpack.c.h.b16 %v852
    %v3936 = vunpack.c.l.b16 %v853
    %v3937 = vunpack.c.h.b16 %v853
    %v3938 = vunpack.c.l.b16 %v854
    %v3939 = vunpack.c.h.b16 %v854
    %v3940 = vunpack.c.l.b16 %v855
    %v3941 = vunpack.c.h.b16 %v855
    %v3942 = vunpack.c.l.b16 %v856
    %v3943 = vunpack.c.h.b16 %v856
    %v3944 = vunpack.c.l.b16 %v857
    %v3945 = vunpack.c.h.b16 %v857
    %v3946 = vunpack.c.l.b16 %v858
    %v3947 = vunpack.c.h.b16 %v858
    %v3948 = vunpack.c.l.b16 %v859
    %v3949 = vunpack.c.h.b16 %v859
    %v3950 = vunpack.c.l.b16 %v860
    %v3951 = vunpack.c.h.b16 %v860
    %v3952 = vunpack.c.l.b16 %v861
    %v3953 = vunpack.c.h.b16 %v861
    %v3954 = vunpack.c.l.b16 %v862
    %v3955 = vunpack.c.h.b16 %v862
    %v3956 = vunpack.c.l.b16 %v863
    %v3957 = vunpack.c.h.b16 %v863
    %v3958 = vunpack.c.l.b16 %v864
    %v3959 = vunpack.c.h.b16 %v864
    %v3960 = vunpack.c.l.b16 %v865
    %v3961 = vunpack.c.h.b16 %v865
    %v3962 = vunpack.c.l.b16 %v866
    %v3963 = vunpack.c.h.b16 %v866
    %v3964 = vunpack.c.l.b16 %v867
    %v3965 = vunpack.c.h.b16 %v867
    %v3966 = vunpack.c.l.b16 %v868
    %v3967 = vunpack.c.h.b16 %v868
    %v3968 = vunpack.c.l.b16 %v869
    %v3969 = vunpack.c.h.b16 %v869
    %v3970 = vunpack.c.l.b16 %v870
    %v3971 = vunpack.c.h.b16 %v870
    %v3972 = vunpack.c.l.b16 %v871
    %v3973 = vunpack.c.h.b16 %v871
    %v3974 = vunpack.c.l.b16 %v872
    %v3975 = vunpack.c.h.b16 %v872
    %v3976 = vunpack.c.l.b16 %v873
    %v3977 = vunpack.c.h.b16 %v873
    %v3978 = vunpack.c.l.b16 %v874
    %v3979 = vunpack.c.h.b16 %v874
    %v3980 = vunpack.c.l.b16 %v875
    %v3981 = vunpack.c.h.b16 %v875
    %v3982 = vunpack.c.l.b16 %v876
    %v3983 = vunpack.c.h.b16 %v876
    %v3984 = vunpack.c.l.b16 %v877
    %v3985 = vunpack.c.h.b16 %v877
    %v3986 = vunpack.c.l.b16 %v878
    %v3987 = vunpack.c.h.b16 %v878
    %v3988 = vunpack.c.l.b16 %v879
    %v3989 = vunpack.c.h.b16 %v879
    %v3990 = vunpack.c.l.b16 %v880
    %v3991 = vunpack.c.h.b16 %v880
    %v3992 = vunpack.c.l.b16 %v881
    %v3993 = vunpack.c.h.b16 %v881
    %v3994 = vunpack.c.l.b16 %v882
    %v3995 = vunpack.c.h.b16 %v882
    %v3996 = vunpack.c.l.b16 %v883
    %v3997 = vunpack.c.h.b16 %v883
    %v3998 = vunpack.c.l.b16 %v884
    %v3999 = vunpack.c.h.b16 %v884
    %v4000 = vunpack.c.l.b16 %v885
    %v4001 = vunpack.c.h.b16 %v885
    %v4002 = vunpack.c.l.b16 %v886
    %v4003 = vunpack.c.h.b16 %v886
    %v4004 = vunpack.c.l.b16 %v887
    %v4005 = vunpack.c.h.b16 %v887
    %v4006 = vunpack.c.l.b16 %v888
    %v4007 = vunpack.c.h.b16 %v888
    %v4008 = vunpack.c.l.b16 %v889
    %v4009 = vunpack.c.h.b16 %v889
    %v4010 = vunpack.c.l.b16 %v890
    %v4011 = vunpack.c.h.b16 %v890
    %v4012 = vunpack.c.l.b16 %v891
    %v4013 = vunpack.c.h.b16 %v891
    %v4014 = vunpack.c.l.b16 %v892
    %v4015 = vunpack.c.h.b16 %v892
    %v4016 = vunpack.c.l.b16 %v893
    %v4017 = vunpack.c.h.b16 %v893
    %v4018 = vunpack.c.l.b16 %v894
    %v4019 = vunpack.c.h.b16 %v894
    %v4020 = vunpack.c.l.b16 %v895
    %v4021 = vunpack.c.h.b16 %v895
    %v4022 = vunpack.c.l.b16 %v896
    %v4023 = vunpack.c.h.b16 %v896
    %v4024 = vunpack.c.l.b16 %v897
    %v4025 = vunpack.c.h.b16 %v897
    %v4026 = vunpack.c.l.b16 %v898
    %v4027 = vunpack.c.h.b16 %v898
    %v4028 = vunpack.c.l.b16 %v899
    %v4029 = vunpack.c.h.b16 %v899
    %v4030 = vunpack.c.l.b16 %v900
    %v4031 = vunpack.c.h.b16 %v900
    %v4032 = vunpack.c.l.b16 %v901
    %v4033 = vunpack.c.h.b16 %v901
    %v4034 = vunpack.c.l.b16 %v902
    %v4035 = vunpack.c.h.b16 %v902
    %v4036 = vunpack.c.l.b16 %v903
    %v4037 = vunpack.c.h.b16 %v903
    %v4038 = vunpack.c.l.b16 %v904
    %v4039 = vunpack.c.h.b16 %v904
    %v4040 = vunpack.c.l.b16 %v905
    %v4041 = vunpack.c.h.b16 %v905
    %v4042 = vunpack.c.l.b16 %v906
    %v4043 = vunpack.c.h.b16 %v906
    %v4044 = vunpack.c.l.b16 %v907
    %v4045 = vunpack.c.h.b16 %v907
    %v4046 = vunpack.c.l.b16 %v908
    %v4047 = vunpack.c.h.b16 %v908
    %v4048 = vunpack.c.l.b16 %v909
    %v4049 = vunpack.c.h.b16 %v909
    %v4050 = vunpack.c.l.b16 %v910
    %v4051 = vunpack.c.h.b16 %v910
    %v4052 = vunpack.c.l.b16 %v911
    %v4053 = vunpack.c.h.b16 %v911
    %v4054 = vunpack.c.l.b16 %v912
    %v4055 = vunpack.c.h.b16 %v912
    %v4056 = vunpack.c.l.b16 %v913
    %v4057 = vunpack.c.h.b16 %v913
    %v4058 = vunpack.c.l.b16 %v914
    %v4059 = vunpack.c.h.b16 %v914
    %v4060 = vunpack.c.l.b16 %v915
    %v4061 = vunpack.c.h.b16 %v915
    %v4062 = vunpack.c.l.b16 %v916
    %v4063 = vunpack.c.h.b16 %v916
    %v4064 = vunpack.c.l.b16 %v917
    %v4065 = vunpack.c.h.b16 %v917
    %v4066 = vunpack.c.l.b16 %v918
    %v4067 = vunpack.c.h.b16 %v918
    %v4068 = vunpack.c.l.b16 %v919
    %v4069 = vunpack.c.h.b16 %v919
    %v4070 = vunpack.c.l.b16 %v920
    %v4071 = vunpack.c.h.b16 %v920
    %v4072 = vunpack.c.l.b16 %v921
    %v4073 = vunpack.c.h.b16 %v921
    %v4074 = vunpack.c.l.b16 %v922
    %v4075 = vunpack.c.h.b16 %v922
    %v4076 = vunpack.c.l.b16 %v923
    %v4077 = vunpack.c.h.b16 %v923
    %v4078 = vunpack.c.l.b16 %v924
    %v4079 = vunpack.c.h.b16 %v924
    %v4080 = vunpack.c.l.b16 %v925
    %v4081 = vunpack.c.h.b16 %v925
    %v4082 = vunpack.c.l.b16 %v926
    %v4083 = vunpack.c.h.b16 %v926
    %v4084 = vunpack.c.l.b16 %v927
    %v4085 = vunpack.c.h.b16 %v927
    %v4086 = vunpack.c.l.b16 %v928
    %v4087 = vunpack.c.h.b16 %v928
    %v4088 = vunpack.c.l.b16 %v929
    %v4089 = vunpack.c.h.b16 %v929
    %v4090 = vunpack.c.l.b16 %v930
    %v4091 = vunpack.c.h.b16 %v930
    %v4092 = vunpack.c.l.b16 %v931
    %v4093 = vunpack.c.h.b16 %v931
    %v4094 = vunpack.c.l.b16 %v932
    %v4095 = vunpack.c.h.b16 %v932
    %v4096 = vunpack.c.l.b16 %v933
    %v4097 = vunpack.c.h.b16 %v933
    %v4098 = vunpack.c.l.b16 %v934
    %v4099 = vunpack.c.h.b16 %v934
    %v4100 = vunpack.c.l.b16 %v935
    %v4101 = vunpack.c.h.b16 %v935
    %v4102 = vunpack.c.l.b16 %v936
    %v4103 = vunpack.c.h.b16 %v936
    %v4104 = vunpack.c.l.b16 %v937
    %v4105 = vunpack.c.h.b16 %v937
    %v4106 = vunpack.c.l.b16 %v938
    %v4107 = vunpack.c.h.b16 %v938
    %v4108 = vunpack.c.l.b16 %v939
    %v4109 = vunpack.c.h.b16 %v939
    %v4110 = vunpack.c.l.b16 %v940
    %v4111 = vunpack.c.h.b16 %v940
    %v4112 = vunpack.c.l.b16 %v941
    %v4113 = vunpack.c.h.b16 %v941
    %v4114 = vunpack.c.l.b16 %v942
    %v4115 = vunpack.c.h.b16 %v942
    %v4116 = vunpack.c.l.b16 %v943
    %v4117 = vunpack.c.h.b16 %v943
    %v4118 = vunpack.c.l.b16 %v944
    %v4119 = vunpack.c.h.b16 %v944
    %v4120 = vunpack.c.l.b16 %v945
    %v4121 = vunpack.c.h.b16 %v945
    %v4122 = vunpack.c.l.b16 %v946
    %v4123 = vunpack.c.h.b16 %v946
    %v4124 = vunpack.c.l.b16 %v947
    %v4125 = vunpack.c.h.b16 %v947
    %v4126 = vunpack.c.l.b16 %v948
    %v4127 = vunpack.c.h.b16 %v948
    %v4128 = vunpack.c.l.b16 %v949
    %v4129 = vunpack.c.h.b16 %v949
    %v4130 = vunpack.c.l.b16 %v950
    %v4131 = vunpack.c.h.b16 %v950
    %v4132 = vunpack.c.l.b16 %v951
    %v4133 = vunpack.c.h.b16 %v951
    %v4134 = vunpack.c.l.b16 %v952
    %v4135 = vunpack.c.h.b16 %v952
    %v4136 = vunpack.c.l.b16 %v953
    %v4137 = vunpack.c.h.b16 %v953
    %v4138 = vunpack.c.l.b16 %v954
    %v4139 = vunpack.c.h.b16 %v954
    %v4140 = vunpack.c.l.b16 %v955
    %v4141 = vunpack.c.h.b16 %v955
    %v4142 = vunpack.c.l.b16 %v956
    %v4143 = vunpack.c.h.b16 %v956
    %v4144 = vunpack.c.l.b16 %v957
    %v4145 = vunpack.c.h.b16 %v957
    %v4146 = vunpack.c.l.b16 %v958
    %v4147 = vunpack.c.h.b16 %v958
    %v4148 = vunpack.c.l.b16 %v959
    %v4149 = vunpack.c.h.b16 %v959
    %v4150 = vunpack.c.l.b16 %v960
    %v4151 = vunpack.c.h.b16 %v960
    %v4152 = vunpack.c.l.b16 %v961
    %v4153 = vunpack.c.h.b16 %v961
    %v4154 = vunpack.c.l.b16 %v962
    %v4155 = vunpack.c.h.b16 %v962
    %v4156 = vunpack.c.l.b16 %v963
    %v4157 = vunpack.c.h.b16 %v963
    %v4158 = vunpack.c.l.b16 %v964
    %v4159 = vunpack.c.h.b16 %v964
    %v4160 = vunpack.c.l.b16 %v965
    %v4161 = vunpack.c.h.b16 %v965
    %v4162 = vunpack.c.l.b16 %v966
    %v4163 = vunpack.c.h.b16 %v966
    %v4164 = vunpack.c.l.b16 %v967
    %v4165 = vunpack.c.h.b16 %v967
    %v4166 = vunpack.c.l.b16 %v968
    %v4167 = vunpack.c.h.b16 %v968
    %v4168 = vunpack.c.l.b16 %v969
    %v4169 = vunpack.c.h.b16 %v969
    %v4170 = vunpack.c.l.b16 %v970
    %v4171 = vunpack.c.h.b16 %v970
    %v4172 = vunpack.c.l.b16 %v971
    %v4173 = vunpack.c.h.b16 %v971
    %v4174 = vunpack.c.l.b16 %v972
    %v4175 = vunpack.c.h.b16 %v972
    %v4176 = vunpack.c.l.b16 %v973
    %v4177 = vunpack.c.h.b16 %v973
    %v4178 = vunpack.c.l.b16 %v974
    %v4179 = vunpack.c.h.b16 %v974
    %v4180 = vunpack.c.l.b16 %v975
    %v4181 = vunpack.c.h.b16 %v975
    %v4182 = vunpack.c.l.b16 %v976
    %v4183 = vunpack.c.h.b16 %v976
    %v4184 = vunpack.c.l.b16 %v977
    %v4185 = vunpack.c.h.b16 %v977
    %v4186 = vunpack.c.l.b16 %v978
    %v4187 = vunpack.c.h.b16 %v978
    %v4188 = vunpack.c.l.b16 %v979
    %v4189 = vunpack.c.h.b16 %v979
    %v4190 = vunpack.c.l.b16 %v980
    %v4191 = vunpack.c.h.b16 %v980
    %v4192 = vunpack.c.l.b16 %v981
    %v4193 = vunpack.c.h.b16 %v981
    %v4194 = vunpack.c.l.b16 %v982
    %v4195 = vunpack.c.h.b16 %v982
    %v4196 = vunpack.c.l.b16 %v983
    %v4197 = vunpack.c.h.b16 %v983
    %v4198 = vunpack.c.l.b16 %v984
    %v4199 = vunpack.c.h.b16 %v984
    %v4200 = vunpack.c.l.b16 %v985
    %v4201 = vunpack.c.h.b16 %v985
    %v4202 = vunpack.c.l.b16 %v986
    %v4203 = vunpack.c.h.b16 %v986
    %v4204 = vunpack.c.l.b16 %v987
    %v4205 = vunpack.c.h.b16 %v987
    %v4206 = vunpack.c.l.b16 %v988
    %v4207 = vunpack.c.h.b16 %v988
    %v4208 = vunpack.c.l.b16 %v989
    %v4209 = vunpack.c.h.b16 %v989
    %v4210 = vunpack.c.l.b16 %v990
    %v4211 = vunpack.c.h.b16 %v990
    %v4212 = vunpack.c.l.b16 %v991
    %v4213 = vunpack.c.h.b16 %v991
    %v4214 = vunpack.c.l.b16 %v992
    %v4215 = vunpack.c.h.b16 %v992
    %v4216 = vunpack.c.l.b16 %v993
    %v4217 = vunpack.c.h.b16 %v993
    %v4218 = vunpack.c.l.b16 %v994
    %v4219 = vunpack.c.h.b16 %v994
    %v4220 = vunpack.c.l.b16 %v995
    %v4221 = vunpack.c.h.b16 %v995
    %v4222 = vunpack.c.l.b16 %v996
    %v4223 = vunpack.c.h.b16 %v996
    %v4224 = vunpack.c.l.b16 %v997
    %v4225 = vunpack.c.h.b16 %v997
    %v4226 = vunpack.c.l.b16 %v998
    %v4227 = vunpack.c.h.b16 %v998
    %v4228 = vunpack.c.l.b16 %v999
    %v4229 = vunpack.c.h.b16 %v999
    %v4230 = vunpack.c.l.b16 %v1000
    %v4231 = vunpack.c.h.b16 %v1000
    %v4232 = vunpack.c.l.b16 %v1001
    %v4233 = vunpack.c.h.b16 %v1001
    %v4234 = vunpack.c.l.b16 %v1002
    %v4235 = vunpack.c.h.b16 %v1002
    %v4236 = vunpack.c.l.b16 %v1003
    %v4237 = vunpack.c.h.b16 %v1003
    %v4238 = vunpack.c.l.b16 %v1004
    %v4239 = vunpack.c.h.b16 %v1004
    %v4240 = vunpack.c.l.b16 %v1005
    %v4241 = vunpack.c.h.b16 %v1005
    %v4242 = vunpack.c.l.b16 %v1006
    %v4243 = vunpack.c.h.b16 %v1006
    %v4244 = vunpack.c.l.b16 %v1007
    %v4245 = vunpack.c.h.b16 %v1007
    %v4246 = vunpack.c.l.b16 %v1008
    %v4247 = vunpack.c.h.b16 %v1008
    %v4248 = vunpack.c.l.b16 %v1009
    %v4249 = vunpack.c.h.b16 %v1009
    %v4250 = vunpack.c.l.b16 %v1010
    %v4251 = vunpack.c.h.b16 %v1010
    %v4252 = vunpack.c.l.b16 %v1011
    %v4253 = vunpack.c.h.b16 %v1011
    %v4254 = vunpack.c.l.b16 %v1012
    %v4255 = vunpack.c.h.b16 %v1012
    %v4256 = vunpack.c.l.b16 %v1013
    %v4257 = vunpack.c.h.b16 %v1013
    %v4258 = vunpack.c.l.b16 %v1014
    %v4259 = vunpack.c.h.b16 %v1014
    %v4260 = vunpack.c.l.b16 %v1015
    %v4261 = vunpack.c.h.b16 %v1015
    %v4262 = vunpack.c.l.b16 %v1016
    %v4263 = vunpack.c.h.b16 %v1016
    %v4264 = vunpack.c.l.b16 %v1017
    %v4265 = vunpack.c.h.b16 %v1017
    %v4266 = vunpack.c.l.b16 %v1018
    %v4267 = vunpack.c.h.b16 %v1018
    %v4268 = vunpack.c.l.b16 %v1019
    %v4269 = vunpack.c.h.b16 %v1019
    %v4270 = vunpack.c.l.b16 %v1020
    %v4271 = vunpack.c.h.b16 %v1020
    %v4272 = vunpack.c.l.b16 %v1021
    %v4273 = vunpack.c.h.b16 %v1021
    %v4274 = vunpack.c.l.b16 %v1022
    %v4275 = vunpack.c.h.b16 %v1022
    %v4276 = vunpack.c.l.b16 %v1023
    %v4277 = vunpack.c.h.b16 %v1023
    %v4278 = vunpack.c.l.b16 %v1024
    %v4279 = vunpack.c.h.b16 %v1024
    %v4280 = vunpack.c.l.b16 %v1025
    %v4281 = vunpack.c.h.b16 %v1025
    %v4282 = vunpack.c.l.b16 %v1026
    %v4283 = vunpack.c.h.b16 %v1026
    %v4284 = vunpack.c.l.b16 %v1027
    %v4285 = vunpack.c.h.b16 %v1027
    %v4286 = vunpack.c.l.b16 %v1028
    %v4287 = vunpack.c.h.b16 %v1028
    %v4288 = vunpack.c.l.b16 %v1029
    %v4289 = vunpack.c.h.b16 %v1029
    %v4290 = vunpack.c.l.b16 %v1030
    %v4291 = vunpack.c.h.b16 %v1030
    %v4292 = vunpack.c.l.b16 %v1031
    %v4293 = vunpack.c.h.b16 %v1031
    %v4294 = vunpack.c.l.b16 %v1032
    %v4295 = vunpack.c.h.b16 %v1032
    %v4296 = vunpack.c.l.b16 %v1033
    %v4297 = vunpack.c.h.b16 %v1033
    %v4298 = vunpack.c.l.b16 %v1034
    %v4299 = vunpack.c.h.b16 %v1034
    %v4300 = vunpack.c.l.b16 %v1035
    %v4301 = vunpack.c.h.b16 %v1035
    %v4302 = vunpack.c.l.b16 %v1036
    %v4303 = vunpack.c.h.b16 %v1036
    %v4304 = vunpack.c.l.b16 %v1037
    %v4305 = vunpack.c.h.b16 %v1037
    %v4306 = vunpack.c.l.b16 %v1038
    %v4307 = vunpack.c.h.b16 %v1038
    %v4308 = vunpack.c.l.b16 %v1039
    %v4309 = vunpack.c.h.b16 %v1039
    %v4310 = vunpack.c.l.b16 %v1040
    %v4311 = vunpack.c.h.b16 %v1040
    %v4312 = vunpack.c.l.b16 %v1041
    %v4313 = vunpack.c.h.b16 %v1041
    %v4314 = vunpack.c.l.b16 %v1042
    %v4315 = vunpack.c.h.b16 %v1042
    %v4316 = vunpack.c.l.b16 %v1043
    %v4317 = vunpack.c.h.b16 %v1043
    %v4318 = vunpack.c.l.b16 %v1044
    %v4319 = vunpack.c.h.b16 %v1044
    %v4320 = vunpack.c.l.b16 %v1045
    %v4321 = vunpack.c.h.b16 %v1045
    %v4322 = vunpack.c.l.b16 %v1046
    %v4323 = vunpack.c.h.b16 %v1046
    %v4324 = vunpack.c.l.b16 %v1047
    %v4325 = vunpack.c.h.b16 %v1047
    %v4326 = vunpack.c.l.b16 %v1048
    %v4327 = vunpack.c.h.b16 %v1048
    %v4328 = vunpack.c.l.b16 %v1049
    %v4329 = vunpack.c.h.b16 %v1049
    %v4330 = vunpack.c.l.b16 %v1050
    %v4331 = vunpack.c.h.b16 %v1050
    %v4332 = vunpack.c.l.b16 %v1051
    %v4333 = vunpack.c.h.b16 %v1051
    %v4334 = vunpack.c.l.b16 %v1052
    %v4335 = vunpack.c.h.b16 %v1052
    %v4336 = vunpack.c.l.b16 %v1053
    %v4337 = vunpack.c.h.b16 %v1053
    %v4338 = vunpack.c.l.b16 %v1054
    %v4339 = vunpack.c.h.b16 %v1054
    %v4340 = vunpack.c.l.b16 %v1055
    %v4341 = vunpack.c.h.b16 %v1055
    %v4342 = vunpack.c.l.b16 %v1056
    %v4343 = vunpack.c.h.b16 %v1056
    %v4344 = vunpack.c.l.b16 %v1057
    %v4345 = vunpack.c.h.b16 %v1057
    %v4346 = vunpack.c.l.b16 %v1058
    %v4347 = vunpack.c.h.b16 %v1058
    %v4348 = vunpack.c.l.b16 %v1059
    %v4349 = vunpack.c.h.b16 %v1059
    %v4350 = vunpack.c.l.b16 %v1060
    %v4351 = vunpack.c.h.b16 %v1060
    %v4352 = vunpack.c.l.b16 %v1061
    %v4353 = vunpack.c.h.b16 %v1061
    %v4354 = vunpack.c.l.b16 %v1062
    %v4355 = vunpack.c.h.b16 %v1062
    %v4356 = vunpack.c.l.b16 %v1063
    %v4357 = vunpack.c.h.b16 %v1063
    %v4358 = vunpack.c.l.b16 %v1064
    %v4359 = vunpack.c.h.b16 %v1064
    %v4360 = vunpack.c.l.b16 %v1065
    %v4361 = vunpack.c.h.b16 %v1065
    %v4362 = vunpack.c.l.b16 %v1066
    %v4363 = vunpack.c.h.b16 %v1066
    %v4364 = vunpack.c.l.b16 %v1067
    %v4365 = vunpack.c.h.b16 %v1067
    %v4366 = vunpack.c.l.b16 %v1068
    %v4367 = vunpack.c.h.b16 %v1068
    %v4368 = vunpack.c.l.b16 %v1069
    %v4369 = vunpack.c.h.b16 %v1069
    %v4370 = vunpack.c.l.b16 %v1070
    %v4371 = vunpack.c.h.b16 %v1070
    %v4372 = vunpack.c.l.b16 %v1071
    %v4373 = vunpack.c.h.b16 %v1071
    %v4374 = vunpack.c.l.b16 %v1072
    %v4375 = vunpack.c.h.b16 %v1072
    %v4376 = vunpack.c.l.b16 %v1073
    %v4377 = vunpack.c.h.b16 %v1073
    %v4378 = vunpack.c.l.b16 %v1074
    %v4379 = vunpack.c.h.b16 %v1074
    %v4380 = vunpack.c.l.b16 %v1075
    %v4381 = vunpack.c.h.b16 %v1075
    %v4382 = vunpack.c.l.b16 %v1076
    %v4383 = vunpack.c.h.b16 %v1076
    %v4384 = vunpack.c.l.b16 %v1077
    %v4385 = vunpack.c.h.b16 %v1077
    %v4386 = vunpack.c.l.b16 %v1078
    %v4387 = vunpack.c.h.b16 %v1078
    %v4388 = vunpack.c.l.b16 %v1079
    %v4389 = vunpack.c.h.b16 %v1079
    %v4390 = vunpack.c.l.b16 %v1080
    %v4391 = vunpack.c.h.b16 %v1080
    %v4392 = vunpack.c.l.b16 %v1081
    %v4393 = vunpack.c.h.b16 %v1081
    %v4394 = vunpack.c.l.b16 %v1082
    %v4395 = vunpack.c.h.b16 %v1082
    %v4396 = vunpack.c.l.b16 %v1083
    %v4397 = vunpack.c.h.b16 %v1083
    %v4398 = vunpack.c.l.b16 %v1084
    %v4399 = vunpack.c.h.b16 %v1084
    %v4400 = vunpack.c.l.b16 %v1085
    %v4401 = vunpack.c.h.b16 %v1085
    %v4402 = vunpack.c.l.b16 %v1086
    %v4403 = vunpack.c.h.b16 %v1086
    %v4404 = vunpack.c.l.b16 %v1087
    %v4405 = vunpack.c.h.b16 %v1087
    %v4406 = vunpack.c.l.b16 %v1088
    %v4407 = vunpack.c.h.b16 %v1088
    %v4408 = vunpack.c.l.b16 %v1089
    %v4409 = vunpack.c.h.b16 %v1089
    %v4410 = vunpack.c.l.b16 %v1090
    %v4411 = vunpack.c.h.b16 %v1090
    %v4412 = vunpack.c.l.b16 %v1091
    %v4413 = vunpack.c.h.b16 %v1091
    %v4414 = vunpack.c.l.b16 %v1092
    %v4415 = vunpack.c.h.b16 %v1092
    %v4416 = vunpack.c.l.b16 %v1093
    %v4417 = vunpack.c.h.b16 %v1093
    %v4418 = vunpack.c.l.b16 %v1094
    %v4419 = vunpack.c.h.b16 %v1094
    %v4420 = vunpack.c.l.b16 %v1095
    %v4421 = vunpack.c.h.b16 %v1095
    %v4422 = vunpack.c.l.b16 %v1096
    %v4423 = vunpack.c.h.b16 %v1096
    %v4424 = vunpack.c.l.b16 %v1097
    %v4425 = vunpack.c.h.b16 %v1097
    %v4426 = vunpack.c.l.b16 %v1098
    %v4427 = vunpack.c.h.b16 %v1098
    %v4428 = vunpack.c.l.b16 %v1099
    %v4429 = vunpack.c.h.b16 %v1099
    %v4430 = vunpack.c.l.b16 %v1100
    %v4431 = vunpack.c.h.b16 %v1100
    %v4432 = vunpack.c.l.b16 %v1101
    %v4433 = vunpack.c.h.b16 %v1101
    %v4434 = vunpack.c.l.b16 %v1102
    %v4435 = vunpack.c.h.b16 %v1102
    %v4436 = vunpack.c.l.b16 %v1103
    %v4437 = vunpack.c.h.b16 %v1103
    %v4438 = vunpack.c.l.b16 %v1104
    %v4439 = vunpack.c.h.b16 %v1104
    %v4440 = vunpack.c.l.b16 %v1105
    %v4441 = vunpack.c.h.b16 %v1105
    %v4442 = vunpack.c.l.b16 %v1106
    %v4443 = vunpack.c.h.b16 %v1106
    %v4444 = vunpack.c.l.b16 %v1107
    %v4445 = vunpack.c.h.b16 %v1107
    %v4446 = vunpack.c.l.b16 %v1108
    %v4447 = vunpack.c.h.b16 %v1108
    %v4448 = vunpack.c.l.b16 %v1109
    %v4449 = vunpack.c.h.b16 %v1109
    %v4450 = vunpack.c.l.b16 %v1110
    %v4451 = vunpack.c.h.b16 %v1110
    %v4452 = vunpack.c.l.b16 %v1111
    %v4453 = vunpack.c.h.b16 %v1111
    %v4454 = vunpack.c.l.b16 %v1112
    %v4455 = vunpack.c.h.b16 %v1112
    %v4456 = vunpack.c.l.b16 %v1113
    %v4457 = vunpack.c.h.b16 %v1113
    %v4458 = vunpack.c.l.b16 %v1114
    %v4459 = vunpack.c.h.b16 %v1114
    %v4460 = vunpack.c.l.b16 %v1115
    %v4461 = vunpack.c.h.b16 %v1115
    %v4462 = vunpack.c.l.b16 %v1116
    %v4463 = vunpack.c.h.b16 %v1116
    %v4464 = vunpack.c.l.b16 %v1117
    %v4465 = vunpack.c.h.b16 %v1117
    %v4466 = vunpack.c.l.b16 %v1118
    %v4467 = vunpack.c.h.b16 %v1118
    %v4468 = vunpack.c.l.b16 %v1119
    %v4469 = vunpack.c.h.b16 %v1119
    %v4470 = vunpack.c.l.b16 %v1120
    %v4471 = vunpack.c.h.b16 %v1120
    %v4472 = vunpack.c.l.b16 %v1121
    %v4473 = vunpack.c.h.b16 %v1121
    %v4474 = vunpack.c.l.b16 %v1122
    %v4475 = vunpack.c.h.b16 %v1122
    %v4476 = vunpack.c.l.b16 %v1123
    %v4477 = vunpack.c.h.b16 %v1123
    %v4478 = vunpack.c.l.b16 %v1124
    %v4479 = vunpack.c.h.b16 %v1124
    %v4480 = vunpack.c.l.b16 %v1125
    %v4481 = vunpack.c.h.b16 %v1125
    %v4482 = vunpack.c.l.b16 %v1126
    %v4483 = vunpack.c.h.b16 %v1126
    %v4484 = vunpack.c.l.b16 %v1127
    %v4485 = vunpack.c.h.b16 %v1127
    %v4486 = vunpack.c.l.b16 %v1128
    %v4487 = vunpack.c.h.b16 %v1128
    %v4488 = vunpack.c.l.b16 %v1129
    %v4489 = vunpack.c.h.b16 %v1129
    %v4490 = vunpack.c.l.b16 %v1130
    %v4491 = vunpack.c.h.b16 %v1130
    %v4492 = vunpack.c.l.b16 %v1131
    %v4493 = vunpack.c.h.b16 %v1131
    %v4494 = vunpack.c.l.b16 %v1132
    %v4495 = vunpack.c.h.b16 %v1132
    %v4496 = vunpack.c.l.b16 %v1133
    %v4497 = vunpack.c.h.b16 %v1133
    %v4498 = vunpack.c.l.b16 %v1134
    %v4499 = vunpack.c.h.b16 %v1134
    %v4500 = vunpack.c.l.b16 %v1135
    %v4501 = vunpack.c.h.b16 %v1135
    %v4502 = vunpack.c.l.b16 %v1136
    %v4503 = vunpack.c.h.b16 %v1136
    %v4504 = vunpack.c.l.b16 %v1137
    %v4505 = vunpack.c.h.b16 %v1137
    %v4506 = vunpack.c.l.b16 %v1138
    %v4507 = vunpack.c.h.b16 %v1138
    %v4508 = vunpack.c.l.b16 %v1139
    %v4509 = vunpack.c.h.b16 %v1139
    %v4510 = vunpack.c.l.b16 %v1140
    %v4511 = vunpack.c.h.b16 %v1140
    %v4512 = vunpack.c.l.b16 %v1141
    %v4513 = vunpack.c.h.b16 %v1141
    %v4514 = vunpack.c.l.b16 %v1142
    %v4515 = vunpack.c.h.b16 %v1142
    %v4516 = vunpack.c.l.b16 %v1143
    %v4517 = vunpack.c.h.b16 %v1143
    %v4518 = vunpack.c.l.b16 %v1144
    %v4519 = vunpack.c.h.b16 %v1144
    %v4520 = vunpack.c.l.b16 %v1145
    %v4521 = vunpack.c.h.b16 %v1145
    %v4522 = vunpack.c.l.b16 %v1146
    %v4523 = vunpack.c.h.b16 %v1146
    %v4524 = vunpack.c.l.b16 %v1147
    %v4525 = vunpack.c.h.b16 %v1147
    %v4526 = vunpack.c.l.b16 %v1148
    %v4527 = vunpack.c.h.b16 %v1148
    %v4528 = vunpack.c.l.b16 %v1149
    %v4529 = vunpack.c.h.b16 %v1149
    %v4530 = vunpack.c.l.b16 %v1150
    %v4531 = vunpack.c.h.b16 %v1150
    %v4532 = vunpack.c.l.b16 %v1151
    %v4533 = vunpack.c.h.b16 %v1151
    %v4534 = vunpack.c.l.b16 %v1152
    %v4535 = vunpack.c.h.b16 %v1152
    %v4536 = vunpack.c.l.b16 %v1153
    %v4537 = vunpack.c.h.b16 %v1153
    %v4538 = vunpack.c.l.b16 %v1154
    %v4539 = vunpack.c.h.b16 %v1154
    %v4540 = vunpack.c.l.b16 %v1155
    %v4541 = vunpack.c.h.b16 %v1155
    %v4542 = vunpack.c.l.b16 %v1156
    %v4543 = vunpack.c.h.b16 %v1156
    %v4544 = vunpack.c.l.b16 %v1157
    %v4545 = vunpack.c.h.b16 %v1157
    %v4546 = vunpack.c.l.b16 %v1158
    %v4547 = vunpack.c.h.b16 %v1158
    %v4548 = vunpack.c.l.b16 %v1159
    %v4549 = vunpack.c.h.b16 %v1159
    %v4550 = vunpack.c.l.b16 %v1160
    %v4551 = vunpack.c.h.b16 %v1160
    %v4552 = vunpack.c.l.b16 %v1161
    %v4553 = vunpack.c.h.b16 %v1161
    %v4554 = vunpack.c.l.b16 %v1162
    %v4555 = vunpack.c.h.b16 %v1162
    %v4556 = vunpack.c.l.b16 %v1163
    %v4557 = vunpack.c.h.b16 %v1163
    %v4558 = vunpack.c.l.b16 %v1164
    %v4559 = vunpack.c.h.b16 %v1164
    %v4560 = vunpack.c.l.b16 %v1165
    %v4561 = vunpack.c.h.b16 %v1165
    %v4562 = vunpack.c.l.b16 %v1166
    %v4563 = vunpack.c.h.b16 %v1166
    %v4564 = vunpack.c.l.b16 %v1167
    %v4565 = vunpack.c.h.b16 %v1167
    %v4566 = vunpack.c.l.b16 %v1168
    %v4567 = vunpack.c.h.b16 %v1168
    %v4568 = vunpack.c.l.b16 %v1169
    %v4569 = vunpack.c.h.b16 %v1169
    %v4570 = vunpack.c.l.b16 %v1170
    %v4571 = vunpack.c.h.b16 %v1170
    %v4572 = vunpack.c.l.b16 %v1171
    %v4573 = vunpack.c.h.b16 %v1171
    %v4574 = vunpack.c.l.b16 %v1172
    %v4575 = vunpack.c.h.b16 %v1172
    %v4576 = vunpack.c.l.b16 %v1173
    %v4577 = vunpack.c.h.b16 %v1173
    %v4578 = vunpack.c.l.b16 %v1174
    %v4579 = vunpack.c.h.b16 %v1174
    %v4580 = vunpack.c.l.b16 %v1175
    %v4581 = vunpack.c.h.b16 %v1175
    %v4582 = vunpack.c.l.b16 %v1176
    %v4583 = vunpack.c.h.b16 %v1176
    %v4584 = vunpack.c.l.b16 %v1177
    %v4585 = vunpack.c.h.b16 %v1177
    %v4586 = vunpack.c.l.b16 %v1178
    %v4587 = vunpack.c.h.b16 %v1178
    %v4588 = vunpack.c.l.b16 %v1179
    %v4589 = vunpack.c.h.b16 %v1179
    %v4590 = vunpack.c.l.b16 %v1180
    %v4591 = vunpack.c.h.b16 %v1180
    %v4592 = vunpack.c.l.b16 %v1181
    %v4593 = vunpack.c.h.b16 %v1181
    %v4594 = vunpack.c.l.b16 %v1182
    %v4595 = vunpack.c.h.b16 %v1182
    %v4596 = vunpack.c.l.b16 %v1183
    %v4597 = vunpack.c.h.b16 %v1183
    %v4598 = vunpack.c.l.b16 %v1184
    %v4599 = vunpack.c.h.b16 %v1184
    %v4600 = vunpack.c.l.b16 %v1185
    %v4601 = vunpack.c.h.b16 %v1185
    %v4602 = vunpack.c.l.b16 %v1186
    %v4603 = vunpack.c.h.b16 %v1186
    %v4604 = vunpack.c.l.b16 %v1187
    %v4605 = vunpack.c.h.b16 %v1187
    %v4606 = vunpack.c.l.b16 %v1188
    %v4607 = vunpack.c.h.b16 %v1188
    %v4608 = vunpack.c.l.b16 %v1189
    %v4609 = vunpack.c.h.b16 %v1189
    %v4610 = vunpack.c.l.b16 %v1190
    %v4611 = vunpack.c.h.b16 %v1190
    %v4612 = vunpack.c.l.b16 %v1191
    %v4613 = vunpack.c.h.b16 %v1191
    %v4614 = vunpack.c.l.b16 %v1192
    %v4615 = vunpack.c.h.b16 %v1192
    %v4616 = vunpack.c.l.b16 %v1193
    %v4617 = vunpack.c.h.b16 %v1193
    %v4618 = vunpack.c.l.b16 %v1194
    %v4619 = vunpack.c.h.b16 %v1194
    %v4620 = vunpack.c.l.b16 %v1195
    %v4621 = vunpack.c.h.b16 %v1195
    %v4622 = vunpack.c.l.b16 %v1196
    %v4623 = vunpack.c.h.b16 %v1196
    %v4624 = vunpack.c.l.b16 %v1197
    %v4625 = vunpack.c.h.b16 %v1197
    %v4626 = vunpack.c.l.b16 %v1198
    %v4627 = vunpack.c.h.b16 %v1198
    %v4628 = vunpack.c.l.b16 %v1199
    %v4629 = vunpack.c.h.b16 %v1199
    %v4630 = vunpack.c.l.b16 %v1200
    %v4631 = vunpack.c.h.b16 %v1200
    %v4632 = vunpack.c.l.b16 %v1201
    %v4633 = vunpack.c.h.b16 %v1201
    %v4634 = vunpack.c.l.b16 %v1202
    %v4635 = vunpack.c.h.b16 %v1202
    %v4636 = vunpack.c.l.b16 %v1203
    %v4637 = vunpack.c.h.b16 %v1203
    %v4638 = vunpack.c.l.b16 %v1204
    %v4639 = vunpack.c.h.b16 %v1204
    %v4640 = vunpack.c.l.b16 %v1205
    %v4641 = vunpack.c.h.b16 %v1205
    %v4642 = vunpack.c.l.b16 %v1206
    %v4643 = vunpack.c.h.b16 %v1206
    %v4644 = vunpack.c.l.b16 %v1207
    %v4645 = vunpack.c.h.b16 %v1207
    %v4646 = vunpack.c.l.b16 %v1208
    %v4647 = vunpack.c.h.b16 %v1208
    %v4648 = vunpack.c.l.b16 %v1209
    %v4649 = vunpack.c.h.b16 %v1209
    %v4650 = vunpack.c.l.b16 %v1210
    %v4651 = vunpack.c.h.b16 %v1210
    %v4652 = vunpack.c.l.b16 %v1211
    %v4653 = vunpack.c.h.b16 %v1211
    %v4654 = vunpack.c.l.b16 %v1212
    %v4655 = vunpack.c.h.b16 %v1212
    %v4656 = vunpack.c.l.b16 %v1213
    %v4657 = vunpack.c.h.b16 %v1213
    %v4658 = vunpack.c.l.b16 %v1214
    %v4659 = vunpack.c.h.b16 %v1214
    %v4660 = vunpack.c.l.b16 %v1215
    %v4661 = vunpack.c.h.b16 %v1215
    %v4662 = vunpack.c.l.b16 %v1216
    %v4663 = vunpack.c.h.b16 %v1216
    %v4664 = vunpack.c.l.b16 %v1217
    %v4665 = vunpack.c.h.b16 %v1217
    %v4666 = vunpack.c.l.b16 %v1218
    %v4667 = vunpack.c.h.b16 %v1218
    %v4668 = vunpack.c.l.b16 %v1219
    %v4669 = vunpack.c.h.b16 %v1219
    %v4670 = vunpack.c.l.b16 %v1220
    %v4671 = vunpack.c.h.b16 %v1220
    %v4672 = vunpack.c.l.b16 %v1221
    %v4673 = vunpack.c.h.b16 %v1221
    %v4674 = vunpack.c.l.b16 %v1222
    %v4675 = vunpack.c.h.b16 %v1222
    %v4676 = vunpack.c.l.b16 %v1223
    %v4677 = vunpack.c.h.b16 %v1223
    %v4678 = vunpack.c.l.b16 %v1224
    %v4679 = vunpack.c.h.b16 %v1224
    %v4680 = vunpack.c.l.b16 %v1225
    %v4681 = vunpack.c.h.b16 %v1225
    %v4682 = vunpack.c.l.b16 %v1226
    %v4683 = vunpack.c.h.b16 %v1226
    %v4684 = vunpack.c.l.b16 %v1227
    %v4685 = vunpack.c.h.b16 %v1227
    %v4686 = vunpack.c.l.b16 %v1228
    %v4687 = vunpack.c.h.b16 %v1228
    %v4688 = vunpack.c.l.b16 %v1229
    %v4689 = vunpack.c.h.b16 %v1229
    %v4690 = vunpack.c.l.b16 %v1230
    %v4691 = vunpack.c.h.b16 %v1230
    %v4692 = vunpack.c.l.b16 %v1231
    %v4693 = vunpack.c.h.b16 %v1231
    %v4694 = vunpack.c.l.b16 %v1232
    %v4695 = vunpack.c.h.b16 %v1232
    %v4696 = vunpack.c.l.b16 %v1233
    %v4697 = vunpack.c.h.b16 %v1233
    %v4698 = vunpack.c.l.b16 %v1234
    %v4699 = vunpack.c.h.b16 %v1234
    %v4700 = vunpack.c.l.b16 %v1235
    %v4701 = vunpack.c.h.b16 %v1235
    %v4702 = vunpack.c.l.b16 %v1236
    %v4703 = vunpack.c.h.b16 %v1236
    %v4704 = vunpack.c.l.b16 %v1237
    %v4705 = vunpack.c.h.b16 %v1237
    %v4706 = vunpack.c.l.b16 %v1238
    %v4707 = vunpack.c.h.b16 %v1238
    %v4708 = vunpack.c.l.b16 %v1239
    %v4709 = vunpack.c.h.b16 %v1239
    %v4710 = vunpack.c.l.b16 %v1240
    %v4711 = vunpack.c.h.b16 %v1240
    %v4712 = vunpack.c.l.b16 %v1241
    %v4713 = vunpack.c.h.b16 %v1241
    %v4714 = vunpack.c.l.b16 %v1242
    %v4715 = vunpack.c.h.b16 %v1242
    %v4716 = vunpack.c.l.b16 %v1243
    %v4717 = vunpack.c.h.b16 %v1243
    %v4718 = vpack.c.b16 %v2422, %v2414
    %v4719 = vpack.c.b16 %v2423, %v2415
    %v4720 = vpack.c.b16 %v2424, %v2416
    %v4721 = vpack.c.b16 %v2425, %v2417
    %v4722 = vpack.c.b16 %v2426, %v2418
    %v4723 = vpack.c.b16 %v2427, %v2419
    %v4724 = vpack.c.b16 %v2428, %v2420
    %v4725 = vpack.c.b16 %v2429, %v2421
    %v4726 = vpack.c.b16 %v2438, %v2430
    %v4727 = vpack.c.b16 %v2439, %v2431
    %v4728 = vpack.c.b16 %v2440, %v2432
    %v4729 = vpack.c.b16 %v2441, %v2433
    %v4730 = vpack.c.b16 %v2442, %v2434
    %v4731 = vpack.c.b16 %v2443, %v2435
    %v4732 = vpack.c.b16 %v2444, %v2436
    %v4733 = vpack.c.b16 %v2445, %v2437
    %v4734 = vpack.c.b16 %v2454, %v2446
    %v4735 = vpack.c.b16 %v2455, %v2447
    %v4736 = vpack.c.b16 %v2456, %v2448
    %v4737 = vpack.c.b16 %v2457, %v2449
    %v4738 = vpack.c.b16 %v2458, %v2450
    %v4739 = vpack.c.b16 %v2459, %v2451
    %v4740 = vpack.c.b16 %v2460, %v2452
    %v4741 = vpack.c.b16 %v2461, %v2453
    %v4742 = vpack.c.b16 %v2470, %v2462
    %v4743 = vpack.c.b16 %v2471, %v2463
    %v4744 = vpack.c.b16 %v2472, %v2464
    %v4745 = vpack.c.b16 %v2473, %v2465
    %v4746 = vpack.c.b16 %v2474, %v2466
    %v4747 = vpack.c.b16 %v2475, %v2467
    %v4748 = vpack.c.b16 %v2476, %v2468
    %v4749 = vpack.c.b16 %v2477, %v2469
    %v4750 = vpack.c.b16 %v2486, %v2478
    %v4751 = vpack.c.b16 %v2487, %v2479
    %v4752 = vpack.c.b16 %v2488, %v2480
    %v4753 = vpack.c.b16 %v2489, %v2481
    %v4754 = vpack.c.b16 %v2490, %v2482
    %v4755 = vpack.c.b16 %v2491, %v2483
    %v4756 = vpack.c.b16 %v2492, %v2484
    %v4757 = vpack.c.b16 %v2493, %v2485
    %v4758 = vpack.c.b16 %v2502, %v2494
    %v4759 = vpack.c.b16 %v2503, %v2495
    %v4760 = vpack.c.b16 %v2504, %v2496
    %v4761 = vpack.c.b16 %v2505, %v2497
    %v4762 = vpack.c.b16 %v2506, %v2498
    %v4763 = vpack.c.b16 %v2507, %v2499
    %v4764 = vpack.c.b16 %v2508, %v2500
    %v4765 = vpack.c.b16 %v2509, %v2501
    %v4766 = vpack.c.b16 %v2518, %v2510
    %v4767 = vpack.c.b16 %v2519, %v2511
    %v4768 = vpack.c.b16 %v2520, %v2512
    %v4769 = vpack.c.b16 %v2521, %v2513
    %v4770 = vpack.c.b16 %v2522, %v2514
    %v4771 = vpack.c.b16 %v2523, %v2515
    %v4772 = vpack.c.b16 %v2524, %v2516
    %v4773 = vpack.c.b16 %v2525, %v2517
    %v4774 = vpack.c.b16 %v2534, %v2526
    %v4775 = vpack.c.b16 %v2535, %v2527
    %v4776 = vpack.c.b16 %v2536, %v2528
    %v4777 = vpack.c.b16 %v2537, %v2529
    %v4778 = vpack.c.b16 %v2538, %v2530
    %v4779 = vpack.c.b16 %v2539, %v2531
    %v4780 = vpack.c.b16 %v2540, %v2532
    %v4781 = vpack.c.b16 %v2541, %v2533
    %v4782 = vpack.c.b16 %v2550, %v2542
    %v4783 = vpack.c.b16 %v2551, %v2543
    %v4784 = vpack.c.b16 %v2552, %v2544
    %v4785 = vpack.c.b16 %v2553, %v2545
    %v4786 = vpack.c.b16 %v2554, %v2546
    %v4787 = vpack.c.b16 %v2555, %v2547
    %v4788 = vpack.c.b16 %v2556, %v2548
    %v4789 = vpack.c.b16 %v2557, %v2549
    %v4790 = vpack.c.b16 %v2566, %v2558
    %v4791 = vpack.c.b16 %v2567, %v2559
    %v4792 = vpack.c.b16 %v2568, %v2560
    %v4793 = vpack.c.b16 %v2569, %v2561
    %v4794 = vpack.c.b16 %v2570, %v2562
    %v4795 = vpack.c.b16 %v2571, %v2563
    %v4796 = vpack.c.b16 %v2572, %v2564
    %v4797 = vpack.c.b16 %v2573, %v2565
    %v4798 = vpack.c.b16 %v2582, %v2574
    %v4799 = vpack.c.b16 %v2583, %v2575
    %v4800 = vpack.c.b16 %v2584, %v2576
    %v4801 = vpack.c.b16 %v2585, %v2577
    %v4802 = vpack.c.b16 %v2586, %v2578
    %v4803 = vpack.c.b16 %v2587, %v2579
    %v4804 = vpack.c.b16 %v2588, %v2580
    %v4805 = vpack.c.b16 %v2589, %v2581
    %v4806 = vpack.c.b16 %v2598, %v2590
    %v4807 = vpack.c.b16 %v2599, %v2591
    %v4808 = vpack.c.b16 %v2600, %v2592
    %v4809 = vpack.c.b16 %v2601, %v2593
    %v4810 = vpack.c.b16 %v2602, %v2594
    %v4811 = vpack.c.b16 %v2603, %v2595
    %v4812 = vpack.c.b16 %v2604, %v2596
    %v4813 = vpack.c.b16 %v2605, %v2597
    %v4814 = vpack.c.b16 %v2614, %v2606
    %v4815 = vpack.c.b16 %v2615, %v2607
    %v4816 = vpack.c.b16 %v2616, %v2608
    %v4817 = vpack.c.b16 %v2617, %v2609
    %v4818 = vpack.c.b16 %v2618, %v2610
    %v4819 = vpack.c.b16 %v2619, %v2611
    %v4820 = vpack.c.b16 %v2620, %v2612
    %v4821 = vpack.c.b16 %v2621, %v2613
    %v4822 = vpack.c.b16 %v2630, %v2622
    %v4823 = vpack.c.b16 %v2631, %v2623
    %v4824 = vpack.c.b16 %v2632, %v2624
    %v4825 = vpack.c.b16 %v2633, %v2625
    %v4826 = vpack.c.b16 %v2634, %v2626
    %v4827 = vpack.c.b16 %v2635, %v2627
    %v4828 = vpack.c.b16 %v2636, %v2628
    %v4829 = vpack.c.b16 %v2637, %v2629
    %v4830 = vpack.c.b16 %v2646, %v2638
    %v4831 = vpack.c.b16 %v2647, %v2639
    %v4832 = vpack.c.b16 %v2648, %v2640
    %v4833 = vpack.c.b16 %v2649, %v2641
    %v4834 = vpack.c.b16 %v2650, %v2642
    %v4835 = vpack.c.b16 %v2651, %v2643
    %v4836 = vpack.c.b16 %v2652, %v2644
    %v4837 = vpack.c.b16 %v2653, %v2645
    %v4838 = vpack.c.b16 %v2662, %v2654
    %v4839 = vpack.c.b16 %v2663, %v2655
    %v4840 = vpack.c.b16 %v2664, %v2656
    %v4841 = vpack.c.b16 %v2665, %v2657
    %v4842 = vpack.c.b16 %v2666, %v2658
    %v4843 = vpack.c.b16 %v2667, %v2659
    %v4844 = vpack.c.b16 %v2668, %v2660
    %v4845 = vpack.c.b16 %v2669, %v2661
    %v4846 = vpack.c.b16 %v2678, %v2670
    %v4847 = vpack.c.b16 %v2679, %v2671
    %v4848 = vpack.c.b16 %v2680, %v2672
    %v4849 = vpack.c.b16 %v2681, %v2673
    %v4850 = vpack.c.b16 %v2682, %v2674
    %v4851 = vpack.c.b16 %v2683, %v2675
    %v4852 = vpack.c.b16 %v2684, %v2676
    %v4853 = vpack.c.b16 %v2685, %v2677
    %v4854 = vpack.c.b16 %v2694, %v2686
    %v4855 = vpack.c.b16 %v2695, %v2687
    %v4856 = vpack.c.b16 %v2696, %v2688
    %v4857 = vpack.c.b16 %v2697, %v2689
    %v4858 = vpack.c.b16 %v2698, %v2690
    %v4859 = vpack.c.b16 %v2699, %v2691
    %v4860 = vpack.c.b16 %v2700, %v2692
    %v4861 = vpack.c.b16 %v2701, %v2693
    %v4862 = vpack.c.b16 %v2710, %v2702
    %v4863 = vpack.c.b16 %v2711, %v2703
    %v4864 = vpack.c.b16 %v2712, %v2704
    %v4865 = vpack.c.b16 %v2713, %v2705
    %v4866 = vpack.c.b16 %v2714, %v2706
    %v4867 = vpack.c.b16 %v2715, %v2707
    %v4868 = vpack.c.b16 %v2716, %v2708
    %v4869 = vpack.c.b16 %v2717, %v2709
    %v4870 = vpack.c.b16 %v2726, %v2718
    %v4871 = vpack.c.b16 %v2727, %v2719
    %v4872 = vpack.c.b16 %v2728, %v2720
    %v4873 = vpack.c.b16 %v2729, %v2721
    %v4874 = vpack.c.b16 %v2730, %v2722
    %v4875 = vpack.c.b16 %v2731, %v2723
    %v4876 = vpack.c.b16 %v2732, %v2724
    %v4877 = vpack.c.b16 %v2733, %v2725
    %v4878 = vpack.c.b16 %v2742, %v2734
    %v4879 = vpack.c.b16 %v2743, %v2735
    %v4880 = vpack.c.b16 %v2744, %v2736
    %v4881 = vpack.c.b16 %v2745, %v2737
    %v4882 = vpack.c.b16 %v2746, %v2738
    %v4883 = vpack.c.b16 %v2747, %v2739
    %v4884 = vpack.c.b16 %v2748, %v2740
    %v4885 = vpack.c.b16 %v2749, %v2741
    %v4886 = vpack.c.b16 %v2758, %v2750
    %v4887 = vpack.c.b16 %v2759, %v2751
    %v4888 = vpack.c.b16 %v2760, %v2752
    %v4889 = vpack.c.b16 %v2761, %v2753
    %v4890 = vpack.c.b16 %v2762, %v2754
    %v4891 = vpack.c.b16 %v2763, %v2755
    %v4892 = vpack.c.b16 %v2764, %v2756
    %v4893 = vpack.c.b16 %v2765, %v2757
    %v4894 = vpack.c.b16 %v2774, %v2766
    %v4895 = vpack.c.b16 %v2775, %v2767
    %v4896 = vpack.c.b16 %v2776, %v2768
    %v4897 = vpack.c.b16 %v2777, %v2769
    %v4898 = vpack.c.b16 %v2778, %v2770
    %v4899 = vpack.c.b16 %v2779, %v2771
    %v4900 = vpack.c.b16 %v2780, %v2772
    %v4901 = vpack.c.b16 %v2781, %v2773
    %v4902 = vpack.c.b16 %v2790, %v2782
    %v4903 = vpack.c.b16 %v2791, %v2783
    %v4904 = vpack.c.b16 %v2792, %v2784
    %v4905 = vpack.c.b16 %v2793, %v2785
    %v4906 = vpack.c.b16 %v2794, %v2786
    %v4907 = vpack.c.b16 %v2795, %v2787
    %v4908 = vpack.c.b16 %v2796, %v2788
    %v4909 = vpack.c.b16 %v2797, %v2789
    %v4910 = vpack.c.b16 %v2806, %v2798
    %v4911 = vpack.c.b16 %v2807, %v2799
    %v4912 = vpack.c.b16 %v2808, %v2800
    %v4913 = vpack.c.b16 %v2809, %v2801
    %v4914 = vpack.c.b16 %v2810, %v2802
    %v4915 = vpack.c.b16 %v2811, %v2803
    %v4916 = vpack.c.b16 %v2812, %v2804
    %v4917 = vpack.c.b16 %v2813, %v2805
    %v4918 = vpack.c.b16 %v2822, %v2814
    %v4919 = vpack.c.b16 %v2823, %v2815
    %v4920 = vpack.c.b16 %v2824, %v2816
    %v4921 = vpack.c.b16 %v2825, %v2817
    %v4922 = vpack.c.b16 %v2826, %v2818
    %v4923 = vpack.c.b16 %v2827, %v2819
    %v4924 = vpack.c.b16 %v2828, %v2820
    %v4925 = vpack.c.b16 %v2829, %v2821
    %v4926 = vpack.c.b16 %v2838, %v2830
    %v4927 = vpack.c.b16 %v2839, %v2831
    %v4928 = vpack.c.b16 %v2840, %v2832
    %v4929 = vpack.c.b16 %v2841, %v2833
    %v4930 = vpack.c.b16 %v2842, %v2834
    %v4931 = vpack.c.b16 %v2843, %v2835
    %v4932 = vpack.c.b16 %v2844, %v2836
    %v4933 = vpack.c.b16 %v2845, %v2837
    %v4934 = vpack.c.b16 %v2854, %v2846
    %v4935 = vpack.c.b16 %v2855, %v2847
    %v4936 = vpack.c.b16 %v2856, %v2848
    %v4937 = vpack.c.b16 %v2857, %v2849
    %v4938 = vpack.c.b16 %v2858, %v2850
    %v4939 = vpack.c.b16 %v2859, %v2851
    %v4940 = vpack.c.b16 %v2860, %v2852
    %v4941 = vpack.c.b16 %v2861, %v2853
    %v4942 = vpack.c.b16 %v2870, %v2862
    %v4943 = vpack.c.b16 %v2871, %v2863
    %v4944 = vpack.c.b16 %v2872, %v2864
    %v4945 = vpack.c.b16 %v2873, %v2865
    %v4946 = vpack.c.b16 %v2874, %v2866
    %v4947 = vpack.c.b16 %v2875, %v2867
    %v4948 = vpack.c.b16 %v2876, %v2868
    %v4949 = vpack.c.b16 %v2877, %v2869
    %v4950 = vpack.c.b16 %v2886, %v2878
    %v4951 = vpack.c.b16 %v2887, %v2879
    %v4952 = vpack.c.b16 %v2888, %v2880
    %v4953 = vpack.c.b16 %v2889, %v2881
    %v4954 = vpack.c.b16 %v2890, %v2882
    %v4955 = vpack.c.b16 %v2891, %v2883
    %v4956 = vpack.c.b16 %v2892, %v2884
    %v4957 = vpack.c.b16 %v2893, %v2885
    %v4958 = vpack.c.b16 %v2902, %v2894
    %v4959 = vpack.c.b16 %v2903, %v2895
    %v4960 = vpack.c.b16 %v2904, %v2896
    %v4961 = vpack.c.b16 %v2905, %v2897
    %v4962 = vpack.c.b16 %v2906, %v2898
    %v4963 = vpack.c.b16 %v2907, %v2899
    %v4964 = vpack.c.b16 %v2908, %v2900
    %v4965 = vpack.c.b16 %v2909, %v2901
    %v4966 = vpack.c.b16 %v2918, %v2910
    %v4967 = vpack.c.b16 %v2919, %v2911
    %v4968 = vpack.c.b16 %v2920, %v2912
    %v4969 = vpack.c.b16 %v2921, %v2913
    %v4970 = vpack.c.b16 %v2922, %v2914
    %v4971 = vpack.c.b16 %v2923, %v2915
    %v4972 = vpack.c.b16 %v2924, %v2916
    %v4973 = vpack.c.b16 %v2925, %v2917
    %v4974 = vpack.c.b16 %v2934, %v2926
    %v4975 = vpack.c.b16 %v2935, %v2927
    %v4976 = vpack.c.b16 %v2936, %v2928
    %v4977 = vpack.c.b16 %v2937, %v2929
    %v4978 = vpack.c.b16 %v2938, %v2930
    %v4979 = vpack.c.b16 %v2939, %v2931
    %v4980 = vpack.c.b16 %v2940, %v2932
    %v4981 = vpack.c.b16 %v2941, %v2933
    %v4982 = vpack.c.b16 %v2950, %v2942
    %v4983 = vpack.c.b16 %v2951, %v2943
    %v4984 = vpack.c.b16 %v2952, %v2944
    %v4985 = vpack.c.b16 %v2953, %v2945
    %v4986 = vpack.c.b16 %v2954, %v2946
    %v4987 = vpack.c.b16 %v2955, %v2947
    %v4988 = vpack.c.b16 %v2956, %v2948
    %v4989 = vpack.c.b16 %v2957, %v2949
    %v4990 = vpack.c.b16 %v2966, %v2958
    %v4991 = vpack.c.b16 %v2967, %v2959
    %v4992 = vpack.c.b16 %v2968, %v2960
    %v4993 = vpack.c.b16 %v2969, %v2961
    %v4994 = vpack.c.b16 %v2970, %v2962
    %v4995 = vpack.c.b16 %v2971, %v2963
    %v4996 = vpack.c.b16 %v2972, %v2964
    %v4997 = vpack.c.b16 %v2973, %v2965
    %v4998 = vpack.c.b16 %v2982, %v2974
    %v4999 = vpack.c.b16 %v2983, %v2975
    %v5000 = vpack.c.b16 %v2984, %v2976
    %v5001 = vpack.c.b16 %v2985, %v2977
    %v5002 = vpack.c.b16 %v2986, %v2978
    %v5003 = vpack.c.b16 %v2987, %v2979
    %v5004 = vpack.c.b16 %v2988, %v2980
    %v5005 = vpack.c.b16 %v2989, %v2981
    %v5006 = vpack.c.b16 %v2998, %v2990
    %v5007 = vpack.c.b16 %v2999, %v2991
    %v5008 = vpack.c.b16 %v3000, %v2992
    %v5009 = vpack.c.b16 %v3001, %v2993
    %v5010 = vpack.c.b16 %v3002, %v2994
    %v5011 = vpack.c.b16 %v3003, %v2995
    %v5012 = vpack.c.b16 %v3004, %v2996
    %v5013 = vpack.c.b16 %v3005, %v2997
    %v5014 = vpack.c.b16 %v3014, %v3006
    %v5015 = vpack.c.b16 %v3015, %v3007
    %v5016 = vpack.c.b16 %v3016, %v3008
    %v5017 = vpack.c.b16 %v3017, %v3009
    %v5018 = vpack.c.b16 %v3018, %v3010
    %v5019 = vpack.c.b16 %v3019, %v3011
    %v5020 = vpack.c.b16 %v3020, %v3012
    %v5021 = vpack.c.b16 %v3021, %v3013
    %v5022 = vpack.c.b16 %v3030, %v3022
    %v5023 = vpack.c.b16 %v3031, %v3023
    %v5024 = vpack.c.b16 %v3032, %v3024
    %v5025 = vpack.c.b16 %v3033, %v3025
    %v5026 = vpack.c.b16 %v3034, %v3026
    %v5027 = vpack.c.b16 %v3035, %v3027
    %v5028 = vpack.c.b16 %v3036, %v3028
    %v5029 = vpack.c.b16 %v3037, %v3029
    %v5030 = vpack.c.b16 %v3046, %v3038
    %v5031 = vpack.c.b16 %v3047, %v3039
    %v5032 = vpack.c.b16 %v3048, %v3040
    %v5033 = vpack.c.b16 %v3049, %v3041
    %v5034 = vpack.c.b16 %v3050, %v3042
    %v5035 = vpack.c.b16 %v3051, %v3043
    %v5036 = vpack.c.b16 %v3052, %v3044
    %v5037 = vpack.c.b16 %v3053, %v3045
    %v5038 = vpack.c.b16 %v3062, %v3054
    %v5039 = vpack.c.b16 %v3063, %v3055
    %v5040 = vpack.c.b16 %v3064, %v3056
    %v5041 = vpack.c.b16 %v3065, %v3057
    %v5042 = vpack.c.b16 %v3066, %v3058
    %v5043 = vpack.c.b16 %v3067, %v3059
    %v5044 = vpack.c.b16 %v3068, %v3060
    %v5045 = vpack.c.b16 %v3069, %v3061
    %v5046 = vpack.c.b16 %v3078, %v3070
    %v5047 = vpack.c.b16 %v3079, %v3071
    %v5048 = vpack.c.b16 %v3080, %v3072
    %v5049 = vpack.c.b16 %v3081, %v3073
    %v5050 = vpack.c.b16 %v3082, %v3074
    %v5051 = vpack.c.b16 %v3083, %v3075
    %v5052 = vpack.c.b16 %v3084, %v3076
    %v5053 = vpack.c.b16 %v3085, %v3077
    %v5054 = vpack.c.b16 %v3094, %v3086
    %v5055 = vpack.c.b16 %v3095, %v3087
    %v5056 = vpack.c.b16 %v3096, %v3088
    %v5057 = vpack.c.b16 %v3097, %v3089
    %v5058 = vpack.c.b16 %v3098, %v3090
    %v5059 = vpack.c.b16 %v3099, %v3091
    %v5060 = vpack.c.b16 %v3100, %v3092
    %v5061 = vpack.c.b16 %v3101, %v3093
    %v5062 = vpack.c.b16 %v3110, %v3102
    %v5063 = vpack.c.b16 %v3111, %v3103
    %v5064 = vpack.c.b16 %v3112, %v3104
    %v5065 = vpack.c.b16 %v3113, %v3105
    %v5066 = vpack.c.b16 %v3114, %v3106
    %v5067 = vpack.c.b16 %v3115, %v3107
    %v5068 = vpack.c.b16 %v3116, %v3108
    %v5069 = vpack.c.b16 %v3117, %v3109
    %v5070 = vpack.c.b16 %v3126, %v3118
    %v5071 = vpack.c.b16 %v3127, %v3119
    %v5072 = vpack.c.b16 %v3128, %v3120
    %v5073 = vpack.c.b16 %v3129, %v3121
    %v5074 = vpack.c.b16 %v3130, %v3122
    %v5075 = vpack.c.b16 %v3131, %v3123
    %v5076 = vpack.c.b16 %v3132, %v3124
    %v5077 = vpack.c.b16 %v3133, %v3125
    %v5078 = vpack.c.b16 %v3142, %v3134
    %v5079 = vpack.c.b16 %v3143, %v3135
    %v5080 = vpack.c.b16 %v3144, %v3136
    %v5081 = vpack.c.b16 %v3145, %v3137
    %v5082 = vpack.c.b16 %v3146, %v3138
    %v5083 = vpack.c.b16 %v3147, %v3139
    %v5084 = vpack.c.b16 %v3148, %v3140
    %v5085 = vpack.c.b16 %v3149, %v3141
    %v5086 = vpack.c.b16 %v3158, %v3150
    %v5087 = vpack.c.b16 %v3159, %v3151
    %v5088 = vpack.c.b16 %v3160, %v3152
    %v5089 = vpack.c.b16 %v3161, %v3153
    %v5090 = vpack.c.b16 %v3162, %v3154
    %v5091 = vpack.c.b16 %v3163, %v3155
    %v5092 = vpack.c.b16 %v3164, %v3156
    %v5093 = vpack.c.b16 %v3165, %v3157
    %v5094 = vpack.c.b16 %v3174, %v3166
    %v5095 = vpack.c.b16 %v3175, %v3167
    %v5096 = vpack.c.b16 %v3176, %v3168
    %v5097 = vpack.c.b16 %v3177, %v3169
    %v5098 = vpack.c.b16 %v3178, %v3170
    %v5099 = vpack.c.b16 %v3179, %v3171
    %v5100 = vpack.c.b16 %v3180, %v3172
    %v5101 = vpack.c.b16 %v3181, %v3173
    %v5102 = vpack.c.b16 %v3190, %v3182
    %v5103 = vpack.c.b16 %v3191, %v3183
    %v5104 = vpack.c.b16 %v3192, %v3184
    %v5105 = vpack.c.b16 %v3193, %v3185
    %v5106 = vpack.c.b16 %v3194, %v3186
    %v5107 = vpack.c.b16 %v3195, %v3187
    %v5108 = vpack.c.b16 %v3196, %v3188
    %v5109 = vpack.c.b16 %v3197, %v3189
    %v5110 = vpack.c.b16 %v3206, %v3198
    %v5111 = vpack.c.b16 %v3207, %v3199
    %v5112 = vpack.c.b16 %v3208, %v3200
    %v5113 = vpack.c.b16 %v3209, %v3201
    %v5114 = vpack.c.b16 %v3210, %v3202
    %v5115 = vpack.c.b16 %v3211, %v3203
    %v5116 = vpack.c.b16 %v3212, %v3204
    %v5117 = vpack.c.b16 %v3213, %v3205
    %v5118 = vpack.c.b16 %v3222, %v3214
    %v5119 = vpack.c.b16 %v3223, %v3215
    %v5120 = vpack.c.b16 %v3224, %v3216
    %v5121 = vpack.c.b16 %v3225, %v3217
    %v5122 = vpack.c.b16 %v3226, %v3218
    %v5123 = vpack.c.b16 %v3227, %v3219
    %v5124 = vpack.c.b16 %v3228, %v3220
    %v5125 = vpack.c.b16 %v3229, %v3221
    %v5126 = vpack.c.b16 %v3238, %v3230
    %v5127 = vpack.c.b16 %v3239, %v3231
    %v5128 = vpack.c.b16 %v3240, %v3232
    %v5129 = vpack.c.b16 %v3241, %v3233
    %v5130 = vpack.c.b16 %v3242, %v3234
    %v5131 = vpack.c.b16 %v3243, %v3235
    %v5132 = vpack.c.b16 %v3244, %v3236
    %v5133 = vpack.c.b16 %v3245, %v3237
    %v5134 = vpack.c.b16 %v3254, %v3246
    %v5135 = vpack.c.b16 %v3255, %v3247
    %v5136 = vpack.c.b16 %v3256, %v3248
    %v5137 = vpack.c.b16 %v3257, %v3249
    %v5138 = vpack.c.b16 %v3258, %v3250
    %v5139 = vpack.c.b16 %v3259, %v3251
    %v5140 = vpack.c.b16 %v3260, %v3252
    %v5141 = vpack.c.b16 %v3261, %v3253
    %v5142 = vpack.c.b16 %v3270, %v3262
    %v5143 = vpack.c.b16 %v3271, %v3263
    %v5144 = vpack.c.b16 %v3272, %v3264
    %v5145 = vpack.c.b16 %v3273, %v3265
    %v5146 = vpack.c.b16 %v3274, %v3266
    %v5147 = vpack.c.b16 %v3275, %v3267
    %v5148 = vpack.c.b16 %v3276, %v3268
    %v5149 = vpack.c.b16 %v3277, %v3269
    %v5150 = vpack.c.b16 %v3286, %v3278
    %v5151 = vpack.c.b16 %v3287, %v3279
    %v5152 = vpack.c.b16 %v3288, %v3280
    %v5153 = vpack.c.b16 %v3289, %v3281
    %v5154 = vpack.c.b16 %v3290, %v3282
    %v5155 = vpack.c.b16 %v3291, %v3283
    %v5156 = vpack.c.b16 %v3292, %v3284
    %v5157 = vpack.c.b16 %v3293, %v3285
    %v5158 = vpack.c.b16 %v3302, %v3294
    %v5159 = vpack.c.b16 %v3303, %v3295
    %v5160 = vpack.c.b16 %v3304, %v3296
    %v5161 = vpack.c.b16 %v3305, %v3297
    %v5162 = vpack.c.b16 %v3306, %v3298
    %v5163 = vpack.c.b16 %v3307, %v3299
    %v5164 = vpack.c.b16 %v3308, %v3300
    %v5165 = vpack.c.b16 %v3309, %v3301
    %v5166 = vpack.c.b16 %v3318, %v3310
    %v5167 = vpack.c.b16 %v3319, %v3311
    %v5168 = vpack.c.b16 %v3320, %v3312
    %v5169 = vpack.c.b16 %v3321, %v3313
    %v5170 = vpack.c.b16 %v3322, %v3314
    %v5171 = vpack.c.b16 %v3323, %v3315
    %v5172 = vpack.c.b16 %v3324, %v3316
    %v5173 = vpack.c.b16 %v3325, %v3317
    %v5174 = vpack.c.b16 %v3334, %v3326
    %v5175 = vpack.c.b16 %v3335, %v3327
    %v5176 = vpack.c.b16 %v3336, %v3328
    %v5177 = vpack.c.b16 %v3337, %v3329
    %v5178 = vpack.c.b16 %v3338, %v3330
    %v5179 = vpack.c.b16 %v3339, %v3331
    %v5180 = vpack.c.b16 %v3340, %v3332
    %v5181 = vpack.c.b16 %v3341, %v3333
    %v5182 = vpack.c.b16 %v3350, %v3342
    %v5183 = vpack.c.b16 %v3351, %v3343
    %v5184 = vpack.c.b16 %v3352, %v3344
    %v5185 = vpack.c.b16 %v3353, %v3345
    %v5186 = vpack.c.b16 %v3354, %v3346
    %v5187 = vpack.c.b16 %v3355, %v3347
    %v5188 = vpack.c.b16 %v3356, %v3348
    %v5189 = vpack.c.b16 %v3357, %v3349
    %v5190 = vpack.c.b16 %v3366, %v3358
    %v5191 = vpack.c.b16 %v3367, %v3359
    %v5192 = vpack.c.b16 %v3368, %v3360
    %v5193 = vpack.c.b16 %v3369, %v3361
    %v5194 = vpack.c.b16 %v3370, %v3362
    %v5195 = vpack.c.b16 %v3371, %v3363
    %v5196 = vpack.c.b16 %v3372, %v3364
    %v5197 = vpack.c.b16 %v3373, %v3365
    %v5198 = vpack.c.b16 %v3382, %v3374
    %v5199 = vpack.c.b16 %v3383, %v3375
    %v5200 = vpack.c.b16 %v3384, %v3376
    %v5201 = vpack.c.b16 %v3385, %v3377
    %v5202 = vpack.c.b16 %v3386, %v3378
    %v5203 = vpack.c.b16 %v3387, %v3379
    %v5204 = vpack.c.b16 %v3388, %v3380
    %v5205 = vpack.c.b16 %v3389, %v3381
    %v5206 = vpack.c.b16 %v3398, %v3390
    %v5207 = vpack.c.b16 %v3399, %v3391
    %v5208 = vpack.c.b16 %v3400, %v3392
    %v5209 = vpack.c.b16 %v3401, %v3393
    %v5210 = vpack.c.b16 %v3402, %v3394
    %v5211 = vpack.c.b16 %v3403, %v3395
    %v5212 = vpack.c.b16 %v3404, %v3396
    %v5213 = vpack.c.b16 %v3405, %v3397
    %v5214 = vpack.c.b16 %v3414, %v3406
    %v5215 = vpack.c.b16 %v3415, %v3407
    %v5216 = vpack.c.b16 %v3416, %v3408
    %v5217 = vpack.c.b16 %v3417, %v3409
    %v5218 = vpack.c.b16 %v3418, %v3410
    %v5219 = vpack.c.b16 %v3419, %v3411
    %v5220 = vpack.c.b16 %v3420, %v3412
    %v5221 = vpack.c.b16 %v3421, %v3413
    %v5222 = vpack.c.b16 %v3430, %v3422
    %v5223 = vpack.c.b16 %v3431, %v3423
    %v5224 = vpack.c.b16 %v3432, %v3424
    %v5225 = vpack.c.b16 %v3433, %v3425
    %v5226 = vpack.c.b16 %v3434, %v3426
    %v5227 = vpack.c.b16 %v3435, %v3427
    %v5228 = vpack.c.b16 %v3436, %v3428
    %v5229 = vpack.c.b16 %v3437, %v3429
    %v5230 = vpack.c.b16 %v3446, %v3438
    %v5231 = vpack.c.b16 %v3447, %v3439
    %v5232 = vpack.c.b16 %v3448, %v3440
    %v5233 = vpack.c.b16 %v3449, %v3441
    %v5234 = vpack.c.b16 %v3450, %v3442
    %v5235 = vpack.c.b16 %v3451, %v3443
    %v5236 = vpack.c.b16 %v3452, %v3444
    %v5237 = vpack.c.b16 %v3453, %v3445
    %v5238 = vpack.c.b16 %v3462, %v3454
    %v5239 = vpack.c.b16 %v3463, %v3455
    %v5240 = vpack.c.b16 %v3464, %v3456
    %v5241 = vpack.c.b16 %v3465, %v3457
    %v5242 = vpack.c.b16 %v3466, %v3458
    %v5243 = vpack.c.b16 %v3467, %v3459
    %v5244 = vpack.c.b16 %v3468, %v3460
    %v5245 = vpack.c.b16 %v3469, %v3461
    %v5246 = vpack.c.b16 %v3478, %v3470
    %v5247 = vpack.c.b16 %v3479, %v3471
    %v5248 = vpack.c.b16 %v3480, %v3472
    %v5249 = vpack.c.b16 %v3481, %v3473
    %v5250 = vpack.c.b16 %v3482, %v3474
    %v5251 = vpack.c.b16 %v3483, %v3475
    %v5252 = vpack.c.b16 %v3484, %v3476
    %v5253 = vpack.c.b16 %v3485, %v3477
    %v5254 = vpack.c.b16 %v3494, %v3486
    %v5255 = vpack.c.b16 %v3495, %v3487
    %v5256 = vpack.c.b16 %v3496, %v3488
    %v5257 = vpack.c.b16 %v3497, %v3489
    %v5258 = vpack.c.b16 %v3498, %v3490
    %v5259 = vpack.c.b16 %v3499, %v3491
    %v5260 = vpack.c.b16 %v3500, %v3492
    %v5261 = vpack.c.b16 %v3501, %v3493
    %v5262 = vpack.c.b16 %v3510, %v3502
    %v5263 = vpack.c.b16 %v3511, %v3503
    %v5264 = vpack.c.b16 %v3512, %v3504
    %v5265 = vpack.c.b16 %v3513, %v3505
    %v5266 = vpack.c.b16 %v3514, %v3506
    %v5267 = vpack.c.b16 %v3515, %v3507
    %v5268 = vpack.c.b16 %v3516, %v3508
    %v5269 = vpack.c.b16 %v3517, %v3509
    %v5270 = vpack.c.b16 %v3526, %v3518
    %v5271 = vpack.c.b16 %v3527, %v3519
    %v5272 = vpack.c.b16 %v3528, %v3520
    %v5273 = vpack.c.b16 %v3529, %v3521
    %v5274 = vpack.c.b16 %v3530, %v3522
    %v5275 = vpack.c.b16 %v3531, %v3523
    %v5276 = vpack.c.b16 %v3532, %v3524
    %v5277 = vpack.c.b16 %v3533, %v3525
    %v5278 = vpack.c.b16 %v3542, %v3534
    %v5279 = vpack.c.b16 %v3543, %v3535
    %v5280 = vpack.c.b16 %v3544, %v3536
    %v5281 = vpack.c.b16 %v3545, %v3537
    %v5282 = vpack.c.b16 %v3546, %v3538
    %v5283 = vpack.c.b16 %v3547, %v3539
    %v5284 = vpack.c.b16 %v3548, %v3540
    %v5285 = vpack.c.b16 %v3549, %v3541
    %v5286 = vpack.c.b16 %v3558, %v3550
    %v5287 = vpack.c.b16 %v3559, %v3551
    %v5288 = vpack.c.b16 %v3560, %v3552
    %v5289 = vpack.c.b16 %v3561, %v3553
    %v5290 = vpack.c.b16 %v3562, %v3554
    %v5291 = vpack.c.b16 %v3563, %v3555
    %v5292 = vpack.c.b16 %v3564, %v3556
    %v5293 = vpack.c.b16 %v3565, %v3557
    %v5294 = vpack.c.b16 %v3574, %v3566
    %v5295 = vpack.c.b16 %v3575, %v3567
    %v5296 = vpack.c.b16 %v3576, %v3568
    %v5297 = vpack.c.b16 %v3577, %v3569
    %v5298 = vpack.c.b16 %v3578, %v3570
    %v5299 = vpack.c.b16 %v3579, %v3571
    %v5300 = vpack.c.b16 %v3580, %v3572
    %v5301 = vpack.c.b16 %v3581, %v3573
    %v5302 = vpack.c.b16 %v3590, %v3582
    %v5303 = vpack.c.b16 %v3591, %v3583
    %v5304 = vpack.c.b16 %v3592, %v3584
    %v5305 = vpack.c.b16 %v3593, %v3585
    %v5306 = vpack.c.b16 %v3594, %v3586
    %v5307 = vpack.c.b16 %v3595, %v3587
    %v5308 = vpack.c.b16 %v3596, %v3588
    %v5309 = vpack.c.b16 %v3597, %v3589
    %v5310 = vpack.c.b16 %v3606, %v3598
    %v5311 = vpack.c.b16 %v3607, %v3599
    %v5312 = vpack.c.b16 %v3608, %v3600
    %v5313 = vpack.c.b16 %v3609, %v3601
    %v5314 = vpack.c.b16 %v3610, %v3602
    %v5315 = vpack.c.b16 %v3611, %v3603
    %v5316 = vpack.c.b16 %v3612, %v3604
    %v5317 = vpack.c.b16 %v3613, %v3605
    %v5318 = vpack.c.b16 %v3622, %v3614
    %v5319 = vpack.c.b16 %v3623, %v3615
    %v5320 = vpack.c.b16 %v3624, %v3616
    %v5321 = vpack.c.b16 %v3625, %v3617
    %v5322 = vpack.c.b16 %v3626, %v3618
    %v5323 = vpack.c.b16 %v3627, %v3619
    %v5324 = vpack.c.b16 %v3628, %v3620
    %v5325 = vpack.c.b16 %v3629, %v3621
    %v5326 = vpack.c.b16 %v3638, %v3630
    %v5327 = vpack.c.b16 %v3639, %v3631
    %v5328 = vpack.c.b16 %v3640, %v3632
    %v5329 = vpack.c.b16 %v3641, %v3633
    %v5330 = vpack.c.b16 %v3642, %v3634
    %v5331 = vpack.c.b16 %v3643, %v3635
    %v5332 = vpack.c.b16 %v3644, %v3636
    %v5333 = vpack.c.b16 %v3645, %v3637
    %v5334 = vpack.c.b16 %v3654, %v3646
    %v5335 = vpack.c.b16 %v3655, %v3647
    %v5336 = vpack.c.b16 %v3656, %v3648
    %v5337 = vpack.c.b16 %v3657, %v3649
    %v5338 = vpack.c.b16 %v3658, %v3650
    %v5339 = vpack.c.b16 %v3659, %v3651
    %v5340 = vpack.c.b16 %v3660, %v3652
    %v5341 = vpack.c.b16 %v3661, %v3653
    %v5342 = vpack.c.b16 %v3670, %v3662
    %v5343 = vpack.c.b16 %v3671, %v3663
    %v5344 = vpack.c.b16 %v3672, %v3664
    %v5345 = vpack.c.b16 %v3673, %v3665
    %v5346 = vpack.c.b16 %v3674, %v3666
    %v5347 = vpack.c.b16 %v3675, %v3667
    %v5348 = vpack.c.b16 %v3676, %v3668
    %v5349 = vpack.c.b16 %v3677, %v3669
    %v5350 = vpack.c.b16 %v3686, %v3678
    %v5351 = vpack.c.b16 %v3687, %v3679
    %v5352 = vpack.c.b16 %v3688, %v3680
    %v5353 = vpack.c.b16 %v3689, %v3681
    %v5354 = vpack.c.b16 %v3690, %v3682
    %v5355 = vpack.c.b16 %v3691, %v3683
    %v5356 = vpack.c.b16 %v3692, %v3684
    %v5357 = vpack.c.b16 %v3693, %v3685
    %v5358 = vpack.c.b16 %v3702, %v3694
    %v5359 = vpack.c.b16 %v3703, %v3695
    %v5360 = vpack.c.b16 %v3704, %v3696
    %v5361 = vpack.c.b16 %v3705, %v3697
    %v5362 = vpack.c.b16 %v3706, %v3698
    %v5363 = vpack.c.b16 %v3707, %v3699
    %v5364 = vpack.c.b16 %v3708, %v3700
    %v5365 = vpack.c.b16 %v3709, %v3701
    %v5366 = vpack.c.b16 %v3718, %v3710
    %v5367 = vpack.c.b16 %v3719, %v3711
    %v5368 = vpack.c.b16 %v3720, %v3712
    %v5369 = vpack.c.b16 %v3721, %v3713
    %v5370 = vpack.c.b16 %v3722, %v3714
    %v5371 = vpack.c.b16 %v3723, %v3715
    %v5372 = vpack.c.b16 %v3724, %v3716
    %v5373 = vpack.c.b16 %v3725, %v3717
    %v5374 = vpack.c.b16 %v3734, %v3726
    %v5375 = vpack.c.b16 %v3735, %v3727
    %v5376 = vpack.c.b16 %v3736, %v3728
    %v5377 = vpack.c.b16 %v3737, %v3729
    %v5378 = vpack.c.b16 %v3738, %v3730
    %v5379 = vpack.c.b16 %v3739, %v3731
    %v5380 = vpack.c.b16 %v3740, %v3732
    %v5381 = vpack.c.b16 %v3741, %v3733
    %v5382 = vpack.c.b16 %v3750, %v3742
    %v5383 = vpack.c.b16 %v3751, %v3743
    %v5384 = vpack.c.b16 %v3752, %v3744
    %v5385 = vpack.c.b16 %v3753, %v3745
    %v5386 = vpack.c.b16 %v3754, %v3746
    %v5387 = vpack.c.b16 %v3755, %v3747
    %v5388 = vpack.c.b16 %v3756, %v3748
    %v5389 = vpack.c.b16 %v3757, %v3749
    %v5390 = vpack.c.b16 %v3766, %v3758
    %v5391 = vpack.c.b16 %v3767, %v3759
    %v5392 = vpack.c.b16 %v3768, %v3760
    %v5393 = vpack.c.b16 %v3769, %v3761
    %v5394 = vpack.c.b16 %v3770, %v3762
    %v5395 = vpack.c.b16 %v3771, %v3763
    %v5396 = vpack.c.b16 %v3772, %v3764
    %v5397 = vpack.c.b16 %v3773, %v3765
    %v5398 = vpack.c.b16 %v3782, %v3774
    %v5399 = vpack.c.b16 %v3783, %v3775
    %v5400 = vpack.c.b16 %v3784, %v3776
    %v5401 = vpack.c.b16 %v3785, %v3777
    %v5402 = vpack.c.b16 %v3786, %v3778
    %v5403 = vpack.c.b16 %v3787, %v3779
    %v5404 = vpack.c.b16 %v3788, %v3780
    %v5405 = vpack.c.b16 %v3789, %v3781
    %v5406 = vpack.c.b16 %v3798, %v3790
    %v5407 = vpack.c.b16 %v3799, %v3791
    %v5408 = vpack.c.b16 %v3800, %v3792
    %v5409 = vpack.c.b16 %v3801, %v3793
    %v5410 = vpack.c.b16 %v3802, %v3794
    %v5411 = vpack.c.b16 %v3803, %v3795
    %v5412 = vpack.c.b16 %v3804, %v3796
    %v5413 = vpack.c.b16 %v3805, %v3797
    %v5414 = vpack.c.b16 %v3814, %v3806
    %v5415 = vpack.c.b16 %v3815, %v3807
    %v5416 = vpack.c.b16 %v3816, %v3808
    %v5417 = vpack.c.b16 %v3817, %v3809
    %v5418 = vpack.c.b16 %v3818, %v3810
    %v5419 = vpack.c.b16 %v3819, %v3811
    %v5420 = vpack.c.b16 %v3820, %v3812
    %v5421 = vpack.c.b16 %v3821, %v3813
    %v5422 = vpack.c.b16 %v3830, %v3822
    %v5423 = vpack.c.b16 %v3831, %v3823
    %v5424 = vpack.c.b16 %v3832, %v3824
    %v5425 = vpack.c.b16 %v3833, %v3825
    %v5426 = vpack.c.b16 %v3834, %v3826
    %v5427 = vpack.c.b16 %v3835, %v3827
    %v5428 = vpack.c.b16 %v3836, %v3828
    %v5429 = vpack.c.b16 %v3837, %v3829
    %v5430 = vpack.c.b16 %v3846, %v3838
    %v5431 = vpack.c.b16 %v3847, %v3839
    %v5432 = vpack.c.b16 %v3848, %v3840
    %v5433 = vpack.c.b16 %v3849, %v3841
    %v5434 = vpack.c.b16 %v3850, %v3842
    %v5435 = vpack.c.b16 %v3851, %v3843
    %v5436 = vpack.c.b16 %v3852, %v3844
    %v5437 = vpack.c.b16 %v3853, %v3845
    %v5438 = vpack.c.b16 %v3862, %v3854
    %v5439 = vpack.c.b16 %v3863, %v3855
    %v5440 = vpack.c.b16 %v3864, %v3856
    %v5441 = vpack.c.b16 %v3865, %v3857
    %v5442 = vpack.c.b16 %v3866, %v3858
    %v5443 = vpack.c.b16 %v3867, %v3859
    %v5444 = vpack.c.b16 %v3868, %v3860
    %v5445 = vpack.c.b16 %v3869, %v3861
    %v5446 = vpack.c.b16 %v3878, %v3870
    %v5447 = vpack.c.b16 %v3879, %v3871
    %v5448 = vpack.c.b16 %v3880, %v3872
    %v5449 = vpack.c.b16 %v3881, %v3873
    %v5450 = vpack.c.b16 %v3882, %v3874
    %v5451 = vpack.c.b16 %v3883, %v3875
    %v5452 = vpack.c.b16 %v3884, %v3876
    %v5453 = vpack.c.b16 %v3885, %v3877
    %v5454 = vpack.c.b16 %v3894, %v3886
    %v5455 = vpack.c.b16 %v3895, %v3887
    %v5456 = vpack.c.b16 %v3896, %v3888
    %v5457 = vpack.c.b16 %v3897, %v3889
    %v5458 = vpack.c.b16 %v3898, %v3890
    %v5459 = vpack.c.b16 %v3899, %v3891
    %v5460 = vpack.c.b16 %v3900, %v3892
    %v5461 = vpack.c.b16 %v3901, %v3893
    %v5462 = vpack.c.b16 %v3910, %v3902
    %v5463 = vpack.c.b16 %v3911, %v3903
    %v5464 = vpack.c.b16 %v3912, %v3904
    %v5465 = vpack.c.b16 %v3913, %v3905
    %v5466 = vpack.c.b16 %v3914, %v3906
    %v5467 = vpack.c.b16 %v3915, %v3907
    %v5468 = vpack.c.b16 %v3916, %v3908
    %v5469 = vpack.c.b16 %v3917, %v3909
    %v5470 = vpack.c.b16 %v3926, %v3918
    %v5471 = vpack.c.b16 %v3927, %v3919
    %v5472 = vpack.c.b16 %v3928, %v3920
    %v5473 = vpack.c.b16 %v3929, %v3921
    %v5474 = vpack.c.b16 %v3930, %v3922
    %v5475 = vpack.c.b16 %v3931, %v3923
    %v5476 = vpack.c.b16 %v3932, %v3924
    %v5477 = vpack.c.b16 %v3933, %v3925
    %v5478 = vpack.c.b16 %v3942, %v3934
    %v5479 = vpack.c.b16 %v3943, %v3935
    %v5480 = vpack.c.b16 %v3944, %v3936
    %v5481 = vpack.c.b16 %v3945, %v3937
    %v5482 = vpack.c.b16 %v3946, %v3938
    %v5483 = vpack.c.b16 %v3947, %v3939
    %v5484 = vpack.c.b16 %v3948, %v3940
    %v5485 = vpack.c.b16 %v3949, %v3941
    %v5486 = vpack.c.b16 %v3958, %v3950
    %v5487 = vpack.c.b16 %v3959, %v3951
    %v5488 = vpack.c.b16 %v3960, %v3952
    %v5489 = vpack.c.b16 %v3961, %v3953
    %v5490 = vpack.c.b16 %v3962, %v3954
    %v5491 = vpack.c.b16 %v3963, %v3955
    %v5492 = vpack.c.b16 %v3964, %v3956
    %v5493 = vpack.c.b16 %v3965, %v3957
    %v5494 = vpack.c.b16 %v3974, %v3966
    %v5495 = vpack.c.b16 %v3975, %v3967
    %v5496 = vpack.c.b16 %v3976, %v3968
    %v5497 = vpack.c.b16 %v3977, %v3969
    %v5498 = vpack.c.b16 %v3978, %v3970
    %v5499 = vpack.c.b16 %v3979, %v3971
    %v5500 = vpack.c.b16 %v3980, %v3972
    %v5501 = vpack.c.b16 %v3981, %v3973
    %v5502 = vpack.c.b16 %v3990, %v3982
    %v5503 = vpack.c.b16 %v3991, %v3983
    %v5504 = vpack.c.b16 %v3992, %v3984
    %v5505 = vpack.c.b16 %v3993, %v3985
    %v5506 = vpack.c.b16 %v3994, %v3986
    %v5507 = vpack.c.b16 %v3995, %v3987
    %v5508 = vpack.c.b16 %v3996, %v3988
    %v5509 = vpack.c.b16 %v3997, %v3989
    %v5510 = vpack.c.b16 %v4006, %v3998
    %v5511 = vpack.c.b16 %v4007, %v3999
    %v5512 = vpack.c.b16 %v4008, %v4000
    %v5513 = vpack.c.b16 %v4009, %v4001
    %v5514 = vpack.c.b16 %v4010, %v4002
    %v5515 = vpack.c.b16 %v4011, %v4003
    %v5516 = vpack.c.b16 %v4012, %v4004
    %v5517 = vpack.c.b16 %v4013, %v4005
    %v5518 = vpack.c.b16 %v4022, %v4014
    %v5519 = vpack.c.b16 %v4023, %v4015
    %v5520 = vpack.c.b16 %v4024, %v4016
    %v5521 = vpack.c.b16 %v4025, %v4017
    %v5522 = vpack.c.b16 %v4026, %v4018
    %v5523 = vpack.c.b16 %v4027, %v4019
    %v5524 = vpack.c.b16 %v4028, %v4020
    %v5525 = vpack.c.b16 %v4029, %v4021
    %v5526 = vpack.c.b16 %v4038, %v4030
    %v5527 = vpack.c.b16 %v4039, %v4031
    %v5528 = vpack.c.b16 %v4040, %v4032
    %v5529 = vpack.c.b16 %v4041, %v4033
    %v5530 = vpack.c.b16 %v4042, %v4034
    %v5531 = vpack.c.b16 %v4043, %v4035
    %v5532 = vpack.c.b16 %v4044, %v4036
    %v5533 = vpack.c.b16 %v4045, %v4037
    %v5534 = vpack.c.b16 %v4054, %v4046
    %v5535 = vpack.c.b16 %v4055, %v4047
    %v5536 = vpack.c.b16 %v4056, %v4048
    %v5537 = vpack.c.b16 %v4057, %v4049
    %v5538 = vpack.c.b16 %v4058, %v4050
    %v5539 = vpack.c.b16 %v4059, %v4051
    %v5540 = vpack.c.b16 %v4060, %v4052
    %v5541 = vpack.c.b16 %v4061, %v4053
    %v5542 = vpack.c.b16 %v4070, %v4062
    %v5543 = vpack.c.b16 %v4071, %v4063
    %v5544 = vpack.c.b16 %v4072, %v4064
    %v5545 = vpack.c.b16 %v4073, %v4065
    %v5546 = vpack.c.b16 %v4074, %v4066
    %v5547 = vpack.c.b16 %v4075, %v4067
    %v5548 = vpack.c.b16 %v4076, %v4068
    %v5549 = vpack.c.b16 %v4077, %v4069
    %v5550 = vpack.c.b16 %v4086, %v4078
    %v5551 = vpack.c.b16 %v4087, %v4079
    %v5552 = vpack.c.b16 %v4088, %v4080
    %v5553 = vpack.c.b16 %v4089, %v4081
    %v5554 = vpack.c.b16 %v4090, %v4082
    %v5555 = vpack.c.b16 %v4091, %v4083
    %v5556 = vpack.c.b16 %v4092, %v4084
    %v5557 = vpack.c.b16 %v4093, %v4085
    %v5558 = vpack.c.b16 %v4102, %v4094
    %v5559 = vpack.c.b16 %v4103, %v4095
    %v5560 = vpack.c.b16 %v4104, %v4096
    %v5561 = vpack.c.b16 %v4105, %v4097
    %v5562 = vpack.c.b16 %v4106, %v4098
    %v5563 = vpack.c.b16 %v4107, %v4099
    %v5564 = vpack.c.b16 %v4108, %v4100
    %v5565 = vpack.c.b16 %v4109, %v4101
    %v5566 = vpack.c.b16 %v4118, %v4110
    %v5567 = vpack.c.b16 %v4119, %v4111
    %v5568 = vpack.c.b16 %v4120, %v4112
    %v5569 = vpack.c.b16 %v4121, %v4113
    %v5570 = vpack.c.b16 %v4122, %v4114
    %v5571 = vpack.c.b16 %v4123, %v4115
    %v5572 = vpack.c.b16 %v4124, %v4116
    %v5573 = vpack.c.b16 %v4125, %v4117
    %v5574 = vpack.c.b16 %v4134, %v4126
    %v5575 = vpack.c.b16 %v4135, %v4127
    %v5576 = vpack.c.b16 %v4136, %v4128
    %v5577 = vpack.c.b16 %v4137, %v4129
    %v5578 = vpack.c.b16 %v4138, %v4130
    %v5579 = vpack.c.b16 %v4139, %v4131
    %v5580 = vpack.c.b16 %v4140, %v4132
    %v5581 = vpack.c.b16 %v4141, %v4133
    %v5582 = vpack.c.b16 %v4150, %v4142
    %v5583 = vpack.c.b16 %v4151, %v4143
    %v5584 = vpack.c.b16 %v4152, %v4144
    %v5585 = vpack.c.b16 %v4153, %v4145
    %v5586 = vpack.c.b16 %v4154, %v4146
    %v5587 = vpack.c.b16 %v4155, %v4147
    %v5588 = vpack.c.b16 %v4156, %v4148
    %v5589 = vpack.c.b16 %v4157, %v4149
    %v5590 = vpack.c.b16 %v4166, %v4158
    %v5591 = vpack.c.b16 %v4167, %v4159
    %v5592 = vpack.c.b16 %v4168, %v4160
    %v5593 = vpack.c.b16 %v4169, %v4161
    %v5594 = vpack.c.b16 %v4170, %v4162
    %v5595 = vpack.c.b16 %v4171, %v4163
    %v5596 = vpack.c.b16 %v4172, %v4164
    %v5597 = vpack.c.b16 %v4173, %v4165
    %v5598 = vpack.c.b16 %v4182, %v4174
    %v5599 = vpack.c.b16 %v4183, %v4175
    %v5600 = vpack.c.b16 %v4184, %v4176
    %v5601 = vpack.c.b16 %v4185, %v4177
    %v5602 = vpack.c.b16 %v4186, %v4178
    %v5603 = vpack.c.b16 %v4187, %v4179
    %v5604 = vpack.c.b16 %v4188, %v4180
    %v5605 = vpack.c.b16 %v4189, %v4181
    %v5606 = vpack.c.b16 %v4198, %v4190
    %v5607 = vpack.c.b16 %v4199, %v4191
    %v5608 = vpack.c.b16 %v4200, %v4192
    %v5609 = vpack.c.b16 %v4201, %v4193
    %v5610 = vpack.c.b16 %v4202, %v4194
    %v5611 = vpack.c.b16 %v4203, %v4195
    %v5612 = vpack.c.b16 %v4204, %v4196
    %v5613 = vpack.c.b16 %v4205, %v4197
    %v5614 = vpack.c.b16 %v4214, %v4206
    %v5615 = vpack.c.b16 %v4215, %v4207
    %v5616 = vpack.c.b16 %v4216, %v4208
    %v5617 = vpack.c.b16 %v4217, %v4209
    %v5618 = vpack.c.b16 %v4218, %v4210
    %v5619 = vpack.c.b16 %v4219, %v4211
    %v5620 = vpack.c.b16 %v4220, %v4212
    %v5621 = vpack.c.b16 %v4221, %v4213
    %v5622 = vpack.c.b16 %v4230, %v4222
    %v5623 = vpack.c.b16 %v4231, %v4223
    %v5624 = vpack.c.b16 %v4232, %v4224
    %v5625 = vpack.c.b16 %v4233, %v4225
    %v5626 = vpack.c.b16 %v4234, %v4226
    %v5627 = vpack.c.b16 %v4235, %v4227
    %v5628 = vpack.c.b16 %v4236, %v4228
    %v5629 = vpack.c.b16 %v4237, %v4229
    %v5630 = vpack.c.b16 %v4246, %v4238
    %v5631 = vpack.c.b16 %v4247, %v4239
    %v5632 = vpack.c.b16 %v4248, %v4240
    %v5633 = vpack.c.b16 %v4249, %v4241
    %v5634 = vpack.c.b16 %v4250, %v4242
    %v5635 = vpack.c.b16 %v4251, %v4243
    %v5636 = vpack.c.b16 %v4252, %v4244
    %v5637 = vpack.c.b16 %v4253, %v4245
    %v5638 = vpack.c.b16 %v4262, %v4254
    %v5639 = vpack.c.b16 %v4263, %v4255
    %v5640 = vpack.c.b16 %v4264, %v4256
    %v5641 = vpack.c.b16 %v4265, %v4257
    %v5642 = vpack.c.b16 %v4266, %v4258
    %v5643 = vpack.c.b16 %v4267, %v4259
    %v5644 = vpack.c.b16 %v4268, %v4260
    %v5645 = vpack.c.b16 %v4269, %v4261
    %v5646 = vpack.c.b16 %v4278, %v4270
    %v5647 = vpack.c.b16 %v4279, %v4271
    %v5648 = vpack.c.b16 %v4280, %v4272
    %v5649 = vpack.c.b16 %v4281, %v4273
    %v5650 = vpack.c.b16 %v4282, %v4274
    %v5651 = vpack.c.b16 %v4283, %v4275
    %v5652 = vpack.c.b16 %v4284, %v4276
    %v5653 = vpack.c.b16 %v4285, %v4277
    %v5654 = vpack.c.b16 %v4294, %v4286
    %v5655 = vpack.c.b16 %v4295, %v4287
    %v5656 = vpack.c.b16 %v4296, %v4288
    %v5657 = vpack.c.b16 %v4297, %v4289
    %v5658 = vpack.c.b16 %v4298, %v4290
    %v5659 = vpack.c.b16 %v4299, %v4291
    %v5660 = vpack.c.b16 %v4300, %v4292
    %v5661 = vpack.c.b16 %v4301, %v4293
    %v5662 = vpack.c.b16 %v4310, %v4302
    %v5663 = vpack.c.b16 %v4311, %v4303
    %v5664 = vpack.c.b16 %v4312, %v4304
    %v5665 = vpack.c.b16 %v4313, %v4305
    %v5666 = vpack.c.b16 %v4314, %v4306
    %v5667 = vpack.c.b16 %v4315, %v4307
    %v5668 = vpack.c.b16 %v4316, %v4308
    %v5669 = vpack.c.b16 %v4317, %v4309
    %v5670 = vpack.c.b16 %v4326, %v4318
    %v5671 = vpack.c.b16 %v4327, %v4319
    %v5672 = vpack.c.b16 %v4328, %v4320
    %v5673 = vpack.c.b16 %v4329, %v4321
    %v5674 = vpack.c.b16 %v4330, %v4322
    %v5675 = vpack.c.b16 %v4331, %v4323
    %v5676 = vpack.c.b16 %v4332, %v4324
    %v5677 = vpack.c.b16 %v4333, %v4325
    %v5678 = vpack.c.b16 %v4342, %v4334
    %v5679 = vpack.c.b16 %v4343, %v4335
    %v5680 = vpack.c.b16 %v4344, %v4336
    %v5681 = vpack.c.b16 %v4345, %v4337
    %v5682 = vpack.c.b16 %v4346, %v4338
    %v5683 = vpack.c.b16 %v4347, %v4339
    %v5684 = vpack.c.b16 %v4348, %v4340
    %v5685 = vpack.c.b16 %v4349, %v4341
    %v5686 = vpack.c.b16 %v4358, %v4350
    %v5687 = vpack.c.b16 %v4359, %v4351
    %v5688 = vpack.c.b16 %v4360, %v4352
    %v5689 = vpack.c.b16 %v4361, %v4353
    %v5690 = vpack.c.b16 %v4362, %v4354
    %v5691 = vpack.c.b16 %v4363, %v4355
    %v5692 = vpack.c.b16 %v4364, %v4356
    %v5693 = vpack.c.b16 %v4365, %v4357
    %v5694 = vpack.c.b16 %v4374, %v4366
    %v5695 = vpack.c.b16 %v4375, %v4367
    %v5696 = vpack.c.b16 %v4376, %v4368
    %v5697 = vpack.c.b16 %v4377, %v4369
    %v5698 = vpack.c.b16 %v4378, %v4370
    %v5699 = vpack.c.b16 %v4379, %v4371
    %v5700 = vpack.c.b16 %v4380, %v4372
    %v5701 = vpack.c.b16 %v4381, %v4373
    %v5702 = vpack.c.b16 %v4390, %v4382
    %v5703 = vpack.c.b16 %v4391, %v4383
    %v5704 = vpack.c.b16 %v4392, %v4384
    %v5705 = vpack.c.b16 %v4393, %v4385
    %v5706 = vpack.c.b16 %v4394, %v4386
    %v5707 = vpack.c.b16 %v4395, %v4387
    %v5708 = vpack.c.b16 %v4396, %v4388
    %v5709 = vpack.c.b16 %v4397, %v4389
    %v5710 = vpack.c.b16 %v4406, %v4398
    %v5711 = vpack.c.b16 %v4407, %v4399
    %v5712 = vpack.c.b16 %v4408, %v4400
    %v5713 = vpack.c.b16 %v4409, %v4401
    %v5714 = vpack.c.b16 %v4410, %v4402
    %v5715 = vpack.c.b16 %v4411, %v4403
    %v5716 = vpack.c.b16 %v4412, %v4404
    %v5717 = vpack.c.b16 %v4413, %v4405
    %v5718 = vpack.c.b16 %v4422, %v4414
    %v5719 = vpack.c.b16 %v4423, %v4415
    %v5720 = vpack.c.b16 %v4424, %v4416
    %v5721 = vpack.c.b16 %v4425, %v4417
    %v5722 = vpack.c.b16 %v4426, %v4418
    %v5723 = vpack.c.b16 %v4427, %v4419
    %v5724 = vpack.c.b16 %v4428, %v4420
    %v5725 = vpack.c.b16 %v4429, %v4421
    %v5726 = vpack.c.b16 %v4438, %v4430
    %v5727 = vpack.c.b16 %v4439, %v4431
    %v5728 = vpack.c.b16 %v4440, %v4432
    %v5729 = vpack.c.b16 %v4441, %v4433
    %v5730 = vpack.c.b16 %v4442, %v4434
    %v5731 = vpack.c.b16 %v4443, %v4435
    %v5732 = vpack.c.b16 %v4444, %v4436
    %v5733 = vpack.c.b16 %v4445, %v4437
    %v5734 = vpack.c.b16 %v4454, %v4446
    %v5735 = vpack.c.b16 %v4455, %v4447
    %v5736 = vpack.c.b16 %v4456, %v4448
    %v5737 = vpack.c.b16 %v4457, %v4449
    %v5738 = vpack.c.b16 %v4458, %v4450
    %v5739 = vpack.c.b16 %v4459, %v4451
    %v5740 = vpack.c.b16 %v4460, %v4452
    %v5741 = vpack.c.b16 %v4461, %v4453
    %v5742 = vpack.c.b16 %v4470, %v4462
    %v5743 = vpack.c.b16 %v4471, %v4463
    %v5744 = vpack.c.b16 %v4472, %v4464
    %v5745 = vpack.c.b16 %v4473, %v4465
    %v5746 = vpack.c.b16 %v4474, %v4466
    %v5747 = vpack.c.b16 %v4475, %v4467
    %v5748 = vpack.c.b16 %v4476, %v4468
    %v5749 = vpack.c.b16 %v4477, %v4469
    %v5750 = vpack.c.b16 %v4486, %v4478
    %v5751 = vpack.c.b16 %v4487, %v4479
    %v5752 = vpack.c.b16 %v4488, %v4480
    %v5753 = vpack.c.b16 %v4489, %v4481
    %v5754 = vpack.c.b16 %v4490, %v4482
    %v5755 = vpack.c.b16 %v4491, %v4483
    %v5756 = vpack.c.b16 %v4492, %v4484
    %v5757 = vpack.c.b16 %v4493, %v4485
    %v5758 = vpack.c.b16 %v4502, %v4494
    %v5759 = vpack.c.b16 %v4503, %v4495
    %v5760 = vpack.c.b16 %v4504, %v4496
    %v5761 = vpack.c.b16 %v4505, %v4497
    %v5762 = vpack.c.b16 %v4506, %v4498
    %v5763 = vpack.c.b16 %v4507, %v4499
    %v5764 = vpack.c.b16 %v4508, %v4500
    %v5765 = vpack.c.b16 %v4509, %v4501
    %v5766 = vpack.c.b16 %v4518, %v4510
    %v5767 = vpack.c.b16 %v4519, %v4511
    %v5768 = vpack.c.b16 %v4520, %v4512
    %v5769 = vpack.c.b16 %v4521, %v4513
    %v5770 = vpack.c.b16 %v4522, %v4514
    %v5771 = vpack.c.b16 %v4523, %v4515
    %v5772 = vpack.c.b16 %v4524, %v4516
    %v5773 = vpack.c.b16 %v4525, %v4517
    %v5774 = vpack.c.b16 %v4534, %v4526
    %v5775 = vpack.c.b16 %v4535, %v4527
    %v5776 = vpack.c.b16 %v4536, %v4528
    %v5777 = vpack.c.b16 %v4537, %v4529
    %v5778 = vpack.c.b16 %v4538, %v4530
    %v5779 = vpack.c.b16 %v4539, %v4531
    %v5780 = vpack.c.b16 %v4540, %v4532
    %v5781 = vpack.c.b16 %v4541, %v4533
    %v5782 = vpack.c.b16 %v4550, %v4542
    %v5783 = vpack.c.b16 %v4551, %v4543
    %v5784 = vpack.c.b16 %v4552, %v4544
    %v5785 = vpack.c.b16 %v4553, %v4545
    %v5786 = vpack.c.b16 %v4554, %v4546
    %v5787 = vpack.c.b16 %v4555, %v4547
    %v5788 = vpack.c.b16 %v4556, %v4548
    %v5789 = vpack.c.b16 %v4557, %v4549
    %v5790 = vpack.c.b16 %v4566, %v4558
    %v5791 = vpack.c.b16 %v4567, %v4559
    %v5792 = vpack.c.b16 %v4568, %v4560
    %v5793 = vpack.c.b16 %v4569, %v4561
    %v5794 = vpack.c.b16 %v4570, %v4562
    %v5795 = vpack.c.b16 %v4571, %v4563
    %v5796 = vpack.c.b16 %v4572, %v4564
    %v5797 = vpack.c.b16 %v4573, %v4565
    %v5798 = vpack.c.b16 %v4582, %v4574
    %v5799 = vpack.c.b16 %v4583, %v4575
    %v5800 = vpack.c.b16 %v4584, %v4576
    %v5801 = vpack.c.b16 %v4585, %v4577
    %v5802 = vpack.c.b16 %v4586, %v4578
    %v5803 = vpack.c.b16 %v4587, %v4579
    %v5804 = vpack.c.b16 %v4588, %v4580
    %v5805 = vpack.c.b16 %v4589, %v4581
    %v5806 = vpack.c.b16 %v4598, %v4590
    %v5807 = vpack.c.b16 %v4599, %v4591
    %v5808 = vpack.c.b16 %v4600, %v4592
    %v5809 = vpack.c.b16 %v4601, %v4593
    %v5810 = vpack.c.b16 %v4602, %v4594
    %v5811 = vpack.c.b16 %v4603, %v4595
    %v5812 = vpack.c.b16 %v4604, %v4596
    %v5813 = vpack.c.b16 %v4605, %v4597
    %v5814 = vpack.c.b16 %v4614, %v4606
    %v5815 = vpack.c.b16 %v4615, %v4607
    %v5816 = vpack.c.b16 %v4616, %v4608
    %v5817 = vpack.c.b16 %v4617, %v4609
    %v5818 = vpack.c.b16 %v4618, %v4610
    %v5819 = vpack.c.b16 %v4619, %v4611
    %v5820 = vpack.c.b16 %v4620, %v4612
    %v5821 = vpack.c.b16 %v4621, %v4613
    %v5822 = vpack.c.b16 %v4630, %v4622
    %v5823 = vpack.c.b16 %v4631, %v4623
    %v5824 = vpack.c.b16 %v4632, %v4624
    %v5825 = vpack.c.b16 %v4633, %v4625
    %v5826 = vpack.c.b16 %v4634, %v4626
    %v5827 = vpack.c.b16 %v4635, %v4627
    %v5828 = vpack.c.b16 %v4636, %v4628
    %v5829 = vpack.c.b16 %v4637, %v4629
    %v5830 = vpack.c.b16 %v4646, %v4638
    %v5831 = vpack.c.b16 %v4647, %v4639
    %v5832 = vpack.c.b16 %v4648, %v4640
    %v5833 = vpack.c.b16 %v4649, %v4641
    %v5834 = vpack.c.b16 %v4650, %v4642
    %v5835 = vpack.c.b16 %v4651, %v4643
    %v5836 = vpack.c.b16 %v4652, %v4644
    %v5837 = vpack.c.b16 %v4653, %v4645
    %v5838 = vpack.c.b16 %v4662, %v4654
    %v5839 = vpack.c.b16 %v4663, %v4655
    %v5840 = vpack.c.b16 %v4664, %v4656
    %v5841 = vpack.c.b16 %v4665, %v4657
    %v5842 = vpack.c.b16 %v4666, %v4658
    %v5843 = vpack.c.b16 %v4667, %v4659
    %v5844 = vpack.c.b16 %v4668, %v4660
    %v5845 = vpack.c.b16 %v4669, %v4661
    %v5846 = vpack.c.b16 %v4678, %v4670
    %v5847 = vpack.c.b16 %v4679, %v4671
    %v5848 = vpack.c.b16 %v4680, %v4672
    %v5849 = vpack.c.b16 %v4681, %v4673
    %v5850 = vpack.c.b16 %v4682, %v4674
    %v5851 = vpack.c.b16 %v4683, %v4675
    %v5852 = vpack.c.b16 %v4684, %v4676
    %v5853 = vpack.c.b16 %v4685, %v4677
    %v5854 = vpack.c.b16 %v4694, %v4686
    %v5855 = vpack.c.b16 %v4695, %v4687
    %v5856 = vpack.c.b16 %v4696, %v4688
    %v5857 = vpack.c.b16 %v4697, %v4689
    %v5858 = vpack.c.b16 %v4698, %v4690
    %v5859 = vpack.c.b16 %v4699, %v4691
    %v5860 = vpack.c.b16 %v4700, %v4692
    %v5861 = vpack.c.b16 %v4701, %v4693
    %v5862 = vpack.c.b16 %v4710, %v4702
    %v5863 = vpack.c.b16 %v4711, %v4703
    %v5864 = vpack.c.b16 %v4712, %v4704
    %v5865 = vpack.c.b16 %v4713, %v4705
    %v5866 = vpack.c.b16 %v4714, %v4706
    %v5867 = vpack.c.b16 %v4715, %v4707
    %v5868 = vpack.c.b16 %v4716, %v4708
    %v5869 = vpack.c.b16 %v4717, %v4709
    %7022 = vmatpush.bf16.msra.mxu0 %v4774
    %7023 = vmatpush.bf16.msra.mxu0 %v4766
    %7024 = vmatpush.bf16.msra.mxu0 %v4758
    %7025 = vmatpush.bf16.msra.mxu0 %v4750
    %7026 = vmatpush.bf16.msra.mxu0 %v4742
    %7027 = vmatpush.bf16.msra.mxu0 %v4734
    %7028 = vmatpush.bf16.msra.mxu0 %v4726
    %7029 = vmatpush.bf16.msra.mxu0 %v4718
    %7030 = vmatmul.bf16.gmra.mxu0 %v74
    %v7031 = vpop.f32.mrf.mxu0
    %v7032 = vadd.f32 %v1246, %v7031
    %v7033 = vpop.f32.mrf.mxu0
    %7034 = vdwg.mxu0
    %7035 = vmatpush.bf16.msra.mxu0 %v4838
    %7036 = vmatpush.bf16.msra.mxu0 %v4830
    %7037 = vmatpush.bf16.msra.mxu0 %v4822
    %7038 = vmatpush.bf16.msra.mxu0 %v4814
    %7039 = vmatpush.bf16.msra.mxu0 %v4806
    %7040 = vmatpush.bf16.msra.mxu0 %v4798
    %7041 = vmatpush.bf16.msra.mxu0 %v4790
    %7042 = vmatpush.bf16.msra.mxu0 %v4782
    %7043 = vmatmul.bf16.gmra.mxu0 %v75
    %v7044 = vpop.f32.mrf.mxu0
    %v7045 = vadd.f32 %v7032, %v7044
    %v7046 = vpop.f32.mrf.mxu0
    %7047 = vdwg.mxu0
    %7048 = vmatpush.bf16.msra.mxu0 %v4902
    %7049 = vmatpush.bf16.msra.mxu0 %v4894
    %7050 = vmatpush.bf16.msra.mxu0 %v4886
    %7051 = vmatpush.bf16.msra.mxu0 %v4878
    %7052 = vmatpush.bf16.msra.mxu0 %v4870
    %7053 = vmatpush.bf16.msra.mxu0 %v4862
    %7054 = vmatpush.bf16.msra.mxu0 %v4854
    %7055 = vmatpush.bf16.msra.mxu0 %v4846
    %7056 = vmatmul.bf16.gmra.mxu0 %v76
    %v7057 = vpop.f32.mrf.mxu0
    %v7058 = vadd.f32 %v7045, %v7057
    %v7059 = vpop.f32.mrf.mxu0
    %7060 = vdwg.mxu0
    %7061 = vmatpush.bf16.msra.mxu0 %v4966
    %7062 = vmatpush.bf16.msra.mxu0 %v4958
    %7063 = vmatpush.bf16.msra.mxu0 %v4950
    %7064 = vmatpush.bf16.msra.mxu0 %v4942
    %7065 = vmatpush.bf16.msra.mxu0 %v4934
    %7066 = vmatpush.bf16.msra.mxu0 %v4926
    %7067 = vmatpush.bf16.msra.mxu0 %v4918
    %7068 = vmatpush.bf16.msra.mxu0 %v4910
    %7069 = vmatmul.bf16.gmra.mxu0 %v77
    %v7070 = vpop.f32.mrf.mxu0
    %v7071 = vadd.f32 %v7058, %v7070
    %v7072 = vpop.f32.mrf.mxu0
    %7073 = vdwg.mxu0
    %7074 = vmatpush.bf16.msra.mxu0 %v5030
    %7075 = vmatpush.bf16.msra.mxu0 %v5022
    %7076 = vmatpush.bf16.msra.mxu0 %v5014
    %7077 = vmatpush.bf16.msra.mxu0 %v5006
    %7078 = vmatpush.bf16.msra.mxu0 %v4998
    %7079 = vmatpush.bf16.msra.mxu0 %v4990
    %7080 = vmatpush.bf16.msra.mxu0 %v4982
    %7081 = vmatpush.bf16.msra.mxu0 %v4974
    %7082 = vmatmul.bf16.gmra.mxu0 %v78
    %v7083 = vpop.f32.mrf.mxu0
    %v7084 = vadd.f32 %v7071, %v7083
    %v7085 = vpop.f32.mrf.mxu0
    %7086 = vdwg.mxu0
    %7087 = vmatpush.bf16.msra.mxu0 %v5094
    %7088 = vmatpush.bf16.msra.mxu0 %v5086
    %7089 = vmatpush.bf16.msra.mxu0 %v5078
    %7090 = vmatpush.bf16.msra.mxu0 %v5070
    %7091 = vmatpush.bf16.msra.mxu0 %v5062
    %7092 = vmatpush.bf16.msra.mxu0 %v5054
    %7093 = vmatpush.bf16.msra.mxu0 %v5046
    %7094 = vmatpush.bf16.msra.mxu0 %v5038
    %7095 = vmatmul.bf16.gmra.mxu0 %v79
    %v7096 = vpop.f32.mrf.mxu0
    %v7097 = vadd.f32 %v7084, %v7096
    %v7098 = vpop.f32.mrf.mxu0
    %7099 = vdwg.mxu0
    %7100 = vmatpush.bf16.msra.mxu0 %v5158
    %7101 = vmatpush.bf16.msra.mxu0 %v5150
    %7102 = vmatpush.bf16.msra.mxu0 %v5142
    %7103 = vmatpush.bf16.msra.mxu0 %v5134
    %7104 = vmatpush.bf16.msra.mxu0 %v5126
    %7105 = vmatpush.bf16.msra.mxu0 %v5118
    %7106 = vmatpush.bf16.msra.mxu0 %v5110
    %7107 = vmatpush.bf16.msra.mxu0 %v5102
    %7108 = vmatmul.bf16.gmra.mxu0 %v80
    %v7109 = vpop.f32.mrf.mxu0
    %v7110 = vadd.f32 %v7097, %v7109
    %v7111 = vpop.f32.mrf.mxu0
    %7112 = vdwg.mxu0
    %7113 = vmatpush.bf16.msra.mxu0 %v5222
    %7114 = vmatpush.bf16.msra.mxu0 %v5214
    %7115 = vmatpush.bf16.msra.mxu0 %v5206
    %7116 = vmatpush.bf16.msra.mxu0 %v5198
    %7117 = vmatpush.bf16.msra.mxu0 %v5190
    %7118 = vmatpush.bf16.msra.mxu0 %v5182
    %7119 = vmatpush.bf16.msra.mxu0 %v5174
    %7120 = vmatpush.bf16.msra.mxu0 %v5166
    %7121 = vmatmul.bf16.gmra.mxu0 %v81
    %v7122 = vpop.f32.mrf.mxu0
    %v7123 = vadd.f32 %v7110, %v7122
    %v7124 = vpop.f32.mrf.mxu0
    %7125 = vdwg.mxu0
    %7126 = vmatpush.bf16.msra.mxu0 %v5286
    %7127 = vmatpush.bf16.msra.mxu0 %v5278
    %7128 = vmatpush.bf16.msra.mxu0 %v5270
    %7129 = vmatpush.bf16.msra.mxu0 %v5262
    %7130 = vmatpush.bf16.msra.mxu0 %v5254
    %7131 = vmatpush.bf16.msra.mxu0 %v5246
    %7132 = vmatpush.bf16.msra.mxu0 %v5238
    %7133 = vmatpush.bf16.msra.mxu0 %v5230
    %7134 = vmatmul.bf16.gmra.mxu0 %v82
    %v7135 = vpop.f32.mrf.mxu0
    %v7136 = vadd.f32 %v7123, %v7135
    %v7137 = vpop.f32.mrf.mxu0
    %7138 = vdwg.mxu0
    %7139 = vmatpush.bf16.msra.mxu0 %v5350
    %7140 = vmatpush.bf16.msra.mxu0 %v5342
    %7141 = vmatpush.bf16.msra.mxu0 %v5334
    %7142 = vmatpush.bf16.msra.mxu0 %v5326
    %7143 = vmatpush.bf16.msra.mxu0 %v5318
    %7144 = vmatpush.bf16.msra.mxu0 %v5310
    %7145 = vmatpush.bf16.msra.mxu0 %v5302
    %7146 = vmatpush.bf16.msra.mxu0 %v5294
    %7147 = vmatmul.bf16.gmra.mxu0 %v83
    %v7148 = vpop.f32.mrf.mxu0
    %v7149 = vadd.f32 %v7136, %v7148
    %v7150 = vpop.f32.mrf.mxu0
    %7151 = vdwg.mxu0
    %7152 = vmatpush.bf16.msra.mxu0 %v5414
    %7153 = vmatpush.bf16.msra.mxu0 %v5406
    %7154 = vmatpush.bf16.msra.mxu0 %v5398
    %7155 = vmatpush.bf16.msra.mxu0 %v5390
    %7156 = vmatpush.bf16.msra.mxu0 %v5382
    %7157 = vmatpush.bf16.msra.mxu0 %v5374
    %7158 = vmatpush.bf16.msra.mxu0 %v5366
    %7159 = vmatpush.bf16.msra.mxu0 %v5358
    %7160 = vmatmul.bf16.gmra.mxu0 %v84
    %v7161 = vpop.f32.mrf.mxu0
    %v7162 = vadd.f32 %v7149, %v7161
    %v7163 = vpop.f32.mrf.mxu0
    %7164 = vdwg.mxu0
    %7165 = vmatpush.bf16.msra.mxu0 %v5478
    %7166 = vmatpush.bf16.msra.mxu0 %v5470
    %7167 = vmatpush.bf16.msra.mxu0 %v5462
    %7168 = vmatpush.bf16.msra.mxu0 %v5454
    %7169 = vmatpush.bf16.msra.mxu0 %v5446
    %7170 = vmatpush.bf16.msra.mxu0 %v5438
    %7171 = vmatpush.bf16.msra.mxu0 %v5430
    %7172 = vmatpush.bf16.msra.mxu0 %v5422
    %7173 = vmatmul.bf16.gmra.mxu0 %v85
    %v7174 = vpop.f32.mrf.mxu0
    %v7175 = vadd.f32 %v7162, %v7174
    %v7176 = vpop.f32.mrf.mxu0
    %7177 = vdwg.mxu0
    %7178 = vmatpush.bf16.msra.mxu0 %v5542
    %7179 = vmatpush.bf16.msra.mxu0 %v5534
    %7180 = vmatpush.bf16.msra.mxu0 %v5526
    %7181 = vmatpush.bf16.msra.mxu0 %v5518
    %7182 = vmatpush.bf16.msra.mxu0 %v5510
    %7183 = vmatpush.bf16.msra.mxu0 %v5502
    %7184 = vmatpush.bf16.msra.mxu0 %v5494
    %7185 = vmatpush.bf16.msra.mxu0 %v5486
    %7186 = vmatmul.bf16.gmra.mxu0 %v86
    %v7187 = vpop.f32.mrf.mxu0
    %v7188 = vadd.f32 %v7175, %v7187
    %v7189 = vpop.f32.mrf.mxu0
    %7190 = vdwg.mxu0
    %7191 = vmatpush.bf16.msra.mxu0 %v5606
    %7192 = vmatpush.bf16.msra.mxu0 %v5598
    %7193 = vmatpush.bf16.msra.mxu0 %v5590
    %7194 = vmatpush.bf16.msra.mxu0 %v5582
    %7195 = vmatpush.bf16.msra.mxu0 %v5574
    %7196 = vmatpush.bf16.msra.mxu0 %v5566
    %7197 = vmatpush.bf16.msra.mxu0 %v5558
    %7198 = vmatpush.bf16.msra.mxu0 %v5550
    %7199 = vmatmul.bf16.gmra.mxu0 %v87
    %v7200 = vpop.f32.mrf.mxu0
    %v7201 = vadd.f32 %v7188, %v7200
    %v7202 = vpop.f32.mrf.mxu0
    %7203 = vdwg.mxu0
    %7204 = vmatpush.bf16.msra.mxu0 %v5670
    %7205 = vmatpush.bf16.msra.mxu0 %v5662
    %7206 = vmatpush.bf16.msra.mxu0 %v5654
    %7207 = vmatpush.bf16.msra.mxu0 %v5646
    %7208 = vmatpush.bf16.msra.mxu0 %v5638
    %7209 = vmatpush.bf16.msra.mxu0 %v5630
    %7210 = vmatpush.bf16.msra.mxu0 %v5622
    %7211 = vmatpush.bf16.msra.mxu0 %v5614
    %7212 = vmatmul.bf16.gmra.mxu0 %v88
    %v7213 = vpop.f32.mrf.mxu0
    %v7214 = vadd.f32 %v7201, %v7213
    %v7215 = vpop.f32.mrf.mxu0
    %7216 = vdwg.mxu0
    %7217 = vmatpush.bf16.msra.mxu0 %v5734
    %7218 = vmatpush.bf16.msra.mxu0 %v5726
    %7219 = vmatpush.bf16.msra.mxu0 %v5718
    %7220 = vmatpush.bf16.msra.mxu0 %v5710
    %7221 = vmatpush.bf16.msra.mxu0 %v5702
    %7222 = vmatpush.bf16.msra.mxu0 %v5694
    %7223 = vmatpush.bf16.msra.mxu0 %v5686
    %7224 = vmatpush.bf16.msra.mxu0 %v5678
    %7225 = vmatmul.bf16.gmra.mxu0 %v89
    %v7226 = vpop.f32.mrf.mxu0
    %v7227 = vadd.f32 %v7214, %v7226
    %v7228 = vpop.f32.mrf.mxu0
    %7229 = vdwg.mxu0
    %7230 = vmatpush.bf16.msra.mxu0 %v5798
    %7231 = vmatpush.bf16.msra.mxu0 %v5790
    %7232 = vmatpush.bf16.msra.mxu0 %v5782
    %7233 = vmatpush.bf16.msra.mxu0 %v5774
    %7234 = vmatpush.bf16.msra.mxu0 %v5766
    %7235 = vmatpush.bf16.msra.mxu0 %v5758
    %7236 = vmatpush.bf16.msra.mxu0 %v5750
    %7237 = vmatpush.bf16.msra.mxu0 %v5742
    %7238 = vmatmul.bf16.gmra.mxu0 %v90
    %v7239 = vpop.f32.mrf.mxu0
    %v7240 = vadd.f32 %v7227, %v7239
    %v7241 = vpop.f32.mrf.mxu0
    %7242 = vdwg.mxu0
    %7243 = vmatpush.bf16.msra.mxu0 %v5862
    %7244 = vmatpush.bf16.msra.mxu0 %v5854
    %7245 = vmatpush.bf16.msra.mxu0 %v5846
    %7246 = vmatpush.bf16.msra.mxu0 %v5838
    %7247 = vmatpush.bf16.msra.mxu0 %v5830
    %7248 = vmatpush.bf16.msra.mxu0 %v5822
    %7249 = vmatpush.bf16.msra.mxu0 %v5814
    %7250 = vmatpush.bf16.msra.mxu0 %v5806
    %7251 = vmatmul.bf16.gmra.mxu0 %v91
    %v7252 = vpop.f32.mrf.mxu0
    %v7253 = vadd.f32 %v7240, %v7252
    %v7254 = vpop.f32.mrf.mxu0
    %7255 = vdwg.mxu0
    %7256 = vmatpush.bf16.msra.mxu0 %v4775
    %7257 = vmatpush.bf16.msra.mxu0 %v4767
    %7258 = vmatpush.bf16.msra.mxu0 %v4759
    %7259 = vmatpush.bf16.msra.mxu0 %v4751
    %7260 = vmatpush.bf16.msra.mxu0 %v4743
    %7261 = vmatpush.bf16.msra.mxu0 %v4735
    %7262 = vmatpush.bf16.msra.mxu0 %v4727
    %7263 = vmatpush.bf16.msra.mxu0 %v4719
    %7264 = vmatmul.bf16.gmra.mxu0 %v74
    %v7265 = vpop.f32.mrf.mxu0
    %v7266 = vadd.f32 %v1247, %v7265
    %v7267 = vpop.f32.mrf.mxu0
    %7268 = vdwg.mxu0
    %7269 = vmatpush.bf16.msra.mxu0 %v4839
    %7270 = vmatpush.bf16.msra.mxu0 %v4831
    %7271 = vmatpush.bf16.msra.mxu0 %v4823
    %7272 = vmatpush.bf16.msra.mxu0 %v4815
    %7273 = vmatpush.bf16.msra.mxu0 %v4807
    %7274 = vmatpush.bf16.msra.mxu0 %v4799
    %7275 = vmatpush.bf16.msra.mxu0 %v4791
    %7276 = vmatpush.bf16.msra.mxu0 %v4783
    %7277 = vmatmul.bf16.gmra.mxu0 %v75
    %v7278 = vpop.f32.mrf.mxu0
    %v7279 = vadd.f32 %v7266, %v7278
    %v7280 = vpop.f32.mrf.mxu0
    %7281 = vdwg.mxu0
    %7282 = vmatpush.bf16.msra.mxu0 %v4903
    %7283 = vmatpush.bf16.msra.mxu0 %v4895
    %7284 = vmatpush.bf16.msra.mxu0 %v4887
    %7285 = vmatpush.bf16.msra.mxu0 %v4879
    %7286 = vmatpush.bf16.msra.mxu0 %v4871
    %7287 = vmatpush.bf16.msra.mxu0 %v4863
    %7288 = vmatpush.bf16.msra.mxu0 %v4855
    %7289 = vmatpush.bf16.msra.mxu0 %v4847
    %7290 = vmatmul.bf16.gmra.mxu0 %v76
    %v7291 = vpop.f32.mrf.mxu0
    %v7292 = vadd.f32 %v7279, %v7291
    %v7293 = vpop.f32.mrf.mxu0
    %7294 = vdwg.mxu0
    %7295 = vmatpush.bf16.msra.mxu0 %v4967
    %7296 = vmatpush.bf16.msra.mxu0 %v4959
    %7297 = vmatpush.bf16.msra.mxu0 %v4951
    %7298 = vmatpush.bf16.msra.mxu0 %v4943
    %7299 = vmatpush.bf16.msra.mxu0 %v4935
    %7300 = vmatpush.bf16.msra.mxu0 %v4927
    %7301 = vmatpush.bf16.msra.mxu0 %v4919
    %7302 = vmatpush.bf16.msra.mxu0 %v4911
    %7303 = vmatmul.bf16.gmra.mxu0 %v77
    %v7304 = vpop.f32.mrf.mxu0
    %v7305 = vadd.f32 %v7292, %v7304
    %v7306 = vpop.f32.mrf.mxu0
    %7307 = vdwg.mxu0
    %7308 = vmatpush.bf16.msra.mxu0 %v5031
    %7309 = vmatpush.bf16.msra.mxu0 %v5023
    %7310 = vmatpush.bf16.msra.mxu0 %v5015
    %7311 = vmatpush.bf16.msra.mxu0 %v5007
    %7312 = vmatpush.bf16.msra.mxu0 %v4999
    %7313 = vmatpush.bf16.msra.mxu0 %v4991
    %7314 = vmatpush.bf16.msra.mxu0 %v4983
    %7315 = vmatpush.bf16.msra.mxu0 %v4975
    %7316 = vmatmul.bf16.gmra.mxu0 %v78
    %v7317 = vpop.f32.mrf.mxu0
    %v7318 = vadd.f32 %v7305, %v7317
    %v7319 = vpop.f32.mrf.mxu0
    %7320 = vdwg.mxu0
    %7321 = vmatpush.bf16.msra.mxu0 %v5095
    %7322 = vmatpush.bf16.msra.mxu0 %v5087
    %7323 = vmatpush.bf16.msra.mxu0 %v5079
    %7324 = vmatpush.bf16.msra.mxu0 %v5071
    %7325 = vmatpush.bf16.msra.mxu0 %v5063
    %7326 = vmatpush.bf16.msra.mxu0 %v5055
    %7327 = vmatpush.bf16.msra.mxu0 %v5047
    %7328 = vmatpush.bf16.msra.mxu0 %v5039
    %7329 = vmatmul.bf16.gmra.mxu0 %v79
    %v7330 = vpop.f32.mrf.mxu0
    %v7331 = vadd.f32 %v7318, %v7330
    %v7332 = vpop.f32.mrf.mxu0
    %7333 = vdwg.mxu0
    %7334 = vmatpush.bf16.msra.mxu0 %v5159
    %7335 = vmatpush.bf16.msra.mxu0 %v5151
    %7336 = vmatpush.bf16.msra.mxu0 %v5143
    %7337 = vmatpush.bf16.msra.mxu0 %v5135
    %7338 = vmatpush.bf16.msra.mxu0 %v5127
    %7339 = vmatpush.bf16.msra.mxu0 %v5119
    %7340 = vmatpush.bf16.msra.mxu0 %v5111
    %7341 = vmatpush.bf16.msra.mxu0 %v5103
    %7342 = vmatmul.bf16.gmra.mxu0 %v80
    %v7343 = vpop.f32.mrf.mxu0
    %v7344 = vadd.f32 %v7331, %v7343
    %v7345 = vpop.f32.mrf.mxu0
    %7346 = vdwg.mxu0
    %7347 = vmatpush.bf16.msra.mxu0 %v5223
    %7348 = vmatpush.bf16.msra.mxu0 %v5215
    %7349 = vmatpush.bf16.msra.mxu0 %v5207
    %7350 = vmatpush.bf16.msra.mxu0 %v5199
    %7351 = vmatpush.bf16.msra.mxu0 %v5191
    %7352 = vmatpush.bf16.msra.mxu0 %v5183
    %7353 = vmatpush.bf16.msra.mxu0 %v5175
    %7354 = vmatpush.bf16.msra.mxu0 %v5167
    %7355 = vmatmul.bf16.gmra.mxu0 %v81
    %v7356 = vpop.f32.mrf.mxu0
    %v7357 = vadd.f32 %v7344, %v7356
    %v7358 = vpop.f32.mrf.mxu0
    %7359 = vdwg.mxu0
    %7360 = vmatpush.bf16.msra.mxu0 %v5287
    %7361 = vmatpush.bf16.msra.mxu0 %v5279
    %7362 = vmatpush.bf16.msra.mxu0 %v5271
    %7363 = vmatpush.bf16.msra.mxu0 %v5263
    %7364 = vmatpush.bf16.msra.mxu0 %v5255
    %7365 = vmatpush.bf16.msra.mxu0 %v5247
    %7366 = vmatpush.bf16.msra.mxu0 %v5239
    %7367 = vmatpush.bf16.msra.mxu0 %v5231
    %7368 = vmatmul.bf16.gmra.mxu0 %v82
    %v7369 = vpop.f32.mrf.mxu0
    %v7370 = vadd.f32 %v7357, %v7369
    %v7371 = vpop.f32.mrf.mxu0
    %7372 = vdwg.mxu0
    %7373 = vmatpush.bf16.msra.mxu0 %v5351
    %7374 = vmatpush.bf16.msra.mxu0 %v5343
    %7375 = vmatpush.bf16.msra.mxu0 %v5335
    %7376 = vmatpush.bf16.msra.mxu0 %v5327
    %7377 = vmatpush.bf16.msra.mxu0 %v5319
    %7378 = vmatpush.bf16.msra.mxu0 %v5311
    %7379 = vmatpush.bf16.msra.mxu0 %v5303
    %7380 = vmatpush.bf16.msra.mxu0 %v5295
    %7381 = vmatmul.bf16.gmra.mxu0 %v83
    %v7382 = vpop.f32.mrf.mxu0
    %v7383 = vadd.f32 %v7370, %v7382
    %v7384 = vpop.f32.mrf.mxu0
    %7385 = vdwg.mxu0
    %7386 = vmatpush.bf16.msra.mxu0 %v5415
    %7387 = vmatpush.bf16.msra.mxu0 %v5407
    %7388 = vmatpush.bf16.msra.mxu0 %v5399
    %7389 = vmatpush.bf16.msra.mxu0 %v5391
    %7390 = vmatpush.bf16.msra.mxu0 %v5383
    %7391 = vmatpush.bf16.msra.mxu0 %v5375
    %7392 = vmatpush.bf16.msra.mxu0 %v5367
    %7393 = vmatpush.bf16.msra.mxu0 %v5359
    %7394 = vmatmul.bf16.gmra.mxu0 %v84
    %v7395 = vpop.f32.mrf.mxu0
    %v7396 = vadd.f32 %v7383, %v7395
    %v7397 = vpop.f32.mrf.mxu0
    %7398 = vdwg.mxu0
    %7399 = vmatpush.bf16.msra.mxu0 %v5479
    %7400 = vmatpush.bf16.msra.mxu0 %v5471
    %7401 = vmatpush.bf16.msra.mxu0 %v5463
    %7402 = vmatpush.bf16.msra.mxu0 %v5455
    %7403 = vmatpush.bf16.msra.mxu0 %v5447
    %7404 = vmatpush.bf16.msra.mxu0 %v5439
    %7405 = vmatpush.bf16.msra.mxu0 %v5431
    %7406 = vmatpush.bf16.msra.mxu0 %v5423
    %7407 = vmatmul.bf16.gmra.mxu0 %v85
    %v7408 = vpop.f32.mrf.mxu0
    %v7409 = vadd.f32 %v7396, %v7408
    %v7410 = vpop.f32.mrf.mxu0
    %7411 = vdwg.mxu0
    %7412 = vmatpush.bf16.msra.mxu0 %v5543
    %7413 = vmatpush.bf16.msra.mxu0 %v5535
    %7414 = vmatpush.bf16.msra.mxu0 %v5527
    %7415 = vmatpush.bf16.msra.mxu0 %v5519
    %7416 = vmatpush.bf16.msra.mxu0 %v5511
    %7417 = vmatpush.bf16.msra.mxu0 %v5503
    %7418 = vmatpush.bf16.msra.mxu0 %v5495
    %7419 = vmatpush.bf16.msra.mxu0 %v5487
    %7420 = vmatmul.bf16.gmra.mxu0 %v86
    %v7421 = vpop.f32.mrf.mxu0
    %v7422 = vadd.f32 %v7409, %v7421
    %v7423 = vpop.f32.mrf.mxu0
    %7424 = vdwg.mxu0
    %7425 = vmatpush.bf16.msra.mxu0 %v5607
    %7426 = vmatpush.bf16.msra.mxu0 %v5599
    %7427 = vmatpush.bf16.msra.mxu0 %v5591
    %7428 = vmatpush.bf16.msra.mxu0 %v5583
    %7429 = vmatpush.bf16.msra.mxu0 %v5575
    %7430 = vmatpush.bf16.msra.mxu0 %v5567
    %7431 = vmatpush.bf16.msra.mxu0 %v5559
    %7432 = vmatpush.bf16.msra.mxu0 %v5551
    %7433 = vmatmul.bf16.gmra.mxu0 %v87
    %v7434 = vpop.f32.mrf.mxu0
    %v7435 = vadd.f32 %v7422, %v7434
    %v7436 = vpop.f32.mrf.mxu0
    %7437 = vdwg.mxu0
    %7438 = vmatpush.bf16.msra.mxu0 %v5671
    %7439 = vmatpush.bf16.msra.mxu0 %v5663
    %7440 = vmatpush.bf16.msra.mxu0 %v5655
    %7441 = vmatpush.bf16.msra.mxu0 %v5647
    %7442 = vmatpush.bf16.msra.mxu0 %v5639
    %7443 = vmatpush.bf16.msra.mxu0 %v5631
    %7444 = vmatpush.bf16.msra.mxu0 %v5623
    %7445 = vmatpush.bf16.msra.mxu0 %v5615
    %7446 = vmatmul.bf16.gmra.mxu0 %v88
    %v7447 = vpop.f32.mrf.mxu0
    %v7448 = vadd.f32 %v7435, %v7447
    %v7449 = vpop.f32.mrf.mxu0
    %7450 = vdwg.mxu0
    %7451 = vmatpush.bf16.msra.mxu0 %v5735
    %7452 = vmatpush.bf16.msra.mxu0 %v5727
    %7453 = vmatpush.bf16.msra.mxu0 %v5719
    %7454 = vmatpush.bf16.msra.mxu0 %v5711
    %7455 = vmatpush.bf16.msra.mxu0 %v5703
    %7456 = vmatpush.bf16.msra.mxu0 %v5695
    %7457 = vmatpush.bf16.msra.mxu0 %v5687
    %7458 = vmatpush.bf16.msra.mxu0 %v5679
    %7459 = vmatmul.bf16.gmra.mxu0 %v89
    %v7460 = vpop.f32.mrf.mxu0
    %v7461 = vadd.f32 %v7448, %v7460
    %v7462 = vpop.f32.mrf.mxu0
    %7463 = vdwg.mxu0
    %7464 = vmatpush.bf16.msra.mxu0 %v5799
    %7465 = vmatpush.bf16.msra.mxu0 %v5791
    %7466 = vmatpush.bf16.msra.mxu0 %v5783
    %7467 = vmatpush.bf16.msra.mxu0 %v5775
    %7468 = vmatpush.bf16.msra.mxu0 %v5767
    %7469 = vmatpush.bf16.msra.mxu0 %v5759
    %7470 = vmatpush.bf16.msra.mxu0 %v5751
    %7471 = vmatpush.bf16.msra.mxu0 %v5743
    %7472 = vmatmul.bf16.gmra.mxu0 %v90
    %v7473 = vpop.f32.mrf.mxu0
    %v7474 = vadd.f32 %v7461, %v7473
    %v7475 = vpop.f32.mrf.mxu0
    %7476 = vdwg.mxu0
    %7477 = vmatpush.bf16.msra.mxu0 %v5863
    %7478 = vmatpush.bf16.msra.mxu0 %v5855
    %7479 = vmatpush.bf16.msra.mxu0 %v5847
    %7480 = vmatpush.bf16.msra.mxu0 %v5839
    %7481 = vmatpush.bf16.msra.mxu0 %v5831
    %7482 = vmatpush.bf16.msra.mxu0 %v5823
    %7483 = vmatpush.bf16.msra.mxu0 %v5815
    %7484 = vmatpush.bf16.msra.mxu0 %v5807
    %7485 = vmatmul.bf16.gmra.mxu0 %v91
    %v7486 = vpop.f32.mrf.mxu0
    %v7487 = vadd.f32 %v7474, %v7486
    %v7488 = vpop.f32.mrf.mxu0
    %7489 = vdwg.mxu0
    %7490 = vmatpush.bf16.msra.mxu0 %v4776
    %7491 = vmatpush.bf16.msra.mxu0 %v4768
    %7492 = vmatpush.bf16.msra.mxu0 %v4760
    %7493 = vmatpush.bf16.msra.mxu0 %v4752
    %7494 = vmatpush.bf16.msra.mxu0 %v4744
    %7495 = vmatpush.bf16.msra.mxu0 %v4736
    %7496 = vmatpush.bf16.msra.mxu0 %v4728
    %7497 = vmatpush.bf16.msra.mxu0 %v4720
    %7498 = vmatmul.bf16.gmra.mxu0 %v74
    %v7499 = vpop.f32.mrf.mxu0
    %v7500 = vadd.f32 %v1248, %v7499
    %v7501 = vpop.f32.mrf.mxu0
    %7502 = vdwg.mxu0
    %7503 = vmatpush.bf16.msra.mxu0 %v4840
    %7504 = vmatpush.bf16.msra.mxu0 %v4832
    %7505 = vmatpush.bf16.msra.mxu0 %v4824
    %7506 = vmatpush.bf16.msra.mxu0 %v4816
    %7507 = vmatpush.bf16.msra.mxu0 %v4808
    %7508 = vmatpush.bf16.msra.mxu0 %v4800
    %7509 = vmatpush.bf16.msra.mxu0 %v4792
    %7510 = vmatpush.bf16.msra.mxu0 %v4784
    %7511 = vmatmul.bf16.gmra.mxu0 %v75
    %v7512 = vpop.f32.mrf.mxu0
    %v7513 = vadd.f32 %v7500, %v7512
    %v7514 = vpop.f32.mrf.mxu0
    %7515 = vdwg.mxu0
    %7516 = vmatpush.bf16.msra.mxu0 %v4904
    %7517 = vmatpush.bf16.msra.mxu0 %v4896
    %7518 = vmatpush.bf16.msra.mxu0 %v4888
    %7519 = vmatpush.bf16.msra.mxu0 %v4880
    %7520 = vmatpush.bf16.msra.mxu0 %v4872
    %7521 = vmatpush.bf16.msra.mxu0 %v4864
    %7522 = vmatpush.bf16.msra.mxu0 %v4856
    %7523 = vmatpush.bf16.msra.mxu0 %v4848
    %7524 = vmatmul.bf16.gmra.mxu0 %v76
    %v7525 = vpop.f32.mrf.mxu0
    %v7526 = vadd.f32 %v7513, %v7525
    %v7527 = vpop.f32.mrf.mxu0
    %7528 = vdwg.mxu0
    %7529 = vmatpush.bf16.msra.mxu0 %v4968
    %7530 = vmatpush.bf16.msra.mxu0 %v4960
    %7531 = vmatpush.bf16.msra.mxu0 %v4952
    %7532 = vmatpush.bf16.msra.mxu0 %v4944
    %7533 = vmatpush.bf16.msra.mxu0 %v4936
    %7534 = vmatpush.bf16.msra.mxu0 %v4928
    %7535 = vmatpush.bf16.msra.mxu0 %v4920
    %7536 = vmatpush.bf16.msra.mxu0 %v4912
    %7537 = vmatmul.bf16.gmra.mxu0 %v77
    %v7538 = vpop.f32.mrf.mxu0
    %v7539 = vadd.f32 %v7526, %v7538
    %v7540 = vpop.f32.mrf.mxu0
    %7541 = vdwg.mxu0
    %7542 = vmatpush.bf16.msra.mxu0 %v5032
    %7543 = vmatpush.bf16.msra.mxu0 %v5024
    %7544 = vmatpush.bf16.msra.mxu0 %v5016
    %7545 = vmatpush.bf16.msra.mxu0 %v5008
    %7546 = vmatpush.bf16.msra.mxu0 %v5000
    %7547 = vmatpush.bf16.msra.mxu0 %v4992
    %7548 = vmatpush.bf16.msra.mxu0 %v4984
    %7549 = vmatpush.bf16.msra.mxu0 %v4976
    %7550 = vmatmul.bf16.gmra.mxu0 %v78
    %v7551 = vpop.f32.mrf.mxu0
    %v7552 = vadd.f32 %v7539, %v7551
    %v7553 = vpop.f32.mrf.mxu0
    %7554 = vdwg.mxu0
    %7555 = vmatpush.bf16.msra.mxu0 %v5096
    %7556 = vmatpush.bf16.msra.mxu0 %v5088
    %7557 = vmatpush.bf16.msra.mxu0 %v5080
    %7558 = vmatpush.bf16.msra.mxu0 %v5072
    %7559 = vmatpush.bf16.msra.mxu0 %v5064
    %7560 = vmatpush.bf16.msra.mxu0 %v5056
    %7561 = vmatpush.bf16.msra.mxu0 %v5048
    %7562 = vmatpush.bf16.msra.mxu0 %v5040
    %7563 = vmatmul.bf16.gmra.mxu0 %v79
    %v7564 = vpop.f32.mrf.mxu0
    %v7565 = vadd.f32 %v7552, %v7564
    %v7566 = vpop.f32.mrf.mxu0
    %7567 = vdwg.mxu0
    %7568 = vmatpush.bf16.msra.mxu0 %v5160
    %7569 = vmatpush.bf16.msra.mxu0 %v5152
    %7570 = vmatpush.bf16.msra.mxu0 %v5144
    %7571 = vmatpush.bf16.msra.mxu0 %v5136
    %7572 = vmatpush.bf16.msra.mxu0 %v5128
    %7573 = vmatpush.bf16.msra.mxu0 %v5120
    %7574 = vmatpush.bf16.msra.mxu0 %v5112
    %7575 = vmatpush.bf16.msra.mxu0 %v5104
    %7576 = vmatmul.bf16.gmra.mxu0 %v80
    %v7577 = vpop.f32.mrf.mxu0
    %v7578 = vadd.f32 %v7565, %v7577
    %v7579 = vpop.f32.mrf.mxu0
    %7580 = vdwg.mxu0
    %7581 = vmatpush.bf16.msra.mxu0 %v5224
    %7582 = vmatpush.bf16.msra.mxu0 %v5216
    %7583 = vmatpush.bf16.msra.mxu0 %v5208
    %7584 = vmatpush.bf16.msra.mxu0 %v5200
    %7585 = vmatpush.bf16.msra.mxu0 %v5192
    %7586 = vmatpush.bf16.msra.mxu0 %v5184
    %7587 = vmatpush.bf16.msra.mxu0 %v5176
    %7588 = vmatpush.bf16.msra.mxu0 %v5168
    %7589 = vmatmul.bf16.gmra.mxu0 %v81
    %v7590 = vpop.f32.mrf.mxu0
    %v7591 = vadd.f32 %v7578, %v7590
    %v7592 = vpop.f32.mrf.mxu0
    %7593 = vdwg.mxu0
    %7594 = vmatpush.bf16.msra.mxu0 %v5288
    %7595 = vmatpush.bf16.msra.mxu0 %v5280
    %7596 = vmatpush.bf16.msra.mxu0 %v5272
    %7597 = vmatpush.bf16.msra.mxu0 %v5264
    %7598 = vmatpush.bf16.msra.mxu0 %v5256
    %7599 = vmatpush.bf16.msra.mxu0 %v5248
    %7600 = vmatpush.bf16.msra.mxu0 %v5240
    %7601 = vmatpush.bf16.msra.mxu0 %v5232
    %7602 = vmatmul.bf16.gmra.mxu0 %v82
    %v7603 = vpop.f32.mrf.mxu0
    %v7604 = vadd.f32 %v7591, %v7603
    %v7605 = vpop.f32.mrf.mxu0
    %7606 = vdwg.mxu0
    %7607 = vmatpush.bf16.msra.mxu0 %v5352
    %7608 = vmatpush.bf16.msra.mxu0 %v5344
    %7609 = vmatpush.bf16.msra.mxu0 %v5336
    %7610 = vmatpush.bf16.msra.mxu0 %v5328
    %7611 = vmatpush.bf16.msra.mxu0 %v5320
    %7612 = vmatpush.bf16.msra.mxu0 %v5312
    %7613 = vmatpush.bf16.msra.mxu0 %v5304
    %7614 = vmatpush.bf16.msra.mxu0 %v5296
    %7615 = vmatmul.bf16.gmra.mxu0 %v83
    %v7616 = vpop.f32.mrf.mxu0
    %v7617 = vadd.f32 %v7604, %v7616
    %v7618 = vpop.f32.mrf.mxu0
    %7619 = vdwg.mxu0
    %7620 = vmatpush.bf16.msra.mxu0 %v5416
    %7621 = vmatpush.bf16.msra.mxu0 %v5408
    %7622 = vmatpush.bf16.msra.mxu0 %v5400
    %7623 = vmatpush.bf16.msra.mxu0 %v5392
    %7624 = vmatpush.bf16.msra.mxu0 %v5384
    %7625 = vmatpush.bf16.msra.mxu0 %v5376
    %7626 = vmatpush.bf16.msra.mxu0 %v5368
    %7627 = vmatpush.bf16.msra.mxu0 %v5360
    %7628 = vmatmul.bf16.gmra.mxu0 %v84
    %v7629 = vpop.f32.mrf.mxu0
    %v7630 = vadd.f32 %v7617, %v7629
    %v7631 = vpop.f32.mrf.mxu0
    %7632 = vdwg.mxu0
    %7633 = vmatpush.bf16.msra.mxu0 %v5480
    %7634 = vmatpush.bf16.msra.mxu0 %v5472
    %7635 = vmatpush.bf16.msra.mxu0 %v5464
    %7636 = vmatpush.bf16.msra.mxu0 %v5456
    %7637 = vmatpush.bf16.msra.mxu0 %v5448
    %7638 = vmatpush.bf16.msra.mxu0 %v5440
    %7639 = vmatpush.bf16.msra.mxu0 %v5432
    %7640 = vmatpush.bf16.msra.mxu0 %v5424
    %7641 = vmatmul.bf16.gmra.mxu0 %v85
    %v7642 = vpop.f32.mrf.mxu0
    %v7643 = vadd.f32 %v7630, %v7642
    %v7644 = vpop.f32.mrf.mxu0
    %7645 = vdwg.mxu0
    %7646 = vmatpush.bf16.msra.mxu0 %v5544
    %7647 = vmatpush.bf16.msra.mxu0 %v5536
    %7648 = vmatpush.bf16.msra.mxu0 %v5528
    %7649 = vmatpush.bf16.msra.mxu0 %v5520
    %7650 = vmatpush.bf16.msra.mxu0 %v5512
    %7651 = vmatpush.bf16.msra.mxu0 %v5504
    %7652 = vmatpush.bf16.msra.mxu0 %v5496
    %7653 = vmatpush.bf16.msra.mxu0 %v5488
    %7654 = vmatmul.bf16.gmra.mxu0 %v86
    %v7655 = vpop.f32.mrf.mxu0
    %v7656 = vadd.f32 %v7643, %v7655
    %v7657 = vpop.f32.mrf.mxu0
    %7658 = vdwg.mxu0
    %7659 = vmatpush.bf16.msra.mxu0 %v5608
    %7660 = vmatpush.bf16.msra.mxu0 %v5600
    %7661 = vmatpush.bf16.msra.mxu0 %v5592
    %7662 = vmatpush.bf16.msra.mxu0 %v5584
    %7663 = vmatpush.bf16.msra.mxu0 %v5576
    %7664 = vmatpush.bf16.msra.mxu0 %v5568
    %7665 = vmatpush.bf16.msra.mxu0 %v5560
    %7666 = vmatpush.bf16.msra.mxu0 %v5552
    %7667 = vmatmul.bf16.gmra.mxu0 %v87
    %v7668 = vpop.f32.mrf.mxu0
    %v7669 = vadd.f32 %v7656, %v7668
    %v7670 = vpop.f32.mrf.mxu0
    %7671 = vdwg.mxu0
    %7672 = vmatpush.bf16.msra.mxu0 %v5672
    %7673 = vmatpush.bf16.msra.mxu0 %v5664
    %7674 = vmatpush.bf16.msra.mxu0 %v5656
    %7675 = vmatpush.bf16.msra.mxu0 %v5648
    %7676 = vmatpush.bf16.msra.mxu0 %v5640
    %7677 = vmatpush.bf16.msra.mxu0 %v5632
    %7678 = vmatpush.bf16.msra.mxu0 %v5624
    %7679 = vmatpush.bf16.msra.mxu0 %v5616
    %7680 = vmatmul.bf16.gmra.mxu0 %v88
    %v7681 = vpop.f32.mrf.mxu0
    %v7682 = vadd.f32 %v7669, %v7681
    %v7683 = vpop.f32.mrf.mxu0
    %7684 = vdwg.mxu0
    %7685 = vmatpush.bf16.msra.mxu0 %v5736
    %7686 = vmatpush.bf16.msra.mxu0 %v5728
    %7687 = vmatpush.bf16.msra.mxu0 %v5720
    %7688 = vmatpush.bf16.msra.mxu0 %v5712
    %7689 = vmatpush.bf16.msra.mxu0 %v5704
    %7690 = vmatpush.bf16.msra.mxu0 %v5696
    %7691 = vmatpush.bf16.msra.mxu0 %v5688
    %7692 = vmatpush.bf16.msra.mxu0 %v5680
    %7693 = vmatmul.bf16.gmra.mxu0 %v89
    %v7694 = vpop.f32.mrf.mxu0
    %v7695 = vadd.f32 %v7682, %v7694
    %v7696 = vpop.f32.mrf.mxu0
    %7697 = vdwg.mxu0
    %7698 = vmatpush.bf16.msra.mxu0 %v5800
    %7699 = vmatpush.bf16.msra.mxu0 %v5792
    %7700 = vmatpush.bf16.msra.mxu0 %v5784
    %7701 = vmatpush.bf16.msra.mxu0 %v5776
    %7702 = vmatpush.bf16.msra.mxu0 %v5768
    %7703 = vmatpush.bf16.msra.mxu0 %v5760
    %7704 = vmatpush.bf16.msra.mxu0 %v5752
    %7705 = vmatpush.bf16.msra.mxu0 %v5744
    %7706 = vmatmul.bf16.gmra.mxu0 %v90
    %v7707 = vpop.f32.mrf.mxu0
    %v7708 = vadd.f32 %v7695, %v7707
    %v7709 = vpop.f32.mrf.mxu0
    %7710 = vdwg.mxu0
    %7711 = vmatpush.bf16.msra.mxu0 %v5864
    %7712 = vmatpush.bf16.msra.mxu0 %v5856
    %7713 = vmatpush.bf16.msra.mxu0 %v5848
    %7714 = vmatpush.bf16.msra.mxu0 %v5840
    %7715 = vmatpush.bf16.msra.mxu0 %v5832
    %7716 = vmatpush.bf16.msra.mxu0 %v5824
    %7717 = vmatpush.bf16.msra.mxu0 %v5816
    %7718 = vmatpush.bf16.msra.mxu0 %v5808
    %7719 = vmatmul.bf16.gmra.mxu0 %v91
    %v7720 = vpop.f32.mrf.mxu0
    %v7721 = vadd.f32 %v7708, %v7720
    %v7722 = vpop.f32.mrf.mxu0
    %7723 = vdwg.mxu0
    %7724 = vmatpush.bf16.msra.mxu0 %v4777
    %7725 = vmatpush.bf16.msra.mxu0 %v4769
    %7726 = vmatpush.bf16.msra.mxu0 %v4761
    %7727 = vmatpush.bf16.msra.mxu0 %v4753
    %7728 = vmatpush.bf16.msra.mxu0 %v4745
    %7729 = vmatpush.bf16.msra.mxu0 %v4737
    %7730 = vmatpush.bf16.msra.mxu0 %v4729
    %7731 = vmatpush.bf16.msra.mxu0 %v4721
    %7732 = vmatmul.bf16.gmra.mxu0 %v74
    %v7733 = vpop.f32.mrf.mxu0
    %v7734 = vadd.f32 %v1249, %v7733
    %v7735 = vpop.f32.mrf.mxu0
    %7736 = vdwg.mxu0
    %7737 = vmatpush.bf16.msra.mxu0 %v4841
    %7738 = vmatpush.bf16.msra.mxu0 %v4833
    %7739 = vmatpush.bf16.msra.mxu0 %v4825
    %7740 = vmatpush.bf16.msra.mxu0 %v4817
    %7741 = vmatpush.bf16.msra.mxu0 %v4809
    %7742 = vmatpush.bf16.msra.mxu0 %v4801
    %7743 = vmatpush.bf16.msra.mxu0 %v4793
    %7744 = vmatpush.bf16.msra.mxu0 %v4785
    %7745 = vmatmul.bf16.gmra.mxu0 %v75
    %v7746 = vpop.f32.mrf.mxu0
    %v7747 = vadd.f32 %v7734, %v7746
    %v7748 = vpop.f32.mrf.mxu0
    %7749 = vdwg.mxu0
    %7750 = vmatpush.bf16.msra.mxu0 %v4905
    %7751 = vmatpush.bf16.msra.mxu0 %v4897
    %7752 = vmatpush.bf16.msra.mxu0 %v4889
    %7753 = vmatpush.bf16.msra.mxu0 %v4881
    %7754 = vmatpush.bf16.msra.mxu0 %v4873
    %7755 = vmatpush.bf16.msra.mxu0 %v4865
    %7756 = vmatpush.bf16.msra.mxu0 %v4857
    %7757 = vmatpush.bf16.msra.mxu0 %v4849
    %7758 = vmatmul.bf16.gmra.mxu0 %v76
    %v7759 = vpop.f32.mrf.mxu0
    %v7760 = vadd.f32 %v7747, %v7759
    %v7761 = vpop.f32.mrf.mxu0
    %7762 = vdwg.mxu0
    %7763 = vmatpush.bf16.msra.mxu0 %v4969
    %7764 = vmatpush.bf16.msra.mxu0 %v4961
    %7765 = vmatpush.bf16.msra.mxu0 %v4953
    %7766 = vmatpush.bf16.msra.mxu0 %v4945
    %7767 = vmatpush.bf16.msra.mxu0 %v4937
    %7768 = vmatpush.bf16.msra.mxu0 %v4929
    %7769 = vmatpush.bf16.msra.mxu0 %v4921
    %7770 = vmatpush.bf16.msra.mxu0 %v4913
    %7771 = vmatmul.bf16.gmra.mxu0 %v77
    %v7772 = vpop.f32.mrf.mxu0
    %v7773 = vadd.f32 %v7760, %v7772
    %v7774 = vpop.f32.mrf.mxu0
    %7775 = vdwg.mxu0
    %7776 = vmatpush.bf16.msra.mxu0 %v5033
    %7777 = vmatpush.bf16.msra.mxu0 %v5025
    %7778 = vmatpush.bf16.msra.mxu0 %v5017
    %7779 = vmatpush.bf16.msra.mxu0 %v5009
    %7780 = vmatpush.bf16.msra.mxu0 %v5001
    %7781 = vmatpush.bf16.msra.mxu0 %v4993
    %7782 = vmatpush.bf16.msra.mxu0 %v4985
    %7783 = vmatpush.bf16.msra.mxu0 %v4977
    %7784 = vmatmul.bf16.gmra.mxu0 %v78
    %v7785 = vpop.f32.mrf.mxu0
    %v7786 = vadd.f32 %v7773, %v7785
    %v7787 = vpop.f32.mrf.mxu0
    %7788 = vdwg.mxu0
    %7789 = vmatpush.bf16.msra.mxu0 %v5097
    %7790 = vmatpush.bf16.msra.mxu0 %v5089
    %7791 = vmatpush.bf16.msra.mxu0 %v5081
    %7792 = vmatpush.bf16.msra.mxu0 %v5073
    %7793 = vmatpush.bf16.msra.mxu0 %v5065
    %7794 = vmatpush.bf16.msra.mxu0 %v5057
    %7795 = vmatpush.bf16.msra.mxu0 %v5049
    %7796 = vmatpush.bf16.msra.mxu0 %v5041
    %7797 = vmatmul.bf16.gmra.mxu0 %v79
    %v7798 = vpop.f32.mrf.mxu0
    %v7799 = vadd.f32 %v7786, %v7798
    %v7800 = vpop.f32.mrf.mxu0
    %7801 = vdwg.mxu0
    %7802 = vmatpush.bf16.msra.mxu0 %v5161
    %7803 = vmatpush.bf16.msra.mxu0 %v5153
    %7804 = vmatpush.bf16.msra.mxu0 %v5145
    %7805 = vmatpush.bf16.msra.mxu0 %v5137
    %7806 = vmatpush.bf16.msra.mxu0 %v5129
    %7807 = vmatpush.bf16.msra.mxu0 %v5121
    %7808 = vmatpush.bf16.msra.mxu0 %v5113
    %7809 = vmatpush.bf16.msra.mxu0 %v5105
    %7810 = vmatmul.bf16.gmra.mxu0 %v80
    %v7811 = vpop.f32.mrf.mxu0
    %v7812 = vadd.f32 %v7799, %v7811
    %v7813 = vpop.f32.mrf.mxu0
    %7814 = vdwg.mxu0
    %7815 = vmatpush.bf16.msra.mxu0 %v5225
    %7816 = vmatpush.bf16.msra.mxu0 %v5217
    %7817 = vmatpush.bf16.msra.mxu0 %v5209
    %7818 = vmatpush.bf16.msra.mxu0 %v5201
    %7819 = vmatpush.bf16.msra.mxu0 %v5193
    %7820 = vmatpush.bf16.msra.mxu0 %v5185
    %7821 = vmatpush.bf16.msra.mxu0 %v5177
    %7822 = vmatpush.bf16.msra.mxu0 %v5169
    %7823 = vmatmul.bf16.gmra.mxu0 %v81
    %v7824 = vpop.f32.mrf.mxu0
    %v7825 = vadd.f32 %v7812, %v7824
    %v7826 = vpop.f32.mrf.mxu0
    %7827 = vdwg.mxu0
    %7828 = vmatpush.bf16.msra.mxu0 %v5289
    %7829 = vmatpush.bf16.msra.mxu0 %v5281
    %7830 = vmatpush.bf16.msra.mxu0 %v5273
    %7831 = vmatpush.bf16.msra.mxu0 %v5265
    %7832 = vmatpush.bf16.msra.mxu0 %v5257
    %7833 = vmatpush.bf16.msra.mxu0 %v5249
    %7834 = vmatpush.bf16.msra.mxu0 %v5241
    %7835 = vmatpush.bf16.msra.mxu0 %v5233
    %7836 = vmatmul.bf16.gmra.mxu0 %v82
    %v7837 = vpop.f32.mrf.mxu0
    %v7838 = vadd.f32 %v7825, %v7837
    %v7839 = vpop.f32.mrf.mxu0
    %7840 = vdwg.mxu0
    %7841 = vmatpush.bf16.msra.mxu0 %v5353
    %7842 = vmatpush.bf16.msra.mxu0 %v5345
    %7843 = vmatpush.bf16.msra.mxu0 %v5337
    %7844 = vmatpush.bf16.msra.mxu0 %v5329
    %7845 = vmatpush.bf16.msra.mxu0 %v5321
    %7846 = vmatpush.bf16.msra.mxu0 %v5313
    %7847 = vmatpush.bf16.msra.mxu0 %v5305
    %7848 = vmatpush.bf16.msra.mxu0 %v5297
    %7849 = vmatmul.bf16.gmra.mxu0 %v83
    %v7850 = vpop.f32.mrf.mxu0
    %v7851 = vadd.f32 %v7838, %v7850
    %v7852 = vpop.f32.mrf.mxu0
    %7853 = vdwg.mxu0
    %7854 = vmatpush.bf16.msra.mxu0 %v5417
    %7855 = vmatpush.bf16.msra.mxu0 %v5409
    %7856 = vmatpush.bf16.msra.mxu0 %v5401
    %7857 = vmatpush.bf16.msra.mxu0 %v5393
    %7858 = vmatpush.bf16.msra.mxu0 %v5385
    %7859 = vmatpush.bf16.msra.mxu0 %v5377
    %7860 = vmatpush.bf16.msra.mxu0 %v5369
    %7861 = vmatpush.bf16.msra.mxu0 %v5361
    %7862 = vmatmul.bf16.gmra.mxu0 %v84
    %v7863 = vpop.f32.mrf.mxu0
    %v7864 = vadd.f32 %v7851, %v7863
    %v7865 = vpop.f32.mrf.mxu0
    %7866 = vdwg.mxu0
    %7867 = vmatpush.bf16.msra.mxu0 %v5481
    %7868 = vmatpush.bf16.msra.mxu0 %v5473
    %7869 = vmatpush.bf16.msra.mxu0 %v5465
    %7870 = vmatpush.bf16.msra.mxu0 %v5457
    %7871 = vmatpush.bf16.msra.mxu0 %v5449
    %7872 = vmatpush.bf16.msra.mxu0 %v5441
    %7873 = vmatpush.bf16.msra.mxu0 %v5433
    %7874 = vmatpush.bf16.msra.mxu0 %v5425
    %7875 = vmatmul.bf16.gmra.mxu0 %v85
    %v7876 = vpop.f32.mrf.mxu0
    %v7877 = vadd.f32 %v7864, %v7876
    %v7878 = vpop.f32.mrf.mxu0
    %7879 = vdwg.mxu0
    %7880 = vmatpush.bf16.msra.mxu0 %v5545
    %7881 = vmatpush.bf16.msra.mxu0 %v5537
    %7882 = vmatpush.bf16.msra.mxu0 %v5529
    %7883 = vmatpush.bf16.msra.mxu0 %v5521
    %7884 = vmatpush.bf16.msra.mxu0 %v5513
    %7885 = vmatpush.bf16.msra.mxu0 %v5505
    %7886 = vmatpush.bf16.msra.mxu0 %v5497
    %7887 = vmatpush.bf16.msra.mxu0 %v5489
    %7888 = vmatmul.bf16.gmra.mxu0 %v86
    %v7889 = vpop.f32.mrf.mxu0
    %v7890 = vadd.f32 %v7877, %v7889
    %v7891 = vpop.f32.mrf.mxu0
    %7892 = vdwg.mxu0
    %7893 = vmatpush.bf16.msra.mxu0 %v5609
    %7894 = vmatpush.bf16.msra.mxu0 %v5601
    %7895 = vmatpush.bf16.msra.mxu0 %v5593
    %7896 = vmatpush.bf16.msra.mxu0 %v5585
    %7897 = vmatpush.bf16.msra.mxu0 %v5577
    %7898 = vmatpush.bf16.msra.mxu0 %v5569
    %7899 = vmatpush.bf16.msra.mxu0 %v5561
    %7900 = vmatpush.bf16.msra.mxu0 %v5553
    %7901 = vmatmul.bf16.gmra.mxu0 %v87
    %v7902 = vpop.f32.mrf.mxu0
    %v7903 = vadd.f32 %v7890, %v7902
    %v7904 = vpop.f32.mrf.mxu0
    %7905 = vdwg.mxu0
    %7906 = vmatpush.bf16.msra.mxu0 %v5673
    %7907 = vmatpush.bf16.msra.mxu0 %v5665
    %7908 = vmatpush.bf16.msra.mxu0 %v5657
    %7909 = vmatpush.bf16.msra.mxu0 %v5649
    %7910 = vmatpush.bf16.msra.mxu0 %v5641
    %7911 = vmatpush.bf16.msra.mxu0 %v5633
    %7912 = vmatpush.bf16.msra.mxu0 %v5625
    %7913 = vmatpush.bf16.msra.mxu0 %v5617
    %7914 = vmatmul.bf16.gmra.mxu0 %v88
    %v7915 = vpop.f32.mrf.mxu0
    %v7916 = vadd.f32 %v7903, %v7915
    %v7917 = vpop.f32.mrf.mxu0
    %7918 = vdwg.mxu0
    %7919 = vmatpush.bf16.msra.mxu0 %v5737
    %7920 = vmatpush.bf16.msra.mxu0 %v5729
    %7921 = vmatpush.bf16.msra.mxu0 %v5721
    %7922 = vmatpush.bf16.msra.mxu0 %v5713
    %7923 = vmatpush.bf16.msra.mxu0 %v5705
    %7924 = vmatpush.bf16.msra.mxu0 %v5697
    %7925 = vmatpush.bf16.msra.mxu0 %v5689
    %7926 = vmatpush.bf16.msra.mxu0 %v5681
    %7927 = vmatmul.bf16.gmra.mxu0 %v89
    %v7928 = vpop.f32.mrf.mxu0
    %v7929 = vadd.f32 %v7916, %v7928
    %v7930 = vpop.f32.mrf.mxu0
    %7931 = vdwg.mxu0
    %7932 = vmatpush.bf16.msra.mxu0 %v5801
    %7933 = vmatpush.bf16.msra.mxu0 %v5793
    %7934 = vmatpush.bf16.msra.mxu0 %v5785
    %7935 = vmatpush.bf16.msra.mxu0 %v5777
    %7936 = vmatpush.bf16.msra.mxu0 %v5769
    %7937 = vmatpush.bf16.msra.mxu0 %v5761
    %7938 = vmatpush.bf16.msra.mxu0 %v5753
    %7939 = vmatpush.bf16.msra.mxu0 %v5745
    %7940 = vmatmul.bf16.gmra.mxu0 %v90
    %v7941 = vpop.f32.mrf.mxu0
    %v7942 = vadd.f32 %v7929, %v7941
    %v7943 = vpop.f32.mrf.mxu0
    %7944 = vdwg.mxu0
    %7945 = vmatpush.bf16.msra.mxu0 %v5865
    %7946 = vmatpush.bf16.msra.mxu0 %v5857
    %7947 = vmatpush.bf16.msra.mxu0 %v5849
    %7948 = vmatpush.bf16.msra.mxu0 %v5841
    %7949 = vmatpush.bf16.msra.mxu0 %v5833
    %7950 = vmatpush.bf16.msra.mxu0 %v5825
    %7951 = vmatpush.bf16.msra.mxu0 %v5817
    %7952 = vmatpush.bf16.msra.mxu0 %v5809
    %7953 = vmatmul.bf16.gmra.mxu0 %v91
    %v7954 = vpop.f32.mrf.mxu0
    %v7955 = vadd.f32 %v7942, %v7954
    %v7956 = vpop.f32.mrf.mxu0
    %7957 = vdwg.mxu0
    %7958 = vmatpush.bf16.msra.mxu0 %v4778
    %7959 = vmatpush.bf16.msra.mxu0 %v4770
    %7960 = vmatpush.bf16.msra.mxu0 %v4762
    %7961 = vmatpush.bf16.msra.mxu0 %v4754
    %7962 = vmatpush.bf16.msra.mxu0 %v4746
    %7963 = vmatpush.bf16.msra.mxu0 %v4738
    %7964 = vmatpush.bf16.msra.mxu0 %v4730
    %7965 = vmatpush.bf16.msra.mxu0 %v4722
    %7966 = vmatmul.bf16.gmra.mxu0 %v74
    %v7967 = vpop.f32.mrf.mxu0
    %v7968 = vadd.f32 %v1250, %v7967
    %v7969 = vpop.f32.mrf.mxu0
    %7970 = vdwg.mxu0
    %7971 = vmatpush.bf16.msra.mxu0 %v4842
    %7972 = vmatpush.bf16.msra.mxu0 %v4834
    %7973 = vmatpush.bf16.msra.mxu0 %v4826
    %7974 = vmatpush.bf16.msra.mxu0 %v4818
    %7975 = vmatpush.bf16.msra.mxu0 %v4810
    %7976 = vmatpush.bf16.msra.mxu0 %v4802
    %7977 = vmatpush.bf16.msra.mxu0 %v4794
    %7978 = vmatpush.bf16.msra.mxu0 %v4786
    %7979 = vmatmul.bf16.gmra.mxu0 %v75
    %v7980 = vpop.f32.mrf.mxu0
    %v7981 = vadd.f32 %v7968, %v7980
    %v7982 = vpop.f32.mrf.mxu0
    %7983 = vdwg.mxu0
    %7984 = vmatpush.bf16.msra.mxu0 %v4906
    %7985 = vmatpush.bf16.msra.mxu0 %v4898
    %7986 = vmatpush.bf16.msra.mxu0 %v4890
    %7987 = vmatpush.bf16.msra.mxu0 %v4882
    %7988 = vmatpush.bf16.msra.mxu0 %v4874
    %7989 = vmatpush.bf16.msra.mxu0 %v4866
    %7990 = vmatpush.bf16.msra.mxu0 %v4858
    %7991 = vmatpush.bf16.msra.mxu0 %v4850
    %7992 = vmatmul.bf16.gmra.mxu0 %v76
    %v7993 = vpop.f32.mrf.mxu0
    %v7994 = vadd.f32 %v7981, %v7993
    %v7995 = vpop.f32.mrf.mxu0
    %7996 = vdwg.mxu0
    %7997 = vmatpush.bf16.msra.mxu0 %v4970
    %7998 = vmatpush.bf16.msra.mxu0 %v4962
    %7999 = vmatpush.bf16.msra.mxu0 %v4954
    %8000 = vmatpush.bf16.msra.mxu0 %v4946
    %8001 = vmatpush.bf16.msra.mxu0 %v4938
    %8002 = vmatpush.bf16.msra.mxu0 %v4930
    %8003 = vmatpush.bf16.msra.mxu0 %v4922
    %8004 = vmatpush.bf16.msra.mxu0 %v4914
    %8005 = vmatmul.bf16.gmra.mxu0 %v77
    %v8006 = vpop.f32.mrf.mxu0
    %v8007 = vadd.f32 %v7994, %v8006
    %v8008 = vpop.f32.mrf.mxu0
    %8009 = vdwg.mxu0
    %8010 = vmatpush.bf16.msra.mxu0 %v5034
    %8011 = vmatpush.bf16.msra.mxu0 %v5026
    %8012 = vmatpush.bf16.msra.mxu0 %v5018
    %8013 = vmatpush.bf16.msra.mxu0 %v5010
    %8014 = vmatpush.bf16.msra.mxu0 %v5002
    %8015 = vmatpush.bf16.msra.mxu0 %v4994
    %8016 = vmatpush.bf16.msra.mxu0 %v4986
    %8017 = vmatpush.bf16.msra.mxu0 %v4978
    %8018 = vmatmul.bf16.gmra.mxu0 %v78
    %v8019 = vpop.f32.mrf.mxu0
    %v8020 = vadd.f32 %v8007, %v8019
    %v8021 = vpop.f32.mrf.mxu0
    %8022 = vdwg.mxu0
    %8023 = vmatpush.bf16.msra.mxu0 %v5098
    %8024 = vmatpush.bf16.msra.mxu0 %v5090
    %8025 = vmatpush.bf16.msra.mxu0 %v5082
    %8026 = vmatpush.bf16.msra.mxu0 %v5074
    %8027 = vmatpush.bf16.msra.mxu0 %v5066
    %8028 = vmatpush.bf16.msra.mxu0 %v5058
    %8029 = vmatpush.bf16.msra.mxu0 %v5050
    %8030 = vmatpush.bf16.msra.mxu0 %v5042
    %8031 = vmatmul.bf16.gmra.mxu0 %v79
    %v8032 = vpop.f32.mrf.mxu0
    %v8033 = vadd.f32 %v8020, %v8032
    %v8034 = vpop.f32.mrf.mxu0
    %8035 = vdwg.mxu0
    %8036 = vmatpush.bf16.msra.mxu0 %v5162
    %8037 = vmatpush.bf16.msra.mxu0 %v5154
    %8038 = vmatpush.bf16.msra.mxu0 %v5146
    %8039 = vmatpush.bf16.msra.mxu0 %v5138
    %8040 = vmatpush.bf16.msra.mxu0 %v5130
    %8041 = vmatpush.bf16.msra.mxu0 %v5122
    %8042 = vmatpush.bf16.msra.mxu0 %v5114
    %8043 = vmatpush.bf16.msra.mxu0 %v5106
    %8044 = vmatmul.bf16.gmra.mxu0 %v80
    %v8045 = vpop.f32.mrf.mxu0
    %v8046 = vadd.f32 %v8033, %v8045
    %v8047 = vpop.f32.mrf.mxu0
    %8048 = vdwg.mxu0
    %8049 = vmatpush.bf16.msra.mxu0 %v5226
    %8050 = vmatpush.bf16.msra.mxu0 %v5218
    %8051 = vmatpush.bf16.msra.mxu0 %v5210
    %8052 = vmatpush.bf16.msra.mxu0 %v5202
    %8053 = vmatpush.bf16.msra.mxu0 %v5194
    %8054 = vmatpush.bf16.msra.mxu0 %v5186
    %8055 = vmatpush.bf16.msra.mxu0 %v5178
    %8056 = vmatpush.bf16.msra.mxu0 %v5170
    %8057 = vmatmul.bf16.gmra.mxu0 %v81
    %v8058 = vpop.f32.mrf.mxu0
    %v8059 = vadd.f32 %v8046, %v8058
    %v8060 = vpop.f32.mrf.mxu0
    %8061 = vdwg.mxu0
    %8062 = vmatpush.bf16.msra.mxu0 %v5290
    %8063 = vmatpush.bf16.msra.mxu0 %v5282
    %8064 = vmatpush.bf16.msra.mxu0 %v5274
    %8065 = vmatpush.bf16.msra.mxu0 %v5266
    %8066 = vmatpush.bf16.msra.mxu0 %v5258
    %8067 = vmatpush.bf16.msra.mxu0 %v5250
    %8068 = vmatpush.bf16.msra.mxu0 %v5242
    %8069 = vmatpush.bf16.msra.mxu0 %v5234
    %8070 = vmatmul.bf16.gmra.mxu0 %v82
    %v8071 = vpop.f32.mrf.mxu0
    %v8072 = vadd.f32 %v8059, %v8071
    %v8073 = vpop.f32.mrf.mxu0
    %8074 = vdwg.mxu0
    %8075 = vmatpush.bf16.msra.mxu0 %v5354
    %8076 = vmatpush.bf16.msra.mxu0 %v5346
    %8077 = vmatpush.bf16.msra.mxu0 %v5338
    %8078 = vmatpush.bf16.msra.mxu0 %v5330
    %8079 = vmatpush.bf16.msra.mxu0 %v5322
    %8080 = vmatpush.bf16.msra.mxu0 %v5314
    %8081 = vmatpush.bf16.msra.mxu0 %v5306
    %8082 = vmatpush.bf16.msra.mxu0 %v5298
    %8083 = vmatmul.bf16.gmra.mxu0 %v83
    %v8084 = vpop.f32.mrf.mxu0
    %v8085 = vadd.f32 %v8072, %v8084
    %v8086 = vpop.f32.mrf.mxu0
    %8087 = vdwg.mxu0
    %8088 = vmatpush.bf16.msra.mxu0 %v5418
    %8089 = vmatpush.bf16.msra.mxu0 %v5410
    %8090 = vmatpush.bf16.msra.mxu0 %v5402
    %8091 = vmatpush.bf16.msra.mxu0 %v5394
    %8092 = vmatpush.bf16.msra.mxu0 %v5386
    %8093 = vmatpush.bf16.msra.mxu0 %v5378
    %8094 = vmatpush.bf16.msra.mxu0 %v5370
    %8095 = vmatpush.bf16.msra.mxu0 %v5362
    %8096 = vmatmul.bf16.gmra.mxu0 %v84
    %v8097 = vpop.f32.mrf.mxu0
    %v8098 = vadd.f32 %v8085, %v8097
    %v8099 = vpop.f32.mrf.mxu0
    %8100 = vdwg.mxu0
    %8101 = vmatpush.bf16.msra.mxu0 %v5482
    %8102 = vmatpush.bf16.msra.mxu0 %v5474
    %8103 = vmatpush.bf16.msra.mxu0 %v5466
    %8104 = vmatpush.bf16.msra.mxu0 %v5458
    %8105 = vmatpush.bf16.msra.mxu0 %v5450
    %8106 = vmatpush.bf16.msra.mxu0 %v5442
    %8107 = vmatpush.bf16.msra.mxu0 %v5434
    %8108 = vmatpush.bf16.msra.mxu0 %v5426
    %8109 = vmatmul.bf16.gmra.mxu0 %v85
    %v8110 = vpop.f32.mrf.mxu0
    %v8111 = vadd.f32 %v8098, %v8110
    %v8112 = vpop.f32.mrf.mxu0
    %8113 = vdwg.mxu0
    %8114 = vmatpush.bf16.msra.mxu0 %v5546
    %8115 = vmatpush.bf16.msra.mxu0 %v5538
    %8116 = vmatpush.bf16.msra.mxu0 %v5530
    %8117 = vmatpush.bf16.msra.mxu0 %v5522
    %8118 = vmatpush.bf16.msra.mxu0 %v5514
    %8119 = vmatpush.bf16.msra.mxu0 %v5506
    %8120 = vmatpush.bf16.msra.mxu0 %v5498
    %8121 = vmatpush.bf16.msra.mxu0 %v5490
    %8122 = vmatmul.bf16.gmra.mxu0 %v86
    %v8123 = vpop.f32.mrf.mxu0
    %v8124 = vadd.f32 %v8111, %v8123
    %v8125 = vpop.f32.mrf.mxu0
    %8126 = vdwg.mxu0
    %8127 = vmatpush.bf16.msra.mxu0 %v5610
    %8128 = vmatpush.bf16.msra.mxu0 %v5602
    %8129 = vmatpush.bf16.msra.mxu0 %v5594
    %8130 = vmatpush.bf16.msra.mxu0 %v5586
    %8131 = vmatpush.bf16.msra.mxu0 %v5578
    %8132 = vmatpush.bf16.msra.mxu0 %v5570
    %8133 = vmatpush.bf16.msra.mxu0 %v5562
    %8134 = vmatpush.bf16.msra.mxu0 %v5554
    %8135 = vmatmul.bf16.gmra.mxu0 %v87
    %v8136 = vpop.f32.mrf.mxu0
    %v8137 = vadd.f32 %v8124, %v8136
    %v8138 = vpop.f32.mrf.mxu0
    %8139 = vdwg.mxu0
    %8140 = vmatpush.bf16.msra.mxu0 %v5674
    %8141 = vmatpush.bf16.msra.mxu0 %v5666
    %8142 = vmatpush.bf16.msra.mxu0 %v5658
    %8143 = vmatpush.bf16.msra.mxu0 %v5650
    %8144 = vmatpush.bf16.msra.mxu0 %v5642
    %8145 = vmatpush.bf16.msra.mxu0 %v5634
    %8146 = vmatpush.bf16.msra.mxu0 %v5626
    %8147 = vmatpush.bf16.msra.mxu0 %v5618
    %8148 = vmatmul.bf16.gmra.mxu0 %v88
    %v8149 = vpop.f32.mrf.mxu0
    %v8150 = vadd.f32 %v8137, %v8149
    %v8151 = vpop.f32.mrf.mxu0
    %8152 = vdwg.mxu0
    %8153 = vmatpush.bf16.msra.mxu0 %v5738
    %8154 = vmatpush.bf16.msra.mxu0 %v5730
    %8155 = vmatpush.bf16.msra.mxu0 %v5722
    %8156 = vmatpush.bf16.msra.mxu0 %v5714
    %8157 = vmatpush.bf16.msra.mxu0 %v5706
    %8158 = vmatpush.bf16.msra.mxu0 %v5698
    %8159 = vmatpush.bf16.msra.mxu0 %v5690
    %8160 = vmatpush.bf16.msra.mxu0 %v5682
    %8161 = vmatmul.bf16.gmra.mxu0 %v89
    %v8162 = vpop.f32.mrf.mxu0
    %v8163 = vadd.f32 %v8150, %v8162
    %v8164 = vpop.f32.mrf.mxu0
    %8165 = vdwg.mxu0
    %8166 = vmatpush.bf16.msra.mxu0 %v5802
    %8167 = vmatpush.bf16.msra.mxu0 %v5794
    %8168 = vmatpush.bf16.msra.mxu0 %v5786
    %8169 = vmatpush.bf16.msra.mxu0 %v5778
    %8170 = vmatpush.bf16.msra.mxu0 %v5770
    %8171 = vmatpush.bf16.msra.mxu0 %v5762
    %8172 = vmatpush.bf16.msra.mxu0 %v5754
    %8173 = vmatpush.bf16.msra.mxu0 %v5746
    %8174 = vmatmul.bf16.gmra.mxu0 %v90
    %v8175 = vpop.f32.mrf.mxu0
    %v8176 = vadd.f32 %v8163, %v8175
    %v8177 = vpop.f32.mrf.mxu0
    %8178 = vdwg.mxu0
    %8179 = vmatpush.bf16.msra.mxu0 %v5866
    %8180 = vmatpush.bf16.msra.mxu0 %v5858
    %8181 = vmatpush.bf16.msra.mxu0 %v5850
    %8182 = vmatpush.bf16.msra.mxu0 %v5842
    %8183 = vmatpush.bf16.msra.mxu0 %v5834
    %8184 = vmatpush.bf16.msra.mxu0 %v5826
    %8185 = vmatpush.bf16.msra.mxu0 %v5818
    %8186 = vmatpush.bf16.msra.mxu0 %v5810
    %8187 = vmatmul.bf16.gmra.mxu0 %v91
    %v8188 = vpop.f32.mrf.mxu0
    %v8189 = vadd.f32 %v8176, %v8188
    %v8190 = vpop.f32.mrf.mxu0
    %8191 = vdwg.mxu0
    %8192 = vmatpush.bf16.msra.mxu0 %v4779
    %8193 = vmatpush.bf16.msra.mxu0 %v4771
    %8194 = vmatpush.bf16.msra.mxu0 %v4763
    %8195 = vmatpush.bf16.msra.mxu0 %v4755
    %8196 = vmatpush.bf16.msra.mxu0 %v4747
    %8197 = vmatpush.bf16.msra.mxu0 %v4739
    %8198 = vmatpush.bf16.msra.mxu0 %v4731
    %8199 = vmatpush.bf16.msra.mxu0 %v4723
    %8200 = vmatmul.bf16.gmra.mxu0 %v74
    %v8201 = vpop.f32.mrf.mxu0
    %v8202 = vadd.f32 %v1251, %v8201
    %v8203 = vpop.f32.mrf.mxu0
    %8204 = vdwg.mxu0
    %8205 = vmatpush.bf16.msra.mxu0 %v4843
    %8206 = vmatpush.bf16.msra.mxu0 %v4835
    %8207 = vmatpush.bf16.msra.mxu0 %v4827
    %8208 = vmatpush.bf16.msra.mxu0 %v4819
    %8209 = vmatpush.bf16.msra.mxu0 %v4811
    %8210 = vmatpush.bf16.msra.mxu0 %v4803
    %8211 = vmatpush.bf16.msra.mxu0 %v4795
    %8212 = vmatpush.bf16.msra.mxu0 %v4787
    %8213 = vmatmul.bf16.gmra.mxu0 %v75
    %v8214 = vpop.f32.mrf.mxu0
    %v8215 = vadd.f32 %v8202, %v8214
    %v8216 = vpop.f32.mrf.mxu0
    %8217 = vdwg.mxu0
    %8218 = vmatpush.bf16.msra.mxu0 %v4907
    %8219 = vmatpush.bf16.msra.mxu0 %v4899
    %8220 = vmatpush.bf16.msra.mxu0 %v4891
    %8221 = vmatpush.bf16.msra.mxu0 %v4883
    %8222 = vmatpush.bf16.msra.mxu0 %v4875
    %8223 = vmatpush.bf16.msra.mxu0 %v4867
    %8224 = vmatpush.bf16.msra.mxu0 %v4859
    %8225 = vmatpush.bf16.msra.mxu0 %v4851
    %8226 = vmatmul.bf16.gmra.mxu0 %v76
    %v8227 = vpop.f32.mrf.mxu0
    %v8228 = vadd.f32 %v8215, %v8227
    %v8229 = vpop.f32.mrf.mxu0
    %8230 = vdwg.mxu0
    %8231 = vmatpush.bf16.msra.mxu0 %v4971
    %8232 = vmatpush.bf16.msra.mxu0 %v4963
    %8233 = vmatpush.bf16.msra.mxu0 %v4955
    %8234 = vmatpush.bf16.msra.mxu0 %v4947
    %8235 = vmatpush.bf16.msra.mxu0 %v4939
    %8236 = vmatpush.bf16.msra.mxu0 %v4931
    %8237 = vmatpush.bf16.msra.mxu0 %v4923
    %8238 = vmatpush.bf16.msra.mxu0 %v4915
    %8239 = vmatmul.bf16.gmra.mxu0 %v77
    %v8240 = vpop.f32.mrf.mxu0
    %v8241 = vadd.f32 %v8228, %v8240
    %v8242 = vpop.f32.mrf.mxu0
    %8243 = vdwg.mxu0
    %8244 = vmatpush.bf16.msra.mxu0 %v5035
    %8245 = vmatpush.bf16.msra.mxu0 %v5027
    %8246 = vmatpush.bf16.msra.mxu0 %v5019
    %8247 = vmatpush.bf16.msra.mxu0 %v5011
    %8248 = vmatpush.bf16.msra.mxu0 %v5003
    %8249 = vmatpush.bf16.msra.mxu0 %v4995
    %8250 = vmatpush.bf16.msra.mxu0 %v4987
    %8251 = vmatpush.bf16.msra.mxu0 %v4979
    %8252 = vmatmul.bf16.gmra.mxu0 %v78
    %v8253 = vpop.f32.mrf.mxu0
    %v8254 = vadd.f32 %v8241, %v8253
    %v8255 = vpop.f32.mrf.mxu0
    %8256 = vdwg.mxu0
    %8257 = vmatpush.bf16.msra.mxu0 %v5099
    %8258 = vmatpush.bf16.msra.mxu0 %v5091
    %8259 = vmatpush.bf16.msra.mxu0 %v5083
    %8260 = vmatpush.bf16.msra.mxu0 %v5075
    %8261 = vmatpush.bf16.msra.mxu0 %v5067
    %8262 = vmatpush.bf16.msra.mxu0 %v5059
    %8263 = vmatpush.bf16.msra.mxu0 %v5051
    %8264 = vmatpush.bf16.msra.mxu0 %v5043
    %8265 = vmatmul.bf16.gmra.mxu0 %v79
    %v8266 = vpop.f32.mrf.mxu0
    %v8267 = vadd.f32 %v8254, %v8266
    %v8268 = vpop.f32.mrf.mxu0
    %8269 = vdwg.mxu0
    %8270 = vmatpush.bf16.msra.mxu0 %v5163
    %8271 = vmatpush.bf16.msra.mxu0 %v5155
    %8272 = vmatpush.bf16.msra.mxu0 %v5147
    %8273 = vmatpush.bf16.msra.mxu0 %v5139
    %8274 = vmatpush.bf16.msra.mxu0 %v5131
    %8275 = vmatpush.bf16.msra.mxu0 %v5123
    %8276 = vmatpush.bf16.msra.mxu0 %v5115
    %8277 = vmatpush.bf16.msra.mxu0 %v5107
    %8278 = vmatmul.bf16.gmra.mxu0 %v80
    %v8279 = vpop.f32.mrf.mxu0
    %v8280 = vadd.f32 %v8267, %v8279
    %v8281 = vpop.f32.mrf.mxu0
    %8282 = vdwg.mxu0
    %8283 = vmatpush.bf16.msra.mxu0 %v5227
    %8284 = vmatpush.bf16.msra.mxu0 %v5219
    %8285 = vmatpush.bf16.msra.mxu0 %v5211
    %8286 = vmatpush.bf16.msra.mxu0 %v5203
    %8287 = vmatpush.bf16.msra.mxu0 %v5195
    %8288 = vmatpush.bf16.msra.mxu0 %v5187
    %8289 = vmatpush.bf16.msra.mxu0 %v5179
    %8290 = vmatpush.bf16.msra.mxu0 %v5171
    %8291 = vmatmul.bf16.gmra.mxu0 %v81
    %v8292 = vpop.f32.mrf.mxu0
    %v8293 = vadd.f32 %v8280, %v8292
    %v8294 = vpop.f32.mrf.mxu0
    %8295 = vdwg.mxu0
    %8296 = vmatpush.bf16.msra.mxu0 %v5291
    %8297 = vmatpush.bf16.msra.mxu0 %v5283
    %8298 = vmatpush.bf16.msra.mxu0 %v5275
    %8299 = vmatpush.bf16.msra.mxu0 %v5267
    %8300 = vmatpush.bf16.msra.mxu0 %v5259
    %8301 = vmatpush.bf16.msra.mxu0 %v5251
    %8302 = vmatpush.bf16.msra.mxu0 %v5243
    %8303 = vmatpush.bf16.msra.mxu0 %v5235
    %8304 = vmatmul.bf16.gmra.mxu0 %v82
    %v8305 = vpop.f32.mrf.mxu0
    %v8306 = vadd.f32 %v8293, %v8305
    %v8307 = vpop.f32.mrf.mxu0
    %8308 = vdwg.mxu0
    %8309 = vmatpush.bf16.msra.mxu0 %v5355
    %8310 = vmatpush.bf16.msra.mxu0 %v5347
    %8311 = vmatpush.bf16.msra.mxu0 %v5339
    %8312 = vmatpush.bf16.msra.mxu0 %v5331
    %8313 = vmatpush.bf16.msra.mxu0 %v5323
    %8314 = vmatpush.bf16.msra.mxu0 %v5315
    %8315 = vmatpush.bf16.msra.mxu0 %v5307
    %8316 = vmatpush.bf16.msra.mxu0 %v5299
    %8317 = vmatmul.bf16.gmra.mxu0 %v83
    %v8318 = vpop.f32.mrf.mxu0
    %v8319 = vadd.f32 %v8306, %v8318
    %v8320 = vpop.f32.mrf.mxu0
    %8321 = vdwg.mxu0
    %8322 = vmatpush.bf16.msra.mxu0 %v5419
    %8323 = vmatpush.bf16.msra.mxu0 %v5411
    %8324 = vmatpush.bf16.msra.mxu0 %v5403
    %8325 = vmatpush.bf16.msra.mxu0 %v5395
    %8326 = vmatpush.bf16.msra.mxu0 %v5387
    %8327 = vmatpush.bf16.msra.mxu0 %v5379
    %8328 = vmatpush.bf16.msra.mxu0 %v5371
    %8329 = vmatpush.bf16.msra.mxu0 %v5363
    %8330 = vmatmul.bf16.gmra.mxu0 %v84
    %v8331 = vpop.f32.mrf.mxu0
    %v8332 = vadd.f32 %v8319, %v8331
    %v8333 = vpop.f32.mrf.mxu0
    %8334 = vdwg.mxu0
    %8335 = vmatpush.bf16.msra.mxu0 %v5483
    %8336 = vmatpush.bf16.msra.mxu0 %v5475
    %8337 = vmatpush.bf16.msra.mxu0 %v5467
    %8338 = vmatpush.bf16.msra.mxu0 %v5459
    %8339 = vmatpush.bf16.msra.mxu0 %v5451
    %8340 = vmatpush.bf16.msra.mxu0 %v5443
    %8341 = vmatpush.bf16.msra.mxu0 %v5435
    %8342 = vmatpush.bf16.msra.mxu0 %v5427
    %8343 = vmatmul.bf16.gmra.mxu0 %v85
    %v8344 = vpop.f32.mrf.mxu0
    %v8345 = vadd.f32 %v8332, %v8344
    %v8346 = vpop.f32.mrf.mxu0
    %8347 = vdwg.mxu0
    %8348 = vmatpush.bf16.msra.mxu0 %v5547
    %8349 = vmatpush.bf16.msra.mxu0 %v5539
    %8350 = vmatpush.bf16.msra.mxu0 %v5531
    %8351 = vmatpush.bf16.msra.mxu0 %v5523
    %8352 = vmatpush.bf16.msra.mxu0 %v5515
    %8353 = vmatpush.bf16.msra.mxu0 %v5507
    %8354 = vmatpush.bf16.msra.mxu0 %v5499
    %8355 = vmatpush.bf16.msra.mxu0 %v5491
    %8356 = vmatmul.bf16.gmra.mxu0 %v86
    %v8357 = vpop.f32.mrf.mxu0
    %v8358 = vadd.f32 %v8345, %v8357
    %v8359 = vpop.f32.mrf.mxu0
    %8360 = vdwg.mxu0
    %8361 = vmatpush.bf16.msra.mxu0 %v5611
    %8362 = vmatpush.bf16.msra.mxu0 %v5603
    %8363 = vmatpush.bf16.msra.mxu0 %v5595
    %8364 = vmatpush.bf16.msra.mxu0 %v5587
    %8365 = vmatpush.bf16.msra.mxu0 %v5579
    %8366 = vmatpush.bf16.msra.mxu0 %v5571
    %8367 = vmatpush.bf16.msra.mxu0 %v5563
    %8368 = vmatpush.bf16.msra.mxu0 %v5555
    %8369 = vmatmul.bf16.gmra.mxu0 %v87
    %v8370 = vpop.f32.mrf.mxu0
    %v8371 = vadd.f32 %v8358, %v8370
    %v8372 = vpop.f32.mrf.mxu0
    %8373 = vdwg.mxu0
    %8374 = vmatpush.bf16.msra.mxu0 %v5675
    %8375 = vmatpush.bf16.msra.mxu0 %v5667
    %8376 = vmatpush.bf16.msra.mxu0 %v5659
    %8377 = vmatpush.bf16.msra.mxu0 %v5651
    %8378 = vmatpush.bf16.msra.mxu0 %v5643
    %8379 = vmatpush.bf16.msra.mxu0 %v5635
    %8380 = vmatpush.bf16.msra.mxu0 %v5627
    %8381 = vmatpush.bf16.msra.mxu0 %v5619
    %8382 = vmatmul.bf16.gmra.mxu0 %v88
    %v8383 = vpop.f32.mrf.mxu0
    %v8384 = vadd.f32 %v8371, %v8383
    %v8385 = vpop.f32.mrf.mxu0
    %8386 = vdwg.mxu0
    %8387 = vmatpush.bf16.msra.mxu0 %v5739
    %8388 = vmatpush.bf16.msra.mxu0 %v5731
    %8389 = vmatpush.bf16.msra.mxu0 %v5723
    %8390 = vmatpush.bf16.msra.mxu0 %v5715
    %8391 = vmatpush.bf16.msra.mxu0 %v5707
    %8392 = vmatpush.bf16.msra.mxu0 %v5699
    %8393 = vmatpush.bf16.msra.mxu0 %v5691
    %8394 = vmatpush.bf16.msra.mxu0 %v5683
    %8395 = vmatmul.bf16.gmra.mxu0 %v89
    %v8396 = vpop.f32.mrf.mxu0
    %v8397 = vadd.f32 %v8384, %v8396
    %v8398 = vpop.f32.mrf.mxu0
    %8399 = vdwg.mxu0
    %8400 = vmatpush.bf16.msra.mxu0 %v5803
    %8401 = vmatpush.bf16.msra.mxu0 %v5795
    %8402 = vmatpush.bf16.msra.mxu0 %v5787
    %8403 = vmatpush.bf16.msra.mxu0 %v5779
    %8404 = vmatpush.bf16.msra.mxu0 %v5771
    %8405 = vmatpush.bf16.msra.mxu0 %v5763
    %8406 = vmatpush.bf16.msra.mxu0 %v5755
    %8407 = vmatpush.bf16.msra.mxu0 %v5747
    %8408 = vmatmul.bf16.gmra.mxu0 %v90
    %v8409 = vpop.f32.mrf.mxu0
    %v8410 = vadd.f32 %v8397, %v8409
    %v8411 = vpop.f32.mrf.mxu0
    %8412 = vdwg.mxu0
    %8413 = vmatpush.bf16.msra.mxu0 %v5867
    %8414 = vmatpush.bf16.msra.mxu0 %v5859
    %8415 = vmatpush.bf16.msra.mxu0 %v5851
    %8416 = vmatpush.bf16.msra.mxu0 %v5843
    %8417 = vmatpush.bf16.msra.mxu0 %v5835
    %8418 = vmatpush.bf16.msra.mxu0 %v5827
    %8419 = vmatpush.bf16.msra.mxu0 %v5819
    %8420 = vmatpush.bf16.msra.mxu0 %v5811
    %8421 = vmatmul.bf16.gmra.mxu0 %v91
    %v8422 = vpop.f32.mrf.mxu0
    %v8423 = vadd.f32 %v8410, %v8422
    %v8424 = vpop.f32.mrf.mxu0
    %8425 = vdwg.mxu0
    %8426 = vmatpush.bf16.msra.mxu0 %v4780
    %8427 = vmatpush.bf16.msra.mxu0 %v4772
    %8428 = vmatpush.bf16.msra.mxu0 %v4764
    %8429 = vmatpush.bf16.msra.mxu0 %v4756
    %8430 = vmatpush.bf16.msra.mxu0 %v4748
    %8431 = vmatpush.bf16.msra.mxu0 %v4740
    %8432 = vmatpush.bf16.msra.mxu0 %v4732
    %8433 = vmatpush.bf16.msra.mxu0 %v4724
    %8434 = vmatmul.bf16.gmra.mxu0 %v74
    %v8435 = vpop.f32.mrf.mxu0
    %v8436 = vadd.f32 %v1252, %v8435
    %v8437 = vpop.f32.mrf.mxu0
    %8438 = vdwg.mxu0
    %8439 = vmatpush.bf16.msra.mxu0 %v4844
    %8440 = vmatpush.bf16.msra.mxu0 %v4836
    %8441 = vmatpush.bf16.msra.mxu0 %v4828
    %8442 = vmatpush.bf16.msra.mxu0 %v4820
    %8443 = vmatpush.bf16.msra.mxu0 %v4812
    %8444 = vmatpush.bf16.msra.mxu0 %v4804
    %8445 = vmatpush.bf16.msra.mxu0 %v4796
    %8446 = vmatpush.bf16.msra.mxu0 %v4788
    %8447 = vmatmul.bf16.gmra.mxu0 %v75
    %v8448 = vpop.f32.mrf.mxu0
    %v8449 = vadd.f32 %v8436, %v8448
    %v8450 = vpop.f32.mrf.mxu0
    %8451 = vdwg.mxu0
    %8452 = vmatpush.bf16.msra.mxu0 %v4908
    %8453 = vmatpush.bf16.msra.mxu0 %v4900
    %8454 = vmatpush.bf16.msra.mxu0 %v4892
    %8455 = vmatpush.bf16.msra.mxu0 %v4884
    %8456 = vmatpush.bf16.msra.mxu0 %v4876
    %8457 = vmatpush.bf16.msra.mxu0 %v4868
    %8458 = vmatpush.bf16.msra.mxu0 %v4860
    %8459 = vmatpush.bf16.msra.mxu0 %v4852
    %8460 = vmatmul.bf16.gmra.mxu0 %v76
    %v8461 = vpop.f32.mrf.mxu0
    %v8462 = vadd.f32 %v8449, %v8461
    %v8463 = vpop.f32.mrf.mxu0
    %8464 = vdwg.mxu0
    %8465 = vmatpush.bf16.msra.mxu0 %v4972
    %8466 = vmatpush.bf16.msra.mxu0 %v4964
    %8467 = vmatpush.bf16.msra.mxu0 %v4956
    %8468 = vmatpush.bf16.msra.mxu0 %v4948
    %8469 = vmatpush.bf16.msra.mxu0 %v4940
    %8470 = vmatpush.bf16.msra.mxu0 %v4932
    %8471 = vmatpush.bf16.msra.mxu0 %v4924
    %8472 = vmatpush.bf16.msra.mxu0 %v4916
    %8473 = vmatmul.bf16.gmra.mxu0 %v77
    %v8474 = vpop.f32.mrf.mxu0
    %v8475 = vadd.f32 %v8462, %v8474
    %v8476 = vpop.f32.mrf.mxu0
    %8477 = vdwg.mxu0
    %8478 = vmatpush.bf16.msra.mxu0 %v5036
    %8479 = vmatpush.bf16.msra.mxu0 %v5028
    %8480 = vmatpush.bf16.msra.mxu0 %v5020
    %8481 = vmatpush.bf16.msra.mxu0 %v5012
    %8482 = vmatpush.bf16.msra.mxu0 %v5004
    %8483 = vmatpush.bf16.msra.mxu0 %v4996
    %8484 = vmatpush.bf16.msra.mxu0 %v4988
    %8485 = vmatpush.bf16.msra.mxu0 %v4980
    %8486 = vmatmul.bf16.gmra.mxu0 %v78
    %v8487 = vpop.f32.mrf.mxu0
    %v8488 = vadd.f32 %v8475, %v8487
    %v8489 = vpop.f32.mrf.mxu0
    %8490 = vdwg.mxu0
    %8491 = vmatpush.bf16.msra.mxu0 %v5100
    %8492 = vmatpush.bf16.msra.mxu0 %v5092
    %8493 = vmatpush.bf16.msra.mxu0 %v5084
    %8494 = vmatpush.bf16.msra.mxu0 %v5076
    %8495 = vmatpush.bf16.msra.mxu0 %v5068
    %8496 = vmatpush.bf16.msra.mxu0 %v5060
    %8497 = vmatpush.bf16.msra.mxu0 %v5052
    %8498 = vmatpush.bf16.msra.mxu0 %v5044
    %8499 = vmatmul.bf16.gmra.mxu0 %v79
    %v8500 = vpop.f32.mrf.mxu0
    %v8501 = vadd.f32 %v8488, %v8500
    %v8502 = vpop.f32.mrf.mxu0
    %8503 = vdwg.mxu0
    %8504 = vmatpush.bf16.msra.mxu0 %v5164
    %8505 = vmatpush.bf16.msra.mxu0 %v5156
    %8506 = vmatpush.bf16.msra.mxu0 %v5148
    %8507 = vmatpush.bf16.msra.mxu0 %v5140
    %8508 = vmatpush.bf16.msra.mxu0 %v5132
    %8509 = vmatpush.bf16.msra.mxu0 %v5124
    %8510 = vmatpush.bf16.msra.mxu0 %v5116
    %8511 = vmatpush.bf16.msra.mxu0 %v5108
    %8512 = vmatmul.bf16.gmra.mxu0 %v80
    %v8513 = vpop.f32.mrf.mxu0
    %v8514 = vadd.f32 %v8501, %v8513
    %v8515 = vpop.f32.mrf.mxu0
    %8516 = vdwg.mxu0
    %8517 = vmatpush.bf16.msra.mxu0 %v5228
    %8518 = vmatpush.bf16.msra.mxu0 %v5220
    %8519 = vmatpush.bf16.msra.mxu0 %v5212
    %8520 = vmatpush.bf16.msra.mxu0 %v5204
    %8521 = vmatpush.bf16.msra.mxu0 %v5196
    %8522 = vmatpush.bf16.msra.mxu0 %v5188
    %8523 = vmatpush.bf16.msra.mxu0 %v5180
    %8524 = vmatpush.bf16.msra.mxu0 %v5172
    %8525 = vmatmul.bf16.gmra.mxu0 %v81
    %v8526 = vpop.f32.mrf.mxu0
    %v8527 = vadd.f32 %v8514, %v8526
    %v8528 = vpop.f32.mrf.mxu0
    %8529 = vdwg.mxu0
    %8530 = vmatpush.bf16.msra.mxu0 %v5292
    %8531 = vmatpush.bf16.msra.mxu0 %v5284
    %8532 = vmatpush.bf16.msra.mxu0 %v5276
    %8533 = vmatpush.bf16.msra.mxu0 %v5268
    %8534 = vmatpush.bf16.msra.mxu0 %v5260
    %8535 = vmatpush.bf16.msra.mxu0 %v5252
    %8536 = vmatpush.bf16.msra.mxu0 %v5244
    %8537 = vmatpush.bf16.msra.mxu0 %v5236
    %8538 = vmatmul.bf16.gmra.mxu0 %v82
    %v8539 = vpop.f32.mrf.mxu0
    %v8540 = vadd.f32 %v8527, %v8539
    %v8541 = vpop.f32.mrf.mxu0
    %8542 = vdwg.mxu0
    %8543 = vmatpush.bf16.msra.mxu0 %v5356
    %8544 = vmatpush.bf16.msra.mxu0 %v5348
    %8545 = vmatpush.bf16.msra.mxu0 %v5340
    %8546 = vmatpush.bf16.msra.mxu0 %v5332
    %8547 = vmatpush.bf16.msra.mxu0 %v5324
    %8548 = vmatpush.bf16.msra.mxu0 %v5316
    %8549 = vmatpush.bf16.msra.mxu0 %v5308
    %8550 = vmatpush.bf16.msra.mxu0 %v5300
    %8551 = vmatmul.bf16.gmra.mxu0 %v83
    %v8552 = vpop.f32.mrf.mxu0
    %v8553 = vadd.f32 %v8540, %v8552
    %v8554 = vpop.f32.mrf.mxu0
    %8555 = vdwg.mxu0
    %8556 = vmatpush.bf16.msra.mxu0 %v5420
    %8557 = vmatpush.bf16.msra.mxu0 %v5412
    %8558 = vmatpush.bf16.msra.mxu0 %v5404
    %8559 = vmatpush.bf16.msra.mxu0 %v5396
    %8560 = vmatpush.bf16.msra.mxu0 %v5388
    %8561 = vmatpush.bf16.msra.mxu0 %v5380
    %8562 = vmatpush.bf16.msra.mxu0 %v5372
    %8563 = vmatpush.bf16.msra.mxu0 %v5364
    %8564 = vmatmul.bf16.gmra.mxu0 %v84
    %v8565 = vpop.f32.mrf.mxu0
    %v8566 = vadd.f32 %v8553, %v8565
    %v8567 = vpop.f32.mrf.mxu0
    %8568 = vdwg.mxu0
    %8569 = vmatpush.bf16.msra.mxu0 %v5484
    %8570 = vmatpush.bf16.msra.mxu0 %v5476
    %8571 = vmatpush.bf16.msra.mxu0 %v5468
    %8572 = vmatpush.bf16.msra.mxu0 %v5460
    %8573 = vmatpush.bf16.msra.mxu0 %v5452
    %8574 = vmatpush.bf16.msra.mxu0 %v5444
    %8575 = vmatpush.bf16.msra.mxu0 %v5436
    %8576 = vmatpush.bf16.msra.mxu0 %v5428
    %8577 = vmatmul.bf16.gmra.mxu0 %v85
    %v8578 = vpop.f32.mrf.mxu0
    %v8579 = vadd.f32 %v8566, %v8578
    %v8580 = vpop.f32.mrf.mxu0
    %8581 = vdwg.mxu0
    %8582 = vmatpush.bf16.msra.mxu0 %v5548
    %8583 = vmatpush.bf16.msra.mxu0 %v5540
    %8584 = vmatpush.bf16.msra.mxu0 %v5532
    %8585 = vmatpush.bf16.msra.mxu0 %v5524
    %8586 = vmatpush.bf16.msra.mxu0 %v5516
    %8587 = vmatpush.bf16.msra.mxu0 %v5508
    %8588 = vmatpush.bf16.msra.mxu0 %v5500
    %8589 = vmatpush.bf16.msra.mxu0 %v5492
    %8590 = vmatmul.bf16.gmra.mxu0 %v86
    %v8591 = vpop.f32.mrf.mxu0
    %v8592 = vadd.f32 %v8579, %v8591
    %v8593 = vpop.f32.mrf.mxu0
    %8594 = vdwg.mxu0
    %8595 = vmatpush.bf16.msra.mxu0 %v5612
    %8596 = vmatpush.bf16.msra.mxu0 %v5604
    %8597 = vmatpush.bf16.msra.mxu0 %v5596
    %8598 = vmatpush.bf16.msra.mxu0 %v5588
    %8599 = vmatpush.bf16.msra.mxu0 %v5580
    %8600 = vmatpush.bf16.msra.mxu0 %v5572
    %8601 = vmatpush.bf16.msra.mxu0 %v5564
    %8602 = vmatpush.bf16.msra.mxu0 %v5556
    %8603 = vmatmul.bf16.gmra.mxu0 %v87
    %v8604 = vpop.f32.mrf.mxu0
    %v8605 = vadd.f32 %v8592, %v8604
    %v8606 = vpop.f32.mrf.mxu0
    %8607 = vdwg.mxu0
    %8608 = vmatpush.bf16.msra.mxu0 %v5676
    %8609 = vmatpush.bf16.msra.mxu0 %v5668
    %8610 = vmatpush.bf16.msra.mxu0 %v5660
    %8611 = vmatpush.bf16.msra.mxu0 %v5652
    %8612 = vmatpush.bf16.msra.mxu0 %v5644
    %8613 = vmatpush.bf16.msra.mxu0 %v5636
    %8614 = vmatpush.bf16.msra.mxu0 %v5628
    %8615 = vmatpush.bf16.msra.mxu0 %v5620
    %8616 = vmatmul.bf16.gmra.mxu0 %v88
    %v8617 = vpop.f32.mrf.mxu0
    %v8618 = vadd.f32 %v8605, %v8617
    %v8619 = vpop.f32.mrf.mxu0
    %8620 = vdwg.mxu0
    %8621 = vmatpush.bf16.msra.mxu0 %v5740
    %8622 = vmatpush.bf16.msra.mxu0 %v5732
    %8623 = vmatpush.bf16.msra.mxu0 %v5724
    %8624 = vmatpush.bf16.msra.mxu0 %v5716
    %8625 = vmatpush.bf16.msra.mxu0 %v5708
    %8626 = vmatpush.bf16.msra.mxu0 %v5700
    %8627 = vmatpush.bf16.msra.mxu0 %v5692
    %8628 = vmatpush.bf16.msra.mxu0 %v5684
    %8629 = vmatmul.bf16.gmra.mxu0 %v89
    %v8630 = vpop.f32.mrf.mxu0
    %v8631 = vadd.f32 %v8618, %v8630
    %v8632 = vpop.f32.mrf.mxu0
    %8633 = vdwg.mxu0
    %8634 = vmatpush.bf16.msra.mxu0 %v5804
    %8635 = vmatpush.bf16.msra.mxu0 %v5796
    %8636 = vmatpush.bf16.msra.mxu0 %v5788
    %8637 = vmatpush.bf16.msra.mxu0 %v5780
    %8638 = vmatpush.bf16.msra.mxu0 %v5772
    %8639 = vmatpush.bf16.msra.mxu0 %v5764
    %8640 = vmatpush.bf16.msra.mxu0 %v5756
    %8641 = vmatpush.bf16.msra.mxu0 %v5748
    %8642 = vmatmul.bf16.gmra.mxu0 %v90
    %v8643 = vpop.f32.mrf.mxu0
    %v8644 = vadd.f32 %v8631, %v8643
    %v8645 = vpop.f32.mrf.mxu0
    %8646 = vdwg.mxu0
    %8647 = vmatpush.bf16.msra.mxu0 %v5868
    %8648 = vmatpush.bf16.msra.mxu0 %v5860
    %8649 = vmatpush.bf16.msra.mxu0 %v5852
    %8650 = vmatpush.bf16.msra.mxu0 %v5844
    %8651 = vmatpush.bf16.msra.mxu0 %v5836
    %8652 = vmatpush.bf16.msra.mxu0 %v5828
    %8653 = vmatpush.bf16.msra.mxu0 %v5820
    %8654 = vmatpush.bf16.msra.mxu0 %v5812
    %8655 = vmatmul.bf16.gmra.mxu0 %v91
    %v8656 = vpop.f32.mrf.mxu0
    %v8657 = vadd.f32 %v8644, %v8656
    %v8658 = vpop.f32.mrf.mxu0
    %8659 = vdwg.mxu0
    %8660 = vmatpush.bf16.msra.mxu0 %v4781
    %8661 = vmatpush.bf16.msra.mxu0 %v4773
    %8662 = vmatpush.bf16.msra.mxu0 %v4765
    %8663 = vmatpush.bf16.msra.mxu0 %v4757
    %8664 = vmatpush.bf16.msra.mxu0 %v4749
    %8665 = vmatpush.bf16.msra.mxu0 %v4741
    %8666 = vmatpush.bf16.msra.mxu0 %v4733
    %8667 = vmatpush.bf16.msra.mxu0 %v4725
    %8668 = vmatmul.bf16.gmra.mxu0 %v74
    %v8669 = vpop.f32.mrf.mxu0
    %v8670 = vadd.f32 %v1253, %v8669
    %v8671 = vpop.f32.mrf.mxu0
    %8672 = vdwg.mxu0
    %8673 = vmatpush.bf16.msra.mxu0 %v4845
    %8674 = vmatpush.bf16.msra.mxu0 %v4837
    %8675 = vmatpush.bf16.msra.mxu0 %v4829
    %8676 = vmatpush.bf16.msra.mxu0 %v4821
    %8677 = vmatpush.bf16.msra.mxu0 %v4813
    %8678 = vmatpush.bf16.msra.mxu0 %v4805
    %8679 = vmatpush.bf16.msra.mxu0 %v4797
    %8680 = vmatpush.bf16.msra.mxu0 %v4789
    %8681 = vmatmul.bf16.gmra.mxu0 %v75
    %v8682 = vpop.f32.mrf.mxu0
    %v8683 = vadd.f32 %v8670, %v8682
    %v8684 = vpop.f32.mrf.mxu0
    %8685 = vdwg.mxu0
    %8686 = vmatpush.bf16.msra.mxu0 %v4909
    %8687 = vmatpush.bf16.msra.mxu0 %v4901
    %8688 = vmatpush.bf16.msra.mxu0 %v4893
    %8689 = vmatpush.bf16.msra.mxu0 %v4885
    %8690 = vmatpush.bf16.msra.mxu0 %v4877
    %8691 = vmatpush.bf16.msra.mxu0 %v4869
    %8692 = vmatpush.bf16.msra.mxu0 %v4861
    %8693 = vmatpush.bf16.msra.mxu0 %v4853
    %8694 = vmatmul.bf16.gmra.mxu0 %v76
    %v8695 = vpop.f32.mrf.mxu0
    %v8696 = vadd.f32 %v8683, %v8695
    %v8697 = vpop.f32.mrf.mxu0
    %8698 = vdwg.mxu0
    %8699 = vmatpush.bf16.msra.mxu0 %v4973
    %8700 = vmatpush.bf16.msra.mxu0 %v4965
    %8701 = vmatpush.bf16.msra.mxu0 %v4957
    %8702 = vmatpush.bf16.msra.mxu0 %v4949
    %8703 = vmatpush.bf16.msra.mxu0 %v4941
    %8704 = vmatpush.bf16.msra.mxu0 %v4933
    %8705 = vmatpush.bf16.msra.mxu0 %v4925
    %8706 = vmatpush.bf16.msra.mxu0 %v4917
    %8707 = vmatmul.bf16.gmra.mxu0 %v77
    %v8708 = vpop.f32.mrf.mxu0
    %v8709 = vadd.f32 %v8696, %v8708
    %v8710 = vpop.f32.mrf.mxu0
    %8711 = vdwg.mxu0
    %8712 = vmatpush.bf16.msra.mxu0 %v5037
    %8713 = vmatpush.bf16.msra.mxu0 %v5029
    %8714 = vmatpush.bf16.msra.mxu0 %v5021
    %8715 = vmatpush.bf16.msra.mxu0 %v5013
    %8716 = vmatpush.bf16.msra.mxu0 %v5005
    %8717 = vmatpush.bf16.msra.mxu0 %v4997
    %8718 = vmatpush.bf16.msra.mxu0 %v4989
    %8719 = vmatpush.bf16.msra.mxu0 %v4981
    %8720 = vmatmul.bf16.gmra.mxu0 %v78
    %v8721 = vpop.f32.mrf.mxu0
    %v8722 = vadd.f32 %v8709, %v8721
    %v8723 = vpop.f32.mrf.mxu0
    %8724 = vdwg.mxu0
    %8725 = vmatpush.bf16.msra.mxu0 %v5101
    %8726 = vmatpush.bf16.msra.mxu0 %v5093
    %8727 = vmatpush.bf16.msra.mxu0 %v5085
    %8728 = vmatpush.bf16.msra.mxu0 %v5077
    %8729 = vmatpush.bf16.msra.mxu0 %v5069
    %8730 = vmatpush.bf16.msra.mxu0 %v5061
    %8731 = vmatpush.bf16.msra.mxu0 %v5053
    %8732 = vmatpush.bf16.msra.mxu0 %v5045
    %8733 = vmatmul.bf16.gmra.mxu0 %v79
    %v8734 = vpop.f32.mrf.mxu0
    %v8735 = vadd.f32 %v8722, %v8734
    %v8736 = vpop.f32.mrf.mxu0
    %8737 = vdwg.mxu0
    %8738 = vmatpush.bf16.msra.mxu0 %v5165
    %8739 = vmatpush.bf16.msra.mxu0 %v5157
    %8740 = vmatpush.bf16.msra.mxu0 %v5149
    %8741 = vmatpush.bf16.msra.mxu0 %v5141
    %8742 = vmatpush.bf16.msra.mxu0 %v5133
    %8743 = vmatpush.bf16.msra.mxu0 %v5125
    %8744 = vmatpush.bf16.msra.mxu0 %v5117
    %8745 = vmatpush.bf16.msra.mxu0 %v5109
    %8746 = vmatmul.bf16.gmra.mxu0 %v80
    %v8747 = vpop.f32.mrf.mxu0
    %v8748 = vadd.f32 %v8735, %v8747
    %v8749 = vpop.f32.mrf.mxu0
    %8750 = vdwg.mxu0
    %8751 = vmatpush.bf16.msra.mxu0 %v5229
    %8752 = vmatpush.bf16.msra.mxu0 %v5221
    %8753 = vmatpush.bf16.msra.mxu0 %v5213
    %8754 = vmatpush.bf16.msra.mxu0 %v5205
    %8755 = vmatpush.bf16.msra.mxu0 %v5197
    %8756 = vmatpush.bf16.msra.mxu0 %v5189
    %8757 = vmatpush.bf16.msra.mxu0 %v5181
    %8758 = vmatpush.bf16.msra.mxu0 %v5173
    %8759 = vmatmul.bf16.gmra.mxu0 %v81
    %v8760 = vpop.f32.mrf.mxu0
    %v8761 = vadd.f32 %v8748, %v8760
    %v8762 = vpop.f32.mrf.mxu0
    %8763 = vdwg.mxu0
    %8764 = vmatpush.bf16.msra.mxu0 %v5293
    %8765 = vmatpush.bf16.msra.mxu0 %v5285
    %8766 = vmatpush.bf16.msra.mxu0 %v5277
    %8767 = vmatpush.bf16.msra.mxu0 %v5269
    %8768 = vmatpush.bf16.msra.mxu0 %v5261
    %8769 = vmatpush.bf16.msra.mxu0 %v5253
    %8770 = vmatpush.bf16.msra.mxu0 %v5245
    %8771 = vmatpush.bf16.msra.mxu0 %v5237
    %8772 = vmatmul.bf16.gmra.mxu0 %v82
    %v8773 = vpop.f32.mrf.mxu0
    %v8774 = vadd.f32 %v8761, %v8773
    %v8775 = vpop.f32.mrf.mxu0
    %8776 = vdwg.mxu0
    %8777 = vmatpush.bf16.msra.mxu0 %v5357
    %8778 = vmatpush.bf16.msra.mxu0 %v5349
    %8779 = vmatpush.bf16.msra.mxu0 %v5341
    %8780 = vmatpush.bf16.msra.mxu0 %v5333
    %8781 = vmatpush.bf16.msra.mxu0 %v5325
    %8782 = vmatpush.bf16.msra.mxu0 %v5317
    %8783 = vmatpush.bf16.msra.mxu0 %v5309
    %8784 = vmatpush.bf16.msra.mxu0 %v5301
    %8785 = vmatmul.bf16.gmra.mxu0 %v83
    %v8786 = vpop.f32.mrf.mxu0
    %v8787 = vadd.f32 %v8774, %v8786
    %v8788 = vpop.f32.mrf.mxu0
    %8789 = vdwg.mxu0
    %8790 = vmatpush.bf16.msra.mxu0 %v5421
    %8791 = vmatpush.bf16.msra.mxu0 %v5413
    %8792 = vmatpush.bf16.msra.mxu0 %v5405
    %8793 = vmatpush.bf16.msra.mxu0 %v5397
    %8794 = vmatpush.bf16.msra.mxu0 %v5389
    %8795 = vmatpush.bf16.msra.mxu0 %v5381
    %8796 = vmatpush.bf16.msra.mxu0 %v5373
    %8797 = vmatpush.bf16.msra.mxu0 %v5365
    %8798 = vmatmul.bf16.gmra.mxu0 %v84
    %v8799 = vpop.f32.mrf.mxu0
    %v8800 = vadd.f32 %v8787, %v8799
    %v8801 = vpop.f32.mrf.mxu0
    %8802 = vdwg.mxu0
    %8803 = vmatpush.bf16.msra.mxu0 %v5485
    %8804 = vmatpush.bf16.msra.mxu0 %v5477
    %8805 = vmatpush.bf16.msra.mxu0 %v5469
    %8806 = vmatpush.bf16.msra.mxu0 %v5461
    %8807 = vmatpush.bf16.msra.mxu0 %v5453
    %8808 = vmatpush.bf16.msra.mxu0 %v5445
    %8809 = vmatpush.bf16.msra.mxu0 %v5437
    %8810 = vmatpush.bf16.msra.mxu0 %v5429
    %8811 = vmatmul.bf16.gmra.mxu0 %v85
    %v8812 = vpop.f32.mrf.mxu0
    %v8813 = vadd.f32 %v8800, %v8812
    %v8814 = vpop.f32.mrf.mxu0
    %8815 = vdwg.mxu0
    %8816 = vmatpush.bf16.msra.mxu0 %v5549
    %8817 = vmatpush.bf16.msra.mxu0 %v5541
    %8818 = vmatpush.bf16.msra.mxu0 %v5533
    %8819 = vmatpush.bf16.msra.mxu0 %v5525
    %8820 = vmatpush.bf16.msra.mxu0 %v5517
    %8821 = vmatpush.bf16.msra.mxu0 %v5509
    %8822 = vmatpush.bf16.msra.mxu0 %v5501
    %8823 = vmatpush.bf16.msra.mxu0 %v5493
    %8824 = vmatmul.bf16.gmra.mxu0 %v86
    %v8825 = vpop.f32.mrf.mxu0
    %v8826 = vadd.f32 %v8813, %v8825
    %v8827 = vpop.f32.mrf.mxu0
    %8828 = vdwg.mxu0
    %8829 = vmatpush.bf16.msra.mxu0 %v5613
    %8830 = vmatpush.bf16.msra.mxu0 %v5605
    %8831 = vmatpush.bf16.msra.mxu0 %v5597
    %8832 = vmatpush.bf16.msra.mxu0 %v5589
    %8833 = vmatpush.bf16.msra.mxu0 %v5581
    %8834 = vmatpush.bf16.msra.mxu0 %v5573
    %8835 = vmatpush.bf16.msra.mxu0 %v5565
    %8836 = vmatpush.bf16.msra.mxu0 %v5557
    %8837 = vmatmul.bf16.gmra.mxu0 %v87
    %v8838 = vpop.f32.mrf.mxu0
    %v8839 = vadd.f32 %v8826, %v8838
    %v8840 = vpop.f32.mrf.mxu0
    %8841 = vdwg.mxu0
    %8842 = vmatpush.bf16.msra.mxu0 %v5677
    %8843 = vmatpush.bf16.msra.mxu0 %v5669
    %8844 = vmatpush.bf16.msra.mxu0 %v5661
    %8845 = vmatpush.bf16.msra.mxu0 %v5653
    %8846 = vmatpush.bf16.msra.mxu0 %v5645
    %8847 = vmatpush.bf16.msra.mxu0 %v5637
    %8848 = vmatpush.bf16.msra.mxu0 %v5629
    %8849 = vmatpush.bf16.msra.mxu0 %v5621
    %8850 = vmatmul.bf16.gmra.mxu0 %v88
    %v8851 = vpop.f32.mrf.mxu0
    %v8852 = vadd.f32 %v8839, %v8851
    %v8853 = vpop.f32.mrf.mxu0
    %8854 = vdwg.mxu0
    %8855 = vmatpush.bf16.msra.mxu0 %v5741
    %8856 = vmatpush.bf16.msra.mxu0 %v5733
    %8857 = vmatpush.bf16.msra.mxu0 %v5725
    %8858 = vmatpush.bf16.msra.mxu0 %v5717
    %8859 = vmatpush.bf16.msra.mxu0 %v5709
    %8860 = vmatpush.bf16.msra.mxu0 %v5701
    %8861 = vmatpush.bf16.msra.mxu0 %v5693
    %8862 = vmatpush.bf16.msra.mxu0 %v5685
    %8863 = vmatmul.bf16.gmra.mxu0 %v89
    %v8864 = vpop.f32.mrf.mxu0
    %v8865 = vadd.f32 %v8852, %v8864
    %v8866 = vpop.f32.mrf.mxu0
    %8867 = vdwg.mxu0
    %8868 = vmatpush.bf16.msra.mxu0 %v5805
    %8869 = vmatpush.bf16.msra.mxu0 %v5797
    %8870 = vmatpush.bf16.msra.mxu0 %v5789
    %8871 = vmatpush.bf16.msra.mxu0 %v5781
    %8872 = vmatpush.bf16.msra.mxu0 %v5773
    %8873 = vmatpush.bf16.msra.mxu0 %v5765
    %8874 = vmatpush.bf16.msra.mxu0 %v5757
    %8875 = vmatpush.bf16.msra.mxu0 %v5749
    %8876 = vmatmul.bf16.gmra.mxu0 %v90
    %v8877 = vpop.f32.mrf.mxu0
    %v8878 = vadd.f32 %v8865, %v8877
    %v8879 = vpop.f32.mrf.mxu0
    %8880 = vdwg.mxu0
    %8881 = vmatpush.bf16.msra.mxu0 %v5869
    %8882 = vmatpush.bf16.msra.mxu0 %v5861
    %8883 = vmatpush.bf16.msra.mxu0 %v5853
    %8884 = vmatpush.bf16.msra.mxu0 %v5845
    %8885 = vmatpush.bf16.msra.mxu0 %v5837
    %8886 = vmatpush.bf16.msra.mxu0 %v5829
    %8887 = vmatpush.bf16.msra.mxu0 %v5821
    %8888 = vmatpush.bf16.msra.mxu0 %v5813
    %8889 = vmatmul.bf16.gmra.mxu0 %v91
    %v8890 = vpop.f32.mrf.mxu0
    %v8891 = vadd.f32 %v8878, %v8890
    %v8892 = vpop.f32.mrf.mxu0
    %8893 = vdwg.mxu0
    %v8894 = vmax.f32 %v7253, 0.0
    %v8895 = vmax.f32 %v7487, 0.0
    %v8896 = vmax.f32 %v7721, 0.0
    %v8897 = vmax.f32 %v7955, 0.0
    %v8898 = vmax.f32 %v8189, 0.0
    %v8899 = vmax.f32 %v8423, 0.0
    %v8900 = vmax.f32 %v8657, 0.0
    %v8901 = vmax.f32 %v8891, 0.0
    %v8902 = vpack.c.bf16 %v8894, %v8894
    %v8903 = vpack.c.bf16 %v8895, %v8895
    %v8904 = vpack.c.bf16 %v8896, %v8896
    %v8905 = vpack.c.bf16 %v8897, %v8897
    %v8906 = vpack.c.bf16 %v8898, %v8898
    %v8907 = vpack.c.bf16 %v8899, %v8899
    %v8908 = vpack.c.bf16 %v8900, %v8900
    %v8909 = vpack.c.bf16 %v8901, %v8901
    %v8910 = vld [vmem:[%s3] sm:$0xf]
    %v8911 = vld [vmem:[%s3 + $0x4] sm:$0xf]
    %v8912 = vld [vmem:[%s3 + $0x8] sm:$0xf]
    %v8913 = vld [vmem:[%s3 + $0xc] sm:$0xf]
    %v8914 = vld [vmem:[%s3 + $0x10] sm:$0xf]
    %v8915 = vld [vmem:[%s3 + $0x14] sm:$0xf]
    %v8916 = vld [vmem:[%s3 + $0x18] sm:$0xf]
    %v8917 = vld [vmem:[%s3 + $0x1c] sm:$0xf]
    %v8918 = vld [vmem:[%s3 + $0x20] sm:$0xf]
    %v8919 = vld [vmem:[%s3 + $0x24] sm:$0xf]
    %v8920 = vld [vmem:[%s3 + $0x28] sm:$0xf]
    %v8921 = vld [vmem:[%s3 + $0x2c] sm:$0xf]
    %v8922 = vld [vmem:[%s3 + $0x30] sm:$0xf]
    %v8923 = vld [vmem:[%s3 + $0x34] sm:$0xf]
    %v8924 = vld [vmem:[%s3 + $0x38] sm:$0xf]
    %v8925 = vld [vmem:[%s3 + $0x3c] sm:$0xf]
    %v8926 = vld [vmem:[%s3 + $0x40] sm:$0xf]
    %v8927 = vld [vmem:[%s3 + $0x44] sm:$0xf]
    %v8928 = vld [vmem:[%s3 + $0x48] sm:$0xf]
    %v8929 = vld [vmem:[%s3 + $0x4c] sm:$0xf]
    %v8930 = vld [vmem:[%s3 + $0x50] sm:$0xf]
    %v8931 = vld [vmem:[%s3 + $0x54] sm:$0xf]
    %v8932 = vld [vmem:[%s3 + $0x58] sm:$0xf]
    %v8933 = vld [vmem:[%s3 + $0x5c] sm:$0xf]
    %v8934 = vld [vmem:[%s3 + $0x60] sm:$0xf]
    %v8935 = vld [vmem:[%s3 + $0x64] sm:$0xf]
    %v8936 = vld [vmem:[%s3 + $0x68] sm:$0xf]
    %v8937 = vld [vmem:[%s3 + $0x6c] sm:$0xf]
    %v8938 = vld [vmem:[%s3 + $0x70] sm:$0xf]
    %v8939 = vld [vmem:[%s3 + $0x74] sm:$0xf]
    %v8940 = vld [vmem:[%s3 + $0x78] sm:$0xf]
    %v8941 = vld [vmem:[%s3 + $0x7c] sm:$0xf]
    %v8942 = vld [vmem:[%s3 + $0x80] sm:$0xf]
    %v8943 = vld [vmem:[%s3 + $0x84] sm:$0xf]
    %v8944 = vld [vmem:[%s3 + $0x88] sm:$0xf]
    %v8945 = vld [vmem:[%s3 + $0x8c] sm:$0xf]
    %v8946 = vld [vmem:[%s3 + $0x90] sm:$0xf]
    %v8947 = vld [vmem:[%s3 + $0x94] sm:$0xf]
    %v8948 = vld [vmem:[%s3 + $0x98] sm:$0xf]
    %v8949 = vld [vmem:[%s3 + $0x9c] sm:$0xf]
    %v8950 = vld [vmem:[%s3 + $0xa0] sm:$0xf]
    %v8951 = vld [vmem:[%s3 + $0xa4] sm:$0xf]
    %v8952 = vld [vmem:[%s3 + $0xa8] sm:$0xf]
    %v8953 = vld [vmem:[%s3 + $0xac] sm:$0xf]
    %v8954 = vld [vmem:[%s3 + $0xb0] sm:$0xf]
    %v8955 = vld [vmem:[%s3 + $0xb4] sm:$0xf]
    %v8956 = vld [vmem:[%s3 + $0xb8] sm:$0xf]
    %v8957 = vld [vmem:[%s3 + $0xbc] sm:$0xf]
    %v8958 = vld [vmem:[%s3 + $0xc0] sm:$0xf]
    %v8959 = vld [vmem:[%s3 + $0xc4] sm:$0xf]
    %v8960 = vld [vmem:[%s3 + $0xc8] sm:$0xf]
    %v8961 = vld [vmem:[%s3 + $0xcc] sm:$0xf]
    %v8962 = vld [vmem:[%s3 + $0xd0] sm:$0xf]
    %v8963 = vld [vmem:[%s3 + $0xd4] sm:$0xf]
    %v8964 = vld [vmem:[%s3 + $0xd8] sm:$0xf]
    %v8965 = vld [vmem:[%s3 + $0xdc] sm:$0xf]
    %v8966 = vld [vmem:[%s3 + $0xe0] sm:$0xf]
    %v8967 = vld [vmem:[%s3 + $0xe4] sm:$0xf]
    %v8968 = vld [vmem:[%s3 + $0xe8] sm:$0xf]
    %v8969 = vld [vmem:[%s3 + $0xec] sm:$0xf]
    %v8970 = vld [vmem:[%s3 + $0xf0] sm:$0xf]
    %v8971 = vld [vmem:[%s3 + $0xf4] sm:$0xf]
    %v8972 = vld [vmem:[%s3 + $0xf8] sm:$0xf]
    %v8973 = vld [vmem:[%s3 + $0xfc] sm:$0xf]
    %v8974 = vld [vmem:[%s3 + $0x100] sm:$0xf]
    %v8975 = vld [vmem:[%s3 + $0x104] sm:$0xf]
    %v8976 = vld [vmem:[%s3 + $0x108] sm:$0xf]
    %v8977 = vld [vmem:[%s3 + $0x10c] sm:$0xf]
    %v8978 = vld [vmem:[%s3 + $0x110] sm:$0xf]
    %v8979 = vld [vmem:[%s3 + $0x114] sm:$0xf]
    %v8980 = vld [vmem:[%s3 + $0x118] sm:$0xf]
    %v8981 = vld [vmem:[%s3 + $0x11c] sm:$0xf]
    %v8982 = vld [vmem:[%s3 + $0x120] sm:$0xf]
    %v8983 = vld [vmem:[%s3 + $0x124] sm:$0xf]
    %v8984 = vld [vmem:[%s3 + $0x128] sm:$0xf]
    %v8985 = vld [vmem:[%s3 + $0x12c] sm:$0xf]
    %v8986 = vld [vmem:[%s3 + $0x130] sm:$0xf]
    %v8987 = vld [vmem:[%s3 + $0x134] sm:$0xf]
    %v8988 = vld [vmem:[%s3 + $0x138] sm:$0xf]
    %v8989 = vld [vmem:[%s3 + $0x13c] sm:$0xf]
    %v8990 = vld [vmem:[%s3 + $0x140] sm:$0xf]
    %v8991 = vld [vmem:[%s3 + $0x144] sm:$0xf]
    %v8992 = vld [vmem:[%s3 + $0x148] sm:$0xf]
    %v8993 = vld [vmem:[%s3 + $0x14c] sm:$0xf]
    %v8994 = vld [vmem:[%s3 + $0x150] sm:$0xf]
    %v8995 = vld [vmem:[%s3 + $0x154] sm:$0xf]
    %v8996 = vld [vmem:[%s3 + $0x158] sm:$0xf]
    %v8997 = vld [vmem:[%s3 + $0x15c] sm:$0xf]
    %v8998 = vld [vmem:[%s3 + $0x160] sm:$0xf]
    %v8999 = vld [vmem:[%s3 + $0x164] sm:$0xf]
    %v9000 = vld [vmem:[%s3 + $0x168] sm:$0xf]
    %v9001 = vld [vmem:[%s3 + $0x16c] sm:$0xf]
    %v9002 = vld [vmem:[%s3 + $0x170] sm:$0xf]
    %v9003 = vld [vmem:[%s3 + $0x174] sm:$0xf]
    %v9004 = vld [vmem:[%s3 + $0x178] sm:$0xf]
    %v9005 = vld [vmem:[%s3 + $0x17c] sm:$0xf]
    %v9006 = vld [vmem:[%s3 + $0x180] sm:$0xf]
    %v9007 = vld [vmem:[%s3 + $0x184] sm:$0xf]
    %v9008 = vld [vmem:[%s3 + $0x188] sm:$0xf]
    %v9009 = vld [vmem:[%s3 + $0x18c] sm:$0xf]
    %v9010 = vld [vmem:[%s3 + $0x190] sm:$0xf]
    %v9011 = vld [vmem:[%s3 + $0x194] sm:$0xf]
    %v9012 = vld [vmem:[%s3 + $0x198] sm:$0xf]
    %v9013 = vld [vmem:[%s3 + $0x19c] sm:$0xf]
    %v9014 = vld [vmem:[%s3 + $0x1a0] sm:$0xf]
    %v9015 = vld [vmem:[%s3 + $0x1a4] sm:$0xf]
    %v9016 = vld [vmem:[%s3 + $0x1a8] sm:$0xf]
    %v9017 = vld [vmem:[%s3 + $0x1ac] sm:$0xf]
    %v9018 = vld [vmem:[%s3 + $0x1b0] sm:$0xf]
    %v9019 = vld [vmem:[%s3 + $0x1b4] sm:$0xf]
    %v9020 = vld [vmem:[%s3 + $0x1b8] sm:$0xf]
    %v9021 = vld [vmem:[%s3 + $0x1bc] sm:$0xf]
    %v9022 = vld [vmem:[%s3 + $0x1c0] sm:$0xf]
    %v9023 = vld [vmem:[%s3 + $0x1c4] sm:$0xf]
    %v9024 = vld [vmem:[%s3 + $0x1c8] sm:$0xf]
    %v9025 = vld [vmem:[%s3 + $0x1cc] sm:$0xf]
    %v9026 = vld [vmem:[%s3 + $0x1d0] sm:$0xf]
    %v9027 = vld [vmem:[%s3 + $0x1d4] sm:$0xf]
    %v9028 = vld [vmem:[%s3 + $0x1d8] sm:$0xf]
    %v9029 = vld [vmem:[%s3 + $0x1dc] sm:$0xf]
    %v9030 = vld [vmem:[%s3 + $0x1e0] sm:$0xf]
    %v9031 = vld [vmem:[%s3 + $0x1e4] sm:$0xf]
    %v9032 = vld [vmem:[%s3 + $0x1e8] sm:$0xf]
    %v9033 = vld [vmem:[%s3 + $0x1ec] sm:$0xf]
    %v9034 = vld [vmem:[%s3 + $0x1f0] sm:$0xf]
    %v9035 = vld [vmem:[%s4] sm:$0x1]
    %v9037 = vperm.slane %v9035, 0
    %v9164 = vunpack.c.l.b16 %v8910
    %v9165 = vunpack.c.l.b16 %v8911
    %v9166 = vunpack.c.l.b16 %v8912
    %v9167 = vunpack.c.l.b16 %v8913
    %v9168 = vunpack.c.l.b16 %v8914
    %v9169 = vunpack.c.l.b16 %v8915
    %v9170 = vunpack.c.l.b16 %v8916
    %v9171 = vunpack.c.l.b16 %v8917
    %v9172 = vunpack.c.l.b16 %v8918
    %v9173 = vunpack.c.l.b16 %v8919
    %v9174 = vunpack.c.l.b16 %v8920
    %v9175 = vunpack.c.l.b16 %v8921
    %v9176 = vunpack.c.l.b16 %v8922
    %v9177 = vunpack.c.l.b16 %v8923
    %v9178 = vunpack.c.l.b16 %v8924
    %v9179 = vunpack.c.l.b16 %v8925
    %v9180 = vunpack.c.l.b16 %v8926
    %v9181 = vunpack.c.l.b16 %v8927
    %v9182 = vunpack.c.l.b16 %v8928
    %v9183 = vunpack.c.l.b16 %v8929
    %v9184 = vunpack.c.l.b16 %v8930
    %v9185 = vunpack.c.l.b16 %v8931
    %v9186 = vunpack.c.l.b16 %v8932
    %v9187 = vunpack.c.l.b16 %v8933
    %v9188 = vunpack.c.l.b16 %v8934
    %v9189 = vunpack.c.l.b16 %v8935
    %v9190 = vunpack.c.l.b16 %v8936
    %v9191 = vunpack.c.l.b16 %v8937
    %v9192 = vunpack.c.l.b16 %v8938
    %v9193 = vunpack.c.l.b16 %v8939
    %v9194 = vunpack.c.l.b16 %v8940
    %v9195 = vunpack.c.l.b16 %v8941
    %v9196 = vunpack.c.l.b16 %v8942
    %v9197 = vunpack.c.l.b16 %v8943
    %v9198 = vunpack.c.l.b16 %v8944
    %v9199 = vunpack.c.l.b16 %v8945
    %v9200 = vunpack.c.l.b16 %v8946
    %v9201 = vunpack.c.l.b16 %v8947
    %v9202 = vunpack.c.l.b16 %v8948
    %v9203 = vunpack.c.l.b16 %v8949
    %v9204 = vunpack.c.l.b16 %v8950
    %v9205 = vunpack.c.l.b16 %v8951
    %v9206 = vunpack.c.l.b16 %v8952
    %v9207 = vunpack.c.l.b16 %v8953
    %v9208 = vunpack.c.l.b16 %v8954
    %v9209 = vunpack.c.l.b16 %v8955
    %v9210 = vunpack.c.l.b16 %v8956
    %v9211 = vunpack.c.l.b16 %v8957
    %v9212 = vunpack.c.l.b16 %v8958
    %v9213 = vunpack.c.l.b16 %v8959
    %v9214 = vunpack.c.l.b16 %v8960
    %v9215 = vunpack.c.l.b16 %v8961
    %v9216 = vunpack.c.l.b16 %v8962
    %v9217 = vunpack.c.l.b16 %v8963
    %v9218 = vunpack.c.l.b16 %v8964
    %v9219 = vunpack.c.l.b16 %v8965
    %v9220 = vunpack.c.l.b16 %v8966
    %v9221 = vunpack.c.l.b16 %v8967
    %v9222 = vunpack.c.l.b16 %v8968
    %v9223 = vunpack.c.l.b16 %v8969
    %v9224 = vunpack.c.l.b16 %v8970
    %v9225 = vunpack.c.l.b16 %v8971
    %v9226 = vunpack.c.l.b16 %v8972
    %v9227 = vunpack.c.l.b16 %v8973
    %v9228 = vunpack.c.l.b16 %v8974
    %v9229 = vunpack.c.l.b16 %v8975
    %v9230 = vunpack.c.l.b16 %v8976
    %v9231 = vunpack.c.l.b16 %v8977
    %v9232 = vunpack.c.l.b16 %v8978
    %v9233 = vunpack.c.l.b16 %v8979
    %v9234 = vunpack.c.l.b16 %v8980
    %v9235 = vunpack.c.l.b16 %v8981
    %v9236 = vunpack.c.l.b16 %v8982
    %v9237 = vunpack.c.l.b16 %v8983
    %v9238 = vunpack.c.l.b16 %v8984
    %v9239 = vunpack.c.l.b16 %v8985
    %v9240 = vunpack.c.l.b16 %v8986
    %v9241 = vunpack.c.l.b16 %v8987
    %v9242 = vunpack.c.l.b16 %v8988
    %v9243 = vunpack.c.l.b16 %v8989
    %v9244 = vunpack.c.l.b16 %v8990
    %v9245 = vunpack.c.l.b16 %v8991
    %v9246 = vunpack.c.l.b16 %v8992
    %v9247 = vunpack.c.l.b16 %v8993
    %v9248 = vunpack.c.l.b16 %v8994
    %v9249 = vunpack.c.l.b16 %v8995
    %v9250 = vunpack.c.l.b16 %v8996
    %v9251 = vunpack.c.l.b16 %v8997
    %v9252 = vunpack.c.l.b16 %v8998
    %v9253 = vunpack.c.l.b16 %v8999
    %v9254 = vunpack.c.l.b16 %v9000
    %v9255 = vunpack.c.l.b16 %v9001
    %v9256 = vunpack.c.l.b16 %v9002
    %v9257 = vunpack.c.l.b16 %v9003
    %v9258 = vunpack.c.l.b16 %v9004
    %v9259 = vunpack.c.l.b16 %v9005
    %v9260 = vunpack.c.l.b16 %v9006
    %v9261 = vunpack.c.l.b16 %v9007
    %v9262 = vunpack.c.l.b16 %v9008
    %v9263 = vunpack.c.l.b16 %v9009
    %v9264 = vunpack.c.l.b16 %v9010
    %v9265 = vunpack.c.l.b16 %v9011
    %v9266 = vunpack.c.l.b16 %v9012
    %v9267 = vunpack.c.l.b16 %v9013
    %v9268 = vunpack.c.l.b16 %v9014
    %v9269 = vunpack.c.l.b16 %v9015
    %v9270 = vunpack.c.l.b16 %v9016
    %v9271 = vunpack.c.l.b16 %v9017
    %v9272 = vunpack.c.l.b16 %v9018
    %v9273 = vunpack.c.l.b16 %v9019
    %v9274 = vunpack.c.l.b16 %v9020
    %v9275 = vunpack.c.l.b16 %v9021
    %v9276 = vunpack.c.l.b16 %v9022
    %v9277 = vunpack.c.l.b16 %v9023
    %v9278 = vunpack.c.l.b16 %v9024
    %v9279 = vunpack.c.l.b16 %v9025
    %v9280 = vunpack.c.l.b16 %v9026
    %v9281 = vunpack.c.l.b16 %v9027
    %v9282 = vunpack.c.l.b16 %v9028
    %v9283 = vunpack.c.l.b16 %v9029
    %v9284 = vunpack.c.l.b16 %v9030
    %v9285 = vunpack.c.l.b16 %v9031
    %v9286 = vunpack.c.l.b16 %v9032
    %v9287 = vunpack.c.l.b16 %v9033
    %v9288 = vunpack.c.l.b16 %v9034
    %v9289 = vpack.c.b16 %v9165, %v9164
    %v9290 = vpack.c.b16 %v9167, %v9166
    %v9291 = vpack.c.b16 %v9169, %v9168
    %v9292 = vpack.c.b16 %v9171, %v9170
    %v9293 = vpack.c.b16 %v9173, %v9172
    %v9294 = vpack.c.b16 %v9175, %v9174
    %v9295 = vpack.c.b16 %v9177, %v9176
    %v9296 = vpack.c.b16 %v9179, %v9178
    %v9297 = vpack.c.b16 %v9181, %v9180
    %v9298 = vpack.c.b16 %v9183, %v9182
    %v9299 = vpack.c.b16 %v9185, %v9184
    %v9300 = vpack.c.b16 %v9187, %v9186
    %v9301 = vpack.c.b16 %v9189, %v9188
    %v9302 = vpack.c.b16 %v9191, %v9190
    %v9303 = vpack.c.b16 %v9193, %v9192
    %v9304 = vpack.c.b16 %v9195, %v9194
    %v9305 = vpack.c.b16 %v9197, %v9196
    %v9306 = vpack.c.b16 %v9199, %v9198
    %v9307 = vpack.c.b16 %v9201, %v9200
    %v9308 = vpack.c.b16 %v9203, %v9202
    %v9309 = vpack.c.b16 %v9205, %v9204
    %v9310 = vpack.c.b16 %v9207, %v9206
    %v9311 = vpack.c.b16 %v9209, %v9208
    %v9312 = vpack.c.b16 %v9211, %v9210
    %v9313 = vpack.c.b16 %v9213, %v9212
    %v9314 = vpack.c.b16 %v9215, %v9214
    %v9315 = vpack.c.b16 %v9217, %v9216
    %v9316 = vpack.c.b16 %v9219, %v9218
    %v9317 = vpack.c.b16 %v9221, %v9220
    %v9318 = vpack.c.b16 %v9223, %v9222
    %v9319 = vpack.c.b16 %v9225, %v9224
    %v9320 = vpack.c.b16 %v9227, %v9226
    %v9321 = vpack.c.b16 %v9229, %v9228
    %v9322 = vpack.c.b16 %v9231, %v9230
    %v9323 = vpack.c.b16 %v9233, %v9232
    %v9324 = vpack.c.b16 %v9235, %v9234
    %v9325 = vpack.c.b16 %v9237, %v9236
    %v9326 = vpack.c.b16 %v9239, %v9238
    %v9327 = vpack.c.b16 %v9241, %v9240
    %v9328 = vpack.c.b16 %v9243, %v9242
    %v9329 = vpack.c.b16 %v9245, %v9244
    %v9330 = vpack.c.b16 %v9247, %v9246
    %v9331 = vpack.c.b16 %v9249, %v9248
    %v9332 = vpack.c.b16 %v9251, %v9250
    %v9333 = vpack.c.b16 %v9253, %v9252
    %v9334 = vpack.c.b16 %v9255, %v9254
    %v9335 = vpack.c.b16 %v9257, %v9256
    %v9336 = vpack.c.b16 %v9259, %v9258
    %v9337 = vpack.c.b16 %v9261, %v9260
    %v9338 = vpack.c.b16 %v9263, %v9262
    %v9339 = vpack.c.b16 %v9265, %v9264
    %v9340 = vpack.c.b16 %v9267, %v9266
    %v9341 = vpack.c.b16 %v9269, %v9268
    %v9342 = vpack.c.b16 %v9271, %v9270
    %v9343 = vpack.c.b16 %v9273, %v9272
    %v9344 = vpack.c.b16 %v9275, %v9274
    %v9345 = vpack.c.b16 %v9277, %v9276
    %v9346 = vpack.c.b16 %v9279, %v9278
    %v9347 = vpack.c.b16 %v9281, %v9280
    %v9348 = vpack.c.b16 %v9283, %v9282
    %v9349 = vpack.c.b16 %v9285, %v9284
    %v9350 = vpack.c.b16 %v9287, %v9286
    %v9351 = vpack.c.b16 %v9288, %v9288
    %vm9414 = vcmask 850944
    %v9416 = vsel %vm9414, %v8909, 0
    %vm9418 = vcmask 1043456
    %v9420 = vsel %vm9418, %v9351, 0
    %9422 = vmatpush.bf16.msra.mxu0 %v9296
    %9423 = vmatpush.bf16.msra.mxu0 %v9295
    %9424 = vmatpush.bf16.msra.mxu0 %v9294
    %9425 = vmatpush.bf16.msra.mxu0 %v9293
    %9426 = vmatpush.bf16.msra.mxu0 %v9292
    %9427 = vmatpush.bf16.msra.mxu0 %v9291
    %9428 = vmatpush.bf16.msra.mxu0 %v9290
    %9429 = vmatpush.bf16.msra.mxu0 %v9289
    %9430 = vmatmul.bf16.gmra.mxu0 %v8902
    %v9431 = vpop.f32.mrf.mxu0
    %v9432 = vadd.f32 %v9037, %v9431
    %v9433 = vpop.f32.mrf.mxu0
    %9434 = vdwg.mxu0
    %9435 = vmatpush.bf16.msra.mxu0 %v9304
    %9436 = vmatpush.bf16.msra.mxu0 %v9303
    %9437 = vmatpush.bf16.msra.mxu0 %v9302
    %9438 = vmatpush.bf16.msra.mxu0 %v9301
    %9439 = vmatpush.bf16.msra.mxu0 %v9300
    %9440 = vmatpush.bf16.msra.mxu0 %v9299
    %9441 = vmatpush.bf16.msra.mxu0 %v9298
    %9442 = vmatpush.bf16.msra.mxu0 %v9297
    %9443 = vmatmul.bf16.gmra.mxu0 %v8903
    %v9444 = vpop.f32.mrf.mxu0
    %v9445 = vadd.f32 %v9432, %v9444
    %v9446 = vpop.f32.mrf.mxu0
    %9447 = vdwg.mxu0
    %9448 = vmatpush.bf16.msra.mxu0 %v9312
    %9449 = vmatpush.bf16.msra.mxu0 %v9311
    %9450 = vmatpush.bf16.msra.mxu0 %v9310
    %9451 = vmatpush.bf16.msra.mxu0 %v9309
    %9452 = vmatpush.bf16.msra.mxu0 %v9308
    %9453 = vmatpush.bf16.msra.mxu0 %v9307
    %9454 = vmatpush.bf16.msra.mxu0 %v9306
    %9455 = vmatpush.bf16.msra.mxu0 %v9305
    %9456 = vmatmul.bf16.gmra.mxu0 %v8904
    %v9457 = vpop.f32.mrf.mxu0
    %v9458 = vadd.f32 %v9445, %v9457
    %v9459 = vpop.f32.mrf.mxu0
    %9460 = vdwg.mxu0
    %9461 = vmatpush.bf16.msra.mxu0 %v9320
    %9462 = vmatpush.bf16.msra.mxu0 %v9319
    %9463 = vmatpush.bf16.msra.mxu0 %v9318
    %9464 = vmatpush.bf16.msra.mxu0 %v9317
    %9465 = vmatpush.bf16.msra.mxu0 %v9316
    %9466 = vmatpush.bf16.msra.mxu0 %v9315
    %9467 = vmatpush.bf16.msra.mxu0 %v9314
    %9468 = vmatpush.bf16.msra.mxu0 %v9313
    %9469 = vmatmul.bf16.gmra.mxu0 %v8905
    %v9470 = vpop.f32.mrf.mxu0
    %v9471 = vadd.f32 %v9458, %v9470
    %v9472 = vpop.f32.mrf.mxu0
    %9473 = vdwg.mxu0
    %9474 = vmatpush.bf16.msra.mxu0 %v9328
    %9475 = vmatpush.bf16.msra.mxu0 %v9327
    %9476 = vmatpush.bf16.msra.mxu0 %v9326
    %9477 = vmatpush.bf16.msra.mxu0 %v9325
    %9478 = vmatpush.bf16.msra.mxu0 %v9324
    %9479 = vmatpush.bf16.msra.mxu0 %v9323
    %9480 = vmatpush.bf16.msra.mxu0 %v9322
    %9481 = vmatpush.bf16.msra.mxu0 %v9321
    %9482 = vmatmul.bf16.gmra.mxu0 %v8906
    %v9483 = vpop.f32.mrf.mxu0
    %v9484 = vadd.f32 %v9471, %v9483
    %v9485 = vpop.f32.mrf.mxu0
    %9486 = vdwg.mxu0
    %9487 = vmatpush.bf16.msra.mxu0 %v9336
    %9488 = vmatpush.bf16.msra.mxu0 %v9335
    %9489 = vmatpush.bf16.msra.mxu0 %v9334
    %9490 = vmatpush.bf16.msra.mxu0 %v9333
    %9491 = vmatpush.bf16.msra.mxu0 %v9332
    %9492 = vmatpush.bf16.msra.mxu0 %v9331
    %9493 = vmatpush.bf16.msra.mxu0 %v9330
    %9494 = vmatpush.bf16.msra.mxu0 %v9329
    %9495 = vmatmul.bf16.gmra.mxu0 %v8907
    %v9496 = vpop.f32.mrf.mxu0
    %v9497 = vadd.f32 %v9484, %v9496
    %v9498 = vpop.f32.mrf.mxu0
    %9499 = vdwg.mxu0
    %9500 = vmatpush.bf16.msra.mxu0 %v9344
    %9501 = vmatpush.bf16.msra.mxu0 %v9343
    %9502 = vmatpush.bf16.msra.mxu0 %v9342
    %9503 = vmatpush.bf16.msra.mxu0 %v9341
    %9504 = vmatpush.bf16.msra.mxu0 %v9340
    %9505 = vmatpush.bf16.msra.mxu0 %v9339
    %9506 = vmatpush.bf16.msra.mxu0 %v9338
    %9507 = vmatpush.bf16.msra.mxu0 %v9337
    %9508 = vmatmul.bf16.gmra.mxu0 %v8908
    %v9509 = vpop.f32.mrf.mxu0
    %v9510 = vadd.f32 %v9497, %v9509
    %v9511 = vpop.f32.mrf.mxu0
    %9512 = vdwg.mxu0
    %9513 = vmatpush.bf16.msra.mxu0 0
    %9514 = vmatpush.bf16.msra.mxu0 %v9420
    %9515 = vmatpush.bf16.msra.mxu0 %v9350
    %9516 = vmatpush.bf16.msra.mxu0 %v9349
    %9517 = vmatpush.bf16.msra.mxu0 %v9348
    %9518 = vmatpush.bf16.msra.mxu0 %v9347
    %9519 = vmatpush.bf16.msra.mxu0 %v9346
    %9520 = vmatpush.bf16.msra.mxu0 %v9345
    %9521 = vmatmul.bf16.gmra.mxu0 %v9416
    %v9522 = vpop.f32.mrf.mxu0
    %v9523 = vadd.f32 %v9510, %v9522
    %v9524 = vpop.f32.mrf.mxu0
    %9525 = vdwg.mxu0
    %vm9526 = vcmask 74752
    %9527 = vst.msk [vmem:[#allocation2] sm:$0x3] %vm9526, %v9523
    // Predicated region
    $region22: #{model_forward.3} parent=1 // pred_check
      _
    $region23: #{model_forward.3} parent=1 // pred_check_branch
      %9529 = sbr.rel (0) target = $region25
    $region24: #{model_forward.3} parent=1 // pred_region
      %9531 = vsyncadd [#allocation3], 0
      %s9533 = sshll.u32 [#allocation2], 4
      %s9534 = int_to_ptr.vmem [resolvable:$true] %s9533
      %s9535 = sshll.u32 %s5, 4
      %s9536 = int_to_ptr.hbm [resolvable:$true] %s9535
      %9538 = dma.vmem_to_hbm [thread:$0]  %s9534, 32, %s9536, [#allocation3]
    $region25: #{model_forward.3} parent=1 // pred_fallthru
      _
    // Predicated region
    $region26: #{model_forward.3} parent=1 // pred_check
      _
    $region27: #{model_forward.3} parent=1 // pred_check_branch
      %9540 = sbr.rel (0) target = $region29
    $region28: #{model_forward.3} parent=1 // pred_region
      %9542 = dma.done [#allocation3], 32
    $region29: #{model_forward.3} parent=1 // pred_fallthru
      _
    %9543 = vsyncpa [#allocation3], 1

</llo_original>
